<compile_context>
chip_gen: v7x
topology: tpu7x:2x2x1
jax: 0.10.0
libtpu: 0.0.40
codegen_flags: <defaults>
</compile_context>

<pallas_src>
import functools

import jax
import jax.numpy as jnp
from jax import lax
from jax.experimental import pallas as pl
from jax.experimental.pallas import tpu as pltpu

NUM_CLASSES = 21
VMEM_LIMIT = 32 * 1024 * 1024   # scoped-VMEM budget that is portable to v7x (64 MiB phys)


def _largest_divisor_at_most(n, cap):
    cap = max(1, min(n, cap))
    for d in range(cap, 0, -1):
        if n % d == 0:
            return d
    return 1


# ----------------------------------------------------------------------------
# Pallas kernels
# ----------------------------------------------------------------------------
def _conv_pool_kernel(xe_ref, xo_ref, w_ref, b_ref, o_ref, *, taps):
    """Fused conv (tap matmuls) + bias + ReLU + 2x2/stride-2 max pool.

    xe_ref / xo_ref: (rows, Wp, K) operand rows for even / odd conv output columns.
        taps == 1 : row r holds the full im2col patch row of conv output row r.
        taps == KH: row r holds the KW*Cin column-unfold of input row r.
    w_ref: (taps, K, C)   b_ref: (1, C)   o_ref: (Hp_block, Wp, C)  (pooled output)
    """
    hp_blk, wp, cout = o_ref.shape
    bias = b_ref[...]                                     # (1, C), loaded once

    def body(hp, carry):
        h0 = hp * 2
        zero = jnp.zeros((wp, cout), jnp.float32)
        a00 = a01 = a10 = a11 = zero                      # 4 pool corners, f32 acc
        for i in range(taps):                             # static unroll
            wi = w_ref[i]                                 # (K, C)
            a00 = a00 + jnp.dot(xe_ref[h0 + i], wi,
                                preferred_element_type=jnp.float32)
            a01 = a01 + jnp.dot(xo_ref[h0 + i], wi,
                                preferred_element_type=jnp.float32)
            a10 = a10 + jnp.dot(xe_ref[h0 + i + 1], wi,
                                preferred_element_type=jnp.float32)
            a11 = a11 + jnp.dot(xo_ref[h0 + i + 1], wi,
                                preferred_element_type=jnp.float32)
        # pool(relu(conv + b)) == relu(max4(conv) + b)  (bias const, relu monotone)
        m = jnp.maximum(jnp.maximum(a00, a01), jnp.maximum(a10, a11))
        o_ref[hp] = jnp.maximum(m + bias, 0.0).astype(o_ref.dtype)
        return carry

    lax.fori_loop(0, hp_blk, body, 0)


def _fc_head_kernel(x_ref, w1_ref, b1_ref, w2_ref, b2_ref, w3_ref, b3_ref, o_ref):
    h = jnp.dot(x_ref[...], w1_ref[...], preferred_element_type=jnp.float32)
    h = jnp.maximum(h + b1_ref[...], 0.0)
    h = jnp.dot(h, w2_ref[...], preferred_element_type=jnp.float32)
    h = jnp.maximum(h + b2_ref[...], 0.0)
    h = jnp.dot(h, w3_ref[...], preferred_element_type=jnp.float32)
    o_ref[...] = (h + b3_ref[...]).astype(o_ref.dtype)


# ----------------------------------------------------------------------------
# Pallas wrappers
# ----------------------------------------------------------------------------
def conv_pool(x, w_taps, b, *, ksize):
    """VALID conv (stride 1) + bias + ReLU + 2x2 max-pool in one pallas_call.

    x: (B, H, W, Cin) NHWC f32.
    w_taps: (taps, K, Cout); taps==1 -> K = ksize*ksize*Cin (conv1, full-patch GEMM),
            taps==ksize    -> K = ksize*Cin      (row taps reduced inside the kernel).
    """
    B, H, W, Cin = x.shape
    KH = KW = ksize
    Ho, Wo = H - KH + 1, W - KW + 1
    assert Ho % 2 == 0 and Wo % 2 == 0, "pool-fused kernel expects even conv output"
    Hp, Wp = Ho // 2, Wo // 2
    taps, K, Cout = w_taps.shape

    # ---- glue: build even-/odd-output-column operands (layout only) ------------
    parts_e, parts_o = [], []
    if taps == 1:
        assert K == KH * KW * Cin
        # conv1 (Cin=3): parity-split full im2col.  In-kernel tap reduction would
        # contract at K=3 (~25x more MXU passes) - far costlier than this stream.
        for i in range(KH):
            for j in range(KW):
                s = x[:, i:i + Ho, j:j + Wo, :]
                parts_e.append(s[:, :, 0::2, :])
                parts_o.append(s[:, :, 1::2, :])
        rows_total = Ho
    else:
        assert taps == KH and K == KW * Cin
        # conv2/conv3: unfold only the KW column taps (3x the input, not 9x of a
        # full im2col); the KH row taps are reduced inside the kernel.
        for j in range(KW):
            s = x[:, :, j:j + Wo, :]
            parts_e.append(s[:, :, 0::2, :])
            parts_o.append(s[:, :, 1::2, :])
        rows_total = H
    xe = jnp.concatenate(parts_e, axis=-1)        # (B, rows_total, Wp, K)
    xo = jnp.concatenate(parts_o, axis=-1)

    # ---- row blocking: divides Hp exactly -> no padding, no ragged tiles --------
    if taps == 1:
        # per pooled row: 2 operands x 2 buffers x (2, Wp, K) + 2 x (Wp, Cout), f32
        bytes_per_row = 4 * (2 * 2 * 2 * Wp * K + 2 * Wp * Cout)
        rb = _largest_divisor_at_most(Hp, max(1, (16 * 1024 * 1024) // bytes_per_row))
    else:
        rb = Hp          # whole image per step (row taps overlap across row blocks)
    nrb = Hp // rb
    in_rows = rows_total // nrb

    return pl.pallas_call(
        functools.partial(_conv_pool_kernel, taps=taps),
        grid=(B, nrb),
        in_specs=[
            pl.BlockSpec((None, in_rows, Wp, K), lambda bb, r: (bb, r, 0, 0)),
            pl.BlockSpec((None, in_rows, Wp, K), lambda bb, r: (bb, r, 0, 0)),
            pl.BlockSpec((taps, K, Cout), lambda bb, r: (0, 0, 0)),
            pl.BlockSpec((1, Cout), lambda bb, r: (0, 0)),
        ],
        out_specs=pl.BlockSpec((None, rb, Wp, Cout), lambda bb, r: (bb, r, 0, 0)),
        out_shape=jax.ShapeDtypeStruct((B, Hp, Wp, Cout), jnp.float32),
        compiler_params=pltpu.CompilerParams(
            dimension_semantics=("parallel", "parallel"),
            vmem_limit_bytes=VMEM_LIMIT),
    )(xe, xo, w_taps, b)


def fc_head(x, w1, b1, w2, b2, w3, b3):
    """relu(x@w1+b1) -> relu(.@w2+b2) -> .@w3+b3, all in one pallas_call."""
    B, K = x.shape
    N3 = w3.shape[1]
    return pl.pallas_call(
        _fc_head_kernel,
        grid=(1,),
        in_specs=[
            pl.BlockSpec((B, K), lambda i: (0, 0)),
            pl.BlockSpec(w1.shape, lambda i: (0, 0)),
            pl.BlockSpec(b1.shape, lambda i: (0, 0)),
            pl.BlockSpec(w2.shape, lambda i: (0, 0)),
            pl.BlockSpec(b2.shape, lambda i: (0, 0)),
            pl.BlockSpec(w3.shape, lambda i: (0, 0)),
            pl.BlockSpec(b3.shape, lambda i: (0, 0)),
        ],
        out_specs=pl.BlockSpec((B, N3), lambda i: (0, 0)),
        out_shape=jax.ShapeDtypeStruct((B, N3), jnp.float32),
        compiler_params=pltpu.CompilerParams(
            dimension_semantics=("arbitrary",),
            vmem_limit_bytes=VMEM_LIMIT),
    )(x, w1, b1, w2, b2, w3, b3)


# ----------------------------------------------------------------------------
# Model: parameters + forward
# ----------------------------------------------------------------------------
def init_params(key):
    """PyTorch-layout parameters (U(-1/sqrt(fan_in), 1/sqrt(fan_in)))."""
    def conv_p(k, cout, cin, ksz):
        kw_, kb_ = jax.random.split(k)
        bound = 1.0 / float(cin * ksz * ksz) ** 0.5
        w = jax.random.uniform(kw_, (cout, cin, ksz, ksz), jnp.float32, -bound, bound)
        b = jax.random.uniform(kb_, (cout,), jnp.float32, -bound, bound)
        return w, b

    def fc_p(k, nout, nin):
        kw_, kb_ = jax.random.split(k)
        bound = 1.0 / float(nin) ** 0.5
        w = jax.random.uniform(kw_, (nout, nin), jnp.float32, -bound, bound)
        b = jax.random.uniform(kb_, (nout,), jnp.float32, -bound, bound)
        return w, b

    ks = jax.random.split(key, 6)
    w1, b1 = conv_p(ks[0], 64, 3, 5)
    w2, b2 = conv_p(ks[1], 32, 64, 3)
    w3, b3 = conv_p(ks[2], 16, 32, 3)
    wf1, bf1 = fc_p(ks[3], 120, 16 * 26 * 26)
    wf2, bf2 = fc_p(ks[4], 84, 120)
    wf3, bf3 = fc_p(ks[5], NUM_CLASSES, 84)
    return dict(w1=w1, b1=b1, w2=w2, b2=b2, w3=w3, b3=b3,
                wf1=wf1, bf1=bf1, wf2=wf2, bf2=bf2, wf3=wf3, bf3=bf3)


def pack_params(p):
    """One-time layout packing so the forward pass does no weight rearrangement.

    conv: (Cout, Cin, KH, KW) -> (taps, K, Cout) tap-matmul layout.
    fc:   (out, in) -> (in, out); fc1 additionally absorbs the NCHW->NHWC flatten
          permutation so the NHWC pooled features can be fed directly.
    """
    def conv_w(w, taps):
        co, ci, kh, kw = w.shape
        w = jnp.transpose(w, (2, 3, 1, 0))                  # (KH, KW, Cin, Cout)
        return w.reshape(taps, (kh * kw * ci) // taps, co)

    wf1 = p["wf1"].reshape(120, 16, 26, 26)                 # (out, C, H, W)
    wf1 = jnp.transpose(wf1, (0, 2, 3, 1)).reshape(120, 26 * 26 * 16)   # (out, HWC)
    return dict(
        w1=conv_w(p["w1"], 1), b1=p["b1"].reshape(1, -1),
        w2=conv_w(p["w2"], 3), b2=p["b2"].reshape(1, -1),
        w3=conv_w(p["w3"], 3), b3=p["b3"].reshape(1, -1),
        wf1=wf1.T, bf1=p["bf1"].reshape(1, -1),
        wf2=p["wf2"].T, bf2=p["bf2"].reshape(1, -1),
        wf3=p["wf3"].T, bf3=p["bf3"].reshape(1, -1),
    )


def simple_classifier_forward(x_nchw, fp):
    x = jnp.transpose(x_nchw, (0, 2, 3, 1)).astype(jnp.float32)   # NCHW -> NHWC
    x = conv_pool(x, fp["w1"], fp["b1"], ksize=5)                 # (B, 110, 110, 64)
    x = conv_pool(x, fp["w2"], fp["b2"], ksize=3)                 # (B, 54, 54, 32)
    x = conv_pool(x, fp["w3"], fp["b3"], ksize=3)                 # (B, 26, 26, 16)
    B = x.shape[0]
    x = x.reshape(B, 26 * 26 * 16)      # NHWC flatten; permutation folded into wf1
    return fc_head(x, fp["wf1"], fp["bf1"], fp["wf2"], fp["bf2"],
                   fp["wf3"], fp["bf3"])


def reference_forward(x_nchw, p):
    """Pure-JAX reference with PyTorch semantics (NCHW)."""
    def conv(x, w, b):
        y = lax.conv_general_dilated(
            x, w, (1, 1), "VALID",
            dimension_numbers=("NCHW", "OIHW", "NCHW"),
            precision=lax.Precision.HIGHEST)
        return jnp.maximum(y + b[None, :, None, None], 0.0)

    def pool(x):
        return lax.reduce_window(x, -jnp.inf, lax.max,
                                 (1, 1, 2, 2), (1, 1, 2, 2), "VALID")

    x = pool(conv(x_nchw, p["w1"], p["b1"]))
    x = pool(conv(x, p["w2"], p["b2"]))
    x = pool(conv(x, p["w3"], p["b3"]))
    x = x.reshape(x.shape[0], -1)
    hp = lax.Precision.HIGHEST
    x = jnp.maximum(jnp.dot(x, p["wf1"].T, precision=hp) + p["bf1"], 0.0)
    x = jnp.maximum(jnp.dot(x, p["wf2"].T, precision=hp) + p["bf2"], 0.0)
    return jnp.dot(x, p["wf3"].T, precision=hp) + p["bf3"]


if __name__ == "__main__":
    key = jax.random.PRNGKey(0)
    kx, kp = jax.random.split(key)
    params = init_params(kp)
    fparams = pack_params(params)          # one-time weight packing (not per forward)
    # fc1 expects 16*26*26 features, which pins the input to 3x224x224.
    x = jax.random.normal(kx, (2, 3, 224, 224), dtype=jnp.float32)

    fwd = jax.jit(simple_classifier_forward)
    out = jax.block_until_ready(fwd(x, fparams))
    assert out.shape == (2, NUM_CLASSES), out.shape

    ref = reference_forward(x, params)
    max_err = float(jnp.max(jnp.abs(out - ref)))
    assert jnp.allclose(out, ref, atol=2e-2, rtol=2e-2), f"max_err={max_err}"

    print("KERNEL_OK")
</pallas_src>

<mosaic_0001>
module attributes {stable_mosaic.version = 11 : i64} {
  func.func @_conv_pool_kernel(%arg0: i32, %arg1: i32, %arg2: memref<1x44x110x75xf32, #tpu.memory_space<vmem>>, %arg3: memref<1x44x110x75xf32, #tpu.memory_space<vmem>>, %arg4: memref<1x75x64xf32, #tpu.memory_space<vmem>>, %arg5: memref<1x64xf32, #tpu.memory_space<vmem>>, %arg6: memref<1x22x110x64xf32, #tpu.memory_space<vmem>>) attributes {dimension_semantics = [#tpu.dimension_semantics<parallel>, #tpu.dimension_semantics<parallel>], iteration_bounds = array<i64: 2, 5>, scalar_prefetch = 0 : i64, scratch_operands = 0 : i64, tpu.core_type = #tpu.core_type<tc>, window_params = [{transform_indices = @transform_0, window_bounds = array<i64: 1, 44, 110, 75>}, {transform_indices = @transform_1, window_bounds = array<i64: 1, 44, 110, 75>}, {pipeline_mode = #tpu.pipeline_mode<synchronous>, transform_indices = @transform_2, window_bounds = array<i64: 1, 75, 64>}, {pipeline_mode = #tpu.pipeline_mode<synchronous>, transform_indices = @transform_3, window_bounds = array<i64: 1, 64>}, {transform_indices = @transform_4, window_bounds = array<i64: 1, 22, 110, 64>}]} {
    %c0 = arith.constant 0 : index
    %c0_0 = arith.constant 0 : index
    %0 = vector.load %arg5[%c0, %c0_0] : memref<1x64xf32, #tpu.memory_space<vmem>>, vector<1x64xf32>
    %c0_i32 = arith.constant 0 : i32
    %c22_i32 = arith.constant 22 : i32
    %1 = arith.addi %c0_i32, %c22_i32 : i32
    %c1_i32 = arith.constant 1 : i32
    scf.for %arg7 = %c0_i32 to %1 step %c1_i32  : i32 {
      %c2_i32 = arith.constant 2 : i32
      %2 = arith.muli %arg7, %c2_i32 : i32
      %cst = arith.constant 0.000000e+00 : f32
      %3 = vector.broadcast %cst : f32 to vector<110x64xf32>
      %c0_2 = arith.constant 0 : index
      %c0_3 = arith.constant 0 : index
      %c0_4 = arith.constant 0 : index
      %4 = vector.load %arg4[%c0_2, %c0_3, %c0_4] : memref<1x75x64xf32, #tpu.memory_space<vmem>>, vector<1x75x64xf32>
      %5 = vector.shape_cast %4 : vector<1x75x64xf32> to vector<75x64xf32>
      %c0_i32_5 = arith.constant 0 : i32
      %6 = arith.addi %2, %c0_i32_5 : i32
      %c0_6 = arith.constant 0 : index
      %7 = arith.index_cast %6 : i32 to index
      %c0_7 = arith.constant 0 : index
      %c0_8 = arith.constant 0 : index
      %8 = vector.load %arg2[%c0_6, %7, %c0_7, %c0_8] : memref<1x44x110x75xf32, #tpu.memory_space<vmem>>, vector<1x1x110x75xf32>
      %9 = vector.shape_cast %8 : vector<1x1x110x75xf32> to vector<110x75xf32>
      %cst_9 = arith.constant dense<0.000000e+00> : vector<110x64xf32>
      %10 = tpu.matmul %9, %5, %cst_9 {dimension_numbers = #tpu.dot_dimension_numbers<[1], [0], [0], [1], [0, 0, 1, 1], [], []>} : vector<110x75xf32>, vector<75x64xf32>, vector<110x64xf32> -> vector<110x64xf32>
      %11 = arith.addf %3, %10 : vector<110x64xf32>
      %c0_i32_10 = arith.constant 0 : i32
      %12 = arith.addi %2, %c0_i32_10 : i32
      %c0_11 = arith.constant 0 : index
      %13 = arith.index_cast %12 : i32 to index
      %c0_12 = arith.constant 0 : index
      %c0_13 = arith.constant 0 : index
      %14 = vector.load %arg3[%c0_11, %13, %c0_12, %c0_13] : memref<1x44x110x75xf32, #tpu.memory_space<vmem>>, vector<1x1x110x75xf32>
      %15 = vector.shape_cast %14 : vector<1x1x110x75xf32> to vector<110x75xf32>
      %cst_14 = arith.constant dense<0.000000e+00> : vector<110x64xf32>
      %16 = tpu.matmul %15, %5, %cst_14 {dimension_numbers = #tpu.dot_dimension_numbers<[1], [0], [0], [1], [0, 0, 1, 1], [], []>} : vector<110x75xf32>, vector<75x64xf32>, vector<110x64xf32> -> vector<110x64xf32>
      %17 = arith.addf %3, %16 : vector<110x64xf32>
      %c0_i32_15 = arith.constant 0 : i32
      %18 = arith.addi %2, %c0_i32_15 : i32
      %c1_i32_16 = arith.constant 1 : i32
      %19 = arith.addi %18, %c1_i32_16 : i32
      %c0_17 = arith.constant 0 : index
      %20 = arith.index_cast %19 : i32 to index
      %c0_18 = arith.constant 0 : index
      %c0_19 = arith.constant 0 : index
      %21 = vector.load %arg2[%c0_17, %20, %c0_18, %c0_19] : memref<1x44x110x75xf32, #tpu.memory_space<vmem>>, vector<1x1x110x75xf32>
      %22 = vector.shape_cast %21 : vector<1x1x110x75xf32> to vector<110x75xf32>
      %cst_20 = arith.constant dense<0.000000e+00> : vector<110x64xf32>
      %23 = tpu.matmul %22, %5, %cst_20 {dimension_numbers = #tpu.dot_dimension_numbers<[1], [0], [0], [1], [0, 0, 1, 1], [], []>} : vector<110x75xf32>, vector<75x64xf32>, vector<110x64xf32> -> vector<110x64xf32>
      %24 = arith.addf %3, %23 : vector<110x64xf32>
      %c0_i32_21 = arith.constant 0 : i32
      %25 = arith.addi %2, %c0_i32_21 : i32
      %c1_i32_22 = arith.constant 1 : i32
      %26 = arith.addi %25, %c1_i32_22 : i32
      %c0_23 = arith.constant 0 : index
      %27 = arith.index_cast %26 : i32 to index
      %c0_24 = arith.constant 0 : index
      %c0_25 = arith.constant 0 : index
      %28 = vector.load %arg3[%c0_23, %27, %c0_24, %c0_25] : memref<1x44x110x75xf32, #tpu.memory_space<vmem>>, vector<1x1x110x75xf32>
      %29 = vector.shape_cast %28 : vector<1x1x110x75xf32> to vector<110x75xf32>
      %cst_26 = arith.constant dense<0.000000e+00> : vector<110x64xf32>
      %30 = tpu.matmul %29, %5, %cst_26 {dimension_numbers = #tpu.dot_dimension_numbers<[1], [0], [0], [1], [0, 0, 1, 1], [], []>} : vector<110x75xf32>, vector<75x64xf32>, vector<110x64xf32> -> vector<110x64xf32>
      %31 = arith.addf %3, %30 : vector<110x64xf32>
      %32 = arith.maximumf %11, %17 : vector<110x64xf32>
      %33 = arith.maximumf %24, %31 : vector<110x64xf32>
      %34 = arith.maximumf %32, %33 : vector<110x64xf32>
      %35 = vector.broadcast %0 : vector<1x64xf32> to vector<110x64xf32>
      %36 = arith.addf %34, %35 : vector<110x64xf32>
      %cst_27 = arith.constant 0.000000e+00 : f32
      %37 = vector.broadcast %cst_27 : f32 to vector<110x64xf32>
      %38 = arith.maximumf %36, %37 : vector<110x64xf32>
      %c0_28 = arith.constant 0 : index
      %39 = arith.index_cast %arg7 : i32 to index
      %c0_29 = arith.constant 0 : index
      %c0_30 = arith.constant 0 : index
      %40 = vector.load %arg6[%c0_28, %39, %c0_29, %c0_30] : memref<1x22x110x64xf32, #tpu.memory_space<vmem>>, vector<1x1x110x64xf32>
      %41 = vector.shape_cast %40 : vector<1x1x110x64xf32> to vector<110x64xf32>
      %42 = vector.shape_cast %38 : vector<110x64xf32> to vector<1x1x110x64xf32>
      tpu.vector_store %arg6[%c0_28, %39, %c0_29, %c0_30], %42 {strides = array<i32>} : memref<1x22x110x64xf32, #tpu.memory_space<vmem>>, vector<1x1x110x64xf32>,
    }
    %c22_i32_1 = arith.constant 22 : i32
    return
  }
  func.func @transform_0(%arg0: i32, %arg1: i32) -> (i32, i32, i32, i32) {
    %c0_i32 = arith.constant 0 : i32
    %c0_i32_0 = arith.constant 0 : i32
    %c0_i32_1 = arith.constant 0 : i32
    return %arg0, %arg1, %c0_i32, %c0_i32_0 : i32, i32, i32, i32
  }
  func.func @transform_1(%arg0: i32, %arg1: i32) -> (i32, i32, i32, i32) {
    %c0_i32 = arith.constant 0 : i32
    %c0_i32_0 = arith.constant 0 : i32
    %c0_i32_1 = arith.constant 0 : i32
    return %arg0, %arg1, %c0_i32, %c0_i32_0 : i32, i32, i32, i32
  }
  func.func @transform_2(%arg0: i32, %arg1: i32) -> (i32, i32, i32) {
    %c0_i32 = arith.constant 0 : i32
    %c0_i32_0 = arith.constant 0 : i32
    %c0_i32_1 = arith.constant 0 : i32
    %c0_i32_2 = arith.constant 0 : i32
    return %c0_i32, %c0_i32_0, %c0_i32_1 : i32, i32, i32
  }
  func.func @transform_3(%arg0: i32, %arg1: i32) -> (i32, i32) {
    %c0_i32 = arith.constant 0 : i32
    %c0_i32_0 = arith.constant 0 : i32
    %c0_i32_1 = arith.constant 0 : i32
    return %c0_i32, %c0_i32_0 : i32, i32
  }
  func.func @transform_4(%arg0: i32, %arg1: i32) -> (i32, i32, i32, i32) {
    %c0_i32 = arith.constant 0 : i32
    %c0_i32_0 = arith.constant 0 : i32
    %c0_i32_1 = arith.constant 0 : i32
    return %arg0, %arg1, %c0_i32, %c0_i32_0 : i32, i32, i32, i32
  }
}

module attributes {stable_mosaic.version = 11 : i64} {
  func.func @_conv_pool_kernel(%arg0: i32, %arg1: i32, %arg2: memref<1x110x54x192xf32, #tpu.memory_space<vmem>>, %arg3: memref<1x110x54x192xf32, #tpu.memory_space<vmem>>, %arg4: memref<3x192x32xf32, #tpu.memory_space<vmem>>, %arg5: memref<1x32xf32, #tpu.memory_space<vmem>>, %arg6: memref<1x54x54x32xf32, #tpu.memory_space<vmem>>) attributes {dimension_semantics = [#tpu.dimension_semantics<parallel>, #tpu.dimension_semantics<parallel>], iteration_bounds = array<i64: 2, 1>, scalar_prefetch = 0 : i64, scratch_operands = 0 : i64, tpu.core_type = #tpu.core_type<tc>, window_params = [{transform_indices = @transform_0, window_bounds = array<i64: 1, 110, 54, 192>}, {transform_indices = @transform_1, window_bounds = array<i64: 1, 110, 54, 192>}, {pipeline_mode = #tpu.pipeline_mode<synchronous>, transform_indices = @transform_2, window_bounds = array<i64: 3, 192, 32>}, {pipeline_mode = #tpu.pipeline_mode<synchronous>, transform_indices = @transform_3, window_bounds = array<i64: 1, 32>}, {transform_indices = @transform_4, window_bounds = array<i64: 1, 54, 54, 32>}]} {
    %c0 = arith.constant 0 : index
    %c0_0 = arith.constant 0 : index
    %0 = vector.load %arg5[%c0, %c0_0] : memref<1x32xf32, #tpu.memory_space<vmem>>, vector<1x32xf32>
    %c0_i32 = arith.constant 0 : i32
    %c54_i32 = arith.constant 54 : i32
    %1 = arith.addi %c0_i32, %c54_i32 : i32
    %c1_i32 = arith.constant 1 : i32
    scf.for %arg7 = %c0_i32 to %1 step %c1_i32  : i32 {
      %c2_i32 = arith.constant 2 : i32
      %2 = arith.muli %arg7, %c2_i32 : i32
      %cst = arith.constant 0.000000e+00 : f32
      %3 = vector.broadcast %cst : f32 to vector<54x32xf32>
      %c0_2 = arith.constant 0 : index
      %c0_3 = arith.constant 0 : index
      %c0_4 = arith.constant 0 : index
      %4 = vector.load %arg4[%c0_2, %c0_3, %c0_4] : memref<3x192x32xf32, #tpu.memory_space<vmem>>, vector<1x192x32xf32>
      %5 = vector.shape_cast %4 : vector<1x192x32xf32> to vector<192x32xf32>
      %c0_i32_5 = arith.constant 0 : i32
      %6 = arith.addi %2, %c0_i32_5 : i32
      %c0_6 = arith.constant 0 : index
      %7 = arith.index_cast %6 : i32 to index
      %c0_7 = arith.constant 0 : index
      %c0_8 = arith.constant 0 : index
      %8 = vector.load %arg2[%c0_6, %7, %c0_7, %c0_8] : memref<1x110x54x192xf32, #tpu.memory_space<vmem>>, vector<1x1x54x192xf32>
      %9 = vector.shape_cast %8 : vector<1x1x54x192xf32> to vector<54x192xf32>
      %cst_9 = arith.constant dense<0.000000e+00> : vector<54x32xf32>
      %10 = tpu.matmul %9, %5, %cst_9 {dimension_numbers = #tpu.dot_dimension_numbers<[1], [0], [0], [1], [0, 0, 1, 1], [], []>} : vector<54x192xf32>, vector<192x32xf32>, vector<54x32xf32> -> vector<54x32xf32>
      %11 = arith.addf %3, %10 : vector<54x32xf32>
      %c0_i32_10 = arith.constant 0 : i32
      %12 = arith.addi %2, %c0_i32_10 : i32
      %c0_11 = arith.constant 0 : index
      %13 = arith.index_cast %12 : i32 to index
      %c0_12 = arith.constant 0 : index
      %c0_13 = arith.constant 0 : index
      %14 = vector.load %arg3[%c0_11, %13, %c0_12, %c0_13] : memref<1x110x54x192xf32, #tpu.memory_space<vmem>>, vector<1x1x54x192xf32>
      %15 = vector.shape_cast %14 : vector<1x1x54x192xf32> to vector<54x192xf32>
      %cst_14 = arith.constant dense<0.000000e+00> : vector<54x32xf32>
      %16 = tpu.matmul %15, %5, %cst_14 {dimension_numbers = #tpu.dot_dimension_numbers<[1], [0], [0], [1], [0, 0, 1, 1], [], []>} : vector<54x192xf32>, vector<192x32xf32>, vector<54x32xf32> -> vector<54x32xf32>
      %17 = arith.addf %3, %16 : vector<54x32xf32>
      %c0_i32_15 = arith.constant 0 : i32
      %18 = arith.addi %2, %c0_i32_15 : i32
      %c1_i32_16 = arith.constant 1 : i32
      %19 = arith.addi %18, %c1_i32_16 : i32
      %c0_17 = arith.constant 0 : index
      %20 = arith.index_cast %19 : i32 to index
      %c0_18 = arith.constant 0 : index
      %c0_19 = arith.constant 0 : index
      %21 = vector.load %arg2[%c0_17, %20, %c0_18, %c0_19] : memref<1x110x54x192xf32, #tpu.memory_space<vmem>>, vector<1x1x54x192xf32>
      %22 = vector.shape_cast %21 : vector<1x1x54x192xf32> to vector<54x192xf32>
      %cst_20 = arith.constant dense<0.000000e+00> : vector<54x32xf32>
      %23 = tpu.matmul %22, %5, %cst_20 {dimension_numbers = #tpu.dot_dimension_numbers<[1], [0], [0], [1], [0, 0, 1, 1], [], []>} : vector<54x192xf32>, vector<192x32xf32>, vector<54x32xf32> -> vector<54x32xf32>
      %24 = arith.addf %3, %23 : vector<54x32xf32>
      %c0_i32_21 = arith.constant 0 : i32
      %25 = arith.addi %2, %c0_i32_21 : i32
      %c1_i32_22 = arith.constant 1 : i32
      %26 = arith.addi %25, %c1_i32_22 : i32
      %c0_23 = arith.constant 0 : index
      %27 = arith.index_cast %26 : i32 to index
      %c0_24 = arith.constant 0 : index
      %c0_25 = arith.constant 0 : index
      %28 = vector.load %arg3[%c0_23, %27, %c0_24, %c0_25] : memref<1x110x54x192xf32, #tpu.memory_space<vmem>>, vector<1x1x54x192xf32>
      %29 = vector.shape_cast %28 : vector<1x1x54x192xf32> to vector<54x192xf32>
      %cst_26 = arith.constant dense<0.000000e+00> : vector<54x32xf32>
      %30 = tpu.matmul %29, %5, %cst_26 {dimension_numbers = #tpu.dot_dimension_numbers<[1], [0], [0], [1], [0, 0, 1, 1], [], []>} : vector<54x192xf32>, vector<192x32xf32>, vector<54x32xf32> -> vector<54x32xf32>
      %31 = arith.addf %3, %30 : vector<54x32xf32>
      %c1 = arith.constant 1 : index
      %c0_27 = arith.constant 0 : index
      %c0_28 = arith.constant 0 : index
      %32 = vector.load %arg4[%c1, %c0_27, %c0_28] : memref<3x192x32xf32, #tpu.memory_space<vmem>>, vector<1x192x32xf32>
      %33 = vector.shape_cast %32 : vector<1x192x32xf32> to vector<192x32xf32>
      %c1_i32_29 = arith.constant 1 : i32
      %34 = arith.addi %2, %c1_i32_29 : i32
      %c0_30 = arith.constant 0 : index
      %35 = arith.index_cast %34 : i32 to index
      %c0_31 = arith.constant 0 : index
      %c0_32 = arith.constant 0 : index
      %36 = vector.load %arg2[%c0_30, %35, %c0_31, %c0_32] : memref<1x110x54x192xf32, #tpu.memory_space<vmem>>, vector<1x1x54x192xf32>
      %37 = vector.shape_cast %36 : vector<1x1x54x192xf32> to vector<54x192xf32>
      %cst_33 = arith.constant dense<0.000000e+00> : vector<54x32xf32>
      %38 = tpu.matmul %37, %33, %cst_33 {dimension_numbers = #tpu.dot_dimension_numbers<[1], [0], [0], [1], [0, 0, 1, 1], [], []>} : vector<54x192xf32>, vector<192x32xf32>, vector<54x32xf32> -> vector<54x32xf32>
      %39 = arith.addf %11, %38 : vector<54x32xf32>
      %c1_i32_34 = arith.constant 1 : i32
      %40 = arith.addi %2, %c1_i32_34 : i32
      %c0_35 = arith.constant 0 : index
      %41 = arith.index_cast %40 : i32 to index
      %c0_36 = arith.constant 0 : index
      %c0_37 = arith.constant 0 : index
      %42 = vector.load %arg3[%c0_35, %41, %c0_36, %c0_37] : memref<1x110x54x192xf32, #tpu.memory_space<vmem>>, vector<1x1x54x192xf32>
      %43 = vector.shape_cast %42 : vector<1x1x54x192xf32> to vector<54x192xf32>
      %cst_38 = arith.constant dense<0.000000e+00> : vector<54x32xf32>
      %44 = tpu.matmul %43, %33, %cst_38 {dimension_numbers = #tpu.dot_dimension_numbers<[1], [0], [0], [1], [0, 0, 1, 1], [], []>} : vector<54x192xf32>, vector<192x32xf32>, vector<54x32xf32> -> vector<54x32xf32>
      %45 = arith.addf %17, %44 : vector<54x32xf32>
      %c1_i32_39 = arith.constant 1 : i32
      %46 = arith.addi %2, %c1_i32_39 : i32
      %c1_i32_40 = arith.constant 1 : i32
      %47 = arith.addi %46, %c1_i32_40 : i32
      %c0_41 = arith.constant 0 : index
      %48 = arith.index_cast %47 : i32 to index
      %c0_42 = arith.constant 0 : index
      %c0_43 = arith.constant 0 : index
      %49 = vector.load %arg2[%c0_41, %48, %c0_42, %c0_43] : memref<1x110x54x192xf32, #tpu.memory_space<vmem>>, vector<1x1x54x192xf32>
      %50 = vector.shape_cast %49 : vector<1x1x54x192xf32> to vector<54x192xf32>
      %cst_44 = arith.constant dense<0.000000e+00> : vector<54x32xf32>
      %51 = tpu.matmul %50, %33, %cst_44 {dimension_numbers = #tpu.dot_dimension_numbers<[1], [0], [0], [1], [0, 0, 1, 1], [], []>} : vector<54x192xf32>, vector<192x32xf32>, vector<54x32xf32> -> vector<54x32xf32>
      %52 = arith.addf %24, %51 : vector<54x32xf32>
      %c1_i32_45 = arith.constant 1 : i32
      %53 = arith.addi %2, %c1_i32_45 : i32
      %c1_i32_46 = arith.constant 1 : i32
      %54 = arith.addi %53, %c1_i32_46 : i32
      %c0_47 = arith.constant 0 : index
      %55 = arith.index_cast %54 : i32 to index
      %c0_48 = arith.constant 0 : index
      %c0_49 = arith.constant 0 : index
      %56 = vector.load %arg3[%c0_47, %55, %c0_48, %c0_49] : memref<1x110x54x192xf32, #tpu.memory_space<vmem>>, vector<1x1x54x192xf32>
      %57 = vector.shape_cast %56 : vector<1x1x54x192xf32> to vector<54x192xf32>
      %cst_50 = arith.constant dense<0.000000e+00> : vector<54x32xf32>
      %58 = tpu.matmul %57, %33, %cst_50 {dimension_numbers = #tpu.dot_dimension_numbers<[1], [0], [0], [1], [0, 0, 1, 1], [], []>} : vector<54x192xf32>, vector<192x32xf32>, vector<54x32xf32> -> vector<54x32xf32>
      %59 = arith.addf %31, %58 : vector<54x32xf32>
      %c2 = arith.constant 2 : index
      %c0_51 = arith.constant 0 : index
      %c0_52 = arith.constant 0 : index
      %60 = vector.load %arg4[%c2, %c0_51, %c0_52] : memref<3x192x32xf32, #tpu.memory_space<vmem>>, vector<1x192x32xf32>
      %61 = vector.shape_cast %60 : vector<1x192x32xf32> to vector<192x32xf32>
      %c2_i32_53 = arith.constant 2 : i32
      %62 = arith.addi %2, %c2_i32_53 : i32
      %c0_54 = arith.constant 0 : index
      %63 = arith.index_cast %62 : i32 to index
      %c0_55 = arith.constant 0 : index
      %c0_56 = arith.constant 0 : index
      %64 = vector.load %arg2[%c0_54, %63, %c0_55, %c0_56] : memref<1x110x54x192xf32, #tpu.memory_space<vmem>>, vector<1x1x54x192xf32>
      %65 = vector.shape_cast %64 : vector<1x1x54x192xf32> to vector<54x192xf32>
      %cst_57 = arith.constant dense<0.000000e+00> : vector<54x32xf32>
      %66 = tpu.matmul %65, %61, %cst_57 {dimension_numbers = #tpu.dot_dimension_numbers<[1], [0], [0], [1], [0, 0, 1, 1], [], []>} : vector<54x192xf32>, vector<192x32xf32>, vector<54x32xf32> -> vector<54x32xf32>
      %67 = arith.addf %39, %66 : vector<54x32xf32>
      %c2_i32_58 = arith.constant 2 : i32
      %68 = arith.addi %2, %c2_i32_58 : i32
      %c0_59 = arith.constant 0 : index
      %69 = arith.index_cast %68 : i32 to index
      %c0_60 = arith.constant 0 : index
      %c0_61 = arith.constant 0 : index
      %70 = vector.load %arg3[%c0_59, %69, %c0_60, %c0_61] : memref<1x110x54x192xf32, #tpu.memory_space<vmem>>, vector<1x1x54x192xf32>
      %71 = vector.shape_cast %70 : vector<1x1x54x192xf32> to vector<54x192xf32>
      %cst_62 = arith.constant dense<0.000000e+00> : vector<54x32xf32>
      %72 = tpu.matmul %71, %61, %cst_62 {dimension_numbers = #tpu.dot_dimension_numbers<[1], [0], [0], [1], [0, 0, 1, 1], [], []>} : vector<54x192xf32>, vector<192x32xf32>, vector<54x32xf32> -> vector<54x32xf32>
      %73 = arith.addf %45, %72 : vector<54x32xf32>
      %c2_i32_63 = arith.constant 2 : i32
      %74 = arith.addi %2, %c2_i32_63 : i32
      %c1_i32_64 = arith.constant 1 : i32
      %75 = arith.addi %74, %c1_i32_64 : i32
      %c0_65 = arith.constant 0 : index
      %76 = arith.index_cast %75 : i32 to index
      %c0_66 = arith.constant 0 : index
      %c0_67 = arith.constant 0 : index
      %77 = vector.load %arg2[%c0_65, %76, %c0_66, %c0_67] : memref<1x110x54x192xf32, #tpu.memory_space<vmem>>, vector<1x1x54x192xf32>
      %78 = vector.shape_cast %77 : vector<1x1x54x192xf32> to vector<54x192xf32>
      %cst_68 = arith.constant dense<0.000000e+00> : vector<54x32xf32>
      %79 = tpu.matmul %78, %61, %cst_68 {dimension_numbers = #tpu.dot_dimension_numbers<[1], [0], [0], [1], [0, 0, 1, 1], [], []>} : vector<54x192xf32>, vector<192x32xf32>, vector<54x32xf32> -> vector<54x32xf32>
      %80 = arith.addf %52, %79 : vector<54x32xf32>
      %c2_i32_69 = arith.constant 2 : i32
      %81 = arith.addi %2, %c2_i32_69 : i32
      %c1_i32_70 = arith.constant 1 : i32
      %82 = arith.addi %81, %c1_i32_70 : i32
      %c0_71 = arith.constant 0 : index
      %83 = arith.index_cast %82 : i32 to index
      %c0_72 = arith.constant 0 : index
      %c0_73 = arith.constant 0 : index
      %84 = vector.load %arg3[%c0_71, %83, %c0_72, %c0_73] : memref<1x110x54x192xf32, #tpu.memory_space<vmem>>, vector<1x1x54x192xf32>
      %85 = vector.shape_cast %84 : vector<1x1x54x192xf32> to vector<54x192xf32>
      %cst_74 = arith.constant dense<0.000000e+00> : vector<54x32xf32>
      %86 = tpu.matmul %85, %61, %cst_74 {dimension_numbers = #tpu.dot_dimension_numbers<[1], [0], [0], [1], [0, 0, 1, 1], [], []>} : vector<54x192xf32>, vector<192x32xf32>, vector<54x32xf32> -> vector<54x32xf32>
      %87 = arith.addf %59, %86 : vector<54x32xf32>
      %88 = arith.maximumf %67, %73 : vector<54x32xf32>
      %89 = arith.maximumf %80, %87 : vector<54x32xf32>
      %90 = arith.maximumf %88, %89 : vector<54x32xf32>
      %91 = vector.broadcast %0 : vector<1x32xf32> to vector<54x32xf32>
      %92 = arith.addf %90, %91 : vector<54x32xf32>
      %cst_75 = arith.constant 0.000000e+00 : f32
      %93 = vector.broadcast %cst_75 : f32 to vector<54x32xf32>
      %94 = arith.maximumf %92, %93 : vector<54x32xf32>
      %c0_76 = arith.constant 0 : index
      %95 = arith.index_cast %arg7 : i32 to index
      %c0_77 = arith.constant 0 : index
      %c0_78 = arith.constant 0 : index
      %96 = vector.load %arg6[%c0_76, %95, %c0_77, %c0_78] : memref<1x54x54x32xf32, #tpu.memory_space<vmem>>, vector<1x1x54x32xf32>
      %97 = vector.shape_cast %96 : vector<1x1x54x32xf32> to vector<54x32xf32>
      %98 = vector.shape_cast %94 : vector<54x32xf32> to vector<1x1x54x32xf32>
      tpu.vector_store %arg6[%c0_76, %95, %c0_77, %c0_78], %98 {strides = array<i32>} : memref<1x54x54x32xf32, #tpu.memory_space<vmem>>, vector<1x1x54x32xf32>,
    }
    %c54_i32_1 = arith.constant 54 : i32
    return
  }
  func.func @transform_0(%arg0: i32, %arg1: i32) -> (i32, i32, i32, i32) {
    %c0_i32 = arith.constant 0 : i32
    %c0_i32_0 = arith.constant 0 : i32
    %c0_i32_1 = arith.constant 0 : i32
    return %arg0, %arg1, %c0_i32, %c0_i32_0 : i32, i32, i32, i32
  }
  func.func @transform_1(%arg0: i32, %arg1: i32) -> (i32, i32, i32, i32) {
    %c0_i32 = arith.constant 0 : i32
    %c0_i32_0 = arith.constant 0 : i32
    %c0_i32_1 = arith.constant 0 : i32
    return %arg0, %arg1, %c0_i32, %c0_i32_0 : i32, i32, i32, i32
  }
  func.func @transform_2(%arg0: i32, %arg1: i32) -> (i32, i32, i32) {
    %c0_i32 = arith.constant 0 : i32
    %c0_i32_0 = arith.constant 0 : i32
    %c0_i32_1 = arith.constant 0 : i32
    %c0_i32_2 = arith.constant 0 : i32
    return %c0_i32, %c0_i32_0, %c0_i32_1 : i32, i32, i32
  }
  func.func @transform_3(%arg0: i32, %arg1: i32) -> (i32, i32) {
    %c0_i32 = arith.constant 0 : i32
    %c0_i32_0 = arith.constant 0 : i32
    %c0_i32_1 = arith.constant 0 : i32
    return %c0_i32, %c0_i32_0 : i32, i32
  }
  func.func @transform_4(%arg0: i32, %arg1: i32) -> (i32, i32, i32, i32) {
    %c0_i32 = arith.constant 0 : i32
    %c0_i32_0 = arith.constant 0 : i32
    %c0_i32_1 = arith.constant 0 : i32
    return %arg0, %arg1, %c0_i32, %c0_i32_0 : i32, i32, i32, i32
  }
}

module attributes {stable_mosaic.version = 11 : i64} {
  func.func @_conv_pool_kernel(%arg0: i32, %arg1: i32, %arg2: memref<1x54x26x96xf32, #tpu.memory_space<vmem>>, %arg3: memref<1x54x26x96xf32, #tpu.memory_space<vmem>>, %arg4: memref<3x96x16xf32, #tpu.memory_space<vmem>>, %arg5: memref<1x16xf32, #tpu.memory_space<vmem>>, %arg6: memref<1x26x26x16xf32, #tpu.memory_space<vmem>>) attributes {dimension_semantics = [#tpu.dimension_semantics<parallel>, #tpu.dimension_semantics<parallel>], iteration_bounds = array<i64: 2, 1>, scalar_prefetch = 0 : i64, scratch_operands = 0 : i64, tpu.core_type = #tpu.core_type<tc>, window_params = [{transform_indices = @transform_0, window_bounds = array<i64: 1, 54, 26, 96>}, {transform_indices = @transform_1, window_bounds = array<i64: 1, 54, 26, 96>}, {pipeline_mode = #tpu.pipeline_mode<synchronous>, transform_indices = @transform_2, window_bounds = array<i64: 3, 96, 16>}, {pipeline_mode = #tpu.pipeline_mode<synchronous>, transform_indices = @transform_3, window_bounds = array<i64: 1, 16>}, {transform_indices = @transform_4, window_bounds = array<i64: 1, 26, 26, 16>}]} {
    %c0 = arith.constant 0 : index
    %c0_0 = arith.constant 0 : index
    %0 = vector.load %arg5[%c0, %c0_0] : memref<1x16xf32, #tpu.memory_space<vmem>>, vector<1x16xf32>
    %c0_i32 = arith.constant 0 : i32
    %c26_i32 = arith.constant 26 : i32
    %1 = arith.addi %c0_i32, %c26_i32 : i32
    %c1_i32 = arith.constant 1 : i32
    scf.for %arg7 = %c0_i32 to %1 step %c1_i32  : i32 {
      %c2_i32 = arith.constant 2 : i32
      %2 = arith.muli %arg7, %c2_i32 : i32
      %cst = arith.constant 0.000000e+00 : f32
      %3 = vector.broadcast %cst : f32 to vector<26x16xf32>
      %c0_2 = arith.constant 0 : index
      %c0_3 = arith.constant 0 : index
      %c0_4 = arith.constant 0 : index
      %4 = vector.load %arg4[%c0_2, %c0_3, %c0_4] : memref<3x96x16xf32, #tpu.memory_space<vmem>>, vector<1x96x16xf32>
      %5 = vector.shape_cast %4 : vector<1x96x16xf32> to vector<96x16xf32>
      %c0_i32_5 = arith.constant 0 : i32
      %6 = arith.addi %2, %c0_i32_5 : i32
      %c0_6 = arith.constant 0 : index
      %7 = arith.index_cast %6 : i32 to index
      %c0_7 = arith.constant 0 : index
      %c0_8 = arith.constant 0 : index
      %8 = vector.load %arg2[%c0_6, %7, %c0_7, %c0_8] : memref<1x54x26x96xf32, #tpu.memory_space<vmem>>, vector<1x1x26x96xf32>
      %9 = vector.shape_cast %8 : vector<1x1x26x96xf32> to vector<26x96xf32>
      %cst_9 = arith.constant dense<0.000000e+00> : vector<26x16xf32>
      %10 = tpu.matmul %9, %5, %cst_9 {dimension_numbers = #tpu.dot_dimension_numbers<[1], [0], [0], [1], [0, 0, 1, 1], [], []>} : vector<26x96xf32>, vector<96x16xf32>, vector<26x16xf32> -> vector<26x16xf32>
      %11 = arith.addf %3, %10 : vector<26x16xf32>
      %c0_i32_10 = arith.constant 0 : i32
      %12 = arith.addi %2, %c0_i32_10 : i32
      %c0_11 = arith.constant 0 : index
      %13 = arith.index_cast %12 : i32 to index
      %c0_12 = arith.constant 0 : index
      %c0_13 = arith.constant 0 : index
      %14 = vector.load %arg3[%c0_11, %13, %c0_12, %c0_13] : memref<1x54x26x96xf32, #tpu.memory_space<vmem>>, vector<1x1x26x96xf32>
      %15 = vector.shape_cast %14 : vector<1x1x26x96xf32> to vector<26x96xf32>
      %cst_14 = arith.constant dense<0.000000e+00> : vector<26x16xf32>
      %16 = tpu.matmul %15, %5, %cst_14 {dimension_numbers = #tpu.dot_dimension_numbers<[1], [0], [0], [1], [0, 0, 1, 1], [], []>} : vector<26x96xf32>, vector<96x16xf32>, vector<26x16xf32> -> vector<26x16xf32>
      %17 = arith.addf %3, %16 : vector<26x16xf32>
      %c0_i32_15 = arith.constant 0 : i32
      %18 = arith.addi %2, %c0_i32_15 : i32
      %c1_i32_16 = arith.constant 1 : i32
      %19 = arith.addi %18, %c1_i32_16 : i32
      %c0_17 = arith.constant 0 : index
      %20 = arith.index_cast %19 : i32 to index
      %c0_18 = arith.constant 0 : index
      %c0_19 = arith.constant 0 : index
      %21 = vector.load %arg2[%c0_17, %20, %c0_18, %c0_19] : memref<1x54x26x96xf32, #tpu.memory_space<vmem>>, vector<1x1x26x96xf32>
      %22 = vector.shape_cast %21 : vector<1x1x26x96xf32> to vector<26x96xf32>
      %cst_20 = arith.constant dense<0.000000e+00> : vector<26x16xf32>
      %23 = tpu.matmul %22, %5, %cst_20 {dimension_numbers = #tpu.dot_dimension_numbers<[1], [0], [0], [1], [0, 0, 1, 1], [], []>} : vector<26x96xf32>, vector<96x16xf32>, vector<26x16xf32> -> vector<26x16xf32>
      %24 = arith.addf %3, %23 : vector<26x16xf32>
      %c0_i32_21 = arith.constant 0 : i32
      %25 = arith.addi %2, %c0_i32_21 : i32
      %c1_i32_22 = arith.constant 1 : i32
      %26 = arith.addi %25, %c1_i32_22 : i32
      %c0_23 = arith.constant 0 : index
      %27 = arith.index_cast %26 : i32 to index
      %c0_24 = arith.constant 0 : index
      %c0_25 = arith.constant 0 : index
      %28 = vector.load %arg3[%c0_23, %27, %c0_24, %c0_25] : memref<1x54x26x96xf32, #tpu.memory_space<vmem>>, vector<1x1x26x96xf32>
      %29 = vector.shape_cast %28 : vector<1x1x26x96xf32> to vector<26x96xf32>
      %cst_26 = arith.constant dense<0.000000e+00> : vector<26x16xf32>
      %30 = tpu.matmul %29, %5, %cst_26 {dimension_numbers = #tpu.dot_dimension_numbers<[1], [0], [0], [1], [0, 0, 1, 1], [], []>} : vector<26x96xf32>, vector<96x16xf32>, vector<26x16xf32> -> vector<26x16xf32>
      %31 = arith.addf %3, %30 : vector<26x16xf32>
      %c1 = arith.constant 1 : index
      %c0_27 = arith.constant 0 : index
      %c0_28 = arith.constant 0 : index
      %32 = vector.load %arg4[%c1, %c0_27, %c0_28] : memref<3x96x16xf32, #tpu.memory_space<vmem>>, vector<1x96x16xf32>
      %33 = vector.shape_cast %32 : vector<1x96x16xf32> to vector<96x16xf32>
      %c1_i32_29 = arith.constant 1 : i32
      %34 = arith.addi %2, %c1_i32_29 : i32
      %c0_30 = arith.constant 0 : index
      %35 = arith.index_cast %34 : i32 to index
      %c0_31 = arith.constant 0 : index
      %c0_32 = arith.constant 0 : index
      %36 = vector.load %arg2[%c0_30, %35, %c0_31, %c0_32] : memref<1x54x26x96xf32, #tpu.memory_space<vmem>>, vector<1x1x26x96xf32>
      %37 = vector.shape_cast %36 : vector<1x1x26x96xf32> to vector<26x96xf32>
      %cst_33 = arith.constant dense<0.000000e+00> : vector<26x16xf32>
      %38 = tpu.matmul %37, %33, %cst_33 {dimension_numbers = #tpu.dot_dimension_numbers<[1], [0], [0], [1], [0, 0, 1, 1], [], []>} : vector<26x96xf32>, vector<96x16xf32>, vector<26x16xf32> -> vector<26x16xf32>
      %39 = arith.addf %11, %38 : vector<26x16xf32>
      %c1_i32_34 = arith.constant 1 : i32
      %40 = arith.addi %2, %c1_i32_34 : i32
      %c0_35 = arith.constant 0 : index
      %41 = arith.index_cast %40 : i32 to index
      %c0_36 = arith.constant 0 : index
      %c0_37 = arith.constant 0 : index
      %42 = vector.load %arg3[%c0_35, %41, %c0_36, %c0_37] : memref<1x54x26x96xf32, #tpu.memory_space<vmem>>, vector<1x1x26x96xf32>
      %43 = vector.shape_cast %42 : vector<1x1x26x96xf32> to vector<26x96xf32>
      %cst_38 = arith.constant dense<0.000000e+00> : vector<26x16xf32>
      %44 = tpu.matmul %43, %33, %cst_38 {dimension_numbers = #tpu.dot_dimension_numbers<[1], [0], [0], [1], [0, 0, 1, 1], [], []>} : vector<26x96xf32>, vector<96x16xf32>, vector<26x16xf32> -> vector<26x16xf32>
      %45 = arith.addf %17, %44 : vector<26x16xf32>
      %c1_i32_39 = arith.constant 1 : i32
      %46 = arith.addi %2, %c1_i32_39 : i32
      %c1_i32_40 = arith.constant 1 : i32
      %47 = arith.addi %46, %c1_i32_40 : i32
      %c0_41 = arith.constant 0 : index
      %48 = arith.index_cast %47 : i32 to index
      %c0_42 = arith.constant 0 : index
      %c0_43 = arith.constant 0 : index
      %49 = vector.load %arg2[%c0_41, %48, %c0_42, %c0_43] : memref<1x54x26x96xf32, #tpu.memory_space<vmem>>, vector<1x1x26x96xf32>
      %50 = vector.shape_cast %49 : vector<1x1x26x96xf32> to vector<26x96xf32>
      %cst_44 = arith.constant dense<0.000000e+00> : vector<26x16xf32>
      %51 = tpu.matmul %50, %33, %cst_44 {dimension_numbers = #tpu.dot_dimension_numbers<[1], [0], [0], [1], [0, 0, 1, 1], [], []>} : vector<26x96xf32>, vector<96x16xf32>, vector<26x16xf32> -> vector<26x16xf32>
      %52 = arith.addf %24, %51 : vector<26x16xf32>
      %c1_i32_45 = arith.constant 1 : i32
      %53 = arith.addi %2, %c1_i32_45 : i32
      %c1_i32_46 = arith.constant 1 : i32
      %54 = arith.addi %53, %c1_i32_46 : i32
      %c0_47 = arith.constant 0 : index
      %55 = arith.index_cast %54 : i32 to index
      %c0_48 = arith.constant 0 : index
      %c0_49 = arith.constant 0 : index
      %56 = vector.load %arg3[%c0_47, %55, %c0_48, %c0_49] : memref<1x54x26x96xf32, #tpu.memory_space<vmem>>, vector<1x1x26x96xf32>
      %57 = vector.shape_cast %56 : vector<1x1x26x96xf32> to vector<26x96xf32>
      %cst_50 = arith.constant dense<0.000000e+00> : vector<26x16xf32>
      %58 = tpu.matmul %57, %33, %cst_50 {dimension_numbers = #tpu.dot_dimension_numbers<[1], [0], [0], [1], [0, 0, 1, 1], [], []>} : vector<26x96xf32>, vector<96x16xf32>, vector<26x16xf32> -> vector<26x16xf32>
      %59 = arith.addf %31, %58 : vector<26x16xf32>
      %c2 = arith.constant 2 : index
      %c0_51 = arith.constant 0 : index
      %c0_52 = arith.constant 0 : index
      %60 = vector.load %arg4[%c2, %c0_51, %c0_52] : memref<3x96x16xf32, #tpu.memory_space<vmem>>, vector<1x96x16xf32>
      %61 = vector.shape_cast %60 : vector<1x96x16xf32> to vector<96x16xf32>
      %c2_i32_53 = arith.constant 2 : i32
      %62 = arith.addi %2, %c2_i32_53 : i32
      %c0_54 = arith.constant 0 : index
      %63 = arith.index_cast %62 : i32 to index
      %c0_55 = arith.constant 0 : index
      %c0_56 = arith.constant 0 : index
      %64 = vector.load %arg2[%c0_54, %63, %c0_55, %c0_56] : memref<1x54x26x96xf32, #tpu.memory_space<vmem>>, vector<1x1x26x96xf32>
      %65 = vector.shape_cast %64 : vector<1x1x26x96xf32> to vector<26x96xf32>
      %cst_57 = arith.constant dense<0.000000e+00> : vector<26x16xf32>
      %66 = tpu.matmul %65, %61, %cst_57 {dimension_numbers = #tpu.dot_dimension_numbers<[1], [0], [0], [1], [0, 0, 1, 1], [], []>} : vector<26x96xf32>, vector<96x16xf32>, vector<26x16xf32> -> vector<26x16xf32>
      %67 = arith.addf %39, %66 : vector<26x16xf32>
      %c2_i32_58 = arith.constant 2 : i32
      %68 = arith.addi %2, %c2_i32_58 : i32
      %c0_59 = arith.constant 0 : index
      %69 = arith.index_cast %68 : i32 to index
      %c0_60 = arith.constant 0 : index
      %c0_61 = arith.constant 0 : index
      %70 = vector.load %arg3[%c0_59, %69, %c0_60, %c0_61] : memref<1x54x26x96xf32, #tpu.memory_space<vmem>>, vector<1x1x26x96xf32>
      %71 = vector.shape_cast %70 : vector<1x1x26x96xf32> to vector<26x96xf32>
      %cst_62 = arith.constant dense<0.000000e+00> : vector<26x16xf32>
      %72 = tpu.matmul %71, %61, %cst_62 {dimension_numbers = #tpu.dot_dimension_numbers<[1], [0], [0], [1], [0, 0, 1, 1], [], []>} : vector<26x96xf32>, vector<96x16xf32>, vector<26x16xf32> -> vector<26x16xf32>
      %73 = arith.addf %45, %72 : vector<26x16xf32>
      %c2_i32_63 = arith.constant 2 : i32
      %74 = arith.addi %2, %c2_i32_63 : i32
      %c1_i32_64 = arith.constant 1 : i32
      %75 = arith.addi %74, %c1_i32_64 : i32
      %c0_65 = arith.constant 0 : index
      %76 = arith.index_cast %75 : i32 to index
      %c0_66 = arith.constant 0 : index
      %c0_67 = arith.constant 0 : index
      %77 = vector.load %arg2[%c0_65, %76, %c0_66, %c0_67] : memref<1x54x26x96xf32, #tpu.memory_space<vmem>>, vector<1x1x26x96xf32>
      %78 = vector.shape_cast %77 : vector<1x1x26x96xf32> to vector<26x96xf32>
      %cst_68 = arith.constant dense<0.000000e+00> : vector<26x16xf32>
      %79 = tpu.matmul %78, %61, %cst_68 {dimension_numbers = #tpu.dot_dimension_numbers<[1], [0], [0], [1], [0, 0, 1, 1], [], []>} : vector<26x96xf32>, vector<96x16xf32>, vector<26x16xf32> -> vector<26x16xf32>
      %80 = arith.addf %52, %79 : vector<26x16xf32>
      %c2_i32_69 = arith.constant 2 : i32
      %81 = arith.addi %2, %c2_i32_69 : i32
      %c1_i32_70 = arith.constant 1 : i32
      %82 = arith.addi %81, %c1_i32_70 : i32
      %c0_71 = arith.constant 0 : index
      %83 = arith.index_cast %82 : i32 to index
      %c0_72 = arith.constant 0 : index
      %c0_73 = arith.constant 0 : index
      %84 = vector.load %arg3[%c0_71, %83, %c0_72, %c0_73] : memref<1x54x26x96xf32, #tpu.memory_space<vmem>>, vector<1x1x26x96xf32>
      %85 = vector.shape_cast %84 : vector<1x1x26x96xf32> to vector<26x96xf32>
      %cst_74 = arith.constant dense<0.000000e+00> : vector<26x16xf32>
      %86 = tpu.matmul %85, %61, %cst_74 {dimension_numbers = #tpu.dot_dimension_numbers<[1], [0], [0], [1], [0, 0, 1, 1], [], []>} : vector<26x96xf32>, vector<96x16xf32>, vector<26x16xf32> -> vector<26x16xf32>
      %87 = arith.addf %59, %86 : vector<26x16xf32>
      %88 = arith.maximumf %67, %73 : vector<26x16xf32>
      %89 = arith.maximumf %80, %87 : vector<26x16xf32>
      %90 = arith.maximumf %88, %89 : vector<26x16xf32>
      %91 = vector.broadcast %0 : vector<1x16xf32> to vector<26x16xf32>
      %92 = arith.addf %90, %91 : vector<26x16xf32>
      %cst_75 = arith.constant 0.000000e+00 : f32
      %93 = vector.broadcast %cst_75 : f32 to vector<26x16xf32>
      %94 = arith.maximumf %92, %93 : vector<26x16xf32>
      %c0_76 = arith.constant 0 : index
      %95 = arith.index_cast %arg7 : i32 to index
      %c0_77 = arith.constant 0 : index
      %c0_78 = arith.constant 0 : index
      %96 = vector.load %arg6[%c0_76, %95, %c0_77, %c0_78] : memref<1x26x26x16xf32, #tpu.memory_space<vmem>>, vector<1x1x26x16xf32>
      %97 = vector.shape_cast %96 : vector<1x1x26x16xf32> to vector<26x16xf32>
      %98 = vector.shape_cast %94 : vector<26x16xf32> to vector<1x1x26x16xf32>
      tpu.vector_store %arg6[%c0_76, %95, %c0_77, %c0_78], %98 {strides = array<i32>} : memref<1x26x26x16xf32, #tpu.memory_space<vmem>>, vector<1x1x26x16xf32>,
    }
    %c26_i32_1 = arith.constant 26 : i32
    return
  }
  func.func @transform_0(%arg0: i32, %arg1: i32) -> (i32, i32, i32, i32) {
    %c0_i32 = arith.constant 0 : i32
    %c0_i32_0 = arith.constant 0 : i32
    %c0_i32_1 = arith.constant 0 : i32
    return %arg0, %arg1, %c0_i32, %c0_i32_0 : i32, i32, i32, i32
  }
  func.func @transform_1(%arg0: i32, %arg1: i32) -> (i32, i32, i32, i32) {
    %c0_i32 = arith.constant 0 : i32
    %c0_i32_0 = arith.constant 0 : i32
    %c0_i32_1 = arith.constant 0 : i32
    return %arg0, %arg1, %c0_i32, %c0_i32_0 : i32, i32, i32, i32
  }
  func.func @transform_2(%arg0: i32, %arg1: i32) -> (i32, i32, i32) {
    %c0_i32 = arith.constant 0 : i32
    %c0_i32_0 = arith.constant 0 : i32
    %c0_i32_1 = arith.constant 0 : i32
    %c0_i32_2 = arith.constant 0 : i32
    return %c0_i32, %c0_i32_0, %c0_i32_1 : i32, i32, i32
  }
  func.func @transform_3(%arg0: i32, %arg1: i32) -> (i32, i32) {
    %c0_i32 = arith.constant 0 : i32
    %c0_i32_0 = arith.constant 0 : i32
    %c0_i32_1 = arith.constant 0 : i32
    return %c0_i32, %c0_i32_0 : i32, i32
  }
  func.func @transform_4(%arg0: i32, %arg1: i32) -> (i32, i32, i32, i32) {
    %c0_i32 = arith.constant 0 : i32
    %c0_i32_0 = arith.constant 0 : i32
    %c0_i32_1 = arith.constant 0 : i32
    return %arg0, %arg1, %c0_i32, %c0_i32_0 : i32, i32, i32, i32
  }
}

module attributes {stable_mosaic.version = 11 : i64} {
  func.func @_fc_head_kernel(%arg0: i32, %arg1: memref<2x10816xf32, #tpu.memory_space<vmem>>, %arg2: memref<10816x120xf32, #tpu.memory_space<vmem>>, %arg3: memref<1x120xf32, #tpu.memory_space<vmem>>, %arg4: memref<120x84xf32, #tpu.memory_space<vmem>>, %arg5: memref<1x84xf32, #tpu.memory_space<vmem>>, %arg6: memref<84x21xf32, #tpu.memory_space<vmem>>, %arg7: memref<1x21xf32, #tpu.memory_space<vmem>>, %arg8: memref<2x21xf32, #tpu.memory_space<vmem>>) attributes {dimension_semantics = [#tpu.dimension_semantics<arbitrary>], iteration_bounds = array<i64: 1>, scalar_prefetch = 0 : i64, scratch_operands = 0 : i64, tpu.core_type = #tpu.core_type<tc>, window_params = [{pipeline_mode = #tpu.pipeline_mode<synchronous>, transform_indices = @transform_0, window_bounds = array<i64: 2, 10816>}, {pipeline_mode = #tpu.pipeline_mode<synchronous>, transform_indices = @transform_1, window_bounds = array<i64: 10816, 120>}, {pipeline_mode = #tpu.pipeline_mode<synchronous>, transform_indices = @transform_2, window_bounds = array<i64: 1, 120>}, {pipeline_mode = #tpu.pipeline_mode<synchronous>, transform_indices = @transform_3, window_bounds = array<i64: 120, 84>}, {pipeline_mode = #tpu.pipeline_mode<synchronous>, transform_indices = @transform_4, window_bounds = array<i64: 1, 84>}, {pipeline_mode = #tpu.pipeline_mode<synchronous>, transform_indices = @transform_5, window_bounds = array<i64: 84, 21>}, {pipeline_mode = #tpu.pipeline_mode<synchronous>, transform_indices = @transform_6, window_bounds = array<i64: 1, 21>}, {pipeline_mode = #tpu.pipeline_mode<synchronous>, transform_indices = @transform_7, window_bounds = array<i64: 2, 21>}]} {
    %c0 = arith.constant 0 : index
    %c0_0 = arith.constant 0 : index
    %0 = vector.load %arg1[%c0, %c0_0] : memref<2x10816xf32, #tpu.memory_space<vmem>>, vector<2x10816xf32>
    %c0_1 = arith.constant 0 : index
    %c0_2 = arith.constant 0 : index
    %1 = vector.load %arg2[%c0_1, %c0_2] : memref<10816x120xf32, #tpu.memory_space<vmem>>, vector<10816x120xf32>
    %cst = arith.constant dense<0.000000e+00> : vector<2x120xf32>
    %2 = tpu.matmul %0, %1, %cst {dimension_numbers = #tpu.dot_dimension_numbers<[1], [0], [0], [1], [0, 0, 1, 1], [], []>} : vector<2x10816xf32>, vector<10816x120xf32>, vector<2x120xf32> -> vector<2x120xf32>
    %c0_3 = arith.constant 0 : index
    %c0_4 = arith.constant 0 : index
    %3 = vector.load %arg3[%c0_3, %c0_4] : memref<1x120xf32, #tpu.memory_space<vmem>>, vector<1x120xf32>
    %4 = vector.broadcast %3 : vector<1x120xf32> to vector<2x120xf32>
    %5 = arith.addf %2, %4 : vector<2x120xf32>
    %cst_5 = arith.constant 0.000000e+00 : f32
    %6 = vector.broadcast %cst_5 : f32 to vector<2x120xf32>
    %7 = arith.maximumf %5, %6 : vector<2x120xf32>
    %c0_6 = arith.constant 0 : index
    %c0_7 = arith.constant 0 : index
    %8 = vector.load %arg4[%c0_6, %c0_7] : memref<120x84xf32, #tpu.memory_space<vmem>>, vector<120x84xf32>
    %cst_8 = arith.constant dense<0.000000e+00> : vector<2x84xf32>
    %9 = tpu.matmul %7, %8, %cst_8 {dimension_numbers = #tpu.dot_dimension_numbers<[1], [0], [0], [1], [0, 0, 1, 1], [], []>} : vector<2x120xf32>, vector<120x84xf32>, vector<2x84xf32> -> vector<2x84xf32>
    %c0_9 = arith.constant 0 : index
    %c0_10 = arith.constant 0 : index
    %10 = vector.load %arg5[%c0_9, %c0_10] : memref<1x84xf32, #tpu.memory_space<vmem>>, vector<1x84xf32>
    %11 = vector.broadcast %10 : vector<1x84xf32> to vector<2x84xf32>
    %12 = arith.addf %9, %11 : vector<2x84xf32>
    %cst_11 = arith.constant 0.000000e+00 : f32
    %13 = vector.broadcast %cst_11 : f32 to vector<2x84xf32>
    %14 = arith.maximumf %12, %13 : vector<2x84xf32>
    %c0_12 = arith.constant 0 : index
    %c0_13 = arith.constant 0 : index
    %15 = vector.load %arg6[%c0_12, %c0_13] : memref<84x21xf32, #tpu.memory_space<vmem>>, vector<84x21xf32>
    %cst_14 = arith.constant dense<0.000000e+00> : vector<2x21xf32>
    %16 = tpu.matmul %14, %15, %cst_14 {dimension_numbers = #tpu.dot_dimension_numbers<[1], [0], [0], [1], [0, 0, 1, 1], [], []>} : vector<2x84xf32>, vector<84x21xf32>, vector<2x21xf32> -> vector<2x21xf32>
    %c0_15 = arith.constant 0 : index
    %c0_16 = arith.constant 0 : index
    %17 = vector.load %arg7[%c0_15, %c0_16] : memref<1x21xf32, #tpu.memory_space<vmem>>, vector<1x21xf32>
    %18 = vector.broadcast %17 : vector<1x21xf32> to vector<2x21xf32>
    %19 = arith.addf %16, %18 : vector<2x21xf32>
    %c0_17 = arith.constant 0 : index
    %c0_18 = arith.constant 0 : index
    %20 = vector.load %arg8[%c0_17, %c0_18] : memref<2x21xf32, #tpu.memory_space<vmem>>, vector<2x21xf32>
    tpu.vector_store %arg8[%c0_17, %c0_18], %19 {strides = array<i32>} : memref<2x21xf32, #tpu.memory_space<vmem>>, vector<2x21xf32>,
    return
  }
  func.func @transform_0(%arg0: i32) -> (i32, i32) {
    %c0_i32 = arith.constant 0 : i32
    %c0_i32_0 = arith.constant 0 : i32
    %c0_i32_1 = arith.constant 0 : i32
    return %c0_i32, %c0_i32_0 : i32, i32
  }
  func.func @transform_1(%arg0: i32) -> (i32, i32) {
    %c0_i32 = arith.constant 0 : i32
    %c0_i32_0 = arith.constant 0 : i32
    %c0_i32_1 = arith.constant 0 : i32
    return %c0_i32, %c0_i32_0 : i32, i32
  }
  func.func @transform_2(%arg0: i32) -> (i32, i32) {
    %c0_i32 = arith.constant 0 : i32
    %c0_i32_0 = arith.constant 0 : i32
    %c0_i32_1 = arith.constant 0 : i32
    return %c0_i32, %c0_i32_0 : i32, i32
  }
  func.func @transform_3(%arg0: i32) -> (i32, i32) {
    %c0_i32 = arith.constant 0 : i32
    %c0_i32_0 = arith.constant 0 : i32
    %c0_i32_1 = arith.constant 0 : i32
    return %c0_i32, %c0_i32_0 : i32, i32
  }
  func.func @transform_4(%arg0: i32) -> (i32, i32) {
    %c0_i32 = arith.constant 0 : i32
    %c0_i32_0 = arith.constant 0 : i32
    %c0_i32_1 = arith.constant 0 : i32
    return %c0_i32, %c0_i32_0 : i32, i32
  }
  func.func @transform_5(%arg0: i32) -> (i32, i32) {
    %c0_i32 = arith.constant 0 : i32
    %c0_i32_0 = arith.constant 0 : i32
    %c0_i32_1 = arith.constant 0 : i32
    return %c0_i32, %c0_i32_0 : i32, i32
  }
  func.func @transform_6(%arg0: i32) -> (i32, i32) {
    %c0_i32 = arith.constant 0 : i32
    %c0_i32_0 = arith.constant 0 : i32
    %c0_i32_1 = arith.constant 0 : i32
    return %c0_i32, %c0_i32_0 : i32, i32
  }
  func.func @transform_7(%arg0: i32) -> (i32, i32) {
    %c0_i32 = arith.constant 0 : i32
    %c0_i32_0 = arith.constant 0 : i32
    %c0_i32_1 = arith.constant 0 : i32
    return %c0_i32, %c0_i32_0 : i32, i32
  }
}

</mosaic_0001>

<llo_original>
// kernel: simple_classifier_forward.4
$region0: #{simple_classifier_forward.4}
  #allocation0 [shape = 'u32[]', space=smem, size = 0x4, offset = 0x4, fixed_abs, tag = 'smem constant byte address 0x4 - core index']
  #allocation1 [shape = 'u32[144,128]{1,0:T(1,128)}', space=vmem, size = 0x12000, scoped, tag = 'internal scratch']
  %s0 = inlined_call_operand.hbm [shape: f32[2,220,110,75], index: 0, kind: input, shape index: {}]
  %s1 = inlined_call_operand.hbm [shape: f32[2,220,110,75], index: 1, kind: input, shape index: {}]
  %s2 = inlined_call_operand.vmem [shape: f32[1,75,64], index: 2, kind: input, shape index: {}]
  %s3 = inlined_call_operand.vmem [shape: f32[1,64], index: 3, kind: input, shape index: {}]
  %s4 = inlined_call_operand.vmem [shape: f32[2,110,110,64], index: 4, kind: output, shape index: {}]
  %s5 = sld [smem:[#allocation0]]
  $region64: #{simple_classifier_forward.4} parent=0
    _
  %s7 = ssub.s32 1, %s5
  %s8 = scalar_select 0, %s7, %s5
  $region1: #{simple_classifier_forward.4} parent=0
    #allocation2 [shape = 'u8[5046272]{0}', space=vmem, size = 0x4d0000, scoped, tag = 'input window, operand 0']
    #allocation3 [shape = 's32[2]{0}', space=sflag, size = 0x8, scoped, tag = 'scoped memory for simple_classifier_forward.4']
    #allocation4 [shape = 'u8[5046272]{0}', space=vmem, size = 0x4d0000, scoped, tag = 'input window, operand 1']
    #allocation5 [shape = 's32[2]{0}', space=sflag, size = 0x8, scoped, tag = 'scoped memory for simple_classifier_forward.4']
    %9 = vsyncpa [#allocation3], 0
    %s10 = scalar_lea.sflag [#allocation3], 1
    %11 = vsyncpa %s10, 0
    %12 = vsyncpa [#allocation5], 0
    %s13 = scalar_lea.sflag [#allocation5], 1
    %14 = vsyncpa %s13, 0
    loop: start=0, step=1, limit=12
    $region2: #{simple_classifier_forward.4} parent=1 // loop_pre_header
      _
    $region3: #{simple_classifier_forward.4} parent=1 // loop_header
      %s16 = sphi 0, %s20
      %p17 = scmp.ge.s32.totalorder %s16, 12
      %s23 = sphi 0, %s35
      %s24 = sphi 0, %s31
      %s25 = sphi 0, %s23
      %s26 = sphi 0, %s24
      %s27 = sphi 0, %s25
      %s28 = sphi 0, %s26
      %s40 = sphi 0, %s42
      %s43 = sphi 0, %s40
      %s44 = sphi 0, %s43
      %s60 = sphi 0, %s44
      %s68 = sphi 0, %s70
      %s71 = sphi 0, %s68
      %s72 = sphi 0, %s71
      %s88 = sphi 0, %s72
      %s92 = sphi 0, %s92
      %s94 = sphi 0, %s92
      %s95 = sphi 0, %s94
      %s109 = sphi 0, %s95
      %s113 = sphi 0, %s113
      %s115 = sphi 0, %s113
      %s116 = sphi 0, %s115
      %s130 = sphi 0, %s116
      %s138 = sphi 0, %s140
      %s141 = sphi 0, %s138
      %s142 = sphi 0, %s141
      %s158 = sphi 0, %s142
    $region4: #{simple_classifier_forward.4} parent=1 // loop_header_branch
      %19 = sbr.rel (%p17) target = $region8
    $region5: #{simple_classifier_forward.4} parent=1 // loop_body
      %s21 = ssub.s32 %s16, 1
      %s22 = ssub.s32 %s16, 2
      %s29 = sadd.s32 1, %s24
      %p30 = scmp.ge.s32.totalorder %s29, 5
      %s31 = scalar_select %p30, 0, %s29
      %s32 = sadd.s32 1, %s23
      %s33 = scalar_select %p30, %s32, %s23
      %p34 = scmp.ge.s32.totalorder %s33, 2
      %s35 = scalar_select %p34, 0, %s33
      %s36 = ssub.s32 %s23, %s35
      %s37 = ssub.s32 %s24, %s31
      %s38 = sor.u32 %s36, %s37
      %p39 = scmp.eq.s32.totalorder %s38, 0
      %s41 = sadd.s32 %s40, 1
      %s42 = scalar_select %p39, %s40, %s41
      %p45 = pneg %p39
      %p46 = scmp.eq.s32.totalorder %s16, 9
      %p47 = por %p45, %p46
      %p48 = scmp.ne.s32.totalorder %s40, %s43
      %p49 = scmp.eq.s32.totalorder %s16, 0
      %p50 = por %p48, %p49
      %p51 = scmp.ne.s32.totalorder %s40, %s43
      %p52 = scmp.eq.s32.totalorder %s21, 9
      %p53 = por %p51, %p52
      %p54 = scmp.ne.s32.totalorder %s43, %s44
      %p55 = scmp.eq.s32.totalorder %s21, 0
      %p56 = por %p54, %p55
      %p57 = scmp.ne.s32.totalorder %s43, %s44
      %p58 = scmp.eq.s32.totalorder %s22, 9
      %p59 = por %p57, %p58
      %p61 = scmp.ne.s32.totalorder %s44, %s60
      %p62 = scmp.eq.s32.totalorder %s22, 0
      %p63 = por %p61, %p62
      %s64 = ssub.s32 %s23, %s35
      %s65 = ssub.s32 %s24, %s31
      %s66 = sor.u32 %s64, %s65
      %p67 = scmp.eq.s32.totalorder %s66, 0
      %s69 = sadd.s32 %s68, 1
      %s70 = scalar_select %p67, %s68, %s69
      %p73 = pneg %p67
      %p74 = scmp.eq.s32.totalorder %s16, 9
      %p75 = por %p73, %p74
      %p76 = scmp.ne.s32.totalorder %s68, %s71
      %p77 = scmp.eq.s32.totalorder %s16, 0
      %p78 = por %p76, %p77
      %p79 = scmp.ne.s32.totalorder %s68, %s71
      %p80 = scmp.eq.s32.totalorder %s21, 9
      %p81 = por %p79, %p80
      %p82 = scmp.ne.s32.totalorder %s71, %s72
      %p83 = scmp.eq.s32.totalorder %s21, 0
      %p84 = por %p82, %p83
      %p85 = scmp.ne.s32.totalorder %s71, %s72
      %p86 = scmp.eq.s32.totalorder %s22, 9
      %p87 = por %p85, %p86
      %p89 = scmp.ne.s32.totalorder %s72, %s88
      %p90 = scmp.eq.s32.totalorder %s22, 0
      %p91 = por %p89, %p90
      %s93 = sadd.s32 %s92, 1
      %p96 = scmp.eq.s32.totalorder %s16, 9
      %p97 = scmp.ne.s32.totalorder %s92, %s94
      %p98 = scmp.eq.s32.totalorder %s16, 0
      %p99 = por %p97, %p98
      %p100 = scmp.ne.s32.totalorder %s92, %s94
      %p101 = scmp.eq.s32.totalorder %s21, 9
      %p102 = por %p100, %p101
      %p103 = scmp.ne.s32.totalorder %s94, %s95
      %p104 = scmp.eq.s32.totalorder %s21, 0
      %p105 = por %p103, %p104
      %p106 = scmp.ne.s32.totalorder %s94, %s95
      %p107 = scmp.eq.s32.totalorder %s22, 9
      %p108 = por %p106, %p107
      %p110 = scmp.ne.s32.totalorder %s95, %s109
      %p111 = scmp.eq.s32.totalorder %s22, 0
      %p112 = por %p110, %p111
      %s114 = sadd.s32 %s113, 1
      %p117 = scmp.eq.s32.totalorder %s16, 9
      %p118 = scmp.ne.s32.totalorder %s113, %s115
      %p119 = scmp.eq.s32.totalorder %s16, 0
      %p120 = por %p118, %p119
      %p121 = scmp.ne.s32.totalorder %s113, %s115
      %p122 = scmp.eq.s32.totalorder %s21, 9
      %p123 = por %p121, %p122
      %p124 = scmp.ne.s32.totalorder %s115, %s116
      %p125 = scmp.eq.s32.totalorder %s21, 0
      %p126 = por %p124, %p125
      %p127 = scmp.ne.s32.totalorder %s115, %s116
      %p128 = scmp.eq.s32.totalorder %s22, 9
      %p129 = por %p127, %p128
      %p131 = scmp.ne.s32.totalorder %s116, %s130
      %p132 = scmp.eq.s32.totalorder %s22, 0
      %p133 = por %p131, %p132
      %s134 = ssub.s32 %s23, %s35
      %s135 = ssub.s32 %s24, %s31
      %s136 = sor.u32 %s134, %s135
      %p137 = scmp.eq.s32.totalorder %s136, 0
      %s139 = sadd.s32 %s138, 1
      %s140 = scalar_select %p137, %s138, %s139
      %p143 = pneg %p137
      %p144 = scmp.eq.s32.totalorder %s16, 9
      %p145 = por %p143, %p144
      %p146 = scmp.ne.s32.totalorder %s138, %s141
      %p147 = scmp.eq.s32.totalorder %s16, 0
      %p148 = por %p146, %p147
      %p149 = scmp.ne.s32.totalorder %s138, %s141
      %p150 = scmp.eq.s32.totalorder %s21, 9
      %p151 = por %p149, %p150
      %p152 = scmp.ne.s32.totalorder %s141, %s142
      %p153 = scmp.eq.s32.totalorder %s21, 0
      %p154 = por %p152, %p153
      %p155 = scmp.ne.s32.totalorder %s141, %s142
      %p156 = scmp.eq.s32.totalorder %s22, 9
      %p157 = por %p155, %p156
      %p159 = scmp.ne.s32.totalorder %s142, %s158
      %p160 = scmp.eq.s32.totalorder %s22, 0
      %p161 = por %p159, %p160
      %p162 = scmp.le.s32.totalorder 1, %s16
      %p163 = scmp.lt.s32.totalorder %s16, 11
      %p164 = pnand %p162, %p163
      %p165 = pneg %p164
      // Predicated region
      $region9: #{simple_classifier_forward.4} parent=5 // pred_check
        _
      $region10: #{simple_classifier_forward.4} parent=5 // pred_check_branch
        %167 = sbr.rel (%p164) target = $region12
      $region11: #{simple_classifier_forward.4} parent=5 // pred_region
        %s168 = ssub.s32 %s16, 1
        // Predicated region
        $region13: #{simple_classifier_forward.4} parent=11 // pred_check
          %p169 = pneg %p105
        $region14: #{simple_classifier_forward.4} parent=11 // pred_check_branch
          %171 = sbr.rel (%p169) target = $region16
        $region15: #{simple_classifier_forward.4} parent=11 // pred_region
          _
        $region16: #{simple_classifier_forward.4} parent=11 // pred_fallthru
          _
        // Predicated region
        $region17: #{simple_classifier_forward.4} parent=11 // pred_check
          %p172 = pneg %p126
        $region18: #{simple_classifier_forward.4} parent=11 // pred_check_branch
          %174 = sbr.rel (%p172) target = $region20
        $region19: #{simple_classifier_forward.4} parent=11 // pred_region
          _
        $region20: #{simple_classifier_forward.4} parent=11 // pred_fallthru
          _
      $region12: #{simple_classifier_forward.4} parent=5 // pred_fallthru
        _
      %p175 = scmp.lt.s32.totalorder %s16, 10
      // Predicated region
      $region21: #{simple_classifier_forward.4} parent=5 // pred_check
        %p176 = pneg %p175
      $region22: #{simple_classifier_forward.4} parent=5 // pred_check_branch
        %178 = sbr.rel (%p176) target = $region24
      $region23: #{simple_classifier_forward.4} parent=5 // pred_region
        // Predicated region
        $region25: #{simple_classifier_forward.4} parent=23 // pred_check
          %p179 = pneg %p50
        $region26: #{simple_classifier_forward.4} parent=23 // pred_check_branch
          %181 = sbr.rel (%p179) target = $region28
        $region27: #{simple_classifier_forward.4} parent=23 // pred_region
          %s182 = sand.u32 %s40, 1
          %s183 = scalar_lea.sflag [#allocation3], %s182
          %s184 = sand.u32 %s40, 1
          %s185 = smul.addr %s184, 4928
          %s186 = scalar_lea.vmem [#allocation2], %s185
          %s187 = smul.u32 44, %s24
          %s189 = ssub.s32 78848, 78848
          %190 = vsyncadd %s183, %s189
          %s191 = smul.addr %s187, 14
          %s192 = smul.addr %s23, 3080
          %s193 = sadd.s32 %s191, %s192
          %s194 = smul.addr %s193, 128
          %s195 = scalar_lea.hbm %s0, %s194
          %s196 = sshll.u32 %s186, 4
          %s197 = int_to_ptr.vmem [resolvable:$true] %s196
          %202 = dma.hbm_to_vmem [thread:$0]  %s195, 78848, %s197, %s183, 128, 128, 8
        $region28: #{simple_classifier_forward.4} parent=23 // pred_fallthru
          _
        // Predicated region
        $region29: #{simple_classifier_forward.4} parent=23 // pred_check
          %p203 = pneg %p78
        $region30: #{simple_classifier_forward.4} parent=23 // pred_check_branch
          %205 = sbr.rel (%p203) target = $region32
        $region31: #{simple_classifier_forward.4} parent=23 // pred_region
          %s206 = sand.u32 %s68, 1
          %s207 = scalar_lea.sflag [#allocation5], %s206
          %s208 = sand.u32 %s68, 1
          %s209 = smul.addr %s208, 4928
          %s210 = scalar_lea.vmem [#allocation4], %s209
          %s211 = smul.u32 44, %s24
          %s213 = ssub.s32 78848, 78848
          %214 = vsyncadd %s207, %s213
          %s215 = smul.addr %s211, 14
          %s216 = smul.addr %s23, 3080
          %s217 = sadd.s32 %s215, %s216
          %s218 = smul.addr %s217, 128
          %s219 = scalar_lea.hbm %s1, %s218
          %s220 = sshll.u32 %s210, 4
          %s221 = int_to_ptr.vmem [resolvable:$true] %s220
          %226 = dma.hbm_to_vmem [thread:$0]  %s219, 78848, %s221, %s207, 128, 128, 8
        $region32: #{simple_classifier_forward.4} parent=23 // pred_fallthru
          _
      $region24: #{simple_classifier_forward.4} parent=5 // pred_fallthru
        _
      %p227 = scmp.le.s32.totalorder 1, %s16
      %p228 = scmp.lt.s32.totalorder %s16, 11
      %p229 = pnand %p227, %p228
      %p230 = pneg %p229
      // Predicated region
      $region33: #{simple_classifier_forward.4} parent=5 // pred_check
        _
      $region34: #{simple_classifier_forward.4} parent=5 // pred_check_branch
        %232 = sbr.rel (%p229) target = $region36
      $region35: #{simple_classifier_forward.4} parent=5 // pred_region
        %s233 = ssub.s32 %s16, 1
        %s234 = sand.u32 %s43, 1
        %s235 = scalar_lea.sflag [#allocation3], %s234
        %s236 = sand.u32 %s43, 1
        %s237 = smul.addr %s236, 4928
        %s238 = scalar_lea.vmem [#allocation2], %s237
        // Predicated region
        $region37: #{simple_classifier_forward.4} parent=35 // pred_check
          %p239 = pneg %p56
        $region38: #{simple_classifier_forward.4} parent=35 // pred_check_branch
          %241 = sbr.rel (%p239) target = $region40
        $region39: #{simple_classifier_forward.4} parent=35 // pred_region
          %242 = dma.done %s235, 78848
        $region40: #{simple_classifier_forward.4} parent=35 // pred_fallthru
          _
        %s243 = sand.u32 %s71, 1
        %s244 = scalar_lea.sflag [#allocation5], %s243
        %s245 = sand.u32 %s71, 1
        %s246 = smul.addr %s245, 4928
        %s247 = scalar_lea.vmem [#allocation4], %s246
        // Predicated region
        $region41: #{simple_classifier_forward.4} parent=35 // pred_check
          %p248 = pneg %p84
        $region42: #{simple_classifier_forward.4} parent=35 // pred_check_branch
          %250 = sbr.rel (%p248) target = $region44
        $region43: #{simple_classifier_forward.4} parent=35 // pred_region
          %251 = dma.done %s244, 78848
        $region44: #{simple_classifier_forward.4} parent=35 // pred_fallthru
          _
        %s252 = sand.u32 %s43, 1
        %s253 = scalar_lea.sflag [#allocation3], %s252
        %s254 = sand.u32 %s43, 1
        %s255 = smul.addr %s254, 4928
        %s256 = scalar_lea.vmem [#allocation2], %s255
        %p257 = pneg %p56
        %p258 = pneg %p53
        %s259 = sand.u32 %s71, 1
        %s260 = scalar_lea.sflag [#allocation5], %s259
        %s261 = sand.u32 %s71, 1
        %s262 = smul.addr %s261, 4928
        %s263 = scalar_lea.vmem [#allocation4], %s262
        %p264 = pneg %p84
        %p265 = pneg %p81
        %p266 = pneg %p105
        %p267 = pneg %p102
        %p268 = pneg %p126
        %p269 = pneg %p123
        %p270 = pneg %p154
        %p271 = pneg %p151
        %s272 = smul.u32 22, %s26
        %p273 = scmp.lt.s32.totalorder %s25, 1
        %s274 = scalar_select %p273, %s25, 1
        %p275 = scmp.lt.s32.totalorder %s272, 109
        %s276 = scalar_select %p275, %s272, 109
        %s277 = smul.addr %s276, 14
        %s278 = smul.addr %s274, 1540
        %s279 = sadd.s32 %s277, %s278
        %s280 = smul.addr %s279, 8
        %s281 = scalar_lea.vmem %s4, %s280
        %s282 = smul.u32 44, %s26
        %s283 = smul.u32 44, %s26
        %s284 = smul.u32 22, %s26
        %p285 = scmp.lt.s32.totalorder %s25, 1
        %s286 = scalar_select %p285, %s25, 1
        %p287 = scmp.lt.s32.totalorder %s284, 109
        %s288 = scalar_select %p287, %s284, 109
        %s289 = smul.addr %s288, 14
        %s290 = smul.addr %s286, 1540
        %s291 = sadd.s32 %s289, %s290
        %s292 = smul.addr %s291, 8
        %s293 = scalar_lea.vmem %s4, %s292
        %s294 = smul.u32 22, %s26
        %v295 = vld [vmem:[%s3] sm:$0x1]
        loop: start=0, step=1, limit=22
        $region45: #{simple_classifier_forward.4} parent=35 // loop_pre_header
          _
        $region46: #{simple_classifier_forward.4} parent=35 // loop_header
          %s297 = sphi 0, %s301
          %p298 = scmp.ge.s32.totalorder %s297, 22
        $region47: #{simple_classifier_forward.4} parent=35 // loop_header_branch
          %300 = sbr.rel (%p298) target = $region51
        $region48: #{simple_classifier_forward.4} parent=35 // loop_body
          %s302 = smul.u32 %s297, 2
          %v303 = vld [vmem:[%s2] sm:$0xff]
          %v304 = vld [vmem:[%s2 + $0x8] sm:$0xff]
          %v305 = vld [vmem:[%s2 + $0x10] sm:$0xff]
          %v306 = vld [vmem:[%s2 + $0x18] sm:$0xff]
          %v307 = vld [vmem:[%s2 + $0x20] sm:$0xff]
          %v308 = vld [vmem:[%s2 + $0x28] sm:$0xff]
          %v309 = vld [vmem:[%s2 + $0x30] sm:$0xff]
          %v310 = vld [vmem:[%s2 + $0x38] sm:$0xff]
          %v311 = vld [vmem:[%s2 + $0x40] sm:$0xff]
          %v312 = vld [vmem:[%s2 + $0x48] sm:$0x7]
          %s313 = smul.u32 %s302, 112
          %s314 = scalar_lea.vmem %s238, %s313 [#allocation2]
          %v315 = vld [vmem:[%s314] sm:$0xff]
          %v316 = vld [vmem:[%s314 + $0x8] sm:$0xff]
          %v317 = vld [vmem:[%s314 + $0x10] sm:$0xff]
          %v318 = vld [vmem:[%s314 + $0x18] sm:$0xff]
          %v319 = vld [vmem:[%s314 + $0x20] sm:$0xff]
          %v320 = vld [vmem:[%s314 + $0x28] sm:$0xff]
          %v321 = vld [vmem:[%s314 + $0x30] sm:$0xff]
          %v322 = vld [vmem:[%s314 + $0x38] sm:$0xff]
          %v323 = vld [vmem:[%s314 + $0x40] sm:$0xff]
          %v324 = vld [vmem:[%s314 + $0x48] sm:$0xff]
          %v325 = vld [vmem:[%s314 + $0x50] sm:$0xff]
          %v326 = vld [vmem:[%s314 + $0x58] sm:$0xff]
          %v327 = vld [vmem:[%s314 + $0x60] sm:$0xff]
          %v328 = vld [vmem:[%s314 + $0x68] sm:$0x3f]
          %vm329 = vcmask 613376
          %v331 = vsel %vm329, %v315, 0
          %v334 = vsel %vm329, %v316, 0
          %v337 = vsel %vm329, %v317, 0
          %v340 = vsel %vm329, %v318, 0
          %v343 = vsel %vm329, %v319, 0
          %v346 = vsel %vm329, %v320, 0
          %v349 = vsel %vm329, %v321, 0
          %v352 = vsel %vm329, %v322, 0
          %v355 = vsel %vm329, %v323, 0
          %v358 = vsel %vm329, %v324, 0
          %v361 = vsel %vm329, %v325, 0
          %v364 = vsel %vm329, %v326, 0
          %v367 = vsel %vm329, %v327, 0
          %v370 = vsel %vm329, %v328, 0
          %vm372 = vcmask 1042432
          %v374 = vsel %vm372, %v312, 0
          %376 = vmatprep.subr.mxu0 0.0
          %377 = vmatpush1.msra.mxu0 %v303
          %378 = vmatprep.subr.mxu0 0.0
          %379 = vmatpush1.msra.mxu0 %v304
          %380 = vmatprep.subr.mxu0 0.0
          %381 = vmatpush1.msra.mxu0 %v305
          %382 = vmatprep.subr.mxu0 0.0
          %383 = vmatpush1.msra.mxu0 %v306
          %384 = vmatprep.subr.mxu0 0.0
          %385 = vmatpush1.msra.mxu0 %v307
          %386 = vmatprep.subr.mxu0 0.0
          %387 = vmatpush1.msra.mxu0 %v308
          %388 = vmatprep.subr.mxu0 0.0
          %389 = vmatpush1.msra.mxu0 %v309
          %390 = vmatprep.subr.mxu0 0.0
          %391 = vmatpush1.msra.mxu0 %v310
          %392 = vmatprep.subr.mxu0 0.0
          %393 = vmatpush1.msra.mxu0 %v311
          %394 = vmatprep.subr.mxu0 0.0
          %395 = vmatpush1.msra.mxu0 %v374
          %396 = vmatprep.subr.mxu0 0.0
          %397 = vmatpush1.msra.mxu0 0.0
          %398 = vmatprep.subr.mxu0 0.0
          %399 = vmatpush1.msra.mxu0 0.0
          %400 = vmatprep.subr.mxu0 0.0
          %401 = vmatpush1.msra.mxu0 0.0
          %402 = vmatprep.subr.mxu0 0.0
          %403 = vmatpush1.msra.mxu0 0.0
          %404 = vmatprep.subr.mxu0 0.0
          %405 = vmatpush1.msra.mxu0 0.0
          %406 = vmatprep.subr.mxu0 0.0
          %407 = vmatpush1.msra.mxu0 0.0
          %408 = vmatprep.subr.mxu0 0.0
          %409 = vmatpush1.msra.mxu0 0.0
          %410 = vmatprep.subr.mxu0 0.0
          %411 = vmatpush1.msra.mxu0 0.0
          %412 = vmatprep.subr.mxu0 0.0
          %413 = vmatpush1.msra.mxu0 0.0
          %414 = vmatprep.subr.mxu0 0.0
          %415 = vmatpush1.msra.mxu0 0.0
          %416 = vmatprep.subr.mxu0 0.0
          %417 = vmatpush1.msra.mxu0 0.0
          %418 = vmatprep.subr.mxu0 0.0
          %419 = vmatpush1.msra.mxu0 0.0
          %420 = vmatprep.subr.mxu0 0.0
          %421 = vmatpush1.msra.mxu0 0.0
          %422 = vmatprep.subr.mxu0 0.0
          %423 = vmatpush1.msra.mxu0 0.0
          %424 = vmatprep.subr.mxu0 0.0
          %425 = vmatpush1.msra.mxu0 0.0
          %426 = vmatprep.subr.mxu0 0.0
          %427 = vmatpush1.msra.mxu0 0.0
          %428 = vmatprep.subr.mxu0 0.0
          %429 = vmatpush1.msra.mxu0 0.0
          %430 = vmatprep.subr.mxu0 0.0
          %431 = vmatpush1.msra.mxu0 0.0
          %432 = vmatprep.subr.mxu0 0.0
          %433 = vmatpush1.msra.mxu0 0.0
          %434 = vmatprep.subr.mxu0 0.0
          %435 = vmatpush1.msra.mxu0 0.0
          %436 = vmatprep.subr.mxu0 0.0
          %437 = vmatpush1.msra.mxu0 0.0
          %438 = vmatprep.subr.mxu0 0.0
          %439 = vmatpush1.msra.mxu0 0.0
          %440 = vmatprep.mubr.f32.mxu0 0.0
          %441 = vmatmul.mubr.f32.gmra.mrb[0].mxu0 %v331
          %v442 = vpop.f32.mrb[0].mxu0
          %v443 = vadd.f32 0.0, %v442
          %v444 = vpop.f32.mrb[0].mxu0
          %445 = vmatprep.mubr.f32.mxu0 0.0
          %446 = vmatmul.mubr.f32.gmra.mrb[0].mxu0 %v334
          %v447 = vpop.f32.mrb[0].mxu0
          %v448 = vadd.f32 0.0, %v447
          %v449 = vpop.f32.mrb[0].mxu0
          %450 = vmatprep.mubr.f32.mxu0 0.0
          %451 = vmatmul.mubr.f32.gmra.mrb[0].mxu0 %v337
          %v452 = vpop.f32.mrb[0].mxu0
          %v453 = vadd.f32 0.0, %v452
          %v454 = vpop.f32.mrb[0].mxu0
          %455 = vmatprep.mubr.f32.mxu0 0.0
          %456 = vmatmul.mubr.f32.gmra.mrb[0].mxu0 %v340
          %v457 = vpop.f32.mrb[0].mxu0
          %v458 = vadd.f32 0.0, %v457
          %v459 = vpop.f32.mrb[0].mxu0
          %460 = vmatprep.mubr.f32.mxu0 0.0
          %461 = vmatmul.mubr.f32.gmra.mrb[0].mxu0 %v343
          %v462 = vpop.f32.mrb[0].mxu0
          %v463 = vadd.f32 0.0, %v462
          %v464 = vpop.f32.mrb[0].mxu0
          %465 = vmatprep.mubr.f32.mxu0 0.0
          %466 = vmatmul.mubr.f32.gmra.mrb[0].mxu0 %v346
          %v467 = vpop.f32.mrb[0].mxu0
          %v468 = vadd.f32 0.0, %v467
          %v469 = vpop.f32.mrb[0].mxu0
          %470 = vmatprep.mubr.f32.mxu0 0.0
          %471 = vmatmul.mubr.f32.gmra.mrb[0].mxu0 %v349
          %v472 = vpop.f32.mrb[0].mxu0
          %v473 = vadd.f32 0.0, %v472
          %v474 = vpop.f32.mrb[0].mxu0
          %475 = vmatprep.mubr.f32.mxu0 0.0
          %476 = vmatmul.mubr.f32.gmra.mrb[0].mxu0 %v352
          %v477 = vpop.f32.mrb[0].mxu0
          %v478 = vadd.f32 0.0, %v477
          %v479 = vpop.f32.mrb[0].mxu0
          %480 = vmatprep.mubr.f32.mxu0 0.0
          %481 = vmatmul.mubr.f32.gmra.mrb[0].mxu0 %v355
          %v482 = vpop.f32.mrb[0].mxu0
          %v483 = vadd.f32 0.0, %v482
          %v484 = vpop.f32.mrb[0].mxu0
          %485 = vmatprep.mubr.f32.mxu0 0.0
          %486 = vmatmul.mubr.f32.gmra.mrb[0].mxu0 %v358
          %v487 = vpop.f32.mrb[0].mxu0
          %v488 = vadd.f32 0.0, %v487
          %v489 = vpop.f32.mrb[0].mxu0
          %490 = vmatprep.mubr.f32.mxu0 0.0
          %491 = vmatmul.mubr.f32.gmra.mrb[0].mxu0 %v361
          %v492 = vpop.f32.mrb[0].mxu0
          %v493 = vadd.f32 0.0, %v492
          %v494 = vpop.f32.mrb[0].mxu0
          %495 = vmatprep.mubr.f32.mxu0 0.0
          %496 = vmatmul.mubr.f32.gmra.mrb[0].mxu0 %v364
          %v497 = vpop.f32.mrb[0].mxu0
          %v498 = vadd.f32 0.0, %v497
          %v499 = vpop.f32.mrb[0].mxu0
          %500 = vmatprep.mubr.f32.mxu0 0.0
          %501 = vmatmul.mubr.f32.gmra.mrb[0].mxu0 %v367
          %v502 = vpop.f32.mrb[0].mxu0
          %v503 = vadd.f32 0.0, %v502
          %v504 = vpop.f32.mrb[0].mxu0
          %505 = vmatprep.mubr.f32.mxu0 0.0
          %506 = vmatmul.mubr.f32.gmra.mrb[0].mxu0 %v370
          %v507 = vpop.f32.mrb[0].mxu0
          %v508 = vadd.f32 0.0, %v507
          %v509 = vpop.f32.mrb[0].mxu0
          %510 = vdwg.mxu0
          %s511 = scalar_lea.vmem %s247, %s313 [#allocation4]
          %v512 = vld [vmem:[%s511] sm:$0xff]
          %v513 = vld [vmem:[%s511 + $0x8] sm:$0xff]
          %v514 = vld [vmem:[%s511 + $0x10] sm:$0xff]
          %v515 = vld [vmem:[%s511 + $0x18] sm:$0xff]
          %v516 = vld [vmem:[%s511 + $0x20] sm:$0xff]
          %v517 = vld [vmem:[%s511 + $0x28] sm:$0xff]
          %v518 = vld [vmem:[%s511 + $0x30] sm:$0xff]
          %v519 = vld [vmem:[%s511 + $0x38] sm:$0xff]
          %v520 = vld [vmem:[%s511 + $0x40] sm:$0xff]
          %v521 = vld [vmem:[%s511 + $0x48] sm:$0xff]
          %v522 = vld [vmem:[%s511 + $0x50] sm:$0xff]
          %v523 = vld [vmem:[%s511 + $0x58] sm:$0xff]
          %v524 = vld [vmem:[%s511 + $0x60] sm:$0xff]
          %v525 = vld [vmem:[%s511 + $0x68] sm:$0x3f]
          %v527 = vsel %vm329, %v512, 0
          %v530 = vsel %vm329, %v513, 0
          %v533 = vsel %vm329, %v514, 0
          %v536 = vsel %vm329, %v515, 0
          %v539 = vsel %vm329, %v516, 0
          %v542 = vsel %vm329, %v517, 0
          %v545 = vsel %vm329, %v518, 0
          %v548 = vsel %vm329, %v519, 0
          %v551 = vsel %vm329, %v520, 0
          %v554 = vsel %vm329, %v521, 0
          %v557 = vsel %vm329, %v522, 0
          %v560 = vsel %vm329, %v523, 0
          %v563 = vsel %vm329, %v524, 0
          %v566 = vsel %vm329, %v525, 0
          %568 = vmatprep.subr.mxu0 0.0
          %569 = vmatpush1.msra.mxu0 %v303
          %570 = vmatprep.subr.mxu0 0.0
          %571 = vmatpush1.msra.mxu0 %v304
          %572 = vmatprep.subr.mxu0 0.0
          %573 = vmatpush1.msra.mxu0 %v305
          %574 = vmatprep.subr.mxu0 0.0
          %575 = vmatpush1.msra.mxu0 %v306
          %576 = vmatprep.subr.mxu0 0.0
          %577 = vmatpush1.msra.mxu0 %v307
          %578 = vmatprep.subr.mxu0 0.0
          %579 = vmatpush1.msra.mxu0 %v308
          %580 = vmatprep.subr.mxu0 0.0
          %581 = vmatpush1.msra.mxu0 %v309
          %582 = vmatprep.subr.mxu0 0.0
          %583 = vmatpush1.msra.mxu0 %v310
          %584 = vmatprep.subr.mxu0 0.0
          %585 = vmatpush1.msra.mxu0 %v311
          %586 = vmatprep.subr.mxu0 0.0
          %587 = vmatpush1.msra.mxu0 %v374
          %588 = vmatprep.subr.mxu0 0.0
          %589 = vmatpush1.msra.mxu0 0.0
          %590 = vmatprep.subr.mxu0 0.0
          %591 = vmatpush1.msra.mxu0 0.0
          %592 = vmatprep.subr.mxu0 0.0
          %593 = vmatpush1.msra.mxu0 0.0
          %594 = vmatprep.subr.mxu0 0.0
          %595 = vmatpush1.msra.mxu0 0.0
          %596 = vmatprep.subr.mxu0 0.0
          %597 = vmatpush1.msra.mxu0 0.0
          %598 = vmatprep.subr.mxu0 0.0
          %599 = vmatpush1.msra.mxu0 0.0
          %600 = vmatprep.subr.mxu0 0.0
          %601 = vmatpush1.msra.mxu0 0.0
          %602 = vmatprep.subr.mxu0 0.0
          %603 = vmatpush1.msra.mxu0 0.0
          %604 = vmatprep.subr.mxu0 0.0
          %605 = vmatpush1.msra.mxu0 0.0
          %606 = vmatprep.subr.mxu0 0.0
          %607 = vmatpush1.msra.mxu0 0.0
          %608 = vmatprep.subr.mxu0 0.0
          %609 = vmatpush1.msra.mxu0 0.0
          %610 = vmatprep.subr.mxu0 0.0
          %611 = vmatpush1.msra.mxu0 0.0
          %612 = vmatprep.subr.mxu0 0.0
          %613 = vmatpush1.msra.mxu0 0.0
          %614 = vmatprep.subr.mxu0 0.0
          %615 = vmatpush1.msra.mxu0 0.0
          %616 = vmatprep.subr.mxu0 0.0
          %617 = vmatpush1.msra.mxu0 0.0
          %618 = vmatprep.subr.mxu0 0.0
          %619 = vmatpush1.msra.mxu0 0.0
          %620 = vmatprep.subr.mxu0 0.0
          %621 = vmatpush1.msra.mxu0 0.0
          %622 = vmatprep.subr.mxu0 0.0
          %623 = vmatpush1.msra.mxu0 0.0
          %624 = vmatprep.subr.mxu0 0.0
          %625 = vmatpush1.msra.mxu0 0.0
          %626 = vmatprep.subr.mxu0 0.0
          %627 = vmatpush1.msra.mxu0 0.0
          %628 = vmatprep.subr.mxu0 0.0
          %629 = vmatpush1.msra.mxu0 0.0
          %630 = vmatprep.subr.mxu0 0.0
          %631 = vmatpush1.msra.mxu0 0.0
          %632 = vmatprep.mubr.f32.mxu0 0.0
          %633 = vmatmul.mubr.f32.gmra.mrb[0].mxu0 %v527
          %v634 = vpop.f32.mrb[0].mxu0
          %v635 = vadd.f32 0.0, %v634
          %v636 = vpop.f32.mrb[0].mxu0
          %637 = vmatprep.mubr.f32.mxu0 0.0
          %638 = vmatmul.mubr.f32.gmra.mrb[0].mxu0 %v530
          %v639 = vpop.f32.mrb[0].mxu0
          %v640 = vadd.f32 0.0, %v639
          %v641 = vpop.f32.mrb[0].mxu0
          %642 = vmatprep.mubr.f32.mxu0 0.0
          %643 = vmatmul.mubr.f32.gmra.mrb[0].mxu0 %v533
          %v644 = vpop.f32.mrb[0].mxu0
          %v645 = vadd.f32 0.0, %v644
          %v646 = vpop.f32.mrb[0].mxu0
          %647 = vmatprep.mubr.f32.mxu0 0.0
          %648 = vmatmul.mubr.f32.gmra.mrb[0].mxu0 %v536
          %v649 = vpop.f32.mrb[0].mxu0
          %v650 = vadd.f32 0.0, %v649
          %v651 = vpop.f32.mrb[0].mxu0
          %652 = vmatprep.mubr.f32.mxu0 0.0
          %653 = vmatmul.mubr.f32.gmra.mrb[0].mxu0 %v539
          %v654 = vpop.f32.mrb[0].mxu0
          %v655 = vadd.f32 0.0, %v654
          %v656 = vpop.f32.mrb[0].mxu0
          %657 = vmatprep.mubr.f32.mxu0 0.0
          %658 = vmatmul.mubr.f32.gmra.mrb[0].mxu0 %v542
          %v659 = vpop.f32.mrb[0].mxu0
          %v660 = vadd.f32 0.0, %v659
          %v661 = vpop.f32.mrb[0].mxu0
          %662 = vmatprep.mubr.f32.mxu0 0.0
          %663 = vmatmul.mubr.f32.gmra.mrb[0].mxu0 %v545
          %v664 = vpop.f32.mrb[0].mxu0
          %v665 = vadd.f32 0.0, %v664
          %v666 = vpop.f32.mrb[0].mxu0
          %667 = vmatprep.mubr.f32.mxu0 0.0
          %668 = vmatmul.mubr.f32.gmra.mrb[0].mxu0 %v548
          %v669 = vpop.f32.mrb[0].mxu0
          %v670 = vadd.f32 0.0, %v669
          %v671 = vpop.f32.mrb[0].mxu0
          %672 = vmatprep.mubr.f32.mxu0 0.0
          %673 = vmatmul.mubr.f32.gmra.mrb[0].mxu0 %v551
          %v674 = vpop.f32.mrb[0].mxu0
          %v675 = vadd.f32 0.0, %v674
          %v676 = vpop.f32.mrb[0].mxu0
          %677 = vmatprep.mubr.f32.mxu0 0.0
          %678 = vmatmul.mubr.f32.gmra.mrb[0].mxu0 %v554
          %v679 = vpop.f32.mrb[0].mxu0
          %v680 = vadd.f32 0.0, %v679
          %v681 = vpop.f32.mrb[0].mxu0
          %682 = vmatprep.mubr.f32.mxu0 0.0
          %683 = vmatmul.mubr.f32.gmra.mrb[0].mxu0 %v557
          %v684 = vpop.f32.mrb[0].mxu0
          %v685 = vadd.f32 0.0, %v684
          %v686 = vpop.f32.mrb[0].mxu0
          %687 = vmatprep.mubr.f32.mxu0 0.0
          %688 = vmatmul.mubr.f32.gmra.mrb[0].mxu0 %v560
          %v689 = vpop.f32.mrb[0].mxu0
          %v690 = vadd.f32 0.0, %v689
          %v691 = vpop.f32.mrb[0].mxu0
          %692 = vmatprep.mubr.f32.mxu0 0.0
          %693 = vmatmul.mubr.f32.gmra.mrb[0].mxu0 %v563
          %v694 = vpop.f32.mrb[0].mxu0
          %v695 = vadd.f32 0.0, %v694
          %v696 = vpop.f32.mrb[0].mxu0
          %697 = vmatprep.mubr.f32.mxu0 0.0
          %698 = vmatmul.mubr.f32.gmra.mrb[0].mxu0 %v566
          %v699 = vpop.f32.mrb[0].mxu0
          %v700 = vadd.f32 0.0, %v699
          %v701 = vpop.f32.mrb[0].mxu0
          %702 = vdwg.mxu0
          %s703 = sadd.s32 %s302, 1
          %s704 = smul.u32 %s703, 112
          %s705 = scalar_lea.vmem %s238, %s704 [#allocation2]
          %v706 = vld [vmem:[%s705] sm:$0xff]
          %v707 = vld [vmem:[%s705 + $0x8] sm:$0xff]
          %v708 = vld [vmem:[%s705 + $0x10] sm:$0xff]
          %v709 = vld [vmem:[%s705 + $0x18] sm:$0xff]
          %v710 = vld [vmem:[%s705 + $0x20] sm:$0xff]
          %v711 = vld [vmem:[%s705 + $0x28] sm:$0xff]
          %v712 = vld [vmem:[%s705 + $0x30] sm:$0xff]
          %v713 = vld [vmem:[%s705 + $0x38] sm:$0xff]
          %v714 = vld [vmem:[%s705 + $0x40] sm:$0xff]
          %v715 = vld [vmem:[%s705 + $0x48] sm:$0xff]
          %v716 = vld [vmem:[%s705 + $0x50] sm:$0xff]
          %v717 = vld [vmem:[%s705 + $0x58] sm:$0xff]
          %v718 = vld [vmem:[%s705 + $0x60] sm:$0xff]
          %v719 = vld [vmem:[%s705 + $0x68] sm:$0x3f]
          %v721 = vsel %vm329, %v706, 0
          %v724 = vsel %vm329, %v707, 0
          %v727 = vsel %vm329, %v708, 0
          %v730 = vsel %vm329, %v709, 0
          %v733 = vsel %vm329, %v710, 0
          %v736 = vsel %vm329, %v711, 0
          %v739 = vsel %vm329, %v712, 0
          %v742 = vsel %vm329, %v713, 0
          %v745 = vsel %vm329, %v714, 0
          %v748 = vsel %vm329, %v715, 0
          %v751 = vsel %vm329, %v716, 0
          %v754 = vsel %vm329, %v717, 0
          %v757 = vsel %vm329, %v718, 0
          %v760 = vsel %vm329, %v719, 0
          %762 = vmatprep.subr.mxu0 0.0
          %763 = vmatpush1.msra.mxu0 %v303
          %764 = vmatprep.subr.mxu0 0.0
          %765 = vmatpush1.msra.mxu0 %v304
          %766 = vmatprep.subr.mxu0 0.0
          %767 = vmatpush1.msra.mxu0 %v305
          %768 = vmatprep.subr.mxu0 0.0
          %769 = vmatpush1.msra.mxu0 %v306
          %770 = vmatprep.subr.mxu0 0.0
          %771 = vmatpush1.msra.mxu0 %v307
          %772 = vmatprep.subr.mxu0 0.0
          %773 = vmatpush1.msra.mxu0 %v308
          %774 = vmatprep.subr.mxu0 0.0
          %775 = vmatpush1.msra.mxu0 %v309
          %776 = vmatprep.subr.mxu0 0.0
          %777 = vmatpush1.msra.mxu0 %v310
          %778 = vmatprep.subr.mxu0 0.0
          %779 = vmatpush1.msra.mxu0 %v311
          %780 = vmatprep.subr.mxu0 0.0
          %781 = vmatpush1.msra.mxu0 %v374
          %782 = vmatprep.subr.mxu0 0.0
          %783 = vmatpush1.msra.mxu0 0.0
          %784 = vmatprep.subr.mxu0 0.0
          %785 = vmatpush1.msra.mxu0 0.0
          %786 = vmatprep.subr.mxu0 0.0
          %787 = vmatpush1.msra.mxu0 0.0
          %788 = vmatprep.subr.mxu0 0.0
          %789 = vmatpush1.msra.mxu0 0.0
          %790 = vmatprep.subr.mxu0 0.0
          %791 = vmatpush1.msra.mxu0 0.0
          %792 = vmatprep.subr.mxu0 0.0
          %793 = vmatpush1.msra.mxu0 0.0
          %794 = vmatprep.subr.mxu0 0.0
          %795 = vmatpush1.msra.mxu0 0.0
          %796 = vmatprep.subr.mxu0 0.0
          %797 = vmatpush1.msra.mxu0 0.0
          %798 = vmatprep.subr.mxu0 0.0
          %799 = vmatpush1.msra.mxu0 0.0
          %800 = vmatprep.subr.mxu0 0.0
          %801 = vmatpush1.msra.mxu0 0.0
          %802 = vmatprep.subr.mxu0 0.0
          %803 = vmatpush1.msra.mxu0 0.0
          %804 = vmatprep.subr.mxu0 0.0
          %805 = vmatpush1.msra.mxu0 0.0
          %806 = vmatprep.subr.mxu0 0.0
          %807 = vmatpush1.msra.mxu0 0.0
          %808 = vmatprep.subr.mxu0 0.0
          %809 = vmatpush1.msra.mxu0 0.0
          %810 = vmatprep.subr.mxu0 0.0
          %811 = vmatpush1.msra.mxu0 0.0
          %812 = vmatprep.subr.mxu0 0.0
          %813 = vmatpush1.msra.mxu0 0.0
          %814 = vmatprep.subr.mxu0 0.0
          %815 = vmatpush1.msra.mxu0 0.0
          %816 = vmatprep.subr.mxu0 0.0
          %817 = vmatpush1.msra.mxu0 0.0
          %818 = vmatprep.subr.mxu0 0.0
          %819 = vmatpush1.msra.mxu0 0.0
          %820 = vmatprep.subr.mxu0 0.0
          %821 = vmatpush1.msra.mxu0 0.0
          %822 = vmatprep.subr.mxu0 0.0
          %823 = vmatpush1.msra.mxu0 0.0
          %824 = vmatprep.subr.mxu0 0.0
          %825 = vmatpush1.msra.mxu0 0.0
          %826 = vmatprep.mubr.f32.mxu0 0.0
          %827 = vmatmul.mubr.f32.gmra.mrb[0].mxu0 %v721
          %v828 = vpop.f32.mrb[0].mxu0
          %v829 = vadd.f32 0.0, %v828
          %v830 = vpop.f32.mrb[0].mxu0
          %831 = vmatprep.mubr.f32.mxu0 0.0
          %832 = vmatmul.mubr.f32.gmra.mrb[0].mxu0 %v724
          %v833 = vpop.f32.mrb[0].mxu0
          %v834 = vadd.f32 0.0, %v833
          %v835 = vpop.f32.mrb[0].mxu0
          %836 = vmatprep.mubr.f32.mxu0 0.0
          %837 = vmatmul.mubr.f32.gmra.mrb[0].mxu0 %v727
          %v838 = vpop.f32.mrb[0].mxu0
          %v839 = vadd.f32 0.0, %v838
          %v840 = vpop.f32.mrb[0].mxu0
          %841 = vmatprep.mubr.f32.mxu0 0.0
          %842 = vmatmul.mubr.f32.gmra.mrb[0].mxu0 %v730
          %v843 = vpop.f32.mrb[0].mxu0
          %v844 = vadd.f32 0.0, %v843
          %v845 = vpop.f32.mrb[0].mxu0
          %846 = vmatprep.mubr.f32.mxu0 0.0
          %847 = vmatmul.mubr.f32.gmra.mrb[0].mxu0 %v733
          %v848 = vpop.f32.mrb[0].mxu0
          %v849 = vadd.f32 0.0, %v848
          %v850 = vpop.f32.mrb[0].mxu0
          %851 = vmatprep.mubr.f32.mxu0 0.0
          %852 = vmatmul.mubr.f32.gmra.mrb[0].mxu0 %v736
          %v853 = vpop.f32.mrb[0].mxu0
          %v854 = vadd.f32 0.0, %v853
          %v855 = vpop.f32.mrb[0].mxu0
          %856 = vmatprep.mubr.f32.mxu0 0.0
          %857 = vmatmul.mubr.f32.gmra.mrb[0].mxu0 %v739
          %v858 = vpop.f32.mrb[0].mxu0
          %v859 = vadd.f32 0.0, %v858
          %v860 = vpop.f32.mrb[0].mxu0
          %861 = vmatprep.mubr.f32.mxu0 0.0
          %862 = vmatmul.mubr.f32.gmra.mrb[0].mxu0 %v742
          %v863 = vpop.f32.mrb[0].mxu0
          %v864 = vadd.f32 0.0, %v863
          %v865 = vpop.f32.mrb[0].mxu0
          %866 = vmatprep.mubr.f32.mxu0 0.0
          %867 = vmatmul.mubr.f32.gmra.mrb[0].mxu0 %v745
          %v868 = vpop.f32.mrb[0].mxu0
          %v869 = vadd.f32 0.0, %v868
          %v870 = vpop.f32.mrb[0].mxu0
          %871 = vmatprep.mubr.f32.mxu0 0.0
          %872 = vmatmul.mubr.f32.gmra.mrb[0].mxu0 %v748
          %v873 = vpop.f32.mrb[0].mxu0
          %v874 = vadd.f32 0.0, %v873
          %v875 = vpop.f32.mrb[0].mxu0
          %876 = vmatprep.mubr.f32.mxu0 0.0
          %877 = vmatmul.mubr.f32.gmra.mrb[0].mxu0 %v751
          %v878 = vpop.f32.mrb[0].mxu0
          %v879 = vadd.f32 0.0, %v878
          %v880 = vpop.f32.mrb[0].mxu0
          %881 = vmatprep.mubr.f32.mxu0 0.0
          %882 = vmatmul.mubr.f32.gmra.mrb[0].mxu0 %v754
          %v883 = vpop.f32.mrb[0].mxu0
          %v884 = vadd.f32 0.0, %v883
          %v885 = vpop.f32.mrb[0].mxu0
          %886 = vmatprep.mubr.f32.mxu0 0.0
          %887 = vmatmul.mubr.f32.gmra.mrb[0].mxu0 %v757
          %v888 = vpop.f32.mrb[0].mxu0
          %v889 = vadd.f32 0.0, %v888
          %v890 = vpop.f32.mrb[0].mxu0
          %891 = vmatprep.mubr.f32.mxu0 0.0
          %892 = vmatmul.mubr.f32.gmra.mrb[0].mxu0 %v760
          %v893 = vpop.f32.mrb[0].mxu0
          %v894 = vadd.f32 0.0, %v893
          %v895 = vpop.f32.mrb[0].mxu0
          %896 = vdwg.mxu0
          %s897 = scalar_lea.vmem %s247, %s704 [#allocation4]
          %v898 = vld [vmem:[%s897] sm:$0xff]
          %v899 = vld [vmem:[%s897 + $0x8] sm:$0xff]
          %v900 = vld [vmem:[%s897 + $0x10] sm:$0xff]
          %v901 = vld [vmem:[%s897 + $0x18] sm:$0xff]
          %v902 = vld [vmem:[%s897 + $0x20] sm:$0xff]
          %v903 = vld [vmem:[%s897 + $0x28] sm:$0xff]
          %v904 = vld [vmem:[%s897 + $0x30] sm:$0xff]
          %v905 = vld [vmem:[%s897 + $0x38] sm:$0xff]
          %v906 = vld [vmem:[%s897 + $0x40] sm:$0xff]
          %v907 = vld [vmem:[%s897 + $0x48] sm:$0xff]
          %v908 = vld [vmem:[%s897 + $0x50] sm:$0xff]
          %v909 = vld [vmem:[%s897 + $0x58] sm:$0xff]
          %v910 = vld [vmem:[%s897 + $0x60] sm:$0xff]
          %v911 = vld [vmem:[%s897 + $0x68] sm:$0x3f]
          %v913 = vsel %vm329, %v898, 0
          %v916 = vsel %vm329, %v899, 0
          %v919 = vsel %vm329, %v900, 0
          %v922 = vsel %vm329, %v901, 0
          %v925 = vsel %vm329, %v902, 0
          %v928 = vsel %vm329, %v903, 0
          %v931 = vsel %vm329, %v904, 0
          %v934 = vsel %vm329, %v905, 0
          %v937 = vsel %vm329, %v906, 0
          %v940 = vsel %vm329, %v907, 0
          %v943 = vsel %vm329, %v908, 0
          %v946 = vsel %vm329, %v909, 0
          %v949 = vsel %vm329, %v910, 0
          %v952 = vsel %vm329, %v911, 0
          %954 = vmatprep.subr.mxu0 0.0
          %955 = vmatpush1.msra.mxu0 %v303
          %956 = vmatprep.subr.mxu0 0.0
          %957 = vmatpush1.msra.mxu0 %v304
          %958 = vmatprep.subr.mxu0 0.0
          %959 = vmatpush1.msra.mxu0 %v305
          %960 = vmatprep.subr.mxu0 0.0
          %961 = vmatpush1.msra.mxu0 %v306
          %962 = vmatprep.subr.mxu0 0.0
          %963 = vmatpush1.msra.mxu0 %v307
          %964 = vmatprep.subr.mxu0 0.0
          %965 = vmatpush1.msra.mxu0 %v308
          %966 = vmatprep.subr.mxu0 0.0
          %967 = vmatpush1.msra.mxu0 %v309
          %968 = vmatprep.subr.mxu0 0.0
          %969 = vmatpush1.msra.mxu0 %v310
          %970 = vmatprep.subr.mxu0 0.0
          %971 = vmatpush1.msra.mxu0 %v311
          %972 = vmatprep.subr.mxu0 0.0
          %973 = vmatpush1.msra.mxu0 %v374
          %974 = vmatprep.subr.mxu0 0.0
          %975 = vmatpush1.msra.mxu0 0.0
          %976 = vmatprep.subr.mxu0 0.0
          %977 = vmatpush1.msra.mxu0 0.0
          %978 = vmatprep.subr.mxu0 0.0
          %979 = vmatpush1.msra.mxu0 0.0
          %980 = vmatprep.subr.mxu0 0.0
          %981 = vmatpush1.msra.mxu0 0.0
          %982 = vmatprep.subr.mxu0 0.0
          %983 = vmatpush1.msra.mxu0 0.0
          %984 = vmatprep.subr.mxu0 0.0
          %985 = vmatpush1.msra.mxu0 0.0
          %986 = vmatprep.subr.mxu0 0.0
          %987 = vmatpush1.msra.mxu0 0.0
          %988 = vmatprep.subr.mxu0 0.0
          %989 = vmatpush1.msra.mxu0 0.0
          %990 = vmatprep.subr.mxu0 0.0
          %991 = vmatpush1.msra.mxu0 0.0
          %992 = vmatprep.subr.mxu0 0.0
          %993 = vmatpush1.msra.mxu0 0.0
          %994 = vmatprep.subr.mxu0 0.0
          %995 = vmatpush1.msra.mxu0 0.0
          %996 = vmatprep.subr.mxu0 0.0
          %997 = vmatpush1.msra.mxu0 0.0
          %998 = vmatprep.subr.mxu0 0.0
          %999 = vmatpush1.msra.mxu0 0.0
          %1000 = vmatprep.subr.mxu0 0.0
          %1001 = vmatpush1.msra.mxu0 0.0
          %1002 = vmatprep.subr.mxu0 0.0
          %1003 = vmatpush1.msra.mxu0 0.0
          %1004 = vmatprep.subr.mxu0 0.0
          %1005 = vmatpush1.msra.mxu0 0.0
          %1006 = vmatprep.subr.mxu0 0.0
          %1007 = vmatpush1.msra.mxu0 0.0
          %1008 = vmatprep.subr.mxu0 0.0
          %1009 = vmatpush1.msra.mxu0 0.0
          %1010 = vmatprep.subr.mxu0 0.0
          %1011 = vmatpush1.msra.mxu0 0.0
          %1012 = vmatprep.subr.mxu0 0.0
          %1013 = vmatpush1.msra.mxu0 0.0
          %1014 = vmatprep.subr.mxu0 0.0
          %1015 = vmatpush1.msra.mxu0 0.0
          %1016 = vmatprep.subr.mxu0 0.0
          %1017 = vmatpush1.msra.mxu0 0.0
          %1018 = vmatprep.mubr.f32.mxu0 0.0
          %1019 = vmatmul.mubr.f32.gmra.mrb[0].mxu0 %v913
          %v1020 = vpop.f32.mrb[0].mxu0
          %v1021 = vadd.f32 0.0, %v1020
          %v1022 = vpop.f32.mrb[0].mxu0
          %1023 = vmatprep.mubr.f32.mxu0 0.0
          %1024 = vmatmul.mubr.f32.gmra.mrb[0].mxu0 %v916
          %v1025 = vpop.f32.mrb[0].mxu0
          %v1026 = vadd.f32 0.0, %v1025
          %v1027 = vpop.f32.mrb[0].mxu0
          %1028 = vmatprep.mubr.f32.mxu0 0.0
          %1029 = vmatmul.mubr.f32.gmra.mrb[0].mxu0 %v919
          %v1030 = vpop.f32.mrb[0].mxu0
          %v1031 = vadd.f32 0.0, %v1030
          %v1032 = vpop.f32.mrb[0].mxu0
          %1033 = vmatprep.mubr.f32.mxu0 0.0
          %1034 = vmatmul.mubr.f32.gmra.mrb[0].mxu0 %v922
          %v1035 = vpop.f32.mrb[0].mxu0
          %v1036 = vadd.f32 0.0, %v1035
          %v1037 = vpop.f32.mrb[0].mxu0
          %1038 = vmatprep.mubr.f32.mxu0 0.0
          %1039 = vmatmul.mubr.f32.gmra.mrb[0].mxu0 %v925
          %v1040 = vpop.f32.mrb[0].mxu0
          %v1041 = vadd.f32 0.0, %v1040
          %v1042 = vpop.f32.mrb[0].mxu0
          %1043 = vmatprep.mubr.f32.mxu0 0.0
          %1044 = vmatmul.mubr.f32.gmra.mrb[0].mxu0 %v928
          %v1045 = vpop.f32.mrb[0].mxu0
          %v1046 = vadd.f32 0.0, %v1045
          %v1047 = vpop.f32.mrb[0].mxu0
          %1048 = vmatprep.mubr.f32.mxu0 0.0
          %1049 = vmatmul.mubr.f32.gmra.mrb[0].mxu0 %v931
          %v1050 = vpop.f32.mrb[0].mxu0
          %v1051 = vadd.f32 0.0, %v1050
          %v1052 = vpop.f32.mrb[0].mxu0
          %1053 = vmatprep.mubr.f32.mxu0 0.0
          %1054 = vmatmul.mubr.f32.gmra.mrb[0].mxu0 %v934
          %v1055 = vpop.f32.mrb[0].mxu0
          %v1056 = vadd.f32 0.0, %v1055
          %v1057 = vpop.f32.mrb[0].mxu0
          %1058 = vmatprep.mubr.f32.mxu0 0.0
          %1059 = vmatmul.mubr.f32.gmra.mrb[0].mxu0 %v937
          %v1060 = vpop.f32.mrb[0].mxu0
          %v1061 = vadd.f32 0.0, %v1060
          %v1062 = vpop.f32.mrb[0].mxu0
          %1063 = vmatprep.mubr.f32.mxu0 0.0
          %1064 = vmatmul.mubr.f32.gmra.mrb[0].mxu0 %v940
          %v1065 = vpop.f32.mrb[0].mxu0
          %v1066 = vadd.f32 0.0, %v1065
          %v1067 = vpop.f32.mrb[0].mxu0
          %1068 = vmatprep.mubr.f32.mxu0 0.0
          %1069 = vmatmul.mubr.f32.gmra.mrb[0].mxu0 %v943
          %v1070 = vpop.f32.mrb[0].mxu0
          %v1071 = vadd.f32 0.0, %v1070
          %v1072 = vpop.f32.mrb[0].mxu0
          %1073 = vmatprep.mubr.f32.mxu0 0.0
          %1074 = vmatmul.mubr.f32.gmra.mrb[0].mxu0 %v946
          %v1075 = vpop.f32.mrb[0].mxu0
          %v1076 = vadd.f32 0.0, %v1075
          %v1077 = vpop.f32.mrb[0].mxu0
          %1078 = vmatprep.mubr.f32.mxu0 0.0
          %1079 = vmatmul.mubr.f32.gmra.mrb[0].mxu0 %v949
          %v1080 = vpop.f32.mrb[0].mxu0
          %v1081 = vadd.f32 0.0, %v1080
          %v1082 = vpop.f32.mrb[0].mxu0
          %1083 = vmatprep.mubr.f32.mxu0 0.0
          %1084 = vmatmul.mubr.f32.gmra.mrb[0].mxu0 %v952
          %v1085 = vpop.f32.mrb[0].mxu0
          %v1086 = vadd.f32 0.0, %v1085
          %v1087 = vpop.f32.mrb[0].mxu0
          %1088 = vdwg.mxu0
          %v1089 = vmax.f32 %v443, %v635
          %v1090 = vmax.f32 %v448, %v640
          %v1091 = vmax.f32 %v453, %v645
          %v1092 = vmax.f32 %v458, %v650
          %v1093 = vmax.f32 %v463, %v655
          %v1094 = vmax.f32 %v468, %v660
          %v1095 = vmax.f32 %v473, %v665
          %v1096 = vmax.f32 %v478, %v670
          %v1097 = vmax.f32 %v483, %v675
          %v1098 = vmax.f32 %v488, %v680
          %v1099 = vmax.f32 %v493, %v685
          %v1100 = vmax.f32 %v498, %v690
          %v1101 = vmax.f32 %v503, %v695
          %v1102 = vmax.f32 %v508, %v700
          %v1103 = vmax.f32 %v829, %v1021
          %v1104 = vmax.f32 %v834, %v1026
          %v1105 = vmax.f32 %v839, %v1031
          %v1106 = vmax.f32 %v844, %v1036
          %v1107 = vmax.f32 %v849, %v1041
          %v1108 = vmax.f32 %v854, %v1046
          %v1109 = vmax.f32 %v859, %v1051
          %v1110 = vmax.f32 %v864, %v1056
          %v1111 = vmax.f32 %v869, %v1061
          %v1112 = vmax.f32 %v874, %v1066
          %v1113 = vmax.f32 %v879, %v1071
          %v1114 = vmax.f32 %v884, %v1076
          %v1115 = vmax.f32 %v889, %v1081
          %v1116 = vmax.f32 %v894, %v1086
          %v1117 = vmax.f32 %v1089, %v1103
          %v1118 = vmax.f32 %v1090, %v1104
          %v1119 = vmax.f32 %v1091, %v1105
          %v1120 = vmax.f32 %v1092, %v1106
          %v1121 = vmax.f32 %v1093, %v1107
          %v1122 = vmax.f32 %v1094, %v1108
          %v1123 = vmax.f32 %v1095, %v1109
          %v1124 = vmax.f32 %v1096, %v1110
          %v1125 = vmax.f32 %v1097, %v1111
          %v1126 = vmax.f32 %v1098, %v1112
          %v1127 = vmax.f32 %v1099, %v1113
          %v1128 = vmax.f32 %v1100, %v1114
          %v1129 = vmax.f32 %v1101, %v1115
          %v1130 = vmax.f32 %v1102, %v1116
          %v1132 = vlaneseq
          %v1133 = vshrl.u32 %v1132, 7
          %v1134 = vsub.s32 0, %v1133
          %v1135 = vrot.slane %v295, %v1134
          %v1137 = vadd.f32 %v1117, %v1135
          %v1138 = vadd.f32 %v1118, %v1135
          %v1139 = vadd.f32 %v1119, %v1135
          %v1140 = vadd.f32 %v1120, %v1135
          %v1141 = vadd.f32 %v1121, %v1135
          %v1142 = vadd.f32 %v1122, %v1135
          %v1143 = vadd.f32 %v1123, %v1135
          %v1144 = vadd.f32 %v1124, %v1135
          %v1145 = vadd.f32 %v1125, %v1135
          %v1146 = vadd.f32 %v1126, %v1135
          %v1147 = vadd.f32 %v1127, %v1135
          %v1148 = vadd.f32 %v1128, %v1135
          %v1149 = vadd.f32 %v1129, %v1135
          %v1150 = vadd.f32 %v1130, %v1135
          %v1151 = vmax.f32 %v1137, 0.0
          %v1152 = vmax.f32 %v1138, 0.0
          %v1153 = vmax.f32 %v1139, 0.0
          %v1154 = vmax.f32 %v1140, 0.0
          %v1155 = vmax.f32 %v1141, 0.0
          %v1156 = vmax.f32 %v1142, 0.0
          %v1157 = vmax.f32 %v1143, 0.0
          %v1158 = vmax.f32 %v1144, 0.0
          %v1159 = vmax.f32 %v1145, 0.0
          %v1160 = vmax.f32 %v1146, 0.0
          %v1161 = vmax.f32 %v1147, 0.0
          %v1162 = vmax.f32 %v1148, 0.0
          %v1163 = vmax.f32 %v1149, 0.0
          %v1164 = vmax.f32 %v1150, 0.0
          %s1165 = smul.u32 %s297, 112
          %s1166 = scalar_lea.vmem %s293, %s1165
          %vm1167 = vcmask 523264
          %1168 = vst.msk [vmem:[%s1166] sm:$0xff] %vm1167, %v1151
          %1169 = vst.msk [vmem:[%s1166 + $0x8] sm:$0xff] %vm1167, %v1152
          %1170 = vst.msk [vmem:[%s1166 + $0x10] sm:$0xff] %vm1167, %v1153
          %1171 = vst.msk [vmem:[%s1166 + $0x18] sm:$0xff] %vm1167, %v1154
          %1172 = vst.msk [vmem:[%s1166 + $0x20] sm:$0xff] %vm1167, %v1155
          %1173 = vst.msk [vmem:[%s1166 + $0x28] sm:$0xff] %vm1167, %v1156
          %1174 = vst.msk [vmem:[%s1166 + $0x30] sm:$0xff] %vm1167, %v1157
          %1175 = vst.msk [vmem:[%s1166 + $0x38] sm:$0xff] %vm1167, %v1158
          %1176 = vst.msk [vmem:[%s1166 + $0x40] sm:$0xff] %vm1167, %v1159
          %1177 = vst.msk [vmem:[%s1166 + $0x48] sm:$0xff] %vm1167, %v1160
          %1178 = vst.msk [vmem:[%s1166 + $0x50] sm:$0xff] %vm1167, %v1161
          %1179 = vst.msk [vmem:[%s1166 + $0x58] sm:$0xff] %vm1167, %v1162
          %1180 = vst.msk [vmem:[%s1166 + $0x60] sm:$0xff] %vm1167, %v1163
          %vm1181 = vcmask 521216
          %1182 = vst.msk [vmem:[%s1166 + $0x68] sm:$0x3f] %vm1181, %v1164
        $region49: #{simple_classifier_forward.4} parent=35 // loop_footer
          %s301 = sadd.s32 1, %s297
        $region50: #{simple_classifier_forward.4} parent=35 // loop_footer_branch
          %296 = sbr.rel target = $region46
        $region51: #{simple_classifier_forward.4} parent=35 // loop_exit
          _
        %s1183 = smul.u32 22, %s26
        %p1184 = scmp.lt.s32.totalorder %s25, 1
        %s1185 = scalar_select %p1184, %s25, 1
        %p1186 = scmp.lt.s32.totalorder %s1183, 109
        %s1187 = scalar_select %p1186, %s1183, 109
        %s1188 = smul.addr %s1187, 14
        %s1189 = smul.addr %s1185, 1540
        %s1190 = sadd.s32 %s1188, %s1189
        %s1191 = smul.addr %s1190, 8
        %s1192 = scalar_lea.vmem %s4, %s1191
        // Predicated region
        $region52: #{simple_classifier_forward.4} parent=35 // pred_check
          %p1193 = pneg %p151
        $region53: #{simple_classifier_forward.4} parent=35 // pred_check_branch
          %1195 = sbr.rel (%p1193) target = $region55
        $region54: #{simple_classifier_forward.4} parent=35 // pred_region
          %s1196 = smul.u32 22, %s26
        $region55: #{simple_classifier_forward.4} parent=35 // pred_fallthru
          _
      $region36: #{simple_classifier_forward.4} parent=5 // pred_fallthru
        _
      %p1197 = scmp.le.s32.totalorder 2, %s16
      // Predicated region
      $region56: #{simple_classifier_forward.4} parent=5 // pred_check
        %p1198 = pneg %p1197
      $region57: #{simple_classifier_forward.4} parent=5 // pred_check_branch
        %1200 = sbr.rel (%p1198) target = $region59
      $region58: #{simple_classifier_forward.4} parent=5 // pred_region
        %s1201 = ssub.s32 %s16, 2
        // Predicated region
        $region60: #{simple_classifier_forward.4} parent=58 // pred_check
          %p1202 = pneg %p157
        $region61: #{simple_classifier_forward.4} parent=58 // pred_check_branch
          %1204 = sbr.rel (%p1202) target = $region63
        $region62: #{simple_classifier_forward.4} parent=58 // pred_region
          %s1205 = smul.u32 22, %s28
          %p1206 = scmp.lt.s32.totalorder %s27, 1
          %s1207 = scalar_select %p1206, %s27, 1
          %p1208 = scmp.lt.s32.totalorder %s1205, 109
          %s1209 = scalar_select %p1208, %s1205, 109
          %s1210 = smul.addr %s1209, 14
          %s1211 = smul.addr %s1207, 1540
          %s1212 = sadd.s32 %s1210, %s1211
          %s1213 = smul.addr %s1212, 8
          %s1214 = scalar_lea.vmem %s4, %s1213
        $region63: #{simple_classifier_forward.4} parent=58 // pred_fallthru
          _
      $region59: #{simple_classifier_forward.4} parent=5 // pred_fallthru
        _
    $region6: #{simple_classifier_forward.4} parent=1 // loop_footer
      %s20 = sadd.s32 1, %s16
    $region7: #{simple_classifier_forward.4} parent=1 // loop_footer_branch
      %15 = sbr.rel target = $region3
    $region8: #{simple_classifier_forward.4} parent=1 // loop_exit
      _
    %1215 = vsyncpa [#allocation3], 1
    %s1216 = scalar_lea.sflag [#allocation3], 1
    %1217 = vsyncpa %s1216, 1
    %1218 = vsyncpa [#allocation5], 1
    %s1219 = scalar_lea.sflag [#allocation5], 1
    %1220 = vsyncpa %s1219, 1

// kernel: simple_classifier_forward.5
$region0: #{simple_classifier_forward.5}
  #allocation0 [shape = 'u32[]', space=smem, size = 0x4, offset = 0x4, fixed_abs, tag = 'smem constant byte address 0x4 - core index']
  #allocation1 [shape = 'u32[144,128]{1,0:T(1,128)}', space=vmem, size = 0x12000, scoped, tag = 'internal scratch']
  %s0 = inlined_call_operand.vmem [shape: f32[2,110,54,192], index: 0, kind: input, shape index: {}]
  %s1 = inlined_call_operand.vmem [shape: f32[2,110,54,192], index: 1, kind: input, shape index: {}]
  %s2 = inlined_call_operand.vmem [shape: f32[3,192,32], index: 2, kind: input, shape index: {}]
  %s3 = inlined_call_operand.vmem [shape: f32[1,32], index: 3, kind: input, shape index: {}]
  %s4 = inlined_call_operand.vmem [shape: f32[2,54,54,32], index: 4, kind: output, shape index: {}]
  %s5 = sld [smem:[#allocation0]]
  $region56: #{simple_classifier_forward.5} parent=0
    _
  %s7 = ssub.s32 1, %s5
  %s8 = scalar_select 0, %s7, %s5
  loop: start=0, step=1, limit=4
  $region2: #{simple_classifier_forward.5} parent=0 // loop_pre_header
    _
  $region3: #{simple_classifier_forward.5} parent=0 // loop_header
    %s10 = sphi 0, %s14
    %p11 = scmp.ge.s32.totalorder %s10, 4
    %s17 = sphi 0, %s29
    %s18 = sphi 0, %s25
    %s19 = sphi 0, %s17
    %s20 = sphi 0, %s18
    %s21 = sphi 0, %s19
    %s22 = sphi 0, %s20
    %s34 = sphi 0, %s36
    %s37 = sphi 0, %s34
    %s38 = sphi 0, %s37
    %s54 = sphi 0, %s38
    %s62 = sphi 0, %s64
    %s65 = sphi 0, %s62
    %s66 = sphi 0, %s65
    %s82 = sphi 0, %s66
    %s86 = sphi 0, %s86
    %s88 = sphi 0, %s86
    %s89 = sphi 0, %s88
    %s103 = sphi 0, %s89
    %s107 = sphi 0, %s107
    %s109 = sphi 0, %s107
    %s110 = sphi 0, %s109
    %s124 = sphi 0, %s110
    %s132 = sphi 0, %s134
    %s135 = sphi 0, %s132
    %s136 = sphi 0, %s135
    %s152 = sphi 0, %s136
  $region4: #{simple_classifier_forward.5} parent=0 // loop_header_branch
    %13 = sbr.rel (%p11) target = $region8
  $region5: #{simple_classifier_forward.5} parent=0 // loop_body
    %s15 = ssub.s32 %s10, 1
    %s16 = ssub.s32 %s10, 2
    %s23 = sadd.s32 1, %s18
    %p24 = scmp.ge.s32.totalorder %s23, 1
    %s25 = scalar_select %p24, 0, %s23
    %s26 = sadd.s32 1, %s17
    %s27 = scalar_select %p24, %s26, %s17
    %p28 = scmp.ge.s32.totalorder %s27, 2
    %s29 = scalar_select %p28, 0, %s27
    %s30 = ssub.s32 %s17, %s29
    %s31 = ssub.s32 %s18, %s25
    %s32 = sor.u32 %s30, %s31
    %p33 = scmp.eq.s32.totalorder %s32, 0
    %s35 = sadd.s32 %s34, 1
    %s36 = scalar_select %p33, %s34, %s35
    %p39 = pneg %p33
    %p40 = scmp.eq.s32.totalorder %s10, 1
    %p41 = por %p39, %p40
    %p42 = scmp.ne.s32.totalorder %s34, %s37
    %p43 = scmp.eq.s32.totalorder %s10, 0
    %p44 = por %p42, %p43
    %p45 = scmp.ne.s32.totalorder %s34, %s37
    %p46 = scmp.eq.s32.totalorder %s15, 1
    %p47 = por %p45, %p46
    %p48 = scmp.ne.s32.totalorder %s37, %s38
    %p49 = scmp.eq.s32.totalorder %s15, 0
    %p50 = por %p48, %p49
    %p51 = scmp.ne.s32.totalorder %s37, %s38
    %p52 = scmp.eq.s32.totalorder %s16, 1
    %p53 = por %p51, %p52
    %p55 = scmp.ne.s32.totalorder %s38, %s54
    %p56 = scmp.eq.s32.totalorder %s16, 0
    %p57 = por %p55, %p56
    %s58 = ssub.s32 %s17, %s29
    %s59 = ssub.s32 %s18, %s25
    %s60 = sor.u32 %s58, %s59
    %p61 = scmp.eq.s32.totalorder %s60, 0
    %s63 = sadd.s32 %s62, 1
    %s64 = scalar_select %p61, %s62, %s63
    %p67 = pneg %p61
    %p68 = scmp.eq.s32.totalorder %s10, 1
    %p69 = por %p67, %p68
    %p70 = scmp.ne.s32.totalorder %s62, %s65
    %p71 = scmp.eq.s32.totalorder %s10, 0
    %p72 = por %p70, %p71
    %p73 = scmp.ne.s32.totalorder %s62, %s65
    %p74 = scmp.eq.s32.totalorder %s15, 1
    %p75 = por %p73, %p74
    %p76 = scmp.ne.s32.totalorder %s65, %s66
    %p77 = scmp.eq.s32.totalorder %s15, 0
    %p78 = por %p76, %p77
    %p79 = scmp.ne.s32.totalorder %s65, %s66
    %p80 = scmp.eq.s32.totalorder %s16, 1
    %p81 = por %p79, %p80
    %p83 = scmp.ne.s32.totalorder %s66, %s82
    %p84 = scmp.eq.s32.totalorder %s16, 0
    %p85 = por %p83, %p84
    %s87 = sadd.s32 %s86, 1
    %p90 = scmp.eq.s32.totalorder %s10, 1
    %p91 = scmp.ne.s32.totalorder %s86, %s88
    %p92 = scmp.eq.s32.totalorder %s10, 0
    %p93 = por %p91, %p92
    %p94 = scmp.ne.s32.totalorder %s86, %s88
    %p95 = scmp.eq.s32.totalorder %s15, 1
    %p96 = por %p94, %p95
    %p97 = scmp.ne.s32.totalorder %s88, %s89
    %p98 = scmp.eq.s32.totalorder %s15, 0
    %p99 = por %p97, %p98
    %p100 = scmp.ne.s32.totalorder %s88, %s89
    %p101 = scmp.eq.s32.totalorder %s16, 1
    %p102 = por %p100, %p101
    %p104 = scmp.ne.s32.totalorder %s89, %s103
    %p105 = scmp.eq.s32.totalorder %s16, 0
    %p106 = por %p104, %p105
    %s108 = sadd.s32 %s107, 1
    %p111 = scmp.eq.s32.totalorder %s10, 1
    %p112 = scmp.ne.s32.totalorder %s107, %s109
    %p113 = scmp.eq.s32.totalorder %s10, 0
    %p114 = por %p112, %p113
    %p115 = scmp.ne.s32.totalorder %s107, %s109
    %p116 = scmp.eq.s32.totalorder %s15, 1
    %p117 = por %p115, %p116
    %p118 = scmp.ne.s32.totalorder %s109, %s110
    %p119 = scmp.eq.s32.totalorder %s15, 0
    %p120 = por %p118, %p119
    %p121 = scmp.ne.s32.totalorder %s109, %s110
    %p122 = scmp.eq.s32.totalorder %s16, 1
    %p123 = por %p121, %p122
    %p125 = scmp.ne.s32.totalorder %s110, %s124
    %p126 = scmp.eq.s32.totalorder %s16, 0
    %p127 = por %p125, %p126
    %s128 = ssub.s32 %s17, %s29
    %s129 = ssub.s32 %s18, %s25
    %s130 = sor.u32 %s128, %s129
    %p131 = scmp.eq.s32.totalorder %s130, 0
    %s133 = sadd.s32 %s132, 1
    %s134 = scalar_select %p131, %s132, %s133
    %p137 = pneg %p131
    %p138 = scmp.eq.s32.totalorder %s10, 1
    %p139 = por %p137, %p138
    %p140 = scmp.ne.s32.totalorder %s132, %s135
    %p141 = scmp.eq.s32.totalorder %s10, 0
    %p142 = por %p140, %p141
    %p143 = scmp.ne.s32.totalorder %s132, %s135
    %p144 = scmp.eq.s32.totalorder %s15, 1
    %p145 = por %p143, %p144
    %p146 = scmp.ne.s32.totalorder %s135, %s136
    %p147 = scmp.eq.s32.totalorder %s15, 0
    %p148 = por %p146, %p147
    %p149 = scmp.ne.s32.totalorder %s135, %s136
    %p150 = scmp.eq.s32.totalorder %s16, 1
    %p151 = por %p149, %p150
    %p153 = scmp.ne.s32.totalorder %s136, %s152
    %p154 = scmp.eq.s32.totalorder %s16, 0
    %p155 = por %p153, %p154
    %p156 = scmp.le.s32.totalorder 1, %s10
    %p157 = scmp.lt.s32.totalorder %s10, 3
    %p158 = pnand %p156, %p157
    %p159 = pneg %p158
    // Predicated region
    $region9: #{simple_classifier_forward.5} parent=5 // pred_check
      _
    $region10: #{simple_classifier_forward.5} parent=5 // pred_check_branch
      %161 = sbr.rel (%p158) target = $region12
    $region11: #{simple_classifier_forward.5} parent=5 // pred_region
      %s162 = ssub.s32 %s10, 1
      // Predicated region
      $region13: #{simple_classifier_forward.5} parent=11 // pred_check
        %p163 = pneg %p99
      $region14: #{simple_classifier_forward.5} parent=11 // pred_check_branch
        %165 = sbr.rel (%p163) target = $region16
      $region15: #{simple_classifier_forward.5} parent=11 // pred_region
        _
      $region16: #{simple_classifier_forward.5} parent=11 // pred_fallthru
        _
      // Predicated region
      $region17: #{simple_classifier_forward.5} parent=11 // pred_check
        %p166 = pneg %p120
      $region18: #{simple_classifier_forward.5} parent=11 // pred_check_branch
        %168 = sbr.rel (%p166) target = $region20
      $region19: #{simple_classifier_forward.5} parent=11 // pred_region
        _
      $region20: #{simple_classifier_forward.5} parent=11 // pred_fallthru
        _
    $region12: #{simple_classifier_forward.5} parent=5 // pred_fallthru
      _
    %p169 = scmp.lt.s32.totalorder %s10, 2
    // Predicated region
    $region21: #{simple_classifier_forward.5} parent=5 // pred_check
      %p170 = pneg %p169
    $region22: #{simple_classifier_forward.5} parent=5 // pred_check_branch
      %172 = sbr.rel (%p170) target = $region24
    $region23: #{simple_classifier_forward.5} parent=5 // pred_region
      // Predicated region
      $region25: #{simple_classifier_forward.5} parent=23 // pred_check
        %p173 = pneg %p44
      $region26: #{simple_classifier_forward.5} parent=23 // pred_check_branch
        %175 = sbr.rel (%p173) target = $region28
      $region27: #{simple_classifier_forward.5} parent=23 // pred_region
        %s176 = smul.u32 110, %s18
        %p177 = scmp.lt.s32.totalorder %s17, 1
        %s178 = scalar_select %p177, %s17, 1
        %p179 = scmp.lt.s32.totalorder %s176, 109
        %s180 = scalar_select %p179, %s176, 109
        %s181 = smul.addr %s180, 14
        %s182 = smul.addr %s178, 1540
        %s183 = sadd.s32 %s181, %s182
        %s184 = smul.addr %s183, 8
        %s185 = scalar_lea.vmem %s0, %s184
        %s186 = smul.u32 110, %s18
      $region28: #{simple_classifier_forward.5} parent=23 // pred_fallthru
        _
      // Predicated region
      $region29: #{simple_classifier_forward.5} parent=23 // pred_check
        %p187 = pneg %p72
      $region30: #{simple_classifier_forward.5} parent=23 // pred_check_branch
        %189 = sbr.rel (%p187) target = $region32
      $region31: #{simple_classifier_forward.5} parent=23 // pred_region
        %s190 = smul.u32 110, %s18
        %p191 = scmp.lt.s32.totalorder %s17, 1
        %s192 = scalar_select %p191, %s17, 1
        %p193 = scmp.lt.s32.totalorder %s190, 109
        %s194 = scalar_select %p193, %s190, 109
        %s195 = smul.addr %s194, 14
        %s196 = smul.addr %s192, 1540
        %s197 = sadd.s32 %s195, %s196
        %s198 = smul.addr %s197, 8
        %s199 = scalar_lea.vmem %s1, %s198
        %s200 = smul.u32 110, %s18
      $region32: #{simple_classifier_forward.5} parent=23 // pred_fallthru
        _
    $region24: #{simple_classifier_forward.5} parent=5 // pred_fallthru
      _
    %p201 = scmp.le.s32.totalorder 1, %s10
    %p202 = scmp.lt.s32.totalorder %s10, 3
    %p203 = pnand %p201, %p202
    %p204 = pneg %p203
    // Predicated region
    $region33: #{simple_classifier_forward.5} parent=5 // pred_check
      _
    $region34: #{simple_classifier_forward.5} parent=5 // pred_check_branch
      %206 = sbr.rel (%p203) target = $region36
    $region35: #{simple_classifier_forward.5} parent=5 // pred_region
      %s207 = ssub.s32 %s10, 1
      %s208 = smul.u32 110, %s20
      %p209 = scmp.lt.s32.totalorder %s19, 1
      %s210 = scalar_select %p209, %s19, 1
      %p211 = scmp.lt.s32.totalorder %s208, 109
      %s212 = scalar_select %p211, %s208, 109
      %s213 = smul.addr %s212, 14
      %s214 = smul.addr %s210, 1540
      %s215 = sadd.s32 %s213, %s214
      %s216 = smul.addr %s215, 8
      %s217 = scalar_lea.vmem %s0, %s216
      %p218 = pneg %p50
      %p219 = pneg %p47
      %s220 = smul.u32 110, %s20
      %p221 = scmp.lt.s32.totalorder %s19, 1
      %s222 = scalar_select %p221, %s19, 1
      %p223 = scmp.lt.s32.totalorder %s220, 109
      %s224 = scalar_select %p223, %s220, 109
      %s225 = smul.addr %s224, 14
      %s226 = smul.addr %s222, 1540
      %s227 = sadd.s32 %s225, %s226
      %s228 = smul.addr %s227, 8
      %s229 = scalar_lea.vmem %s1, %s228
      %p230 = pneg %p78
      %p231 = pneg %p75
      %p232 = pneg %p99
      %p233 = pneg %p96
      %p234 = pneg %p120
      %p235 = pneg %p117
      %p236 = pneg %p148
      %p237 = pneg %p145
      %s238 = smul.u32 54, %s20
      %p239 = scmp.lt.s32.totalorder %s19, 1
      %s240 = scalar_select %p239, %s19, 1
      %p241 = scmp.lt.s32.totalorder %s238, 53
      %s242 = scalar_select %p241, %s238, 53
      %s243 = smul.addr %s242, 7
      %s244 = smul.addr %s240, 378
      %s245 = sadd.s32 %s243, %s244
      %s246 = smul.addr %s245, 8
      %s247 = scalar_lea.vmem %s4, %s246
      %s248 = smul.u32 110, %s20
      %p249 = scmp.lt.s32.totalorder %s19, 1
      %s250 = scalar_select %p249, %s19, 1
      %p251 = scmp.lt.s32.totalorder %s248, 109
      %s252 = scalar_select %p251, %s248, 109
      %s253 = smul.addr %s252, 14
      %s254 = smul.addr %s250, 1540
      %s255 = sadd.s32 %s253, %s254
      %s256 = smul.addr %s255, 8
      %s257 = scalar_lea.vmem %s0, %s256
      %s258 = smul.u32 110, %s20
      %s259 = smul.u32 110, %s20
      %p260 = scmp.lt.s32.totalorder %s19, 1
      %s261 = scalar_select %p260, %s19, 1
      %p262 = scmp.lt.s32.totalorder %s259, 109
      %s263 = scalar_select %p262, %s259, 109
      %s264 = smul.addr %s263, 14
      %s265 = smul.addr %s261, 1540
      %s266 = sadd.s32 %s264, %s265
      %s267 = smul.addr %s266, 8
      %s268 = scalar_lea.vmem %s1, %s267
      %s269 = smul.u32 110, %s20
      %s270 = smul.u32 54, %s20
      %p271 = scmp.lt.s32.totalorder %s19, 1
      %s272 = scalar_select %p271, %s19, 1
      %p273 = scmp.lt.s32.totalorder %s270, 53
      %s274 = scalar_select %p273, %s270, 53
      %s275 = smul.addr %s274, 7
      %s276 = smul.addr %s272, 378
      %s277 = sadd.s32 %s275, %s276
      %s278 = smul.addr %s277, 8
      %s279 = scalar_lea.vmem %s4, %s278
      %s280 = smul.u32 54, %s20
      %v281 = vld [vmem:[%s3] sm:$0x1]
      loop: start=0, step=1, limit=54
      $region37: #{simple_classifier_forward.5} parent=35 // loop_pre_header
        _
      $region38: #{simple_classifier_forward.5} parent=35 // loop_header
        %s283 = sphi 0, %s287
        %p284 = scmp.ge.s32.totalorder %s283, 54
      $region39: #{simple_classifier_forward.5} parent=35 // loop_header_branch
        %286 = sbr.rel (%p284) target = $region43
      $region40: #{simple_classifier_forward.5} parent=35 // loop_body
        %s288 = smul.u32 %s283, 2
        %v289 = vld [vmem:[%s2] sm:$0xff]
        %v290 = vld [vmem:[%s2 + $0x8] sm:$0xff]
        %v291 = vld [vmem:[%s2 + $0x10] sm:$0xff]
        %v292 = vld [vmem:[%s2 + $0x18] sm:$0xff]
        %v293 = vld [vmem:[%s2 + $0x20] sm:$0xff]
        %v294 = vld [vmem:[%s2 + $0x28] sm:$0xff]
        %v295 = vld [vmem:[%s2 + $0x30] sm:$0xff]
        %v296 = vld [vmem:[%s2 + $0x38] sm:$0xff]
        %v297 = vld [vmem:[%s2 + $0x40] sm:$0xff]
        %v298 = vld [vmem:[%s2 + $0x48] sm:$0xff]
        %v299 = vld [vmem:[%s2 + $0x50] sm:$0xff]
        %v300 = vld [vmem:[%s2 + $0x58] sm:$0xff]
        %v301 = vld [vmem:[%s2 + $0x60] sm:$0xff]
        %v302 = vld [vmem:[%s2 + $0x68] sm:$0xff]
        %v303 = vld [vmem:[%s2 + $0x70] sm:$0xff]
        %v304 = vld [vmem:[%s2 + $0x78] sm:$0xff]
        %v305 = vld [vmem:[%s2 + $0x80] sm:$0xff]
        %v306 = vld [vmem:[%s2 + $0x88] sm:$0xff]
        %v307 = vld [vmem:[%s2 + $0x90] sm:$0xff]
        %v308 = vld [vmem:[%s2 + $0x98] sm:$0xff]
        %v309 = vld [vmem:[%s2 + $0xa0] sm:$0xff]
        %v310 = vld [vmem:[%s2 + $0xa8] sm:$0xff]
        %v311 = vld [vmem:[%s2 + $0xb0] sm:$0xff]
        %v312 = vld [vmem:[%s2 + $0xb8] sm:$0xff]
        %s313 = smul.u32 %s288, 14
        %s314 = smul.addr %s313, 8
        %s315 = scalar_lea.vmem %s257, %s314
        %v316 = vld [vmem:[%s315] sm:$0xff]
        %v317 = vld [vmem:[%s315 + $0x8] sm:$0xff]
        %v318 = vld [vmem:[%s315 + $0x10] sm:$0xff]
        %v319 = vld [vmem:[%s315 + $0x18] sm:$0xff]
        %v320 = vld [vmem:[%s315 + $0x20] sm:$0xff]
        %v321 = vld [vmem:[%s315 + $0x28] sm:$0xff]
        %v322 = vld [vmem:[%s315 + $0x30] sm:$0xff]
        %v323 = vld [vmem:[%s315 + $0x38] sm:$0xff]
        %v324 = vld [vmem:[%s315 + $0x40] sm:$0xff]
        %v325 = vld [vmem:[%s315 + $0x48] sm:$0xff]
        %v326 = vld [vmem:[%s315 + $0x50] sm:$0xff]
        %v327 = vld [vmem:[%s315 + $0x58] sm:$0xff]
        %v328 = vld [vmem:[%s315 + $0x60] sm:$0x3f]
        %v329 = vld [vmem:[%s315 + $0x68] sm:$0x3f]
        %s330 = smul.addr %s313, 8
        %s331 = scalar_lea.vmem %s268, %s330
        %v332 = vld [vmem:[%s331] sm:$0xff]
        %v333 = vld [vmem:[%s331 + $0x8] sm:$0xff]
        %v334 = vld [vmem:[%s331 + $0x10] sm:$0xff]
        %v335 = vld [vmem:[%s331 + $0x18] sm:$0xff]
        %v336 = vld [vmem:[%s331 + $0x20] sm:$0xff]
        %v337 = vld [vmem:[%s331 + $0x28] sm:$0xff]
        %v338 = vld [vmem:[%s331 + $0x30] sm:$0xff]
        %v339 = vld [vmem:[%s331 + $0x38] sm:$0xff]
        %v340 = vld [vmem:[%s331 + $0x40] sm:$0xff]
        %v341 = vld [vmem:[%s331 + $0x48] sm:$0xff]
        %v342 = vld [vmem:[%s331 + $0x50] sm:$0xff]
        %v343 = vld [vmem:[%s331 + $0x58] sm:$0xff]
        %v344 = vld [vmem:[%s331 + $0x60] sm:$0x3f]
        %v345 = vld [vmem:[%s331 + $0x68] sm:$0x3f]
        %s346 = sadd.s32 %s288, 1
        %s347 = smul.u32 %s346, 14
        %s348 = smul.addr %s347, 8
        %s349 = scalar_lea.vmem %s257, %s348
        %v350 = vld [vmem:[%s349] sm:$0xff]
        %v351 = vld [vmem:[%s349 + $0x8] sm:$0xff]
        %v352 = vld [vmem:[%s349 + $0x10] sm:$0xff]
        %v353 = vld [vmem:[%s349 + $0x18] sm:$0xff]
        %v354 = vld [vmem:[%s349 + $0x20] sm:$0xff]
        %v355 = vld [vmem:[%s349 + $0x28] sm:$0xff]
        %v356 = vld [vmem:[%s349 + $0x30] sm:$0xff]
        %v357 = vld [vmem:[%s349 + $0x38] sm:$0xff]
        %v358 = vld [vmem:[%s349 + $0x40] sm:$0xff]
        %v359 = vld [vmem:[%s349 + $0x48] sm:$0xff]
        %v360 = vld [vmem:[%s349 + $0x50] sm:$0xff]
        %v361 = vld [vmem:[%s349 + $0x58] sm:$0xff]
        %v362 = vld [vmem:[%s349 + $0x60] sm:$0x3f]
        %v363 = vld [vmem:[%s349 + $0x68] sm:$0x3f]
        %s364 = smul.addr %s347, 8
        %s365 = scalar_lea.vmem %s268, %s364
        %v366 = vld [vmem:[%s365] sm:$0xff]
        %v367 = vld [vmem:[%s365 + $0x8] sm:$0xff]
        %v368 = vld [vmem:[%s365 + $0x10] sm:$0xff]
        %v369 = vld [vmem:[%s365 + $0x18] sm:$0xff]
        %v370 = vld [vmem:[%s365 + $0x20] sm:$0xff]
        %v371 = vld [vmem:[%s365 + $0x28] sm:$0xff]
        %v372 = vld [vmem:[%s365 + $0x30] sm:$0xff]
        %v373 = vld [vmem:[%s365 + $0x38] sm:$0xff]
        %v374 = vld [vmem:[%s365 + $0x40] sm:$0xff]
        %v375 = vld [vmem:[%s365 + $0x48] sm:$0xff]
        %v376 = vld [vmem:[%s365 + $0x50] sm:$0xff]
        %v377 = vld [vmem:[%s365 + $0x58] sm:$0xff]
        %v378 = vld [vmem:[%s365 + $0x60] sm:$0x3f]
        %v379 = vld [vmem:[%s365 + $0x68] sm:$0x3f]
        %s380 = scalar_lea.vmem %s2, 192
        %v381 = vld [vmem:[%s380] sm:$0xff]
        %v382 = vld [vmem:[%s380 + $0x8] sm:$0xff]
        %v383 = vld [vmem:[%s380 + $0x10] sm:$0xff]
        %v384 = vld [vmem:[%s380 + $0x18] sm:$0xff]
        %v385 = vld [vmem:[%s380 + $0x20] sm:$0xff]
        %v386 = vld [vmem:[%s380 + $0x28] sm:$0xff]
        %v387 = vld [vmem:[%s380 + $0x30] sm:$0xff]
        %v388 = vld [vmem:[%s380 + $0x38] sm:$0xff]
        %v389 = vld [vmem:[%s380 + $0x40] sm:$0xff]
        %v390 = vld [vmem:[%s380 + $0x48] sm:$0xff]
        %v391 = vld [vmem:[%s380 + $0x50] sm:$0xff]
        %v392 = vld [vmem:[%s380 + $0x58] sm:$0xff]
        %v393 = vld [vmem:[%s380 + $0x60] sm:$0xff]
        %v394 = vld [vmem:[%s380 + $0x68] sm:$0xff]
        %v395 = vld [vmem:[%s380 + $0x70] sm:$0xff]
        %v396 = vld [vmem:[%s380 + $0x78] sm:$0xff]
        %v397 = vld [vmem:[%s380 + $0x80] sm:$0xff]
        %v398 = vld [vmem:[%s380 + $0x88] sm:$0xff]
        %v399 = vld [vmem:[%s380 + $0x90] sm:$0xff]
        %v400 = vld [vmem:[%s380 + $0x98] sm:$0xff]
        %v401 = vld [vmem:[%s380 + $0xa0] sm:$0xff]
        %v402 = vld [vmem:[%s380 + $0xa8] sm:$0xff]
        %v403 = vld [vmem:[%s380 + $0xb0] sm:$0xff]
        %v404 = vld [vmem:[%s380 + $0xb8] sm:$0xff]
        %vm405 = vcmask 523264
        %v407 = vsel %vm405, %v351, 0
        %v410 = vsel %vm405, %v353, 0
        %v413 = vsel %vm405, %v355, 0
        %v416 = vsel %vm405, %v357, 0
        %v419 = vsel %vm405, %v359, 0
        %v422 = vsel %vm405, %v361, 0
        %v425 = vsel %vm405, %v363, 0
        %427 = vmatprep.subr.mxu0 0.0
        %428 = vmatpush1.msra.mxu0 %v381
        %429 = vmatprep.subr.mxu0 0.0
        %430 = vmatpush1.msra.mxu0 %v382
        %431 = vmatprep.subr.mxu0 0.0
        %432 = vmatpush1.msra.mxu0 %v383
        %433 = vmatprep.subr.mxu0 0.0
        %434 = vmatpush1.msra.mxu0 %v384
        %435 = vmatprep.subr.mxu0 0.0
        %436 = vmatpush1.msra.mxu0 %v385
        %437 = vmatprep.subr.mxu0 0.0
        %438 = vmatpush1.msra.mxu0 %v386
        %439 = vmatprep.subr.mxu0 0.0
        %440 = vmatpush1.msra.mxu0 %v387
        %441 = vmatprep.subr.mxu0 0.0
        %442 = vmatpush1.msra.mxu0 %v388
        %443 = vmatprep.subr.mxu0 0.0
        %444 = vmatpush1.msra.mxu0 %v389
        %445 = vmatprep.subr.mxu0 0.0
        %446 = vmatpush1.msra.mxu0 %v390
        %447 = vmatprep.subr.mxu0 0.0
        %448 = vmatpush1.msra.mxu0 %v391
        %449 = vmatprep.subr.mxu0 0.0
        %450 = vmatpush1.msra.mxu0 %v392
        %451 = vmatprep.subr.mxu0 0.0
        %452 = vmatpush1.msra.mxu0 %v393
        %453 = vmatprep.subr.mxu0 0.0
        %454 = vmatpush1.msra.mxu0 %v394
        %455 = vmatprep.subr.mxu0 0.0
        %456 = vmatpush1.msra.mxu0 %v395
        %457 = vmatprep.subr.mxu0 0.0
        %458 = vmatpush1.msra.mxu0 %v396
        %459 = vmatprep.subr.mxu0 0.0
        %460 = vmatpush1.msra.mxu0 %v397
        %461 = vmatprep.subr.mxu0 0.0
        %462 = vmatpush1.msra.mxu0 %v398
        %463 = vmatprep.subr.mxu0 0.0
        %464 = vmatpush1.msra.mxu0 %v399
        %465 = vmatprep.subr.mxu0 0.0
        %466 = vmatpush1.msra.mxu0 %v400
        %467 = vmatprep.subr.mxu0 0.0
        %468 = vmatpush1.msra.mxu0 %v401
        %469 = vmatprep.subr.mxu0 0.0
        %470 = vmatpush1.msra.mxu0 %v402
        %471 = vmatprep.subr.mxu0 0.0
        %472 = vmatpush1.msra.mxu0 %v403
        %473 = vmatprep.subr.mxu0 0.0
        %474 = vmatpush1.msra.mxu0 %v404
        %475 = vmatprep.subr.mxu0 0.0
        %476 = vmatpush1.msra.mxu0 0.0
        %477 = vmatprep.subr.mxu0 0.0
        %478 = vmatpush1.msra.mxu0 0.0
        %479 = vmatprep.subr.mxu0 0.0
        %480 = vmatpush1.msra.mxu0 0.0
        %481 = vmatprep.subr.mxu0 0.0
        %482 = vmatpush1.msra.mxu0 0.0
        %483 = vmatprep.subr.mxu0 0.0
        %484 = vmatpush1.msra.mxu0 0.0
        %485 = vmatprep.subr.mxu0 0.0
        %486 = vmatpush1.msra.mxu0 0.0
        %487 = vmatprep.subr.mxu0 0.0
        %488 = vmatpush1.msra.mxu0 0.0
        %489 = vmatprep.subr.mxu0 0.0
        %490 = vmatpush1.msra.mxu0 0.0
        %491 = vmatprep.mubr.f32.mxu0 %v407
        %492 = vmatmul.mubr.f32.gmra.mrb[0].mxu0 %v350
        %v493 = vpop.f32.mrb[0].mxu0
        %v494 = vadd.f32 0.0, %v493
        %v495 = vpop.f32.mrb[0].mxu0
        %496 = vmatprep.mubr.f32.mxu0 %v410
        %497 = vmatmul.mubr.f32.gmra.mrb[0].mxu0 %v352
        %v498 = vpop.f32.mrb[0].mxu0
        %v499 = vadd.f32 0.0, %v498
        %v500 = vpop.f32.mrb[0].mxu0
        %501 = vmatprep.mubr.f32.mxu0 %v413
        %502 = vmatmul.mubr.f32.gmra.mrb[0].mxu0 %v354
        %v503 = vpop.f32.mrb[0].mxu0
        %v504 = vadd.f32 0.0, %v503
        %v505 = vpop.f32.mrb[0].mxu0
        %506 = vmatprep.mubr.f32.mxu0 %v416
        %507 = vmatmul.mubr.f32.gmra.mrb[0].mxu0 %v356
        %v508 = vpop.f32.mrb[0].mxu0
        %v509 = vadd.f32 0.0, %v508
        %v510 = vpop.f32.mrb[0].mxu0
        %511 = vmatprep.mubr.f32.mxu0 %v419
        %512 = vmatmul.mubr.f32.gmra.mrb[0].mxu0 %v358
        %v513 = vpop.f32.mrb[0].mxu0
        %v514 = vadd.f32 0.0, %v513
        %v515 = vpop.f32.mrb[0].mxu0
        %516 = vmatprep.mubr.f32.mxu0 %v422
        %517 = vmatmul.mubr.f32.gmra.mrb[0].mxu0 %v360
        %v518 = vpop.f32.mrb[0].mxu0
        %v519 = vadd.f32 0.0, %v518
        %v520 = vpop.f32.mrb[0].mxu0
        %521 = vmatprep.mubr.f32.mxu0 %v425
        %522 = vmatmul.mubr.f32.gmra.mrb[0].mxu0 %v362
        %v523 = vpop.f32.mrb[0].mxu0
        %v524 = vadd.f32 0.0, %v523
        %v525 = vpop.f32.mrb[0].mxu0
        %526 = vdwg.mxu0
        %v528 = vsel %vm405, %v317, 0
        %v531 = vsel %vm405, %v319, 0
        %v534 = vsel %vm405, %v321, 0
        %v537 = vsel %vm405, %v323, 0
        %v540 = vsel %vm405, %v325, 0
        %v543 = vsel %vm405, %v327, 0
        %v546 = vsel %vm405, %v329, 0
        %548 = vmatprep.subr.mxu0 0.0
        %549 = vmatpush1.msra.mxu0 %v289
        %550 = vmatprep.subr.mxu0 0.0
        %551 = vmatpush1.msra.mxu0 %v290
        %552 = vmatprep.subr.mxu0 0.0
        %553 = vmatpush1.msra.mxu0 %v291
        %554 = vmatprep.subr.mxu0 0.0
        %555 = vmatpush1.msra.mxu0 %v292
        %556 = vmatprep.subr.mxu0 0.0
        %557 = vmatpush1.msra.mxu0 %v293
        %558 = vmatprep.subr.mxu0 0.0
        %559 = vmatpush1.msra.mxu0 %v294
        %560 = vmatprep.subr.mxu0 0.0
        %561 = vmatpush1.msra.mxu0 %v295
        %562 = vmatprep.subr.mxu0 0.0
        %563 = vmatpush1.msra.mxu0 %v296
        %564 = vmatprep.subr.mxu0 0.0
        %565 = vmatpush1.msra.mxu0 %v297
        %566 = vmatprep.subr.mxu0 0.0
        %567 = vmatpush1.msra.mxu0 %v298
        %568 = vmatprep.subr.mxu0 0.0
        %569 = vmatpush1.msra.mxu0 %v299
        %570 = vmatprep.subr.mxu0 0.0
        %571 = vmatpush1.msra.mxu0 %v300
        %572 = vmatprep.subr.mxu0 0.0
        %573 = vmatpush1.msra.mxu0 %v301
        %574 = vmatprep.subr.mxu0 0.0
        %575 = vmatpush1.msra.mxu0 %v302
        %576 = vmatprep.subr.mxu0 0.0
        %577 = vmatpush1.msra.mxu0 %v303
        %578 = vmatprep.subr.mxu0 0.0
        %579 = vmatpush1.msra.mxu0 %v304
        %580 = vmatprep.subr.mxu0 0.0
        %581 = vmatpush1.msra.mxu0 %v305
        %582 = vmatprep.subr.mxu0 0.0
        %583 = vmatpush1.msra.mxu0 %v306
        %584 = vmatprep.subr.mxu0 0.0
        %585 = vmatpush1.msra.mxu0 %v307
        %586 = vmatprep.subr.mxu0 0.0
        %587 = vmatpush1.msra.mxu0 %v308
        %588 = vmatprep.subr.mxu0 0.0
        %589 = vmatpush1.msra.mxu0 %v309
        %590 = vmatprep.subr.mxu0 0.0
        %591 = vmatpush1.msra.mxu0 %v310
        %592 = vmatprep.subr.mxu0 0.0
        %593 = vmatpush1.msra.mxu0 %v311
        %594 = vmatprep.subr.mxu0 0.0
        %595 = vmatpush1.msra.mxu0 %v312
        %596 = vmatprep.subr.mxu0 0.0
        %597 = vmatpush1.msra.mxu0 0.0
        %598 = vmatprep.subr.mxu0 0.0
        %599 = vmatpush1.msra.mxu0 0.0
        %600 = vmatprep.subr.mxu0 0.0
        %601 = vmatpush1.msra.mxu0 0.0
        %602 = vmatprep.subr.mxu0 0.0
        %603 = vmatpush1.msra.mxu0 0.0
        %604 = vmatprep.subr.mxu0 0.0
        %605 = vmatpush1.msra.mxu0 0.0
        %606 = vmatprep.subr.mxu0 0.0
        %607 = vmatpush1.msra.mxu0 0.0
        %608 = vmatprep.subr.mxu0 0.0
        %609 = vmatpush1.msra.mxu0 0.0
        %610 = vmatprep.subr.mxu0 0.0
        %611 = vmatpush1.msra.mxu0 0.0
        %612 = vmatprep.mubr.f32.mxu0 %v528
        %613 = vmatmul.mubr.f32.gmra.mrb[0].mxu0 %v316
        %v614 = vpop.f32.mrb[0].mxu0
        %v615 = vadd.f32 %v494, %v614
        %v616 = vpop.f32.mrb[0].mxu0
        %617 = vmatprep.mubr.f32.mxu0 %v531
        %618 = vmatmul.mubr.f32.gmra.mrb[0].mxu0 %v318
        %v619 = vpop.f32.mrb[0].mxu0
        %v620 = vadd.f32 %v499, %v619
        %v621 = vpop.f32.mrb[0].mxu0
        %622 = vmatprep.mubr.f32.mxu0 %v534
        %623 = vmatmul.mubr.f32.gmra.mrb[0].mxu0 %v320
        %v624 = vpop.f32.mrb[0].mxu0
        %v625 = vadd.f32 %v504, %v624
        %v626 = vpop.f32.mrb[0].mxu0
        %627 = vmatprep.mubr.f32.mxu0 %v537
        %628 = vmatmul.mubr.f32.gmra.mrb[0].mxu0 %v322
        %v629 = vpop.f32.mrb[0].mxu0
        %v630 = vadd.f32 %v509, %v629
        %v631 = vpop.f32.mrb[0].mxu0
        %632 = vmatprep.mubr.f32.mxu0 %v540
        %633 = vmatmul.mubr.f32.gmra.mrb[0].mxu0 %v324
        %v634 = vpop.f32.mrb[0].mxu0
        %v635 = vadd.f32 %v514, %v634
        %v636 = vpop.f32.mrb[0].mxu0
        %637 = vmatprep.mubr.f32.mxu0 %v543
        %638 = vmatmul.mubr.f32.gmra.mrb[0].mxu0 %v326
        %v639 = vpop.f32.mrb[0].mxu0
        %v640 = vadd.f32 %v519, %v639
        %v641 = vpop.f32.mrb[0].mxu0
        %642 = vmatprep.mubr.f32.mxu0 %v546
        %643 = vmatmul.mubr.f32.gmra.mrb[0].mxu0 %v328
        %v644 = vpop.f32.mrb[0].mxu0
        %v645 = vadd.f32 %v524, %v644
        %v646 = vpop.f32.mrb[0].mxu0
        %647 = vdwg.mxu0
        %v649 = vsel %vm405, %v367, 0
        %v652 = vsel %vm405, %v369, 0
        %v655 = vsel %vm405, %v371, 0
        %v658 = vsel %vm405, %v373, 0
        %v661 = vsel %vm405, %v375, 0
        %v664 = vsel %vm405, %v377, 0
        %v667 = vsel %vm405, %v379, 0
        %669 = vmatprep.subr.mxu0 0.0
        %670 = vmatpush1.msra.mxu0 %v381
        %671 = vmatprep.subr.mxu0 0.0
        %672 = vmatpush1.msra.mxu0 %v382
        %673 = vmatprep.subr.mxu0 0.0
        %674 = vmatpush1.msra.mxu0 %v383
        %675 = vmatprep.subr.mxu0 0.0
        %676 = vmatpush1.msra.mxu0 %v384
        %677 = vmatprep.subr.mxu0 0.0
        %678 = vmatpush1.msra.mxu0 %v385
        %679 = vmatprep.subr.mxu0 0.0
        %680 = vmatpush1.msra.mxu0 %v386
        %681 = vmatprep.subr.mxu0 0.0
        %682 = vmatpush1.msra.mxu0 %v387
        %683 = vmatprep.subr.mxu0 0.0
        %684 = vmatpush1.msra.mxu0 %v388
        %685 = vmatprep.subr.mxu0 0.0
        %686 = vmatpush1.msra.mxu0 %v389
        %687 = vmatprep.subr.mxu0 0.0
        %688 = vmatpush1.msra.mxu0 %v390
        %689 = vmatprep.subr.mxu0 0.0
        %690 = vmatpush1.msra.mxu0 %v391
        %691 = vmatprep.subr.mxu0 0.0
        %692 = vmatpush1.msra.mxu0 %v392
        %693 = vmatprep.subr.mxu0 0.0
        %694 = vmatpush1.msra.mxu0 %v393
        %695 = vmatprep.subr.mxu0 0.0
        %696 = vmatpush1.msra.mxu0 %v394
        %697 = vmatprep.subr.mxu0 0.0
        %698 = vmatpush1.msra.mxu0 %v395
        %699 = vmatprep.subr.mxu0 0.0
        %700 = vmatpush1.msra.mxu0 %v396
        %701 = vmatprep.subr.mxu0 0.0
        %702 = vmatpush1.msra.mxu0 %v397
        %703 = vmatprep.subr.mxu0 0.0
        %704 = vmatpush1.msra.mxu0 %v398
        %705 = vmatprep.subr.mxu0 0.0
        %706 = vmatpush1.msra.mxu0 %v399
        %707 = vmatprep.subr.mxu0 0.0
        %708 = vmatpush1.msra.mxu0 %v400
        %709 = vmatprep.subr.mxu0 0.0
        %710 = vmatpush1.msra.mxu0 %v401
        %711 = vmatprep.subr.mxu0 0.0
        %712 = vmatpush1.msra.mxu0 %v402
        %713 = vmatprep.subr.mxu0 0.0
        %714 = vmatpush1.msra.mxu0 %v403
        %715 = vmatprep.subr.mxu0 0.0
        %716 = vmatpush1.msra.mxu0 %v404
        %717 = vmatprep.subr.mxu0 0.0
        %718 = vmatpush1.msra.mxu0 0.0
        %719 = vmatprep.subr.mxu0 0.0
        %720 = vmatpush1.msra.mxu0 0.0
        %721 = vmatprep.subr.mxu0 0.0
        %722 = vmatpush1.msra.mxu0 0.0
        %723 = vmatprep.subr.mxu0 0.0
        %724 = vmatpush1.msra.mxu0 0.0
        %725 = vmatprep.subr.mxu0 0.0
        %726 = vmatpush1.msra.mxu0 0.0
        %727 = vmatprep.subr.mxu0 0.0
        %728 = vmatpush1.msra.mxu0 0.0
        %729 = vmatprep.subr.mxu0 0.0
        %730 = vmatpush1.msra.mxu0 0.0
        %731 = vmatprep.subr.mxu0 0.0
        %732 = vmatpush1.msra.mxu0 0.0
        %733 = vmatprep.mubr.f32.mxu0 %v649
        %734 = vmatmul.mubr.f32.gmra.mrb[0].mxu0 %v366
        %v735 = vpop.f32.mrb[0].mxu0
        %v736 = vadd.f32 0.0, %v735
        %v737 = vpop.f32.mrb[0].mxu0
        %738 = vmatprep.mubr.f32.mxu0 %v652
        %739 = vmatmul.mubr.f32.gmra.mrb[0].mxu0 %v368
        %v740 = vpop.f32.mrb[0].mxu0
        %v741 = vadd.f32 0.0, %v740
        %v742 = vpop.f32.mrb[0].mxu0
        %743 = vmatprep.mubr.f32.mxu0 %v655
        %744 = vmatmul.mubr.f32.gmra.mrb[0].mxu0 %v370
        %v745 = vpop.f32.mrb[0].mxu0
        %v746 = vadd.f32 0.0, %v745
        %v747 = vpop.f32.mrb[0].mxu0
        %748 = vmatprep.mubr.f32.mxu0 %v658
        %749 = vmatmul.mubr.f32.gmra.mrb[0].mxu0 %v372
        %v750 = vpop.f32.mrb[0].mxu0
        %v751 = vadd.f32 0.0, %v750
        %v752 = vpop.f32.mrb[0].mxu0
        %753 = vmatprep.mubr.f32.mxu0 %v661
        %754 = vmatmul.mubr.f32.gmra.mrb[0].mxu0 %v374
        %v755 = vpop.f32.mrb[0].mxu0
        %v756 = vadd.f32 0.0, %v755
        %v757 = vpop.f32.mrb[0].mxu0
        %758 = vmatprep.mubr.f32.mxu0 %v664
        %759 = vmatmul.mubr.f32.gmra.mrb[0].mxu0 %v376
        %v760 = vpop.f32.mrb[0].mxu0
        %v761 = vadd.f32 0.0, %v760
        %v762 = vpop.f32.mrb[0].mxu0
        %763 = vmatprep.mubr.f32.mxu0 %v667
        %764 = vmatmul.mubr.f32.gmra.mrb[0].mxu0 %v378
        %v765 = vpop.f32.mrb[0].mxu0
        %v766 = vadd.f32 0.0, %v765
        %v767 = vpop.f32.mrb[0].mxu0
        %768 = vdwg.mxu0
        %v770 = vsel %vm405, %v333, 0
        %v773 = vsel %vm405, %v335, 0
        %v776 = vsel %vm405, %v337, 0
        %v779 = vsel %vm405, %v339, 0
        %v782 = vsel %vm405, %v341, 0
        %v785 = vsel %vm405, %v343, 0
        %v788 = vsel %vm405, %v345, 0
        %790 = vmatprep.subr.mxu0 0.0
        %791 = vmatpush1.msra.mxu0 %v289
        %792 = vmatprep.subr.mxu0 0.0
        %793 = vmatpush1.msra.mxu0 %v290
        %794 = vmatprep.subr.mxu0 0.0
        %795 = vmatpush1.msra.mxu0 %v291
        %796 = vmatprep.subr.mxu0 0.0
        %797 = vmatpush1.msra.mxu0 %v292
        %798 = vmatprep.subr.mxu0 0.0
        %799 = vmatpush1.msra.mxu0 %v293
        %800 = vmatprep.subr.mxu0 0.0
        %801 = vmatpush1.msra.mxu0 %v294
        %802 = vmatprep.subr.mxu0 0.0
        %803 = vmatpush1.msra.mxu0 %v295
        %804 = vmatprep.subr.mxu0 0.0
        %805 = vmatpush1.msra.mxu0 %v296
        %806 = vmatprep.subr.mxu0 0.0
        %807 = vmatpush1.msra.mxu0 %v297
        %808 = vmatprep.subr.mxu0 0.0
        %809 = vmatpush1.msra.mxu0 %v298
        %810 = vmatprep.subr.mxu0 0.0
        %811 = vmatpush1.msra.mxu0 %v299
        %812 = vmatprep.subr.mxu0 0.0
        %813 = vmatpush1.msra.mxu0 %v300
        %814 = vmatprep.subr.mxu0 0.0
        %815 = vmatpush1.msra.mxu0 %v301
        %816 = vmatprep.subr.mxu0 0.0
        %817 = vmatpush1.msra.mxu0 %v302
        %818 = vmatprep.subr.mxu0 0.0
        %819 = vmatpush1.msra.mxu0 %v303
        %820 = vmatprep.subr.mxu0 0.0
        %821 = vmatpush1.msra.mxu0 %v304
        %822 = vmatprep.subr.mxu0 0.0
        %823 = vmatpush1.msra.mxu0 %v305
        %824 = vmatprep.subr.mxu0 0.0
        %825 = vmatpush1.msra.mxu0 %v306
        %826 = vmatprep.subr.mxu0 0.0
        %827 = vmatpush1.msra.mxu0 %v307
        %828 = vmatprep.subr.mxu0 0.0
        %829 = vmatpush1.msra.mxu0 %v308
        %830 = vmatprep.subr.mxu0 0.0
        %831 = vmatpush1.msra.mxu0 %v309
        %832 = vmatprep.subr.mxu0 0.0
        %833 = vmatpush1.msra.mxu0 %v310
        %834 = vmatprep.subr.mxu0 0.0
        %835 = vmatpush1.msra.mxu0 %v311
        %836 = vmatprep.subr.mxu0 0.0
        %837 = vmatpush1.msra.mxu0 %v312
        %838 = vmatprep.subr.mxu0 0.0
        %839 = vmatpush1.msra.mxu0 0.0
        %840 = vmatprep.subr.mxu0 0.0
        %841 = vmatpush1.msra.mxu0 0.0
        %842 = vmatprep.subr.mxu0 0.0
        %843 = vmatpush1.msra.mxu0 0.0
        %844 = vmatprep.subr.mxu0 0.0
        %845 = vmatpush1.msra.mxu0 0.0
        %846 = vmatprep.subr.mxu0 0.0
        %847 = vmatpush1.msra.mxu0 0.0
        %848 = vmatprep.subr.mxu0 0.0
        %849 = vmatpush1.msra.mxu0 0.0
        %850 = vmatprep.subr.mxu0 0.0
        %851 = vmatpush1.msra.mxu0 0.0
        %852 = vmatprep.subr.mxu0 0.0
        %853 = vmatpush1.msra.mxu0 0.0
        %854 = vmatprep.mubr.f32.mxu0 %v770
        %855 = vmatmul.mubr.f32.gmra.mrb[0].mxu0 %v332
        %v856 = vpop.f32.mrb[0].mxu0
        %v857 = vadd.f32 %v736, %v856
        %v858 = vpop.f32.mrb[0].mxu0
        %859 = vmatprep.mubr.f32.mxu0 %v773
        %860 = vmatmul.mubr.f32.gmra.mrb[0].mxu0 %v334
        %v861 = vpop.f32.mrb[0].mxu0
        %v862 = vadd.f32 %v741, %v861
        %v863 = vpop.f32.mrb[0].mxu0
        %864 = vmatprep.mubr.f32.mxu0 %v776
        %865 = vmatmul.mubr.f32.gmra.mrb[0].mxu0 %v336
        %v866 = vpop.f32.mrb[0].mxu0
        %v867 = vadd.f32 %v746, %v866
        %v868 = vpop.f32.mrb[0].mxu0
        %869 = vmatprep.mubr.f32.mxu0 %v779
        %870 = vmatmul.mubr.f32.gmra.mrb[0].mxu0 %v338
        %v871 = vpop.f32.mrb[0].mxu0
        %v872 = vadd.f32 %v751, %v871
        %v873 = vpop.f32.mrb[0].mxu0
        %874 = vmatprep.mubr.f32.mxu0 %v782
        %875 = vmatmul.mubr.f32.gmra.mrb[0].mxu0 %v340
        %v876 = vpop.f32.mrb[0].mxu0
        %v877 = vadd.f32 %v756, %v876
        %v878 = vpop.f32.mrb[0].mxu0
        %879 = vmatprep.mubr.f32.mxu0 %v785
        %880 = vmatmul.mubr.f32.gmra.mrb[0].mxu0 %v342
        %v881 = vpop.f32.mrb[0].mxu0
        %v882 = vadd.f32 %v761, %v881
        %v883 = vpop.f32.mrb[0].mxu0
        %884 = vmatprep.mubr.f32.mxu0 %v788
        %885 = vmatmul.mubr.f32.gmra.mrb[0].mxu0 %v344
        %v886 = vpop.f32.mrb[0].mxu0
        %v887 = vadd.f32 %v766, %v886
        %v888 = vpop.f32.mrb[0].mxu0
        %889 = vdwg.mxu0
        %s890 = sadd.s32 %s288, 2
        %s891 = smul.u32 %s890, 14
        %s892 = smul.addr %s891, 8
        %s893 = scalar_lea.vmem %s257, %s892
        %v894 = vld [vmem:[%s893] sm:$0xff]
        %v895 = vld [vmem:[%s893 + $0x8] sm:$0xff]
        %v896 = vld [vmem:[%s893 + $0x10] sm:$0xff]
        %v897 = vld [vmem:[%s893 + $0x18] sm:$0xff]
        %v898 = vld [vmem:[%s893 + $0x20] sm:$0xff]
        %v899 = vld [vmem:[%s893 + $0x28] sm:$0xff]
        %v900 = vld [vmem:[%s893 + $0x30] sm:$0xff]
        %v901 = vld [vmem:[%s893 + $0x38] sm:$0xff]
        %v902 = vld [vmem:[%s893 + $0x40] sm:$0xff]
        %v903 = vld [vmem:[%s893 + $0x48] sm:$0xff]
        %v904 = vld [vmem:[%s893 + $0x50] sm:$0xff]
        %v905 = vld [vmem:[%s893 + $0x58] sm:$0xff]
        %v906 = vld [vmem:[%s893 + $0x60] sm:$0x3f]
        %v907 = vld [vmem:[%s893 + $0x68] sm:$0x3f]
        %v909 = vsel %vm405, %v895, 0
        %v912 = vsel %vm405, %v897, 0
        %v915 = vsel %vm405, %v899, 0
        %v918 = vsel %vm405, %v901, 0
        %v921 = vsel %vm405, %v903, 0
        %v924 = vsel %vm405, %v905, 0
        %v927 = vsel %vm405, %v907, 0
        %929 = vmatprep.subr.mxu0 0.0
        %930 = vmatpush1.msra.mxu0 %v381
        %931 = vmatprep.subr.mxu0 0.0
        %932 = vmatpush1.msra.mxu0 %v382
        %933 = vmatprep.subr.mxu0 0.0
        %934 = vmatpush1.msra.mxu0 %v383
        %935 = vmatprep.subr.mxu0 0.0
        %936 = vmatpush1.msra.mxu0 %v384
        %937 = vmatprep.subr.mxu0 0.0
        %938 = vmatpush1.msra.mxu0 %v385
        %939 = vmatprep.subr.mxu0 0.0
        %940 = vmatpush1.msra.mxu0 %v386
        %941 = vmatprep.subr.mxu0 0.0
        %942 = vmatpush1.msra.mxu0 %v387
        %943 = vmatprep.subr.mxu0 0.0
        %944 = vmatpush1.msra.mxu0 %v388
        %945 = vmatprep.subr.mxu0 0.0
        %946 = vmatpush1.msra.mxu0 %v389
        %947 = vmatprep.subr.mxu0 0.0
        %948 = vmatpush1.msra.mxu0 %v390
        %949 = vmatprep.subr.mxu0 0.0
        %950 = vmatpush1.msra.mxu0 %v391
        %951 = vmatprep.subr.mxu0 0.0
        %952 = vmatpush1.msra.mxu0 %v392
        %953 = vmatprep.subr.mxu0 0.0
        %954 = vmatpush1.msra.mxu0 %v393
        %955 = vmatprep.subr.mxu0 0.0
        %956 = vmatpush1.msra.mxu0 %v394
        %957 = vmatprep.subr.mxu0 0.0
        %958 = vmatpush1.msra.mxu0 %v395
        %959 = vmatprep.subr.mxu0 0.0
        %960 = vmatpush1.msra.mxu0 %v396
        %961 = vmatprep.subr.mxu0 0.0
        %962 = vmatpush1.msra.mxu0 %v397
        %963 = vmatprep.subr.mxu0 0.0
        %964 = vmatpush1.msra.mxu0 %v398
        %965 = vmatprep.subr.mxu0 0.0
        %966 = vmatpush1.msra.mxu0 %v399
        %967 = vmatprep.subr.mxu0 0.0
        %968 = vmatpush1.msra.mxu0 %v400
        %969 = vmatprep.subr.mxu0 0.0
        %970 = vmatpush1.msra.mxu0 %v401
        %971 = vmatprep.subr.mxu0 0.0
        %972 = vmatpush1.msra.mxu0 %v402
        %973 = vmatprep.subr.mxu0 0.0
        %974 = vmatpush1.msra.mxu0 %v403
        %975 = vmatprep.subr.mxu0 0.0
        %976 = vmatpush1.msra.mxu0 %v404
        %977 = vmatprep.subr.mxu0 0.0
        %978 = vmatpush1.msra.mxu0 0.0
        %979 = vmatprep.subr.mxu0 0.0
        %980 = vmatpush1.msra.mxu0 0.0
        %981 = vmatprep.subr.mxu0 0.0
        %982 = vmatpush1.msra.mxu0 0.0
        %983 = vmatprep.subr.mxu0 0.0
        %984 = vmatpush1.msra.mxu0 0.0
        %985 = vmatprep.subr.mxu0 0.0
        %986 = vmatpush1.msra.mxu0 0.0
        %987 = vmatprep.subr.mxu0 0.0
        %988 = vmatpush1.msra.mxu0 0.0
        %989 = vmatprep.subr.mxu0 0.0
        %990 = vmatpush1.msra.mxu0 0.0
        %991 = vmatprep.subr.mxu0 0.0
        %992 = vmatpush1.msra.mxu0 0.0
        %993 = vmatprep.mubr.f32.mxu0 %v909
        %994 = vmatmul.mubr.f32.gmra.mrb[0].mxu0 %v894
        %v995 = vpop.f32.mrb[0].mxu0
        %v996 = vadd.f32 0.0, %v995
        %v997 = vpop.f32.mrb[0].mxu0
        %998 = vmatprep.mubr.f32.mxu0 %v912
        %999 = vmatmul.mubr.f32.gmra.mrb[0].mxu0 %v896
        %v1000 = vpop.f32.mrb[0].mxu0
        %v1001 = vadd.f32 0.0, %v1000
        %v1002 = vpop.f32.mrb[0].mxu0
        %1003 = vmatprep.mubr.f32.mxu0 %v915
        %1004 = vmatmul.mubr.f32.gmra.mrb[0].mxu0 %v898
        %v1005 = vpop.f32.mrb[0].mxu0
        %v1006 = vadd.f32 0.0, %v1005
        %v1007 = vpop.f32.mrb[0].mxu0
        %1008 = vmatprep.mubr.f32.mxu0 %v918
        %1009 = vmatmul.mubr.f32.gmra.mrb[0].mxu0 %v900
        %v1010 = vpop.f32.mrb[0].mxu0
        %v1011 = vadd.f32 0.0, %v1010
        %v1012 = vpop.f32.mrb[0].mxu0
        %1013 = vmatprep.mubr.f32.mxu0 %v921
        %1014 = vmatmul.mubr.f32.gmra.mrb[0].mxu0 %v902
        %v1015 = vpop.f32.mrb[0].mxu0
        %v1016 = vadd.f32 0.0, %v1015
        %v1017 = vpop.f32.mrb[0].mxu0
        %1018 = vmatprep.mubr.f32.mxu0 %v924
        %1019 = vmatmul.mubr.f32.gmra.mrb[0].mxu0 %v904
        %v1020 = vpop.f32.mrb[0].mxu0
        %v1021 = vadd.f32 0.0, %v1020
        %v1022 = vpop.f32.mrb[0].mxu0
        %1023 = vmatprep.mubr.f32.mxu0 %v927
        %1024 = vmatmul.mubr.f32.gmra.mrb[0].mxu0 %v906
        %v1025 = vpop.f32.mrb[0].mxu0
        %v1026 = vadd.f32 0.0, %v1025
        %v1027 = vpop.f32.mrb[0].mxu0
        %1028 = vdwg.mxu0
        %1029 = vmatprep.subr.mxu0 0.0
        %1030 = vmatpush1.msra.mxu0 %v289
        %1031 = vmatprep.subr.mxu0 0.0
        %1032 = vmatpush1.msra.mxu0 %v290
        %1033 = vmatprep.subr.mxu0 0.0
        %1034 = vmatpush1.msra.mxu0 %v291
        %1035 = vmatprep.subr.mxu0 0.0
        %1036 = vmatpush1.msra.mxu0 %v292
        %1037 = vmatprep.subr.mxu0 0.0
        %1038 = vmatpush1.msra.mxu0 %v293
        %1039 = vmatprep.subr.mxu0 0.0
        %1040 = vmatpush1.msra.mxu0 %v294
        %1041 = vmatprep.subr.mxu0 0.0
        %1042 = vmatpush1.msra.mxu0 %v295
        %1043 = vmatprep.subr.mxu0 0.0
        %1044 = vmatpush1.msra.mxu0 %v296
        %1045 = vmatprep.subr.mxu0 0.0
        %1046 = vmatpush1.msra.mxu0 %v297
        %1047 = vmatprep.subr.mxu0 0.0
        %1048 = vmatpush1.msra.mxu0 %v298
        %1049 = vmatprep.subr.mxu0 0.0
        %1050 = vmatpush1.msra.mxu0 %v299
        %1051 = vmatprep.subr.mxu0 0.0
        %1052 = vmatpush1.msra.mxu0 %v300
        %1053 = vmatprep.subr.mxu0 0.0
        %1054 = vmatpush1.msra.mxu0 %v301
        %1055 = vmatprep.subr.mxu0 0.0
        %1056 = vmatpush1.msra.mxu0 %v302
        %1057 = vmatprep.subr.mxu0 0.0
        %1058 = vmatpush1.msra.mxu0 %v303
        %1059 = vmatprep.subr.mxu0 0.0
        %1060 = vmatpush1.msra.mxu0 %v304
        %1061 = vmatprep.subr.mxu0 0.0
        %1062 = vmatpush1.msra.mxu0 %v305
        %1063 = vmatprep.subr.mxu0 0.0
        %1064 = vmatpush1.msra.mxu0 %v306
        %1065 = vmatprep.subr.mxu0 0.0
        %1066 = vmatpush1.msra.mxu0 %v307
        %1067 = vmatprep.subr.mxu0 0.0
        %1068 = vmatpush1.msra.mxu0 %v308
        %1069 = vmatprep.subr.mxu0 0.0
        %1070 = vmatpush1.msra.mxu0 %v309
        %1071 = vmatprep.subr.mxu0 0.0
        %1072 = vmatpush1.msra.mxu0 %v310
        %1073 = vmatprep.subr.mxu0 0.0
        %1074 = vmatpush1.msra.mxu0 %v311
        %1075 = vmatprep.subr.mxu0 0.0
        %1076 = vmatpush1.msra.mxu0 %v312
        %1077 = vmatprep.subr.mxu0 0.0
        %1078 = vmatpush1.msra.mxu0 0.0
        %1079 = vmatprep.subr.mxu0 0.0
        %1080 = vmatpush1.msra.mxu0 0.0
        %1081 = vmatprep.subr.mxu0 0.0
        %1082 = vmatpush1.msra.mxu0 0.0
        %1083 = vmatprep.subr.mxu0 0.0
        %1084 = vmatpush1.msra.mxu0 0.0
        %1085 = vmatprep.subr.mxu0 0.0
        %1086 = vmatpush1.msra.mxu0 0.0
        %1087 = vmatprep.subr.mxu0 0.0
        %1088 = vmatpush1.msra.mxu0 0.0
        %1089 = vmatprep.subr.mxu0 0.0
        %1090 = vmatpush1.msra.mxu0 0.0
        %1091 = vmatprep.subr.mxu0 0.0
        %1092 = vmatpush1.msra.mxu0 0.0
        %1093 = vmatprep.mubr.f32.mxu0 %v407
        %1094 = vmatmul.mubr.f32.gmra.mrb[0].mxu0 %v350
        %v1095 = vpop.f32.mrb[0].mxu0
        %v1096 = vadd.f32 %v996, %v1095
        %v1097 = vpop.f32.mrb[0].mxu0
        %1098 = vmatprep.mubr.f32.mxu0 %v410
        %1099 = vmatmul.mubr.f32.gmra.mrb[0].mxu0 %v352
        %v1100 = vpop.f32.mrb[0].mxu0
        %v1101 = vadd.f32 %v1001, %v1100
        %v1102 = vpop.f32.mrb[0].mxu0
        %1103 = vmatprep.mubr.f32.mxu0 %v413
        %1104 = vmatmul.mubr.f32.gmra.mrb[0].mxu0 %v354
        %v1105 = vpop.f32.mrb[0].mxu0
        %v1106 = vadd.f32 %v1006, %v1105
        %v1107 = vpop.f32.mrb[0].mxu0
        %1108 = vmatprep.mubr.f32.mxu0 %v416
        %1109 = vmatmul.mubr.f32.gmra.mrb[0].mxu0 %v356
        %v1110 = vpop.f32.mrb[0].mxu0
        %v1111 = vadd.f32 %v1011, %v1110
        %v1112 = vpop.f32.mrb[0].mxu0
        %1113 = vmatprep.mubr.f32.mxu0 %v419
        %1114 = vmatmul.mubr.f32.gmra.mrb[0].mxu0 %v358
        %v1115 = vpop.f32.mrb[0].mxu0
        %v1116 = vadd.f32 %v1016, %v1115
        %v1117 = vpop.f32.mrb[0].mxu0
        %1118 = vmatprep.mubr.f32.mxu0 %v422
        %1119 = vmatmul.mubr.f32.gmra.mrb[0].mxu0 %v360
        %v1120 = vpop.f32.mrb[0].mxu0
        %v1121 = vadd.f32 %v1021, %v1120
        %v1122 = vpop.f32.mrb[0].mxu0
        %1123 = vmatprep.mubr.f32.mxu0 %v425
        %1124 = vmatmul.mubr.f32.gmra.mrb[0].mxu0 %v362
        %v1125 = vpop.f32.mrb[0].mxu0
        %v1126 = vadd.f32 %v1026, %v1125
        %v1127 = vpop.f32.mrb[0].mxu0
        %1128 = vdwg.mxu0
        %s1129 = smul.addr %s891, 8
        %s1130 = scalar_lea.vmem %s268, %s1129
        %v1131 = vld [vmem:[%s1130] sm:$0xff]
        %v1132 = vld [vmem:[%s1130 + $0x8] sm:$0xff]
        %v1133 = vld [vmem:[%s1130 + $0x10] sm:$0xff]
        %v1134 = vld [vmem:[%s1130 + $0x18] sm:$0xff]
        %v1135 = vld [vmem:[%s1130 + $0x20] sm:$0xff]
        %v1136 = vld [vmem:[%s1130 + $0x28] sm:$0xff]
        %v1137 = vld [vmem:[%s1130 + $0x30] sm:$0xff]
        %v1138 = vld [vmem:[%s1130 + $0x38] sm:$0xff]
        %v1139 = vld [vmem:[%s1130 + $0x40] sm:$0xff]
        %v1140 = vld [vmem:[%s1130 + $0x48] sm:$0xff]
        %v1141 = vld [vmem:[%s1130 + $0x50] sm:$0xff]
        %v1142 = vld [vmem:[%s1130 + $0x58] sm:$0xff]
        %v1143 = vld [vmem:[%s1130 + $0x60] sm:$0x3f]
        %v1144 = vld [vmem:[%s1130 + $0x68] sm:$0x3f]
        %v1146 = vsel %vm405, %v1132, 0
        %v1149 = vsel %vm405, %v1134, 0
        %v1152 = vsel %vm405, %v1136, 0
        %v1155 = vsel %vm405, %v1138, 0
        %v1158 = vsel %vm405, %v1140, 0
        %v1161 = vsel %vm405, %v1142, 0
        %v1164 = vsel %vm405, %v1144, 0
        %1166 = vmatprep.subr.mxu0 0.0
        %1167 = vmatpush1.msra.mxu0 %v381
        %1168 = vmatprep.subr.mxu0 0.0
        %1169 = vmatpush1.msra.mxu0 %v382
        %1170 = vmatprep.subr.mxu0 0.0
        %1171 = vmatpush1.msra.mxu0 %v383
        %1172 = vmatprep.subr.mxu0 0.0
        %1173 = vmatpush1.msra.mxu0 %v384
        %1174 = vmatprep.subr.mxu0 0.0
        %1175 = vmatpush1.msra.mxu0 %v385
        %1176 = vmatprep.subr.mxu0 0.0
        %1177 = vmatpush1.msra.mxu0 %v386
        %1178 = vmatprep.subr.mxu0 0.0
        %1179 = vmatpush1.msra.mxu0 %v387
        %1180 = vmatprep.subr.mxu0 0.0
        %1181 = vmatpush1.msra.mxu0 %v388
        %1182 = vmatprep.subr.mxu0 0.0
        %1183 = vmatpush1.msra.mxu0 %v389
        %1184 = vmatprep.subr.mxu0 0.0
        %1185 = vmatpush1.msra.mxu0 %v390
        %1186 = vmatprep.subr.mxu0 0.0
        %1187 = vmatpush1.msra.mxu0 %v391
        %1188 = vmatprep.subr.mxu0 0.0
        %1189 = vmatpush1.msra.mxu0 %v392
        %1190 = vmatprep.subr.mxu0 0.0
        %1191 = vmatpush1.msra.mxu0 %v393
        %1192 = vmatprep.subr.mxu0 0.0
        %1193 = vmatpush1.msra.mxu0 %v394
        %1194 = vmatprep.subr.mxu0 0.0
        %1195 = vmatpush1.msra.mxu0 %v395
        %1196 = vmatprep.subr.mxu0 0.0
        %1197 = vmatpush1.msra.mxu0 %v396
        %1198 = vmatprep.subr.mxu0 0.0
        %1199 = vmatpush1.msra.mxu0 %v397
        %1200 = vmatprep.subr.mxu0 0.0
        %1201 = vmatpush1.msra.mxu0 %v398
        %1202 = vmatprep.subr.mxu0 0.0
        %1203 = vmatpush1.msra.mxu0 %v399
        %1204 = vmatprep.subr.mxu0 0.0
        %1205 = vmatpush1.msra.mxu0 %v400
        %1206 = vmatprep.subr.mxu0 0.0
        %1207 = vmatpush1.msra.mxu0 %v401
        %1208 = vmatprep.subr.mxu0 0.0
        %1209 = vmatpush1.msra.mxu0 %v402
        %1210 = vmatprep.subr.mxu0 0.0
        %1211 = vmatpush1.msra.mxu0 %v403
        %1212 = vmatprep.subr.mxu0 0.0
        %1213 = vmatpush1.msra.mxu0 %v404
        %1214 = vmatprep.subr.mxu0 0.0
        %1215 = vmatpush1.msra.mxu0 0.0
        %1216 = vmatprep.subr.mxu0 0.0
        %1217 = vmatpush1.msra.mxu0 0.0
        %1218 = vmatprep.subr.mxu0 0.0
        %1219 = vmatpush1.msra.mxu0 0.0
        %1220 = vmatprep.subr.mxu0 0.0
        %1221 = vmatpush1.msra.mxu0 0.0
        %1222 = vmatprep.subr.mxu0 0.0
        %1223 = vmatpush1.msra.mxu0 0.0
        %1224 = vmatprep.subr.mxu0 0.0
        %1225 = vmatpush1.msra.mxu0 0.0
        %1226 = vmatprep.subr.mxu0 0.0
        %1227 = vmatpush1.msra.mxu0 0.0
        %1228 = vmatprep.subr.mxu0 0.0
        %1229 = vmatpush1.msra.mxu0 0.0
        %1230 = vmatprep.mubr.f32.mxu0 %v1146
        %1231 = vmatmul.mubr.f32.gmra.mrb[0].mxu0 %v1131
        %v1232 = vpop.f32.mrb[0].mxu0
        %v1233 = vadd.f32 0.0, %v1232
        %v1234 = vpop.f32.mrb[0].mxu0
        %1235 = vmatprep.mubr.f32.mxu0 %v1149
        %1236 = vmatmul.mubr.f32.gmra.mrb[0].mxu0 %v1133
        %v1237 = vpop.f32.mrb[0].mxu0
        %v1238 = vadd.f32 0.0, %v1237
        %v1239 = vpop.f32.mrb[0].mxu0
        %1240 = vmatprep.mubr.f32.mxu0 %v1152
        %1241 = vmatmul.mubr.f32.gmra.mrb[0].mxu0 %v1135
        %v1242 = vpop.f32.mrb[0].mxu0
        %v1243 = vadd.f32 0.0, %v1242
        %v1244 = vpop.f32.mrb[0].mxu0
        %1245 = vmatprep.mubr.f32.mxu0 %v1155
        %1246 = vmatmul.mubr.f32.gmra.mrb[0].mxu0 %v1137
        %v1247 = vpop.f32.mrb[0].mxu0
        %v1248 = vadd.f32 0.0, %v1247
        %v1249 = vpop.f32.mrb[0].mxu0
        %1250 = vmatprep.mubr.f32.mxu0 %v1158
        %1251 = vmatmul.mubr.f32.gmra.mrb[0].mxu0 %v1139
        %v1252 = vpop.f32.mrb[0].mxu0
        %v1253 = vadd.f32 0.0, %v1252
        %v1254 = vpop.f32.mrb[0].mxu0
        %1255 = vmatprep.mubr.f32.mxu0 %v1161
        %1256 = vmatmul.mubr.f32.gmra.mrb[0].mxu0 %v1141
        %v1257 = vpop.f32.mrb[0].mxu0
        %v1258 = vadd.f32 0.0, %v1257
        %v1259 = vpop.f32.mrb[0].mxu0
        %1260 = vmatprep.mubr.f32.mxu0 %v1164
        %1261 = vmatmul.mubr.f32.gmra.mrb[0].mxu0 %v1143
        %v1262 = vpop.f32.mrb[0].mxu0
        %v1263 = vadd.f32 0.0, %v1262
        %v1264 = vpop.f32.mrb[0].mxu0
        %1265 = vdwg.mxu0
        %1266 = vmatprep.subr.mxu0 0.0
        %1267 = vmatpush1.msra.mxu0 %v289
        %1268 = vmatprep.subr.mxu0 0.0
        %1269 = vmatpush1.msra.mxu0 %v290
        %1270 = vmatprep.subr.mxu0 0.0
        %1271 = vmatpush1.msra.mxu0 %v291
        %1272 = vmatprep.subr.mxu0 0.0
        %1273 = vmatpush1.msra.mxu0 %v292
        %1274 = vmatprep.subr.mxu0 0.0
        %1275 = vmatpush1.msra.mxu0 %v293
        %1276 = vmatprep.subr.mxu0 0.0
        %1277 = vmatpush1.msra.mxu0 %v294
        %1278 = vmatprep.subr.mxu0 0.0
        %1279 = vmatpush1.msra.mxu0 %v295
        %1280 = vmatprep.subr.mxu0 0.0
        %1281 = vmatpush1.msra.mxu0 %v296
        %1282 = vmatprep.subr.mxu0 0.0
        %1283 = vmatpush1.msra.mxu0 %v297
        %1284 = vmatprep.subr.mxu0 0.0
        %1285 = vmatpush1.msra.mxu0 %v298
        %1286 = vmatprep.subr.mxu0 0.0
        %1287 = vmatpush1.msra.mxu0 %v299
        %1288 = vmatprep.subr.mxu0 0.0
        %1289 = vmatpush1.msra.mxu0 %v300
        %1290 = vmatprep.subr.mxu0 0.0
        %1291 = vmatpush1.msra.mxu0 %v301
        %1292 = vmatprep.subr.mxu0 0.0
        %1293 = vmatpush1.msra.mxu0 %v302
        %1294 = vmatprep.subr.mxu0 0.0
        %1295 = vmatpush1.msra.mxu0 %v303
        %1296 = vmatprep.subr.mxu0 0.0
        %1297 = vmatpush1.msra.mxu0 %v304
        %1298 = vmatprep.subr.mxu0 0.0
        %1299 = vmatpush1.msra.mxu0 %v305
        %1300 = vmatprep.subr.mxu0 0.0
        %1301 = vmatpush1.msra.mxu0 %v306
        %1302 = vmatprep.subr.mxu0 0.0
        %1303 = vmatpush1.msra.mxu0 %v307
        %1304 = vmatprep.subr.mxu0 0.0
        %1305 = vmatpush1.msra.mxu0 %v308
        %1306 = vmatprep.subr.mxu0 0.0
        %1307 = vmatpush1.msra.mxu0 %v309
        %1308 = vmatprep.subr.mxu0 0.0
        %1309 = vmatpush1.msra.mxu0 %v310
        %1310 = vmatprep.subr.mxu0 0.0
        %1311 = vmatpush1.msra.mxu0 %v311
        %1312 = vmatprep.subr.mxu0 0.0
        %1313 = vmatpush1.msra.mxu0 %v312
        %1314 = vmatprep.subr.mxu0 0.0
        %1315 = vmatpush1.msra.mxu0 0.0
        %1316 = vmatprep.subr.mxu0 0.0
        %1317 = vmatpush1.msra.mxu0 0.0
        %1318 = vmatprep.subr.mxu0 0.0
        %1319 = vmatpush1.msra.mxu0 0.0
        %1320 = vmatprep.subr.mxu0 0.0
        %1321 = vmatpush1.msra.mxu0 0.0
        %1322 = vmatprep.subr.mxu0 0.0
        %1323 = vmatpush1.msra.mxu0 0.0
        %1324 = vmatprep.subr.mxu0 0.0
        %1325 = vmatpush1.msra.mxu0 0.0
        %1326 = vmatprep.subr.mxu0 0.0
        %1327 = vmatpush1.msra.mxu0 0.0
        %1328 = vmatprep.subr.mxu0 0.0
        %1329 = vmatpush1.msra.mxu0 0.0
        %1330 = vmatprep.mubr.f32.mxu0 %v649
        %1331 = vmatmul.mubr.f32.gmra.mrb[0].mxu0 %v366
        %v1332 = vpop.f32.mrb[0].mxu0
        %v1333 = vadd.f32 %v1233, %v1332
        %v1334 = vpop.f32.mrb[0].mxu0
        %1335 = vmatprep.mubr.f32.mxu0 %v652
        %1336 = vmatmul.mubr.f32.gmra.mrb[0].mxu0 %v368
        %v1337 = vpop.f32.mrb[0].mxu0
        %v1338 = vadd.f32 %v1238, %v1337
        %v1339 = vpop.f32.mrb[0].mxu0
        %1340 = vmatprep.mubr.f32.mxu0 %v655
        %1341 = vmatmul.mubr.f32.gmra.mrb[0].mxu0 %v370
        %v1342 = vpop.f32.mrb[0].mxu0
        %v1343 = vadd.f32 %v1243, %v1342
        %v1344 = vpop.f32.mrb[0].mxu0
        %1345 = vmatprep.mubr.f32.mxu0 %v658
        %1346 = vmatmul.mubr.f32.gmra.mrb[0].mxu0 %v372
        %v1347 = vpop.f32.mrb[0].mxu0
        %v1348 = vadd.f32 %v1248, %v1347
        %v1349 = vpop.f32.mrb[0].mxu0
        %1350 = vmatprep.mubr.f32.mxu0 %v661
        %1351 = vmatmul.mubr.f32.gmra.mrb[0].mxu0 %v374
        %v1352 = vpop.f32.mrb[0].mxu0
        %v1353 = vadd.f32 %v1253, %v1352
        %v1354 = vpop.f32.mrb[0].mxu0
        %1355 = vmatprep.mubr.f32.mxu0 %v664
        %1356 = vmatmul.mubr.f32.gmra.mrb[0].mxu0 %v376
        %v1357 = vpop.f32.mrb[0].mxu0
        %v1358 = vadd.f32 %v1258, %v1357
        %v1359 = vpop.f32.mrb[0].mxu0
        %1360 = vmatprep.mubr.f32.mxu0 %v667
        %1361 = vmatmul.mubr.f32.gmra.mrb[0].mxu0 %v378
        %v1362 = vpop.f32.mrb[0].mxu0
        %v1363 = vadd.f32 %v1263, %v1362
        %v1364 = vpop.f32.mrb[0].mxu0
        %1365 = vdwg.mxu0
        %s1366 = scalar_lea.vmem %s2, 384
        %v1367 = vld [vmem:[%s1366] sm:$0xff]
        %v1368 = vld [vmem:[%s1366 + $0x8] sm:$0xff]
        %v1369 = vld [vmem:[%s1366 + $0x10] sm:$0xff]
        %v1370 = vld [vmem:[%s1366 + $0x18] sm:$0xff]
        %v1371 = vld [vmem:[%s1366 + $0x20] sm:$0xff]
        %v1372 = vld [vmem:[%s1366 + $0x28] sm:$0xff]
        %v1373 = vld [vmem:[%s1366 + $0x30] sm:$0xff]
        %v1374 = vld [vmem:[%s1366 + $0x38] sm:$0xff]
        %v1375 = vld [vmem:[%s1366 + $0x40] sm:$0xff]
        %v1376 = vld [vmem:[%s1366 + $0x48] sm:$0xff]
        %v1377 = vld [vmem:[%s1366 + $0x50] sm:$0xff]
        %v1378 = vld [vmem:[%s1366 + $0x58] sm:$0xff]
        %v1379 = vld [vmem:[%s1366 + $0x60] sm:$0xff]
        %v1380 = vld [vmem:[%s1366 + $0x68] sm:$0xff]
        %v1381 = vld [vmem:[%s1366 + $0x70] sm:$0xff]
        %v1382 = vld [vmem:[%s1366 + $0x78] sm:$0xff]
        %v1383 = vld [vmem:[%s1366 + $0x80] sm:$0xff]
        %v1384 = vld [vmem:[%s1366 + $0x88] sm:$0xff]
        %v1385 = vld [vmem:[%s1366 + $0x90] sm:$0xff]
        %v1386 = vld [vmem:[%s1366 + $0x98] sm:$0xff]
        %v1387 = vld [vmem:[%s1366 + $0xa0] sm:$0xff]
        %v1388 = vld [vmem:[%s1366 + $0xa8] sm:$0xff]
        %v1389 = vld [vmem:[%s1366 + $0xb0] sm:$0xff]
        %v1390 = vld [vmem:[%s1366 + $0xb8] sm:$0xff]
        %1391 = vmatprep.subr.mxu0 0.0
        %1392 = vmatpush1.msra.mxu0 %v1367
        %1393 = vmatprep.subr.mxu0 0.0
        %1394 = vmatpush1.msra.mxu0 %v1368
        %1395 = vmatprep.subr.mxu0 0.0
        %1396 = vmatpush1.msra.mxu0 %v1369
        %1397 = vmatprep.subr.mxu0 0.0
        %1398 = vmatpush1.msra.mxu0 %v1370
        %1399 = vmatprep.subr.mxu0 0.0
        %1400 = vmatpush1.msra.mxu0 %v1371
        %1401 = vmatprep.subr.mxu0 0.0
        %1402 = vmatpush1.msra.mxu0 %v1372
        %1403 = vmatprep.subr.mxu0 0.0
        %1404 = vmatpush1.msra.mxu0 %v1373
        %1405 = vmatprep.subr.mxu0 0.0
        %1406 = vmatpush1.msra.mxu0 %v1374
        %1407 = vmatprep.subr.mxu0 0.0
        %1408 = vmatpush1.msra.mxu0 %v1375
        %1409 = vmatprep.subr.mxu0 0.0
        %1410 = vmatpush1.msra.mxu0 %v1376
        %1411 = vmatprep.subr.mxu0 0.0
        %1412 = vmatpush1.msra.mxu0 %v1377
        %1413 = vmatprep.subr.mxu0 0.0
        %1414 = vmatpush1.msra.mxu0 %v1378
        %1415 = vmatprep.subr.mxu0 0.0
        %1416 = vmatpush1.msra.mxu0 %v1379
        %1417 = vmatprep.subr.mxu0 0.0
        %1418 = vmatpush1.msra.mxu0 %v1380
        %1419 = vmatprep.subr.mxu0 0.0
        %1420 = vmatpush1.msra.mxu0 %v1381
        %1421 = vmatprep.subr.mxu0 0.0
        %1422 = vmatpush1.msra.mxu0 %v1382
        %1423 = vmatprep.subr.mxu0 0.0
        %1424 = vmatpush1.msra.mxu0 %v1383
        %1425 = vmatprep.subr.mxu0 0.0
        %1426 = vmatpush1.msra.mxu0 %v1384
        %1427 = vmatprep.subr.mxu0 0.0
        %1428 = vmatpush1.msra.mxu0 %v1385
        %1429 = vmatprep.subr.mxu0 0.0
        %1430 = vmatpush1.msra.mxu0 %v1386
        %1431 = vmatprep.subr.mxu0 0.0
        %1432 = vmatpush1.msra.mxu0 %v1387
        %1433 = vmatprep.subr.mxu0 0.0
        %1434 = vmatpush1.msra.mxu0 %v1388
        %1435 = vmatprep.subr.mxu0 0.0
        %1436 = vmatpush1.msra.mxu0 %v1389
        %1437 = vmatprep.subr.mxu0 0.0
        %1438 = vmatpush1.msra.mxu0 %v1390
        %1439 = vmatprep.subr.mxu0 0.0
        %1440 = vmatpush1.msra.mxu0 0.0
        %1441 = vmatprep.subr.mxu0 0.0
        %1442 = vmatpush1.msra.mxu0 0.0
        %1443 = vmatprep.subr.mxu0 0.0
        %1444 = vmatpush1.msra.mxu0 0.0
        %1445 = vmatprep.subr.mxu0 0.0
        %1446 = vmatpush1.msra.mxu0 0.0
        %1447 = vmatprep.subr.mxu0 0.0
        %1448 = vmatpush1.msra.mxu0 0.0
        %1449 = vmatprep.subr.mxu0 0.0
        %1450 = vmatpush1.msra.mxu0 0.0
        %1451 = vmatprep.subr.mxu0 0.0
        %1452 = vmatpush1.msra.mxu0 0.0
        %1453 = vmatprep.subr.mxu0 0.0
        %1454 = vmatpush1.msra.mxu0 0.0
        %1455 = vmatprep.mubr.f32.mxu0 %v909
        %1456 = vmatmul.mubr.f32.gmra.mrb[0].mxu0 %v894
        %v1457 = vpop.f32.mrb[0].mxu0
        %v1458 = vadd.f32 0.0, %v1457
        %v1459 = vpop.f32.mrb[0].mxu0
        %1460 = vmatprep.mubr.f32.mxu0 %v912
        %1461 = vmatmul.mubr.f32.gmra.mrb[0].mxu0 %v896
        %v1462 = vpop.f32.mrb[0].mxu0
        %v1463 = vadd.f32 0.0, %v1462
        %v1464 = vpop.f32.mrb[0].mxu0
        %1465 = vmatprep.mubr.f32.mxu0 %v915
        %1466 = vmatmul.mubr.f32.gmra.mrb[0].mxu0 %v898
        %v1467 = vpop.f32.mrb[0].mxu0
        %v1468 = vadd.f32 0.0, %v1467
        %v1469 = vpop.f32.mrb[0].mxu0
        %1470 = vmatprep.mubr.f32.mxu0 %v918
        %1471 = vmatmul.mubr.f32.gmra.mrb[0].mxu0 %v900
        %v1472 = vpop.f32.mrb[0].mxu0
        %v1473 = vadd.f32 0.0, %v1472
        %v1474 = vpop.f32.mrb[0].mxu0
        %1475 = vmatprep.mubr.f32.mxu0 %v921
        %1476 = vmatmul.mubr.f32.gmra.mrb[0].mxu0 %v902
        %v1477 = vpop.f32.mrb[0].mxu0
        %v1478 = vadd.f32 0.0, %v1477
        %v1479 = vpop.f32.mrb[0].mxu0
        %1480 = vmatprep.mubr.f32.mxu0 %v924
        %1481 = vmatmul.mubr.f32.gmra.mrb[0].mxu0 %v904
        %v1482 = vpop.f32.mrb[0].mxu0
        %v1483 = vadd.f32 0.0, %v1482
        %v1484 = vpop.f32.mrb[0].mxu0
        %1485 = vmatprep.mubr.f32.mxu0 %v927
        %1486 = vmatmul.mubr.f32.gmra.mrb[0].mxu0 %v906
        %v1487 = vpop.f32.mrb[0].mxu0
        %v1488 = vadd.f32 0.0, %v1487
        %v1489 = vpop.f32.mrb[0].mxu0
        %1490 = vdwg.mxu0
        %v1491 = vadd.f32 %v615, %v1458
        %v1492 = vadd.f32 %v620, %v1463
        %v1493 = vadd.f32 %v625, %v1468
        %v1494 = vadd.f32 %v630, %v1473
        %v1495 = vadd.f32 %v635, %v1478
        %v1496 = vadd.f32 %v640, %v1483
        %v1497 = vadd.f32 %v645, %v1488
        %1498 = vmatprep.subr.mxu0 0.0
        %1499 = vmatpush1.msra.mxu0 %v1367
        %1500 = vmatprep.subr.mxu0 0.0
        %1501 = vmatpush1.msra.mxu0 %v1368
        %1502 = vmatprep.subr.mxu0 0.0
        %1503 = vmatpush1.msra.mxu0 %v1369
        %1504 = vmatprep.subr.mxu0 0.0
        %1505 = vmatpush1.msra.mxu0 %v1370
        %1506 = vmatprep.subr.mxu0 0.0
        %1507 = vmatpush1.msra.mxu0 %v1371
        %1508 = vmatprep.subr.mxu0 0.0
        %1509 = vmatpush1.msra.mxu0 %v1372
        %1510 = vmatprep.subr.mxu0 0.0
        %1511 = vmatpush1.msra.mxu0 %v1373
        %1512 = vmatprep.subr.mxu0 0.0
        %1513 = vmatpush1.msra.mxu0 %v1374
        %1514 = vmatprep.subr.mxu0 0.0
        %1515 = vmatpush1.msra.mxu0 %v1375
        %1516 = vmatprep.subr.mxu0 0.0
        %1517 = vmatpush1.msra.mxu0 %v1376
        %1518 = vmatprep.subr.mxu0 0.0
        %1519 = vmatpush1.msra.mxu0 %v1377
        %1520 = vmatprep.subr.mxu0 0.0
        %1521 = vmatpush1.msra.mxu0 %v1378
        %1522 = vmatprep.subr.mxu0 0.0
        %1523 = vmatpush1.msra.mxu0 %v1379
        %1524 = vmatprep.subr.mxu0 0.0
        %1525 = vmatpush1.msra.mxu0 %v1380
        %1526 = vmatprep.subr.mxu0 0.0
        %1527 = vmatpush1.msra.mxu0 %v1381
        %1528 = vmatprep.subr.mxu0 0.0
        %1529 = vmatpush1.msra.mxu0 %v1382
        %1530 = vmatprep.subr.mxu0 0.0
        %1531 = vmatpush1.msra.mxu0 %v1383
        %1532 = vmatprep.subr.mxu0 0.0
        %1533 = vmatpush1.msra.mxu0 %v1384
        %1534 = vmatprep.subr.mxu0 0.0
        %1535 = vmatpush1.msra.mxu0 %v1385
        %1536 = vmatprep.subr.mxu0 0.0
        %1537 = vmatpush1.msra.mxu0 %v1386
        %1538 = vmatprep.subr.mxu0 0.0
        %1539 = vmatpush1.msra.mxu0 %v1387
        %1540 = vmatprep.subr.mxu0 0.0
        %1541 = vmatpush1.msra.mxu0 %v1388
        %1542 = vmatprep.subr.mxu0 0.0
        %1543 = vmatpush1.msra.mxu0 %v1389
        %1544 = vmatprep.subr.mxu0 0.0
        %1545 = vmatpush1.msra.mxu0 %v1390
        %1546 = vmatprep.subr.mxu0 0.0
        %1547 = vmatpush1.msra.mxu0 0.0
        %1548 = vmatprep.subr.mxu0 0.0
        %1549 = vmatpush1.msra.mxu0 0.0
        %1550 = vmatprep.subr.mxu0 0.0
        %1551 = vmatpush1.msra.mxu0 0.0
        %1552 = vmatprep.subr.mxu0 0.0
        %1553 = vmatpush1.msra.mxu0 0.0
        %1554 = vmatprep.subr.mxu0 0.0
        %1555 = vmatpush1.msra.mxu0 0.0
        %1556 = vmatprep.subr.mxu0 0.0
        %1557 = vmatpush1.msra.mxu0 0.0
        %1558 = vmatprep.subr.mxu0 0.0
        %1559 = vmatpush1.msra.mxu0 0.0
        %1560 = vmatprep.subr.mxu0 0.0
        %1561 = vmatpush1.msra.mxu0 0.0
        %1562 = vmatprep.mubr.f32.mxu0 %v1146
        %1563 = vmatmul.mubr.f32.gmra.mrb[0].mxu0 %v1131
        %v1564 = vpop.f32.mrb[0].mxu0
        %v1565 = vadd.f32 0.0, %v1564
        %v1566 = vpop.f32.mrb[0].mxu0
        %1567 = vmatprep.mubr.f32.mxu0 %v1149
        %1568 = vmatmul.mubr.f32.gmra.mrb[0].mxu0 %v1133
        %v1569 = vpop.f32.mrb[0].mxu0
        %v1570 = vadd.f32 0.0, %v1569
        %v1571 = vpop.f32.mrb[0].mxu0
        %1572 = vmatprep.mubr.f32.mxu0 %v1152
        %1573 = vmatmul.mubr.f32.gmra.mrb[0].mxu0 %v1135
        %v1574 = vpop.f32.mrb[0].mxu0
        %v1575 = vadd.f32 0.0, %v1574
        %v1576 = vpop.f32.mrb[0].mxu0
        %1577 = vmatprep.mubr.f32.mxu0 %v1155
        %1578 = vmatmul.mubr.f32.gmra.mrb[0].mxu0 %v1137
        %v1579 = vpop.f32.mrb[0].mxu0
        %v1580 = vadd.f32 0.0, %v1579
        %v1581 = vpop.f32.mrb[0].mxu0
        %1582 = vmatprep.mubr.f32.mxu0 %v1158
        %1583 = vmatmul.mubr.f32.gmra.mrb[0].mxu0 %v1139
        %v1584 = vpop.f32.mrb[0].mxu0
        %v1585 = vadd.f32 0.0, %v1584
        %v1586 = vpop.f32.mrb[0].mxu0
        %1587 = vmatprep.mubr.f32.mxu0 %v1161
        %1588 = vmatmul.mubr.f32.gmra.mrb[0].mxu0 %v1141
        %v1589 = vpop.f32.mrb[0].mxu0
        %v1590 = vadd.f32 0.0, %v1589
        %v1591 = vpop.f32.mrb[0].mxu0
        %1592 = vmatprep.mubr.f32.mxu0 %v1164
        %1593 = vmatmul.mubr.f32.gmra.mrb[0].mxu0 %v1143
        %v1594 = vpop.f32.mrb[0].mxu0
        %v1595 = vadd.f32 0.0, %v1594
        %v1596 = vpop.f32.mrb[0].mxu0
        %1597 = vdwg.mxu0
        %v1598 = vadd.f32 %v857, %v1565
        %v1599 = vadd.f32 %v862, %v1570
        %v1600 = vadd.f32 %v867, %v1575
        %v1601 = vadd.f32 %v872, %v1580
        %v1602 = vadd.f32 %v877, %v1585
        %v1603 = vadd.f32 %v882, %v1590
        %v1604 = vadd.f32 %v887, %v1595
        %s1605 = sadd.s32 %s288, 3
        %s1606 = smul.u32 %s1605, 14
        %s1607 = smul.addr %s1606, 8
        %s1608 = scalar_lea.vmem %s257, %s1607
        %v1609 = vld [vmem:[%s1608] sm:$0xff]
        %v1610 = vld [vmem:[%s1608 + $0x8] sm:$0xff]
        %v1611 = vld [vmem:[%s1608 + $0x10] sm:$0xff]
        %v1612 = vld [vmem:[%s1608 + $0x18] sm:$0xff]
        %v1613 = vld [vmem:[%s1608 + $0x20] sm:$0xff]
        %v1614 = vld [vmem:[%s1608 + $0x28] sm:$0xff]
        %v1615 = vld [vmem:[%s1608 + $0x30] sm:$0xff]
        %v1616 = vld [vmem:[%s1608 + $0x38] sm:$0xff]
        %v1617 = vld [vmem:[%s1608 + $0x40] sm:$0xff]
        %v1618 = vld [vmem:[%s1608 + $0x48] sm:$0xff]
        %v1619 = vld [vmem:[%s1608 + $0x50] sm:$0xff]
        %v1620 = vld [vmem:[%s1608 + $0x58] sm:$0xff]
        %v1621 = vld [vmem:[%s1608 + $0x60] sm:$0x3f]
        %v1622 = vld [vmem:[%s1608 + $0x68] sm:$0x3f]
        %v1624 = vsel %vm405, %v1610, 0
        %v1627 = vsel %vm405, %v1612, 0
        %v1630 = vsel %vm405, %v1614, 0
        %v1633 = vsel %vm405, %v1616, 0
        %v1636 = vsel %vm405, %v1618, 0
        %v1639 = vsel %vm405, %v1620, 0
        %v1642 = vsel %vm405, %v1622, 0
        %1644 = vmatprep.subr.mxu0 0.0
        %1645 = vmatpush1.msra.mxu0 %v1367
        %1646 = vmatprep.subr.mxu0 0.0
        %1647 = vmatpush1.msra.mxu0 %v1368
        %1648 = vmatprep.subr.mxu0 0.0
        %1649 = vmatpush1.msra.mxu0 %v1369
        %1650 = vmatprep.subr.mxu0 0.0
        %1651 = vmatpush1.msra.mxu0 %v1370
        %1652 = vmatprep.subr.mxu0 0.0
        %1653 = vmatpush1.msra.mxu0 %v1371
        %1654 = vmatprep.subr.mxu0 0.0
        %1655 = vmatpush1.msra.mxu0 %v1372
        %1656 = vmatprep.subr.mxu0 0.0
        %1657 = vmatpush1.msra.mxu0 %v1373
        %1658 = vmatprep.subr.mxu0 0.0
        %1659 = vmatpush1.msra.mxu0 %v1374
        %1660 = vmatprep.subr.mxu0 0.0
        %1661 = vmatpush1.msra.mxu0 %v1375
        %1662 = vmatprep.subr.mxu0 0.0
        %1663 = vmatpush1.msra.mxu0 %v1376
        %1664 = vmatprep.subr.mxu0 0.0
        %1665 = vmatpush1.msra.mxu0 %v1377
        %1666 = vmatprep.subr.mxu0 0.0
        %1667 = vmatpush1.msra.mxu0 %v1378
        %1668 = vmatprep.subr.mxu0 0.0
        %1669 = vmatpush1.msra.mxu0 %v1379
        %1670 = vmatprep.subr.mxu0 0.0
        %1671 = vmatpush1.msra.mxu0 %v1380
        %1672 = vmatprep.subr.mxu0 0.0
        %1673 = vmatpush1.msra.mxu0 %v1381
        %1674 = vmatprep.subr.mxu0 0.0
        %1675 = vmatpush1.msra.mxu0 %v1382
        %1676 = vmatprep.subr.mxu0 0.0
        %1677 = vmatpush1.msra.mxu0 %v1383
        %1678 = vmatprep.subr.mxu0 0.0
        %1679 = vmatpush1.msra.mxu0 %v1384
        %1680 = vmatprep.subr.mxu0 0.0
        %1681 = vmatpush1.msra.mxu0 %v1385
        %1682 = vmatprep.subr.mxu0 0.0
        %1683 = vmatpush1.msra.mxu0 %v1386
        %1684 = vmatprep.subr.mxu0 0.0
        %1685 = vmatpush1.msra.mxu0 %v1387
        %1686 = vmatprep.subr.mxu0 0.0
        %1687 = vmatpush1.msra.mxu0 %v1388
        %1688 = vmatprep.subr.mxu0 0.0
        %1689 = vmatpush1.msra.mxu0 %v1389
        %1690 = vmatprep.subr.mxu0 0.0
        %1691 = vmatpush1.msra.mxu0 %v1390
        %1692 = vmatprep.subr.mxu0 0.0
        %1693 = vmatpush1.msra.mxu0 0.0
        %1694 = vmatprep.subr.mxu0 0.0
        %1695 = vmatpush1.msra.mxu0 0.0
        %1696 = vmatprep.subr.mxu0 0.0
        %1697 = vmatpush1.msra.mxu0 0.0
        %1698 = vmatprep.subr.mxu0 0.0
        %1699 = vmatpush1.msra.mxu0 0.0
        %1700 = vmatprep.subr.mxu0 0.0
        %1701 = vmatpush1.msra.mxu0 0.0
        %1702 = vmatprep.subr.mxu0 0.0
        %1703 = vmatpush1.msra.mxu0 0.0
        %1704 = vmatprep.subr.mxu0 0.0
        %1705 = vmatpush1.msra.mxu0 0.0
        %1706 = vmatprep.subr.mxu0 0.0
        %1707 = vmatpush1.msra.mxu0 0.0
        %1708 = vmatprep.mubr.f32.mxu0 %v1624
        %1709 = vmatmul.mubr.f32.gmra.mrb[0].mxu0 %v1609
        %v1710 = vpop.f32.mrb[0].mxu0
        %v1711 = vadd.f32 0.0, %v1710
        %v1712 = vpop.f32.mrb[0].mxu0
        %1713 = vmatprep.mubr.f32.mxu0 %v1627
        %1714 = vmatmul.mubr.f32.gmra.mrb[0].mxu0 %v1611
        %v1715 = vpop.f32.mrb[0].mxu0
        %v1716 = vadd.f32 0.0, %v1715
        %v1717 = vpop.f32.mrb[0].mxu0
        %1718 = vmatprep.mubr.f32.mxu0 %v1630
        %1719 = vmatmul.mubr.f32.gmra.mrb[0].mxu0 %v1613
        %v1720 = vpop.f32.mrb[0].mxu0
        %v1721 = vadd.f32 0.0, %v1720
        %v1722 = vpop.f32.mrb[0].mxu0
        %1723 = vmatprep.mubr.f32.mxu0 %v1633
        %1724 = vmatmul.mubr.f32.gmra.mrb[0].mxu0 %v1615
        %v1725 = vpop.f32.mrb[0].mxu0
        %v1726 = vadd.f32 0.0, %v1725
        %v1727 = vpop.f32.mrb[0].mxu0
        %1728 = vmatprep.mubr.f32.mxu0 %v1636
        %1729 = vmatmul.mubr.f32.gmra.mrb[0].mxu0 %v1617
        %v1730 = vpop.f32.mrb[0].mxu0
        %v1731 = vadd.f32 0.0, %v1730
        %v1732 = vpop.f32.mrb[0].mxu0
        %1733 = vmatprep.mubr.f32.mxu0 %v1639
        %1734 = vmatmul.mubr.f32.gmra.mrb[0].mxu0 %v1619
        %v1735 = vpop.f32.mrb[0].mxu0
        %v1736 = vadd.f32 0.0, %v1735
        %v1737 = vpop.f32.mrb[0].mxu0
        %1738 = vmatprep.mubr.f32.mxu0 %v1642
        %1739 = vmatmul.mubr.f32.gmra.mrb[0].mxu0 %v1621
        %v1740 = vpop.f32.mrb[0].mxu0
        %v1741 = vadd.f32 0.0, %v1740
        %v1742 = vpop.f32.mrb[0].mxu0
        %1743 = vdwg.mxu0
        %v1744 = vadd.f32 %v1096, %v1711
        %v1745 = vadd.f32 %v1101, %v1716
        %v1746 = vadd.f32 %v1106, %v1721
        %v1747 = vadd.f32 %v1111, %v1726
        %v1748 = vadd.f32 %v1116, %v1731
        %v1749 = vadd.f32 %v1121, %v1736
        %v1750 = vadd.f32 %v1126, %v1741
        %s1751 = smul.addr %s1606, 8
        %s1752 = scalar_lea.vmem %s268, %s1751
        %v1753 = vld [vmem:[%s1752] sm:$0xff]
        %v1754 = vld [vmem:[%s1752 + $0x8] sm:$0xff]
        %v1755 = vld [vmem:[%s1752 + $0x10] sm:$0xff]
        %v1756 = vld [vmem:[%s1752 + $0x18] sm:$0xff]
        %v1757 = vld [vmem:[%s1752 + $0x20] sm:$0xff]
        %v1758 = vld [vmem:[%s1752 + $0x28] sm:$0xff]
        %v1759 = vld [vmem:[%s1752 + $0x30] sm:$0xff]
        %v1760 = vld [vmem:[%s1752 + $0x38] sm:$0xff]
        %v1761 = vld [vmem:[%s1752 + $0x40] sm:$0xff]
        %v1762 = vld [vmem:[%s1752 + $0x48] sm:$0xff]
        %v1763 = vld [vmem:[%s1752 + $0x50] sm:$0xff]
        %v1764 = vld [vmem:[%s1752 + $0x58] sm:$0xff]
        %v1765 = vld [vmem:[%s1752 + $0x60] sm:$0x3f]
        %v1766 = vld [vmem:[%s1752 + $0x68] sm:$0x3f]
        %v1768 = vsel %vm405, %v1754, 0
        %v1771 = vsel %vm405, %v1756, 0
        %v1774 = vsel %vm405, %v1758, 0
        %v1777 = vsel %vm405, %v1760, 0
        %v1780 = vsel %vm405, %v1762, 0
        %v1783 = vsel %vm405, %v1764, 0
        %v1786 = vsel %vm405, %v1766, 0
        %1788 = vmatprep.subr.mxu0 0.0
        %1789 = vmatpush1.msra.mxu0 %v1367
        %1790 = vmatprep.subr.mxu0 0.0
        %1791 = vmatpush1.msra.mxu0 %v1368
        %1792 = vmatprep.subr.mxu0 0.0
        %1793 = vmatpush1.msra.mxu0 %v1369
        %1794 = vmatprep.subr.mxu0 0.0
        %1795 = vmatpush1.msra.mxu0 %v1370
        %1796 = vmatprep.subr.mxu0 0.0
        %1797 = vmatpush1.msra.mxu0 %v1371
        %1798 = vmatprep.subr.mxu0 0.0
        %1799 = vmatpush1.msra.mxu0 %v1372
        %1800 = vmatprep.subr.mxu0 0.0
        %1801 = vmatpush1.msra.mxu0 %v1373
        %1802 = vmatprep.subr.mxu0 0.0
        %1803 = vmatpush1.msra.mxu0 %v1374
        %1804 = vmatprep.subr.mxu0 0.0
        %1805 = vmatpush1.msra.mxu0 %v1375
        %1806 = vmatprep.subr.mxu0 0.0
        %1807 = vmatpush1.msra.mxu0 %v1376
        %1808 = vmatprep.subr.mxu0 0.0
        %1809 = vmatpush1.msra.mxu0 %v1377
        %1810 = vmatprep.subr.mxu0 0.0
        %1811 = vmatpush1.msra.mxu0 %v1378
        %1812 = vmatprep.subr.mxu0 0.0
        %1813 = vmatpush1.msra.mxu0 %v1379
        %1814 = vmatprep.subr.mxu0 0.0
        %1815 = vmatpush1.msra.mxu0 %v1380
        %1816 = vmatprep.subr.mxu0 0.0
        %1817 = vmatpush1.msra.mxu0 %v1381
        %1818 = vmatprep.subr.mxu0 0.0
        %1819 = vmatpush1.msra.mxu0 %v1382
        %1820 = vmatprep.subr.mxu0 0.0
        %1821 = vmatpush1.msra.mxu0 %v1383
        %1822 = vmatprep.subr.mxu0 0.0
        %1823 = vmatpush1.msra.mxu0 %v1384
        %1824 = vmatprep.subr.mxu0 0.0
        %1825 = vmatpush1.msra.mxu0 %v1385
        %1826 = vmatprep.subr.mxu0 0.0
        %1827 = vmatpush1.msra.mxu0 %v1386
        %1828 = vmatprep.subr.mxu0 0.0
        %1829 = vmatpush1.msra.mxu0 %v1387
        %1830 = vmatprep.subr.mxu0 0.0
        %1831 = vmatpush1.msra.mxu0 %v1388
        %1832 = vmatprep.subr.mxu0 0.0
        %1833 = vmatpush1.msra.mxu0 %v1389
        %1834 = vmatprep.subr.mxu0 0.0
        %1835 = vmatpush1.msra.mxu0 %v1390
        %1836 = vmatprep.subr.mxu0 0.0
        %1837 = vmatpush1.msra.mxu0 0.0
        %1838 = vmatprep.subr.mxu0 0.0
        %1839 = vmatpush1.msra.mxu0 0.0
        %1840 = vmatprep.subr.mxu0 0.0
        %1841 = vmatpush1.msra.mxu0 0.0
        %1842 = vmatprep.subr.mxu0 0.0
        %1843 = vmatpush1.msra.mxu0 0.0
        %1844 = vmatprep.subr.mxu0 0.0
        %1845 = vmatpush1.msra.mxu0 0.0
        %1846 = vmatprep.subr.mxu0 0.0
        %1847 = vmatpush1.msra.mxu0 0.0
        %1848 = vmatprep.subr.mxu0 0.0
        %1849 = vmatpush1.msra.mxu0 0.0
        %1850 = vmatprep.subr.mxu0 0.0
        %1851 = vmatpush1.msra.mxu0 0.0
        %1852 = vmatprep.mubr.f32.mxu0 %v1768
        %1853 = vmatmul.mubr.f32.gmra.mrb[0].mxu0 %v1753
        %v1854 = vpop.f32.mrb[0].mxu0
        %v1855 = vadd.f32 0.0, %v1854
        %v1856 = vpop.f32.mrb[0].mxu0
        %1857 = vmatprep.mubr.f32.mxu0 %v1771
        %1858 = vmatmul.mubr.f32.gmra.mrb[0].mxu0 %v1755
        %v1859 = vpop.f32.mrb[0].mxu0
        %v1860 = vadd.f32 0.0, %v1859
        %v1861 = vpop.f32.mrb[0].mxu0
        %1862 = vmatprep.mubr.f32.mxu0 %v1774
        %1863 = vmatmul.mubr.f32.gmra.mrb[0].mxu0 %v1757
        %v1864 = vpop.f32.mrb[0].mxu0
        %v1865 = vadd.f32 0.0, %v1864
        %v1866 = vpop.f32.mrb[0].mxu0
        %1867 = vmatprep.mubr.f32.mxu0 %v1777
        %1868 = vmatmul.mubr.f32.gmra.mrb[0].mxu0 %v1759
        %v1869 = vpop.f32.mrb[0].mxu0
        %v1870 = vadd.f32 0.0, %v1869
        %v1871 = vpop.f32.mrb[0].mxu0
        %1872 = vmatprep.mubr.f32.mxu0 %v1780
        %1873 = vmatmul.mubr.f32.gmra.mrb[0].mxu0 %v1761
        %v1874 = vpop.f32.mrb[0].mxu0
        %v1875 = vadd.f32 0.0, %v1874
        %v1876 = vpop.f32.mrb[0].mxu0
        %1877 = vmatprep.mubr.f32.mxu0 %v1783
        %1878 = vmatmul.mubr.f32.gmra.mrb[0].mxu0 %v1763
        %v1879 = vpop.f32.mrb[0].mxu0
        %v1880 = vadd.f32 0.0, %v1879
        %v1881 = vpop.f32.mrb[0].mxu0
        %1882 = vmatprep.mubr.f32.mxu0 %v1786
        %1883 = vmatmul.mubr.f32.gmra.mrb[0].mxu0 %v1765
        %v1884 = vpop.f32.mrb[0].mxu0
        %v1885 = vadd.f32 0.0, %v1884
        %v1886 = vpop.f32.mrb[0].mxu0
        %1887 = vdwg.mxu0
        %v1888 = vadd.f32 %v1333, %v1855
        %v1889 = vadd.f32 %v1338, %v1860
        %v1890 = vadd.f32 %v1343, %v1865
        %v1891 = vadd.f32 %v1348, %v1870
        %v1892 = vadd.f32 %v1353, %v1875
        %v1893 = vadd.f32 %v1358, %v1880
        %v1894 = vadd.f32 %v1363, %v1885
        %v1895 = vmax.f32 %v1491, %v1598
        %v1896 = vmax.f32 %v1492, %v1599
        %v1897 = vmax.f32 %v1493, %v1600
        %v1898 = vmax.f32 %v1494, %v1601
        %v1899 = vmax.f32 %v1495, %v1602
        %v1900 = vmax.f32 %v1496, %v1603
        %v1901 = vmax.f32 %v1497, %v1604
        %v1902 = vmax.f32 %v1744, %v1888
        %v1903 = vmax.f32 %v1745, %v1889
        %v1904 = vmax.f32 %v1746, %v1890
        %v1905 = vmax.f32 %v1747, %v1891
        %v1906 = vmax.f32 %v1748, %v1892
        %v1907 = vmax.f32 %v1749, %v1893
        %v1908 = vmax.f32 %v1750, %v1894
        %v1909 = vmax.f32 %v1895, %v1902
        %v1910 = vmax.f32 %v1896, %v1903
        %v1911 = vmax.f32 %v1897, %v1904
        %v1912 = vmax.f32 %v1898, %v1905
        %v1913 = vmax.f32 %v1899, %v1906
        %v1914 = vmax.f32 %v1900, %v1907
        %v1915 = vmax.f32 %v1901, %v1908
        %v1917 = vlaneseq
        %v1918 = vshrl.u32 %v1917, 7
        %v1919 = vsub.s32 0, %v1918
        %v1920 = vrot.slane %v281, %v1919
        %v1922 = vadd.f32 %v1909, %v1920
        %v1923 = vadd.f32 %v1910, %v1920
        %v1924 = vadd.f32 %v1911, %v1920
        %v1925 = vadd.f32 %v1912, %v1920
        %v1926 = vadd.f32 %v1913, %v1920
        %v1927 = vadd.f32 %v1914, %v1920
        %v1928 = vadd.f32 %v1915, %v1920
        %v1929 = vmax.f32 %v1922, 0.0
        %v1930 = vmax.f32 %v1923, 0.0
        %v1931 = vmax.f32 %v1924, 0.0
        %v1932 = vmax.f32 %v1925, 0.0
        %v1933 = vmax.f32 %v1926, 0.0
        %v1934 = vmax.f32 %v1927, 0.0
        %v1935 = vmax.f32 %v1928, 0.0
        %s1936 = smul.u32 %s283, 56
        %s1937 = scalar_lea.vmem %s279, %s1936
        %vm1938 = vcmask 261120
        %1939 = vst.msk [vmem:[%s1937] sm:$0xff] %vm1938, %v1929
        %1940 = vst.msk [vmem:[%s1937 + $0x8] sm:$0xff] %vm1938, %v1930
        %1941 = vst.msk [vmem:[%s1937 + $0x10] sm:$0xff] %vm1938, %v1931
        %1942 = vst.msk [vmem:[%s1937 + $0x18] sm:$0xff] %vm1938, %v1932
        %1943 = vst.msk [vmem:[%s1937 + $0x20] sm:$0xff] %vm1938, %v1933
        %1944 = vst.msk [vmem:[%s1937 + $0x28] sm:$0xff] %vm1938, %v1934
        %vm1945 = vcmask 259072
        %1946 = vst.msk [vmem:[%s1937 + $0x30] sm:$0x3f] %vm1945, %v1935
      $region41: #{simple_classifier_forward.5} parent=35 // loop_footer
        %s287 = sadd.s32 1, %s283
      $region42: #{simple_classifier_forward.5} parent=35 // loop_footer_branch
        %282 = sbr.rel target = $region38
      $region43: #{simple_classifier_forward.5} parent=35 // loop_exit
        _
      %s1947 = smul.u32 54, %s20
      %p1948 = scmp.lt.s32.totalorder %s19, 1
      %s1949 = scalar_select %p1948, %s19, 1
      %p1950 = scmp.lt.s32.totalorder %s1947, 53
      %s1951 = scalar_select %p1950, %s1947, 53
      %s1952 = smul.addr %s1951, 7
      %s1953 = smul.addr %s1949, 378
      %s1954 = sadd.s32 %s1952, %s1953
      %s1955 = smul.addr %s1954, 8
      %s1956 = scalar_lea.vmem %s4, %s1955
      // Predicated region
      $region44: #{simple_classifier_forward.5} parent=35 // pred_check
        %p1957 = pneg %p145
      $region45: #{simple_classifier_forward.5} parent=35 // pred_check_branch
        %1959 = sbr.rel (%p1957) target = $region47
      $region46: #{simple_classifier_forward.5} parent=35 // pred_region
        %s1960 = smul.u32 54, %s20
      $region47: #{simple_classifier_forward.5} parent=35 // pred_fallthru
        _
    $region36: #{simple_classifier_forward.5} parent=5 // pred_fallthru
      _
    %p1961 = scmp.le.s32.totalorder 2, %s10
    // Predicated region
    $region48: #{simple_classifier_forward.5} parent=5 // pred_check
      %p1962 = pneg %p1961
    $region49: #{simple_classifier_forward.5} parent=5 // pred_check_branch
      %1964 = sbr.rel (%p1962) target = $region51
    $region50: #{simple_classifier_forward.5} parent=5 // pred_region
      %s1965 = ssub.s32 %s10, 2
      // Predicated region
      $region52: #{simple_classifier_forward.5} parent=50 // pred_check
        %p1966 = pneg %p151
      $region53: #{simple_classifier_forward.5} parent=50 // pred_check_branch
        %1968 = sbr.rel (%p1966) target = $region55
      $region54: #{simple_classifier_forward.5} parent=50 // pred_region
        %s1969 = smul.u32 54, %s22
        %p1970 = scmp.lt.s32.totalorder %s21, 1
        %s1971 = scalar_select %p1970, %s21, 1
        %p1972 = scmp.lt.s32.totalorder %s1969, 53
        %s1973 = scalar_select %p1972, %s1969, 53
        %s1974 = smul.addr %s1973, 7
        %s1975 = smul.addr %s1971, 378
        %s1976 = sadd.s32 %s1974, %s1975
        %s1977 = smul.addr %s1976, 8
        %s1978 = scalar_lea.vmem %s4, %s1977
      $region55: #{simple_classifier_forward.5} parent=50 // pred_fallthru
        _
    $region51: #{simple_classifier_forward.5} parent=5 // pred_fallthru
      _
  $region6: #{simple_classifier_forward.5} parent=0 // loop_footer
    %s14 = sadd.s32 1, %s10
  $region7: #{simple_classifier_forward.5} parent=0 // loop_footer_branch
    %9 = sbr.rel target = $region3
  $region8: #{simple_classifier_forward.5} parent=0 // loop_exit
    _

// kernel: simple_classifier_forward.6
$region0: #{simple_classifier_forward.6}
  #allocation0 [shape = 'u32[]', space=smem, size = 0x4, offset = 0x4, fixed_abs, tag = 'smem constant byte address 0x4 - core index']
  #allocation1 [shape = 'u32[144,128]{1,0:T(1,128)}', space=vmem, size = 0x12000, scoped, tag = 'internal scratch']
  %s0 = inlined_call_operand.vmem [shape: f32[2,54,26,96], index: 0, kind: input, shape index: {}]
  %s1 = inlined_call_operand.vmem [shape: f32[2,54,26,96], index: 1, kind: input, shape index: {}]
  %s2 = inlined_call_operand.vmem [shape: f32[3,96,16], index: 2, kind: input, shape index: {}]
  %s3 = inlined_call_operand.vmem [shape: f32[1,16], index: 3, kind: input, shape index: {}]
  %s4 = inlined_call_operand.vmem [shape: f32[2,26,26,16], index: 4, kind: output, shape index: {}]
  %s5 = sld [smem:[#allocation0]]
  $region56: #{simple_classifier_forward.6} parent=0
    _
  %s7 = ssub.s32 1, %s5
  %s8 = scalar_select 0, %s7, %s5
  loop: start=0, step=1, limit=4
  $region2: #{simple_classifier_forward.6} parent=0 // loop_pre_header
    _
  $region3: #{simple_classifier_forward.6} parent=0 // loop_header
    %s10 = sphi 0, %s14
    %p11 = scmp.ge.s32.totalorder %s10, 4
    %s17 = sphi 0, %s29
    %s18 = sphi 0, %s25
    %s19 = sphi 0, %s17
    %s20 = sphi 0, %s18
    %s21 = sphi 0, %s19
    %s22 = sphi 0, %s20
    %s34 = sphi 0, %s36
    %s37 = sphi 0, %s34
    %s38 = sphi 0, %s37
    %s54 = sphi 0, %s38
    %s62 = sphi 0, %s64
    %s65 = sphi 0, %s62
    %s66 = sphi 0, %s65
    %s82 = sphi 0, %s66
    %s86 = sphi 0, %s86
    %s88 = sphi 0, %s86
    %s89 = sphi 0, %s88
    %s103 = sphi 0, %s89
    %s107 = sphi 0, %s107
    %s109 = sphi 0, %s107
    %s110 = sphi 0, %s109
    %s124 = sphi 0, %s110
    %s132 = sphi 0, %s134
    %s135 = sphi 0, %s132
    %s136 = sphi 0, %s135
    %s152 = sphi 0, %s136
  $region4: #{simple_classifier_forward.6} parent=0 // loop_header_branch
    %13 = sbr.rel (%p11) target = $region8
  $region5: #{simple_classifier_forward.6} parent=0 // loop_body
    %s15 = ssub.s32 %s10, 1
    %s16 = ssub.s32 %s10, 2
    %s23 = sadd.s32 1, %s18
    %p24 = scmp.ge.s32.totalorder %s23, 1
    %s25 = scalar_select %p24, 0, %s23
    %s26 = sadd.s32 1, %s17
    %s27 = scalar_select %p24, %s26, %s17
    %p28 = scmp.ge.s32.totalorder %s27, 2
    %s29 = scalar_select %p28, 0, %s27
    %s30 = ssub.s32 %s17, %s29
    %s31 = ssub.s32 %s18, %s25
    %s32 = sor.u32 %s30, %s31
    %p33 = scmp.eq.s32.totalorder %s32, 0
    %s35 = sadd.s32 %s34, 1
    %s36 = scalar_select %p33, %s34, %s35
    %p39 = pneg %p33
    %p40 = scmp.eq.s32.totalorder %s10, 1
    %p41 = por %p39, %p40
    %p42 = scmp.ne.s32.totalorder %s34, %s37
    %p43 = scmp.eq.s32.totalorder %s10, 0
    %p44 = por %p42, %p43
    %p45 = scmp.ne.s32.totalorder %s34, %s37
    %p46 = scmp.eq.s32.totalorder %s15, 1
    %p47 = por %p45, %p46
    %p48 = scmp.ne.s32.totalorder %s37, %s38
    %p49 = scmp.eq.s32.totalorder %s15, 0
    %p50 = por %p48, %p49
    %p51 = scmp.ne.s32.totalorder %s37, %s38
    %p52 = scmp.eq.s32.totalorder %s16, 1
    %p53 = por %p51, %p52
    %p55 = scmp.ne.s32.totalorder %s38, %s54
    %p56 = scmp.eq.s32.totalorder %s16, 0
    %p57 = por %p55, %p56
    %s58 = ssub.s32 %s17, %s29
    %s59 = ssub.s32 %s18, %s25
    %s60 = sor.u32 %s58, %s59
    %p61 = scmp.eq.s32.totalorder %s60, 0
    %s63 = sadd.s32 %s62, 1
    %s64 = scalar_select %p61, %s62, %s63
    %p67 = pneg %p61
    %p68 = scmp.eq.s32.totalorder %s10, 1
    %p69 = por %p67, %p68
    %p70 = scmp.ne.s32.totalorder %s62, %s65
    %p71 = scmp.eq.s32.totalorder %s10, 0
    %p72 = por %p70, %p71
    %p73 = scmp.ne.s32.totalorder %s62, %s65
    %p74 = scmp.eq.s32.totalorder %s15, 1
    %p75 = por %p73, %p74
    %p76 = scmp.ne.s32.totalorder %s65, %s66
    %p77 = scmp.eq.s32.totalorder %s15, 0
    %p78 = por %p76, %p77
    %p79 = scmp.ne.s32.totalorder %s65, %s66
    %p80 = scmp.eq.s32.totalorder %s16, 1
    %p81 = por %p79, %p80
    %p83 = scmp.ne.s32.totalorder %s66, %s82
    %p84 = scmp.eq.s32.totalorder %s16, 0
    %p85 = por %p83, %p84
    %s87 = sadd.s32 %s86, 1
    %p90 = scmp.eq.s32.totalorder %s10, 1
    %p91 = scmp.ne.s32.totalorder %s86, %s88
    %p92 = scmp.eq.s32.totalorder %s10, 0
    %p93 = por %p91, %p92
    %p94 = scmp.ne.s32.totalorder %s86, %s88
    %p95 = scmp.eq.s32.totalorder %s15, 1
    %p96 = por %p94, %p95
    %p97 = scmp.ne.s32.totalorder %s88, %s89
    %p98 = scmp.eq.s32.totalorder %s15, 0
    %p99 = por %p97, %p98
    %p100 = scmp.ne.s32.totalorder %s88, %s89
    %p101 = scmp.eq.s32.totalorder %s16, 1
    %p102 = por %p100, %p101
    %p104 = scmp.ne.s32.totalorder %s89, %s103
    %p105 = scmp.eq.s32.totalorder %s16, 0
    %p106 = por %p104, %p105
    %s108 = sadd.s32 %s107, 1
    %p111 = scmp.eq.s32.totalorder %s10, 1
    %p112 = scmp.ne.s32.totalorder %s107, %s109
    %p113 = scmp.eq.s32.totalorder %s10, 0
    %p114 = por %p112, %p113
    %p115 = scmp.ne.s32.totalorder %s107, %s109
    %p116 = scmp.eq.s32.totalorder %s15, 1
    %p117 = por %p115, %p116
    %p118 = scmp.ne.s32.totalorder %s109, %s110
    %p119 = scmp.eq.s32.totalorder %s15, 0
    %p120 = por %p118, %p119
    %p121 = scmp.ne.s32.totalorder %s109, %s110
    %p122 = scmp.eq.s32.totalorder %s16, 1
    %p123 = por %p121, %p122
    %p125 = scmp.ne.s32.totalorder %s110, %s124
    %p126 = scmp.eq.s32.totalorder %s16, 0
    %p127 = por %p125, %p126
    %s128 = ssub.s32 %s17, %s29
    %s129 = ssub.s32 %s18, %s25
    %s130 = sor.u32 %s128, %s129
    %p131 = scmp.eq.s32.totalorder %s130, 0
    %s133 = sadd.s32 %s132, 1
    %s134 = scalar_select %p131, %s132, %s133
    %p137 = pneg %p131
    %p138 = scmp.eq.s32.totalorder %s10, 1
    %p139 = por %p137, %p138
    %p140 = scmp.ne.s32.totalorder %s132, %s135
    %p141 = scmp.eq.s32.totalorder %s10, 0
    %p142 = por %p140, %p141
    %p143 = scmp.ne.s32.totalorder %s132, %s135
    %p144 = scmp.eq.s32.totalorder %s15, 1
    %p145 = por %p143, %p144
    %p146 = scmp.ne.s32.totalorder %s135, %s136
    %p147 = scmp.eq.s32.totalorder %s15, 0
    %p148 = por %p146, %p147
    %p149 = scmp.ne.s32.totalorder %s135, %s136
    %p150 = scmp.eq.s32.totalorder %s16, 1
    %p151 = por %p149, %p150
    %p153 = scmp.ne.s32.totalorder %s136, %s152
    %p154 = scmp.eq.s32.totalorder %s16, 0
    %p155 = por %p153, %p154
    %p156 = scmp.le.s32.totalorder 1, %s10
    %p157 = scmp.lt.s32.totalorder %s10, 3
    %p158 = pnand %p156, %p157
    %p159 = pneg %p158
    // Predicated region
    $region9: #{simple_classifier_forward.6} parent=5 // pred_check
      _
    $region10: #{simple_classifier_forward.6} parent=5 // pred_check_branch
      %161 = sbr.rel (%p158) target = $region12
    $region11: #{simple_classifier_forward.6} parent=5 // pred_region
      %s162 = ssub.s32 %s10, 1
      // Predicated region
      $region13: #{simple_classifier_forward.6} parent=11 // pred_check
        %p163 = pneg %p99
      $region14: #{simple_classifier_forward.6} parent=11 // pred_check_branch
        %165 = sbr.rel (%p163) target = $region16
      $region15: #{simple_classifier_forward.6} parent=11 // pred_region
        _
      $region16: #{simple_classifier_forward.6} parent=11 // pred_fallthru
        _
      // Predicated region
      $region17: #{simple_classifier_forward.6} parent=11 // pred_check
        %p166 = pneg %p120
      $region18: #{simple_classifier_forward.6} parent=11 // pred_check_branch
        %168 = sbr.rel (%p166) target = $region20
      $region19: #{simple_classifier_forward.6} parent=11 // pred_region
        _
      $region20: #{simple_classifier_forward.6} parent=11 // pred_fallthru
        _
    $region12: #{simple_classifier_forward.6} parent=5 // pred_fallthru
      _
    %p169 = scmp.lt.s32.totalorder %s10, 2
    // Predicated region
    $region21: #{simple_classifier_forward.6} parent=5 // pred_check
      %p170 = pneg %p169
    $region22: #{simple_classifier_forward.6} parent=5 // pred_check_branch
      %172 = sbr.rel (%p170) target = $region24
    $region23: #{simple_classifier_forward.6} parent=5 // pred_region
      // Predicated region
      $region25: #{simple_classifier_forward.6} parent=23 // pred_check
        %p173 = pneg %p44
      $region26: #{simple_classifier_forward.6} parent=23 // pred_check_branch
        %175 = sbr.rel (%p173) target = $region28
      $region27: #{simple_classifier_forward.6} parent=23 // pred_region
        %s176 = smul.u32 54, %s18
        %p177 = scmp.lt.s32.totalorder %s17, 1
        %s178 = scalar_select %p177, %s17, 1
        %p179 = scmp.lt.s32.totalorder %s176, 53
        %s180 = scalar_select %p179, %s176, 53
        %s181 = smul.addr %s180, 4
        %s182 = smul.addr %s178, 216
        %s183 = sadd.s32 %s181, %s182
        %s184 = smul.addr %s183, 8
        %s185 = scalar_lea.vmem %s0, %s184
        %s186 = smul.u32 54, %s18
      $region28: #{simple_classifier_forward.6} parent=23 // pred_fallthru
        _
      // Predicated region
      $region29: #{simple_classifier_forward.6} parent=23 // pred_check
        %p187 = pneg %p72
      $region30: #{simple_classifier_forward.6} parent=23 // pred_check_branch
        %189 = sbr.rel (%p187) target = $region32
      $region31: #{simple_classifier_forward.6} parent=23 // pred_region
        %s190 = smul.u32 54, %s18
        %p191 = scmp.lt.s32.totalorder %s17, 1
        %s192 = scalar_select %p191, %s17, 1
        %p193 = scmp.lt.s32.totalorder %s190, 53
        %s194 = scalar_select %p193, %s190, 53
        %s195 = smul.addr %s194, 4
        %s196 = smul.addr %s192, 216
        %s197 = sadd.s32 %s195, %s196
        %s198 = smul.addr %s197, 8
        %s199 = scalar_lea.vmem %s1, %s198
        %s200 = smul.u32 54, %s18
      $region32: #{simple_classifier_forward.6} parent=23 // pred_fallthru
        _
    $region24: #{simple_classifier_forward.6} parent=5 // pred_fallthru
      _
    %p201 = scmp.le.s32.totalorder 1, %s10
    %p202 = scmp.lt.s32.totalorder %s10, 3
    %p203 = pnand %p201, %p202
    %p204 = pneg %p203
    // Predicated region
    $region33: #{simple_classifier_forward.6} parent=5 // pred_check
      _
    $region34: #{simple_classifier_forward.6} parent=5 // pred_check_branch
      %206 = sbr.rel (%p203) target = $region36
    $region35: #{simple_classifier_forward.6} parent=5 // pred_region
      %s207 = ssub.s32 %s10, 1
      %s208 = smul.u32 54, %s20
      %p209 = scmp.lt.s32.totalorder %s19, 1
      %s210 = scalar_select %p209, %s19, 1
      %p211 = scmp.lt.s32.totalorder %s208, 53
      %s212 = scalar_select %p211, %s208, 53
      %s213 = smul.addr %s212, 4
      %s214 = smul.addr %s210, 216
      %s215 = sadd.s32 %s213, %s214
      %s216 = smul.addr %s215, 8
      %s217 = scalar_lea.vmem %s0, %s216
      %p218 = pneg %p50
      %p219 = pneg %p47
      %s220 = smul.u32 54, %s20
      %p221 = scmp.lt.s32.totalorder %s19, 1
      %s222 = scalar_select %p221, %s19, 1
      %p223 = scmp.lt.s32.totalorder %s220, 53
      %s224 = scalar_select %p223, %s220, 53
      %s225 = smul.addr %s224, 4
      %s226 = smul.addr %s222, 216
      %s227 = sadd.s32 %s225, %s226
      %s228 = smul.addr %s227, 8
      %s229 = scalar_lea.vmem %s1, %s228
      %p230 = pneg %p78
      %p231 = pneg %p75
      %p232 = pneg %p99
      %p233 = pneg %p96
      %p234 = pneg %p120
      %p235 = pneg %p117
      %p236 = pneg %p148
      %p237 = pneg %p145
      %s238 = smul.u32 26, %s20
      %p239 = scmp.lt.s32.totalorder %s19, 1
      %s240 = scalar_select %p239, %s19, 1
      %p241 = scmp.lt.s32.totalorder %s238, 25
      %s242 = scalar_select %p241, %s238, 25
      %s243 = smul.addr %s242, 4
      %s244 = smul.addr %s240, 104
      %s245 = sadd.s32 %s243, %s244
      %s246 = smul.addr %s245, 8
      %s247 = scalar_lea.vmem %s4, %s246
      %s248 = smul.u32 54, %s20
      %p249 = scmp.lt.s32.totalorder %s19, 1
      %s250 = scalar_select %p249, %s19, 1
      %p251 = scmp.lt.s32.totalorder %s248, 53
      %s252 = scalar_select %p251, %s248, 53
      %s253 = smul.addr %s252, 4
      %s254 = smul.addr %s250, 216
      %s255 = sadd.s32 %s253, %s254
      %s256 = smul.addr %s255, 8
      %s257 = scalar_lea.vmem %s0, %s256
      %s258 = smul.u32 54, %s20
      %s259 = smul.u32 54, %s20
      %p260 = scmp.lt.s32.totalorder %s19, 1
      %s261 = scalar_select %p260, %s19, 1
      %p262 = scmp.lt.s32.totalorder %s259, 53
      %s263 = scalar_select %p262, %s259, 53
      %s264 = smul.addr %s263, 4
      %s265 = smul.addr %s261, 216
      %s266 = sadd.s32 %s264, %s265
      %s267 = smul.addr %s266, 8
      %s268 = scalar_lea.vmem %s1, %s267
      %s269 = smul.u32 54, %s20
      %s270 = smul.u32 26, %s20
      %p271 = scmp.lt.s32.totalorder %s19, 1
      %s272 = scalar_select %p271, %s19, 1
      %p273 = scmp.lt.s32.totalorder %s270, 25
      %s274 = scalar_select %p273, %s270, 25
      %s275 = smul.addr %s274, 4
      %s276 = smul.addr %s272, 104
      %s277 = sadd.s32 %s275, %s276
      %s278 = smul.addr %s277, 8
      %s279 = scalar_lea.vmem %s4, %s278
      %s280 = smul.u32 26, %s20
      %v281 = vld [vmem:[%s3] sm:$0x1]
      loop: start=0, step=1, limit=26
      $region37: #{simple_classifier_forward.6} parent=35 // loop_pre_header
        _
      $region38: #{simple_classifier_forward.6} parent=35 // loop_header
        %s283 = sphi 0, %s287
        %p284 = scmp.ge.s32.totalorder %s283, 26
      $region39: #{simple_classifier_forward.6} parent=35 // loop_header_branch
        %286 = sbr.rel (%p284) target = $region43
      $region40: #{simple_classifier_forward.6} parent=35 // loop_body
        %s288 = smul.u32 %s283, 2
        %v289 = vld [vmem:[%s2] sm:$0xff]
        %v290 = vld [vmem:[%s2 + $0x8] sm:$0xff]
        %v291 = vld [vmem:[%s2 + $0x10] sm:$0xff]
        %v292 = vld [vmem:[%s2 + $0x18] sm:$0xff]
        %v293 = vld [vmem:[%s2 + $0x20] sm:$0xff]
        %v294 = vld [vmem:[%s2 + $0x28] sm:$0xff]
        %v295 = vld [vmem:[%s2 + $0x30] sm:$0xff]
        %v296 = vld [vmem:[%s2 + $0x38] sm:$0xff]
        %v297 = vld [vmem:[%s2 + $0x40] sm:$0xff]
        %v298 = vld [vmem:[%s2 + $0x48] sm:$0xff]
        %v299 = vld [vmem:[%s2 + $0x50] sm:$0xff]
        %v300 = vld [vmem:[%s2 + $0x58] sm:$0xff]
        %s301 = smul.u32 %s288, 32
        %s302 = scalar_lea.vmem %s257, %s301
        %v303 = vld [vmem:[%s302] sm:$0xff]
        %v304 = vld [vmem:[%s302 + $0x8] sm:$0xff]
        %v305 = vld [vmem:[%s302 + $0x10] sm:$0xff]
        %v306 = vld [vmem:[%s302 + $0x18] sm:$0x3]
        %s307 = scalar_lea.vmem %s268, %s301
        %v308 = vld [vmem:[%s307] sm:$0xff]
        %v309 = vld [vmem:[%s307 + $0x8] sm:$0xff]
        %v310 = vld [vmem:[%s307 + $0x10] sm:$0xff]
        %v311 = vld [vmem:[%s307 + $0x18] sm:$0x3]
        %s312 = sadd.s32 %s288, 1
        %s313 = smul.u32 %s312, 32
        %s314 = scalar_lea.vmem %s257, %s313
        %v315 = vld [vmem:[%s314] sm:$0xff]
        %v316 = vld [vmem:[%s314 + $0x8] sm:$0xff]
        %v317 = vld [vmem:[%s314 + $0x10] sm:$0xff]
        %v318 = vld [vmem:[%s314 + $0x18] sm:$0x3]
        %s319 = scalar_lea.vmem %s268, %s313
        %v320 = vld [vmem:[%s319] sm:$0xff]
        %v321 = vld [vmem:[%s319 + $0x8] sm:$0xff]
        %v322 = vld [vmem:[%s319 + $0x10] sm:$0xff]
        %v323 = vld [vmem:[%s319 + $0x18] sm:$0x3]
        %s324 = scalar_lea.vmem %s2, 96
        %v325 = vld [vmem:[%s324] sm:$0xff]
        %v326 = vld [vmem:[%s324 + $0x8] sm:$0xff]
        %v327 = vld [vmem:[%s324 + $0x10] sm:$0xff]
        %v328 = vld [vmem:[%s324 + $0x18] sm:$0xff]
        %v329 = vld [vmem:[%s324 + $0x20] sm:$0xff]
        %v330 = vld [vmem:[%s324 + $0x28] sm:$0xff]
        %v331 = vld [vmem:[%s324 + $0x30] sm:$0xff]
        %v332 = vld [vmem:[%s324 + $0x38] sm:$0xff]
        %v333 = vld [vmem:[%s324 + $0x40] sm:$0xff]
        %v334 = vld [vmem:[%s324 + $0x48] sm:$0xff]
        %v335 = vld [vmem:[%s324 + $0x50] sm:$0xff]
        %v336 = vld [vmem:[%s324 + $0x58] sm:$0xff]
        %vm337 = vcmask 785408
        %v339 = vsel %vm337, %v315, 0
        %v342 = vsel %vm337, %v316, 0
        %v345 = vsel %vm337, %v317, 0
        %v348 = vsel %vm337, %v318, 0
        %350 = vmatprep.subr.mxu0 0.0
        %351 = vmatpush1.msra.mxu0 %v325
        %352 = vmatprep.subr.mxu0 0.0
        %353 = vmatpush1.msra.mxu0 %v326
        %354 = vmatprep.subr.mxu0 0.0
        %355 = vmatpush1.msra.mxu0 %v327
        %356 = vmatprep.subr.mxu0 0.0
        %357 = vmatpush1.msra.mxu0 %v328
        %358 = vmatprep.subr.mxu0 0.0
        %359 = vmatpush1.msra.mxu0 %v329
        %360 = vmatprep.subr.mxu0 0.0
        %361 = vmatpush1.msra.mxu0 %v330
        %362 = vmatprep.subr.mxu0 0.0
        %363 = vmatpush1.msra.mxu0 %v331
        %364 = vmatprep.subr.mxu0 0.0
        %365 = vmatpush1.msra.mxu0 %v332
        %366 = vmatprep.subr.mxu0 0.0
        %367 = vmatpush1.msra.mxu0 %v333
        %368 = vmatprep.subr.mxu0 0.0
        %369 = vmatpush1.msra.mxu0 %v334
        %370 = vmatprep.subr.mxu0 0.0
        %371 = vmatpush1.msra.mxu0 %v335
        %372 = vmatprep.subr.mxu0 0.0
        %373 = vmatpush1.msra.mxu0 %v336
        %374 = vmatprep.subr.mxu0 0.0
        %375 = vmatpush1.msra.mxu0 0.0
        %376 = vmatprep.subr.mxu0 0.0
        %377 = vmatpush1.msra.mxu0 0.0
        %378 = vmatprep.subr.mxu0 0.0
        %379 = vmatpush1.msra.mxu0 0.0
        %380 = vmatprep.subr.mxu0 0.0
        %381 = vmatpush1.msra.mxu0 0.0
        %382 = vmatprep.subr.mxu0 0.0
        %383 = vmatpush1.msra.mxu0 0.0
        %384 = vmatprep.subr.mxu0 0.0
        %385 = vmatpush1.msra.mxu0 0.0
        %386 = vmatprep.subr.mxu0 0.0
        %387 = vmatpush1.msra.mxu0 0.0
        %388 = vmatprep.subr.mxu0 0.0
        %389 = vmatpush1.msra.mxu0 0.0
        %390 = vmatprep.subr.mxu0 0.0
        %391 = vmatpush1.msra.mxu0 0.0
        %392 = vmatprep.subr.mxu0 0.0
        %393 = vmatpush1.msra.mxu0 0.0
        %394 = vmatprep.subr.mxu0 0.0
        %395 = vmatpush1.msra.mxu0 0.0
        %396 = vmatprep.subr.mxu0 0.0
        %397 = vmatpush1.msra.mxu0 0.0
        %398 = vmatprep.subr.mxu0 0.0
        %399 = vmatpush1.msra.mxu0 0.0
        %400 = vmatprep.subr.mxu0 0.0
        %401 = vmatpush1.msra.mxu0 0.0
        %402 = vmatprep.subr.mxu0 0.0
        %403 = vmatpush1.msra.mxu0 0.0
        %404 = vmatprep.subr.mxu0 0.0
        %405 = vmatpush1.msra.mxu0 0.0
        %406 = vmatprep.subr.mxu0 0.0
        %407 = vmatpush1.msra.mxu0 0.0
        %408 = vmatprep.subr.mxu0 0.0
        %409 = vmatpush1.msra.mxu0 0.0
        %410 = vmatprep.subr.mxu0 0.0
        %411 = vmatpush1.msra.mxu0 0.0
        %412 = vmatprep.subr.mxu0 0.0
        %413 = vmatpush1.msra.mxu0 0.0
        %414 = vmatprep.mubr.f32.mxu0 0.0
        %415 = vmatmul.mubr.f32.gmra.mrb[0].mxu0 %v339
        %v416 = vpop.f32.mrb[0].mxu0
        %v417 = vadd.f32 0.0, %v416
        %v418 = vpop.f32.mrb[0].mxu0
        %419 = vmatprep.mubr.f32.mxu0 0.0
        %420 = vmatmul.mubr.f32.gmra.mrb[0].mxu0 %v342
        %v421 = vpop.f32.mrb[0].mxu0
        %v422 = vadd.f32 0.0, %v421
        %v423 = vpop.f32.mrb[0].mxu0
        %424 = vmatprep.mubr.f32.mxu0 0.0
        %425 = vmatmul.mubr.f32.gmra.mrb[0].mxu0 %v345
        %v426 = vpop.f32.mrb[0].mxu0
        %v427 = vadd.f32 0.0, %v426
        %v428 = vpop.f32.mrb[0].mxu0
        %429 = vmatprep.mubr.f32.mxu0 0.0
        %430 = vmatmul.mubr.f32.gmra.mrb[0].mxu0 %v348
        %v431 = vpop.f32.mrb[0].mxu0
        %v432 = vadd.f32 0.0, %v431
        %v433 = vpop.f32.mrb[0].mxu0
        %434 = vdwg.mxu0
        %v436 = vsel %vm337, %v303, 0
        %v439 = vsel %vm337, %v304, 0
        %v442 = vsel %vm337, %v305, 0
        %v445 = vsel %vm337, %v306, 0
        %447 = vmatprep.subr.mxu0 0.0
        %448 = vmatpush1.msra.mxu0 %v289
        %449 = vmatprep.subr.mxu0 0.0
        %450 = vmatpush1.msra.mxu0 %v290
        %451 = vmatprep.subr.mxu0 0.0
        %452 = vmatpush1.msra.mxu0 %v291
        %453 = vmatprep.subr.mxu0 0.0
        %454 = vmatpush1.msra.mxu0 %v292
        %455 = vmatprep.subr.mxu0 0.0
        %456 = vmatpush1.msra.mxu0 %v293
        %457 = vmatprep.subr.mxu0 0.0
        %458 = vmatpush1.msra.mxu0 %v294
        %459 = vmatprep.subr.mxu0 0.0
        %460 = vmatpush1.msra.mxu0 %v295
        %461 = vmatprep.subr.mxu0 0.0
        %462 = vmatpush1.msra.mxu0 %v296
        %463 = vmatprep.subr.mxu0 0.0
        %464 = vmatpush1.msra.mxu0 %v297
        %465 = vmatprep.subr.mxu0 0.0
        %466 = vmatpush1.msra.mxu0 %v298
        %467 = vmatprep.subr.mxu0 0.0
        %468 = vmatpush1.msra.mxu0 %v299
        %469 = vmatprep.subr.mxu0 0.0
        %470 = vmatpush1.msra.mxu0 %v300
        %471 = vmatprep.subr.mxu0 0.0
        %472 = vmatpush1.msra.mxu0 0.0
        %473 = vmatprep.subr.mxu0 0.0
        %474 = vmatpush1.msra.mxu0 0.0
        %475 = vmatprep.subr.mxu0 0.0
        %476 = vmatpush1.msra.mxu0 0.0
        %477 = vmatprep.subr.mxu0 0.0
        %478 = vmatpush1.msra.mxu0 0.0
        %479 = vmatprep.subr.mxu0 0.0
        %480 = vmatpush1.msra.mxu0 0.0
        %481 = vmatprep.subr.mxu0 0.0
        %482 = vmatpush1.msra.mxu0 0.0
        %483 = vmatprep.subr.mxu0 0.0
        %484 = vmatpush1.msra.mxu0 0.0
        %485 = vmatprep.subr.mxu0 0.0
        %486 = vmatpush1.msra.mxu0 0.0
        %487 = vmatprep.subr.mxu0 0.0
        %488 = vmatpush1.msra.mxu0 0.0
        %489 = vmatprep.subr.mxu0 0.0
        %490 = vmatpush1.msra.mxu0 0.0
        %491 = vmatprep.subr.mxu0 0.0
        %492 = vmatpush1.msra.mxu0 0.0
        %493 = vmatprep.subr.mxu0 0.0
        %494 = vmatpush1.msra.mxu0 0.0
        %495 = vmatprep.subr.mxu0 0.0
        %496 = vmatpush1.msra.mxu0 0.0
        %497 = vmatprep.subr.mxu0 0.0
        %498 = vmatpush1.msra.mxu0 0.0
        %499 = vmatprep.subr.mxu0 0.0
        %500 = vmatpush1.msra.mxu0 0.0
        %501 = vmatprep.subr.mxu0 0.0
        %502 = vmatpush1.msra.mxu0 0.0
        %503 = vmatprep.subr.mxu0 0.0
        %504 = vmatpush1.msra.mxu0 0.0
        %505 = vmatprep.subr.mxu0 0.0
        %506 = vmatpush1.msra.mxu0 0.0
        %507 = vmatprep.subr.mxu0 0.0
        %508 = vmatpush1.msra.mxu0 0.0
        %509 = vmatprep.subr.mxu0 0.0
        %510 = vmatpush1.msra.mxu0 0.0
        %511 = vmatprep.mubr.f32.mxu0 0.0
        %512 = vmatmul.mubr.f32.gmra.mrb[0].mxu0 %v436
        %v513 = vpop.f32.mrb[0].mxu0
        %v514 = vadd.f32 %v417, %v513
        %v515 = vpop.f32.mrb[0].mxu0
        %516 = vmatprep.mubr.f32.mxu0 0.0
        %517 = vmatmul.mubr.f32.gmra.mrb[0].mxu0 %v439
        %v518 = vpop.f32.mrb[0].mxu0
        %v519 = vadd.f32 %v422, %v518
        %v520 = vpop.f32.mrb[0].mxu0
        %521 = vmatprep.mubr.f32.mxu0 0.0
        %522 = vmatmul.mubr.f32.gmra.mrb[0].mxu0 %v442
        %v523 = vpop.f32.mrb[0].mxu0
        %v524 = vadd.f32 %v427, %v523
        %v525 = vpop.f32.mrb[0].mxu0
        %526 = vmatprep.mubr.f32.mxu0 0.0
        %527 = vmatmul.mubr.f32.gmra.mrb[0].mxu0 %v445
        %v528 = vpop.f32.mrb[0].mxu0
        %v529 = vadd.f32 %v432, %v528
        %v530 = vpop.f32.mrb[0].mxu0
        %531 = vdwg.mxu0
        %v533 = vsel %vm337, %v320, 0
        %v536 = vsel %vm337, %v321, 0
        %v539 = vsel %vm337, %v322, 0
        %v542 = vsel %vm337, %v323, 0
        %544 = vmatprep.subr.mxu0 0.0
        %545 = vmatpush1.msra.mxu0 %v325
        %546 = vmatprep.subr.mxu0 0.0
        %547 = vmatpush1.msra.mxu0 %v326
        %548 = vmatprep.subr.mxu0 0.0
        %549 = vmatpush1.msra.mxu0 %v327
        %550 = vmatprep.subr.mxu0 0.0
        %551 = vmatpush1.msra.mxu0 %v328
        %552 = vmatprep.subr.mxu0 0.0
        %553 = vmatpush1.msra.mxu0 %v329
        %554 = vmatprep.subr.mxu0 0.0
        %555 = vmatpush1.msra.mxu0 %v330
        %556 = vmatprep.subr.mxu0 0.0
        %557 = vmatpush1.msra.mxu0 %v331
        %558 = vmatprep.subr.mxu0 0.0
        %559 = vmatpush1.msra.mxu0 %v332
        %560 = vmatprep.subr.mxu0 0.0
        %561 = vmatpush1.msra.mxu0 %v333
        %562 = vmatprep.subr.mxu0 0.0
        %563 = vmatpush1.msra.mxu0 %v334
        %564 = vmatprep.subr.mxu0 0.0
        %565 = vmatpush1.msra.mxu0 %v335
        %566 = vmatprep.subr.mxu0 0.0
        %567 = vmatpush1.msra.mxu0 %v336
        %568 = vmatprep.subr.mxu0 0.0
        %569 = vmatpush1.msra.mxu0 0.0
        %570 = vmatprep.subr.mxu0 0.0
        %571 = vmatpush1.msra.mxu0 0.0
        %572 = vmatprep.subr.mxu0 0.0
        %573 = vmatpush1.msra.mxu0 0.0
        %574 = vmatprep.subr.mxu0 0.0
        %575 = vmatpush1.msra.mxu0 0.0
        %576 = vmatprep.subr.mxu0 0.0
        %577 = vmatpush1.msra.mxu0 0.0
        %578 = vmatprep.subr.mxu0 0.0
        %579 = vmatpush1.msra.mxu0 0.0
        %580 = vmatprep.subr.mxu0 0.0
        %581 = vmatpush1.msra.mxu0 0.0
        %582 = vmatprep.subr.mxu0 0.0
        %583 = vmatpush1.msra.mxu0 0.0
        %584 = vmatprep.subr.mxu0 0.0
        %585 = vmatpush1.msra.mxu0 0.0
        %586 = vmatprep.subr.mxu0 0.0
        %587 = vmatpush1.msra.mxu0 0.0
        %588 = vmatprep.subr.mxu0 0.0
        %589 = vmatpush1.msra.mxu0 0.0
        %590 = vmatprep.subr.mxu0 0.0
        %591 = vmatpush1.msra.mxu0 0.0
        %592 = vmatprep.subr.mxu0 0.0
        %593 = vmatpush1.msra.mxu0 0.0
        %594 = vmatprep.subr.mxu0 0.0
        %595 = vmatpush1.msra.mxu0 0.0
        %596 = vmatprep.subr.mxu0 0.0
        %597 = vmatpush1.msra.mxu0 0.0
        %598 = vmatprep.subr.mxu0 0.0
        %599 = vmatpush1.msra.mxu0 0.0
        %600 = vmatprep.subr.mxu0 0.0
        %601 = vmatpush1.msra.mxu0 0.0
        %602 = vmatprep.subr.mxu0 0.0
        %603 = vmatpush1.msra.mxu0 0.0
        %604 = vmatprep.subr.mxu0 0.0
        %605 = vmatpush1.msra.mxu0 0.0
        %606 = vmatprep.subr.mxu0 0.0
        %607 = vmatpush1.msra.mxu0 0.0
        %608 = vmatprep.mubr.f32.mxu0 0.0
        %609 = vmatmul.mubr.f32.gmra.mrb[0].mxu0 %v533
        %v610 = vpop.f32.mrb[0].mxu0
        %v611 = vadd.f32 0.0, %v610
        %v612 = vpop.f32.mrb[0].mxu0
        %613 = vmatprep.mubr.f32.mxu0 0.0
        %614 = vmatmul.mubr.f32.gmra.mrb[0].mxu0 %v536
        %v615 = vpop.f32.mrb[0].mxu0
        %v616 = vadd.f32 0.0, %v615
        %v617 = vpop.f32.mrb[0].mxu0
        %618 = vmatprep.mubr.f32.mxu0 0.0
        %619 = vmatmul.mubr.f32.gmra.mrb[0].mxu0 %v539
        %v620 = vpop.f32.mrb[0].mxu0
        %v621 = vadd.f32 0.0, %v620
        %v622 = vpop.f32.mrb[0].mxu0
        %623 = vmatprep.mubr.f32.mxu0 0.0
        %624 = vmatmul.mubr.f32.gmra.mrb[0].mxu0 %v542
        %v625 = vpop.f32.mrb[0].mxu0
        %v626 = vadd.f32 0.0, %v625
        %v627 = vpop.f32.mrb[0].mxu0
        %628 = vdwg.mxu0
        %v630 = vsel %vm337, %v308, 0
        %v633 = vsel %vm337, %v309, 0
        %v636 = vsel %vm337, %v310, 0
        %v639 = vsel %vm337, %v311, 0
        %641 = vmatprep.subr.mxu0 0.0
        %642 = vmatpush1.msra.mxu0 %v289
        %643 = vmatprep.subr.mxu0 0.0
        %644 = vmatpush1.msra.mxu0 %v290
        %645 = vmatprep.subr.mxu0 0.0
        %646 = vmatpush1.msra.mxu0 %v291
        %647 = vmatprep.subr.mxu0 0.0
        %648 = vmatpush1.msra.mxu0 %v292
        %649 = vmatprep.subr.mxu0 0.0
        %650 = vmatpush1.msra.mxu0 %v293
        %651 = vmatprep.subr.mxu0 0.0
        %652 = vmatpush1.msra.mxu0 %v294
        %653 = vmatprep.subr.mxu0 0.0
        %654 = vmatpush1.msra.mxu0 %v295
        %655 = vmatprep.subr.mxu0 0.0
        %656 = vmatpush1.msra.mxu0 %v296
        %657 = vmatprep.subr.mxu0 0.0
        %658 = vmatpush1.msra.mxu0 %v297
        %659 = vmatprep.subr.mxu0 0.0
        %660 = vmatpush1.msra.mxu0 %v298
        %661 = vmatprep.subr.mxu0 0.0
        %662 = vmatpush1.msra.mxu0 %v299
        %663 = vmatprep.subr.mxu0 0.0
        %664 = vmatpush1.msra.mxu0 %v300
        %665 = vmatprep.subr.mxu0 0.0
        %666 = vmatpush1.msra.mxu0 0.0
        %667 = vmatprep.subr.mxu0 0.0
        %668 = vmatpush1.msra.mxu0 0.0
        %669 = vmatprep.subr.mxu0 0.0
        %670 = vmatpush1.msra.mxu0 0.0
        %671 = vmatprep.subr.mxu0 0.0
        %672 = vmatpush1.msra.mxu0 0.0
        %673 = vmatprep.subr.mxu0 0.0
        %674 = vmatpush1.msra.mxu0 0.0
        %675 = vmatprep.subr.mxu0 0.0
        %676 = vmatpush1.msra.mxu0 0.0
        %677 = vmatprep.subr.mxu0 0.0
        %678 = vmatpush1.msra.mxu0 0.0
        %679 = vmatprep.subr.mxu0 0.0
        %680 = vmatpush1.msra.mxu0 0.0
        %681 = vmatprep.subr.mxu0 0.0
        %682 = vmatpush1.msra.mxu0 0.0
        %683 = vmatprep.subr.mxu0 0.0
        %684 = vmatpush1.msra.mxu0 0.0
        %685 = vmatprep.subr.mxu0 0.0
        %686 = vmatpush1.msra.mxu0 0.0
        %687 = vmatprep.subr.mxu0 0.0
        %688 = vmatpush1.msra.mxu0 0.0
        %689 = vmatprep.subr.mxu0 0.0
        %690 = vmatpush1.msra.mxu0 0.0
        %691 = vmatprep.subr.mxu0 0.0
        %692 = vmatpush1.msra.mxu0 0.0
        %693 = vmatprep.subr.mxu0 0.0
        %694 = vmatpush1.msra.mxu0 0.0
        %695 = vmatprep.subr.mxu0 0.0
        %696 = vmatpush1.msra.mxu0 0.0
        %697 = vmatprep.subr.mxu0 0.0
        %698 = vmatpush1.msra.mxu0 0.0
        %699 = vmatprep.subr.mxu0 0.0
        %700 = vmatpush1.msra.mxu0 0.0
        %701 = vmatprep.subr.mxu0 0.0
        %702 = vmatpush1.msra.mxu0 0.0
        %703 = vmatprep.subr.mxu0 0.0
        %704 = vmatpush1.msra.mxu0 0.0
        %705 = vmatprep.mubr.f32.mxu0 0.0
        %706 = vmatmul.mubr.f32.gmra.mrb[0].mxu0 %v630
        %v707 = vpop.f32.mrb[0].mxu0
        %v708 = vadd.f32 %v611, %v707
        %v709 = vpop.f32.mrb[0].mxu0
        %710 = vmatprep.mubr.f32.mxu0 0.0
        %711 = vmatmul.mubr.f32.gmra.mrb[0].mxu0 %v633
        %v712 = vpop.f32.mrb[0].mxu0
        %v713 = vadd.f32 %v616, %v712
        %v714 = vpop.f32.mrb[0].mxu0
        %715 = vmatprep.mubr.f32.mxu0 0.0
        %716 = vmatmul.mubr.f32.gmra.mrb[0].mxu0 %v636
        %v717 = vpop.f32.mrb[0].mxu0
        %v718 = vadd.f32 %v621, %v717
        %v719 = vpop.f32.mrb[0].mxu0
        %720 = vmatprep.mubr.f32.mxu0 0.0
        %721 = vmatmul.mubr.f32.gmra.mrb[0].mxu0 %v639
        %v722 = vpop.f32.mrb[0].mxu0
        %v723 = vadd.f32 %v626, %v722
        %v724 = vpop.f32.mrb[0].mxu0
        %725 = vdwg.mxu0
        %s726 = sadd.s32 %s288, 2
        %s727 = smul.u32 %s726, 32
        %s728 = scalar_lea.vmem %s257, %s727
        %v729 = vld [vmem:[%s728] sm:$0xff]
        %v730 = vld [vmem:[%s728 + $0x8] sm:$0xff]
        %v731 = vld [vmem:[%s728 + $0x10] sm:$0xff]
        %v732 = vld [vmem:[%s728 + $0x18] sm:$0x3]
        %v734 = vsel %vm337, %v729, 0
        %v737 = vsel %vm337, %v730, 0
        %v740 = vsel %vm337, %v731, 0
        %v743 = vsel %vm337, %v732, 0
        %745 = vmatprep.subr.mxu0 0.0
        %746 = vmatpush1.msra.mxu0 %v325
        %747 = vmatprep.subr.mxu0 0.0
        %748 = vmatpush1.msra.mxu0 %v326
        %749 = vmatprep.subr.mxu0 0.0
        %750 = vmatpush1.msra.mxu0 %v327
        %751 = vmatprep.subr.mxu0 0.0
        %752 = vmatpush1.msra.mxu0 %v328
        %753 = vmatprep.subr.mxu0 0.0
        %754 = vmatpush1.msra.mxu0 %v329
        %755 = vmatprep.subr.mxu0 0.0
        %756 = vmatpush1.msra.mxu0 %v330
        %757 = vmatprep.subr.mxu0 0.0
        %758 = vmatpush1.msra.mxu0 %v331
        %759 = vmatprep.subr.mxu0 0.0
        %760 = vmatpush1.msra.mxu0 %v332
        %761 = vmatprep.subr.mxu0 0.0
        %762 = vmatpush1.msra.mxu0 %v333
        %763 = vmatprep.subr.mxu0 0.0
        %764 = vmatpush1.msra.mxu0 %v334
        %765 = vmatprep.subr.mxu0 0.0
        %766 = vmatpush1.msra.mxu0 %v335
        %767 = vmatprep.subr.mxu0 0.0
        %768 = vmatpush1.msra.mxu0 %v336
        %769 = vmatprep.subr.mxu0 0.0
        %770 = vmatpush1.msra.mxu0 0.0
        %771 = vmatprep.subr.mxu0 0.0
        %772 = vmatpush1.msra.mxu0 0.0
        %773 = vmatprep.subr.mxu0 0.0
        %774 = vmatpush1.msra.mxu0 0.0
        %775 = vmatprep.subr.mxu0 0.0
        %776 = vmatpush1.msra.mxu0 0.0
        %777 = vmatprep.subr.mxu0 0.0
        %778 = vmatpush1.msra.mxu0 0.0
        %779 = vmatprep.subr.mxu0 0.0
        %780 = vmatpush1.msra.mxu0 0.0
        %781 = vmatprep.subr.mxu0 0.0
        %782 = vmatpush1.msra.mxu0 0.0
        %783 = vmatprep.subr.mxu0 0.0
        %784 = vmatpush1.msra.mxu0 0.0
        %785 = vmatprep.subr.mxu0 0.0
        %786 = vmatpush1.msra.mxu0 0.0
        %787 = vmatprep.subr.mxu0 0.0
        %788 = vmatpush1.msra.mxu0 0.0
        %789 = vmatprep.subr.mxu0 0.0
        %790 = vmatpush1.msra.mxu0 0.0
        %791 = vmatprep.subr.mxu0 0.0
        %792 = vmatpush1.msra.mxu0 0.0
        %793 = vmatprep.subr.mxu0 0.0
        %794 = vmatpush1.msra.mxu0 0.0
        %795 = vmatprep.subr.mxu0 0.0
        %796 = vmatpush1.msra.mxu0 0.0
        %797 = vmatprep.subr.mxu0 0.0
        %798 = vmatpush1.msra.mxu0 0.0
        %799 = vmatprep.subr.mxu0 0.0
        %800 = vmatpush1.msra.mxu0 0.0
        %801 = vmatprep.subr.mxu0 0.0
        %802 = vmatpush1.msra.mxu0 0.0
        %803 = vmatprep.subr.mxu0 0.0
        %804 = vmatpush1.msra.mxu0 0.0
        %805 = vmatprep.subr.mxu0 0.0
        %806 = vmatpush1.msra.mxu0 0.0
        %807 = vmatprep.subr.mxu0 0.0
        %808 = vmatpush1.msra.mxu0 0.0
        %809 = vmatprep.mubr.f32.mxu0 0.0
        %810 = vmatmul.mubr.f32.gmra.mrb[0].mxu0 %v734
        %v811 = vpop.f32.mrb[0].mxu0
        %v812 = vadd.f32 0.0, %v811
        %v813 = vpop.f32.mrb[0].mxu0
        %814 = vmatprep.mubr.f32.mxu0 0.0
        %815 = vmatmul.mubr.f32.gmra.mrb[0].mxu0 %v737
        %v816 = vpop.f32.mrb[0].mxu0
        %v817 = vadd.f32 0.0, %v816
        %v818 = vpop.f32.mrb[0].mxu0
        %819 = vmatprep.mubr.f32.mxu0 0.0
        %820 = vmatmul.mubr.f32.gmra.mrb[0].mxu0 %v740
        %v821 = vpop.f32.mrb[0].mxu0
        %v822 = vadd.f32 0.0, %v821
        %v823 = vpop.f32.mrb[0].mxu0
        %824 = vmatprep.mubr.f32.mxu0 0.0
        %825 = vmatmul.mubr.f32.gmra.mrb[0].mxu0 %v743
        %v826 = vpop.f32.mrb[0].mxu0
        %v827 = vadd.f32 0.0, %v826
        %v828 = vpop.f32.mrb[0].mxu0
        %829 = vdwg.mxu0
        %830 = vmatprep.subr.mxu0 0.0
        %831 = vmatpush1.msra.mxu0 %v289
        %832 = vmatprep.subr.mxu0 0.0
        %833 = vmatpush1.msra.mxu0 %v290
        %834 = vmatprep.subr.mxu0 0.0
        %835 = vmatpush1.msra.mxu0 %v291
        %836 = vmatprep.subr.mxu0 0.0
        %837 = vmatpush1.msra.mxu0 %v292
        %838 = vmatprep.subr.mxu0 0.0
        %839 = vmatpush1.msra.mxu0 %v293
        %840 = vmatprep.subr.mxu0 0.0
        %841 = vmatpush1.msra.mxu0 %v294
        %842 = vmatprep.subr.mxu0 0.0
        %843 = vmatpush1.msra.mxu0 %v295
        %844 = vmatprep.subr.mxu0 0.0
        %845 = vmatpush1.msra.mxu0 %v296
        %846 = vmatprep.subr.mxu0 0.0
        %847 = vmatpush1.msra.mxu0 %v297
        %848 = vmatprep.subr.mxu0 0.0
        %849 = vmatpush1.msra.mxu0 %v298
        %850 = vmatprep.subr.mxu0 0.0
        %851 = vmatpush1.msra.mxu0 %v299
        %852 = vmatprep.subr.mxu0 0.0
        %853 = vmatpush1.msra.mxu0 %v300
        %854 = vmatprep.subr.mxu0 0.0
        %855 = vmatpush1.msra.mxu0 0.0
        %856 = vmatprep.subr.mxu0 0.0
        %857 = vmatpush1.msra.mxu0 0.0
        %858 = vmatprep.subr.mxu0 0.0
        %859 = vmatpush1.msra.mxu0 0.0
        %860 = vmatprep.subr.mxu0 0.0
        %861 = vmatpush1.msra.mxu0 0.0
        %862 = vmatprep.subr.mxu0 0.0
        %863 = vmatpush1.msra.mxu0 0.0
        %864 = vmatprep.subr.mxu0 0.0
        %865 = vmatpush1.msra.mxu0 0.0
        %866 = vmatprep.subr.mxu0 0.0
        %867 = vmatpush1.msra.mxu0 0.0
        %868 = vmatprep.subr.mxu0 0.0
        %869 = vmatpush1.msra.mxu0 0.0
        %870 = vmatprep.subr.mxu0 0.0
        %871 = vmatpush1.msra.mxu0 0.0
        %872 = vmatprep.subr.mxu0 0.0
        %873 = vmatpush1.msra.mxu0 0.0
        %874 = vmatprep.subr.mxu0 0.0
        %875 = vmatpush1.msra.mxu0 0.0
        %876 = vmatprep.subr.mxu0 0.0
        %877 = vmatpush1.msra.mxu0 0.0
        %878 = vmatprep.subr.mxu0 0.0
        %879 = vmatpush1.msra.mxu0 0.0
        %880 = vmatprep.subr.mxu0 0.0
        %881 = vmatpush1.msra.mxu0 0.0
        %882 = vmatprep.subr.mxu0 0.0
        %883 = vmatpush1.msra.mxu0 0.0
        %884 = vmatprep.subr.mxu0 0.0
        %885 = vmatpush1.msra.mxu0 0.0
        %886 = vmatprep.subr.mxu0 0.0
        %887 = vmatpush1.msra.mxu0 0.0
        %888 = vmatprep.subr.mxu0 0.0
        %889 = vmatpush1.msra.mxu0 0.0
        %890 = vmatprep.subr.mxu0 0.0
        %891 = vmatpush1.msra.mxu0 0.0
        %892 = vmatprep.subr.mxu0 0.0
        %893 = vmatpush1.msra.mxu0 0.0
        %894 = vmatprep.mubr.f32.mxu0 0.0
        %895 = vmatmul.mubr.f32.gmra.mrb[0].mxu0 %v339
        %v896 = vpop.f32.mrb[0].mxu0
        %v897 = vadd.f32 %v812, %v896
        %v898 = vpop.f32.mrb[0].mxu0
        %899 = vmatprep.mubr.f32.mxu0 0.0
        %900 = vmatmul.mubr.f32.gmra.mrb[0].mxu0 %v342
        %v901 = vpop.f32.mrb[0].mxu0
        %v902 = vadd.f32 %v817, %v901
        %v903 = vpop.f32.mrb[0].mxu0
        %904 = vmatprep.mubr.f32.mxu0 0.0
        %905 = vmatmul.mubr.f32.gmra.mrb[0].mxu0 %v345
        %v906 = vpop.f32.mrb[0].mxu0
        %v907 = vadd.f32 %v822, %v906
        %v908 = vpop.f32.mrb[0].mxu0
        %909 = vmatprep.mubr.f32.mxu0 0.0
        %910 = vmatmul.mubr.f32.gmra.mrb[0].mxu0 %v348
        %v911 = vpop.f32.mrb[0].mxu0
        %v912 = vadd.f32 %v827, %v911
        %v913 = vpop.f32.mrb[0].mxu0
        %914 = vdwg.mxu0
        %s915 = scalar_lea.vmem %s268, %s727
        %v916 = vld [vmem:[%s915] sm:$0xff]
        %v917 = vld [vmem:[%s915 + $0x8] sm:$0xff]
        %v918 = vld [vmem:[%s915 + $0x10] sm:$0xff]
        %v919 = vld [vmem:[%s915 + $0x18] sm:$0x3]
        %v921 = vsel %vm337, %v916, 0
        %v924 = vsel %vm337, %v917, 0
        %v927 = vsel %vm337, %v918, 0
        %v930 = vsel %vm337, %v919, 0
        %932 = vmatprep.subr.mxu0 0.0
        %933 = vmatpush1.msra.mxu0 %v325
        %934 = vmatprep.subr.mxu0 0.0
        %935 = vmatpush1.msra.mxu0 %v326
        %936 = vmatprep.subr.mxu0 0.0
        %937 = vmatpush1.msra.mxu0 %v327
        %938 = vmatprep.subr.mxu0 0.0
        %939 = vmatpush1.msra.mxu0 %v328
        %940 = vmatprep.subr.mxu0 0.0
        %941 = vmatpush1.msra.mxu0 %v329
        %942 = vmatprep.subr.mxu0 0.0
        %943 = vmatpush1.msra.mxu0 %v330
        %944 = vmatprep.subr.mxu0 0.0
        %945 = vmatpush1.msra.mxu0 %v331
        %946 = vmatprep.subr.mxu0 0.0
        %947 = vmatpush1.msra.mxu0 %v332
        %948 = vmatprep.subr.mxu0 0.0
        %949 = vmatpush1.msra.mxu0 %v333
        %950 = vmatprep.subr.mxu0 0.0
        %951 = vmatpush1.msra.mxu0 %v334
        %952 = vmatprep.subr.mxu0 0.0
        %953 = vmatpush1.msra.mxu0 %v335
        %954 = vmatprep.subr.mxu0 0.0
        %955 = vmatpush1.msra.mxu0 %v336
        %956 = vmatprep.subr.mxu0 0.0
        %957 = vmatpush1.msra.mxu0 0.0
        %958 = vmatprep.subr.mxu0 0.0
        %959 = vmatpush1.msra.mxu0 0.0
        %960 = vmatprep.subr.mxu0 0.0
        %961 = vmatpush1.msra.mxu0 0.0
        %962 = vmatprep.subr.mxu0 0.0
        %963 = vmatpush1.msra.mxu0 0.0
        %964 = vmatprep.subr.mxu0 0.0
        %965 = vmatpush1.msra.mxu0 0.0
        %966 = vmatprep.subr.mxu0 0.0
        %967 = vmatpush1.msra.mxu0 0.0
        %968 = vmatprep.subr.mxu0 0.0
        %969 = vmatpush1.msra.mxu0 0.0
        %970 = vmatprep.subr.mxu0 0.0
        %971 = vmatpush1.msra.mxu0 0.0
        %972 = vmatprep.subr.mxu0 0.0
        %973 = vmatpush1.msra.mxu0 0.0
        %974 = vmatprep.subr.mxu0 0.0
        %975 = vmatpush1.msra.mxu0 0.0
        %976 = vmatprep.subr.mxu0 0.0
        %977 = vmatpush1.msra.mxu0 0.0
        %978 = vmatprep.subr.mxu0 0.0
        %979 = vmatpush1.msra.mxu0 0.0
        %980 = vmatprep.subr.mxu0 0.0
        %981 = vmatpush1.msra.mxu0 0.0
        %982 = vmatprep.subr.mxu0 0.0
        %983 = vmatpush1.msra.mxu0 0.0
        %984 = vmatprep.subr.mxu0 0.0
        %985 = vmatpush1.msra.mxu0 0.0
        %986 = vmatprep.subr.mxu0 0.0
        %987 = vmatpush1.msra.mxu0 0.0
        %988 = vmatprep.subr.mxu0 0.0
        %989 = vmatpush1.msra.mxu0 0.0
        %990 = vmatprep.subr.mxu0 0.0
        %991 = vmatpush1.msra.mxu0 0.0
        %992 = vmatprep.subr.mxu0 0.0
        %993 = vmatpush1.msra.mxu0 0.0
        %994 = vmatprep.subr.mxu0 0.0
        %995 = vmatpush1.msra.mxu0 0.0
        %996 = vmatprep.mubr.f32.mxu0 0.0
        %997 = vmatmul.mubr.f32.gmra.mrb[0].mxu0 %v921
        %v998 = vpop.f32.mrb[0].mxu0
        %v999 = vadd.f32 0.0, %v998
        %v1000 = vpop.f32.mrb[0].mxu0
        %1001 = vmatprep.mubr.f32.mxu0 0.0
        %1002 = vmatmul.mubr.f32.gmra.mrb[0].mxu0 %v924
        %v1003 = vpop.f32.mrb[0].mxu0
        %v1004 = vadd.f32 0.0, %v1003
        %v1005 = vpop.f32.mrb[0].mxu0
        %1006 = vmatprep.mubr.f32.mxu0 0.0
        %1007 = vmatmul.mubr.f32.gmra.mrb[0].mxu0 %v927
        %v1008 = vpop.f32.mrb[0].mxu0
        %v1009 = vadd.f32 0.0, %v1008
        %v1010 = vpop.f32.mrb[0].mxu0
        %1011 = vmatprep.mubr.f32.mxu0 0.0
        %1012 = vmatmul.mubr.f32.gmra.mrb[0].mxu0 %v930
        %v1013 = vpop.f32.mrb[0].mxu0
        %v1014 = vadd.f32 0.0, %v1013
        %v1015 = vpop.f32.mrb[0].mxu0
        %1016 = vdwg.mxu0
        %1017 = vmatprep.subr.mxu0 0.0
        %1018 = vmatpush1.msra.mxu0 %v289
        %1019 = vmatprep.subr.mxu0 0.0
        %1020 = vmatpush1.msra.mxu0 %v290
        %1021 = vmatprep.subr.mxu0 0.0
        %1022 = vmatpush1.msra.mxu0 %v291
        %1023 = vmatprep.subr.mxu0 0.0
        %1024 = vmatpush1.msra.mxu0 %v292
        %1025 = vmatprep.subr.mxu0 0.0
        %1026 = vmatpush1.msra.mxu0 %v293
        %1027 = vmatprep.subr.mxu0 0.0
        %1028 = vmatpush1.msra.mxu0 %v294
        %1029 = vmatprep.subr.mxu0 0.0
        %1030 = vmatpush1.msra.mxu0 %v295
        %1031 = vmatprep.subr.mxu0 0.0
        %1032 = vmatpush1.msra.mxu0 %v296
        %1033 = vmatprep.subr.mxu0 0.0
        %1034 = vmatpush1.msra.mxu0 %v297
        %1035 = vmatprep.subr.mxu0 0.0
        %1036 = vmatpush1.msra.mxu0 %v298
        %1037 = vmatprep.subr.mxu0 0.0
        %1038 = vmatpush1.msra.mxu0 %v299
        %1039 = vmatprep.subr.mxu0 0.0
        %1040 = vmatpush1.msra.mxu0 %v300
        %1041 = vmatprep.subr.mxu0 0.0
        %1042 = vmatpush1.msra.mxu0 0.0
        %1043 = vmatprep.subr.mxu0 0.0
        %1044 = vmatpush1.msra.mxu0 0.0
        %1045 = vmatprep.subr.mxu0 0.0
        %1046 = vmatpush1.msra.mxu0 0.0
        %1047 = vmatprep.subr.mxu0 0.0
        %1048 = vmatpush1.msra.mxu0 0.0
        %1049 = vmatprep.subr.mxu0 0.0
        %1050 = vmatpush1.msra.mxu0 0.0
        %1051 = vmatprep.subr.mxu0 0.0
        %1052 = vmatpush1.msra.mxu0 0.0
        %1053 = vmatprep.subr.mxu0 0.0
        %1054 = vmatpush1.msra.mxu0 0.0
        %1055 = vmatprep.subr.mxu0 0.0
        %1056 = vmatpush1.msra.mxu0 0.0
        %1057 = vmatprep.subr.mxu0 0.0
        %1058 = vmatpush1.msra.mxu0 0.0
        %1059 = vmatprep.subr.mxu0 0.0
        %1060 = vmatpush1.msra.mxu0 0.0
        %1061 = vmatprep.subr.mxu0 0.0
        %1062 = vmatpush1.msra.mxu0 0.0
        %1063 = vmatprep.subr.mxu0 0.0
        %1064 = vmatpush1.msra.mxu0 0.0
        %1065 = vmatprep.subr.mxu0 0.0
        %1066 = vmatpush1.msra.mxu0 0.0
        %1067 = vmatprep.subr.mxu0 0.0
        %1068 = vmatpush1.msra.mxu0 0.0
        %1069 = vmatprep.subr.mxu0 0.0
        %1070 = vmatpush1.msra.mxu0 0.0
        %1071 = vmatprep.subr.mxu0 0.0
        %1072 = vmatpush1.msra.mxu0 0.0
        %1073 = vmatprep.subr.mxu0 0.0
        %1074 = vmatpush1.msra.mxu0 0.0
        %1075 = vmatprep.subr.mxu0 0.0
        %1076 = vmatpush1.msra.mxu0 0.0
        %1077 = vmatprep.subr.mxu0 0.0
        %1078 = vmatpush1.msra.mxu0 0.0
        %1079 = vmatprep.subr.mxu0 0.0
        %1080 = vmatpush1.msra.mxu0 0.0
        %1081 = vmatprep.mubr.f32.mxu0 0.0
        %1082 = vmatmul.mubr.f32.gmra.mrb[0].mxu0 %v533
        %v1083 = vpop.f32.mrb[0].mxu0
        %v1084 = vadd.f32 %v999, %v1083
        %v1085 = vpop.f32.mrb[0].mxu0
        %1086 = vmatprep.mubr.f32.mxu0 0.0
        %1087 = vmatmul.mubr.f32.gmra.mrb[0].mxu0 %v536
        %v1088 = vpop.f32.mrb[0].mxu0
        %v1089 = vadd.f32 %v1004, %v1088
        %v1090 = vpop.f32.mrb[0].mxu0
        %1091 = vmatprep.mubr.f32.mxu0 0.0
        %1092 = vmatmul.mubr.f32.gmra.mrb[0].mxu0 %v539
        %v1093 = vpop.f32.mrb[0].mxu0
        %v1094 = vadd.f32 %v1009, %v1093
        %v1095 = vpop.f32.mrb[0].mxu0
        %1096 = vmatprep.mubr.f32.mxu0 0.0
        %1097 = vmatmul.mubr.f32.gmra.mrb[0].mxu0 %v542
        %v1098 = vpop.f32.mrb[0].mxu0
        %v1099 = vadd.f32 %v1014, %v1098
        %v1100 = vpop.f32.mrb[0].mxu0
        %1101 = vdwg.mxu0
        %s1102 = scalar_lea.vmem %s2, 192
        %v1103 = vld [vmem:[%s1102] sm:$0xff]
        %v1104 = vld [vmem:[%s1102 + $0x8] sm:$0xff]
        %v1105 = vld [vmem:[%s1102 + $0x10] sm:$0xff]
        %v1106 = vld [vmem:[%s1102 + $0x18] sm:$0xff]
        %v1107 = vld [vmem:[%s1102 + $0x20] sm:$0xff]
        %v1108 = vld [vmem:[%s1102 + $0x28] sm:$0xff]
        %v1109 = vld [vmem:[%s1102 + $0x30] sm:$0xff]
        %v1110 = vld [vmem:[%s1102 + $0x38] sm:$0xff]
        %v1111 = vld [vmem:[%s1102 + $0x40] sm:$0xff]
        %v1112 = vld [vmem:[%s1102 + $0x48] sm:$0xff]
        %v1113 = vld [vmem:[%s1102 + $0x50] sm:$0xff]
        %v1114 = vld [vmem:[%s1102 + $0x58] sm:$0xff]
        %1115 = vmatprep.subr.mxu0 0.0
        %1116 = vmatpush1.msra.mxu0 %v1103
        %1117 = vmatprep.subr.mxu0 0.0
        %1118 = vmatpush1.msra.mxu0 %v1104
        %1119 = vmatprep.subr.mxu0 0.0
        %1120 = vmatpush1.msra.mxu0 %v1105
        %1121 = vmatprep.subr.mxu0 0.0
        %1122 = vmatpush1.msra.mxu0 %v1106
        %1123 = vmatprep.subr.mxu0 0.0
        %1124 = vmatpush1.msra.mxu0 %v1107
        %1125 = vmatprep.subr.mxu0 0.0
        %1126 = vmatpush1.msra.mxu0 %v1108
        %1127 = vmatprep.subr.mxu0 0.0
        %1128 = vmatpush1.msra.mxu0 %v1109
        %1129 = vmatprep.subr.mxu0 0.0
        %1130 = vmatpush1.msra.mxu0 %v1110
        %1131 = vmatprep.subr.mxu0 0.0
        %1132 = vmatpush1.msra.mxu0 %v1111
        %1133 = vmatprep.subr.mxu0 0.0
        %1134 = vmatpush1.msra.mxu0 %v1112
        %1135 = vmatprep.subr.mxu0 0.0
        %1136 = vmatpush1.msra.mxu0 %v1113
        %1137 = vmatprep.subr.mxu0 0.0
        %1138 = vmatpush1.msra.mxu0 %v1114
        %1139 = vmatprep.subr.mxu0 0.0
        %1140 = vmatpush1.msra.mxu0 0.0
        %1141 = vmatprep.subr.mxu0 0.0
        %1142 = vmatpush1.msra.mxu0 0.0
        %1143 = vmatprep.subr.mxu0 0.0
        %1144 = vmatpush1.msra.mxu0 0.0
        %1145 = vmatprep.subr.mxu0 0.0
        %1146 = vmatpush1.msra.mxu0 0.0
        %1147 = vmatprep.subr.mxu0 0.0
        %1148 = vmatpush1.msra.mxu0 0.0
        %1149 = vmatprep.subr.mxu0 0.0
        %1150 = vmatpush1.msra.mxu0 0.0
        %1151 = vmatprep.subr.mxu0 0.0
        %1152 = vmatpush1.msra.mxu0 0.0
        %1153 = vmatprep.subr.mxu0 0.0
        %1154 = vmatpush1.msra.mxu0 0.0
        %1155 = vmatprep.subr.mxu0 0.0
        %1156 = vmatpush1.msra.mxu0 0.0
        %1157 = vmatprep.subr.mxu0 0.0
        %1158 = vmatpush1.msra.mxu0 0.0
        %1159 = vmatprep.subr.mxu0 0.0
        %1160 = vmatpush1.msra.mxu0 0.0
        %1161 = vmatprep.subr.mxu0 0.0
        %1162 = vmatpush1.msra.mxu0 0.0
        %1163 = vmatprep.subr.mxu0 0.0
        %1164 = vmatpush1.msra.mxu0 0.0
        %1165 = vmatprep.subr.mxu0 0.0
        %1166 = vmatpush1.msra.mxu0 0.0
        %1167 = vmatprep.subr.mxu0 0.0
        %1168 = vmatpush1.msra.mxu0 0.0
        %1169 = vmatprep.subr.mxu0 0.0
        %1170 = vmatpush1.msra.mxu0 0.0
        %1171 = vmatprep.subr.mxu0 0.0
        %1172 = vmatpush1.msra.mxu0 0.0
        %1173 = vmatprep.subr.mxu0 0.0
        %1174 = vmatpush1.msra.mxu0 0.0
        %1175 = vmatprep.subr.mxu0 0.0
        %1176 = vmatpush1.msra.mxu0 0.0
        %1177 = vmatprep.subr.mxu0 0.0
        %1178 = vmatpush1.msra.mxu0 0.0
        %1179 = vmatprep.mubr.f32.mxu0 0.0
        %1180 = vmatmul.mubr.f32.gmra.mrb[0].mxu0 %v734
        %v1181 = vpop.f32.mrb[0].mxu0
        %v1182 = vadd.f32 0.0, %v1181
        %v1183 = vpop.f32.mrb[0].mxu0
        %1184 = vmatprep.mubr.f32.mxu0 0.0
        %1185 = vmatmul.mubr.f32.gmra.mrb[0].mxu0 %v737
        %v1186 = vpop.f32.mrb[0].mxu0
        %v1187 = vadd.f32 0.0, %v1186
        %v1188 = vpop.f32.mrb[0].mxu0
        %1189 = vmatprep.mubr.f32.mxu0 0.0
        %1190 = vmatmul.mubr.f32.gmra.mrb[0].mxu0 %v740
        %v1191 = vpop.f32.mrb[0].mxu0
        %v1192 = vadd.f32 0.0, %v1191
        %v1193 = vpop.f32.mrb[0].mxu0
        %1194 = vmatprep.mubr.f32.mxu0 0.0
        %1195 = vmatmul.mubr.f32.gmra.mrb[0].mxu0 %v743
        %v1196 = vpop.f32.mrb[0].mxu0
        %v1197 = vadd.f32 0.0, %v1196
        %v1198 = vpop.f32.mrb[0].mxu0
        %1199 = vdwg.mxu0
        %v1200 = vadd.f32 %v514, %v1182
        %v1201 = vadd.f32 %v519, %v1187
        %v1202 = vadd.f32 %v524, %v1192
        %v1203 = vadd.f32 %v529, %v1197
        %1204 = vmatprep.subr.mxu0 0.0
        %1205 = vmatpush1.msra.mxu0 %v1103
        %1206 = vmatprep.subr.mxu0 0.0
        %1207 = vmatpush1.msra.mxu0 %v1104
        %1208 = vmatprep.subr.mxu0 0.0
        %1209 = vmatpush1.msra.mxu0 %v1105
        %1210 = vmatprep.subr.mxu0 0.0
        %1211 = vmatpush1.msra.mxu0 %v1106
        %1212 = vmatprep.subr.mxu0 0.0
        %1213 = vmatpush1.msra.mxu0 %v1107
        %1214 = vmatprep.subr.mxu0 0.0
        %1215 = vmatpush1.msra.mxu0 %v1108
        %1216 = vmatprep.subr.mxu0 0.0
        %1217 = vmatpush1.msra.mxu0 %v1109
        %1218 = vmatprep.subr.mxu0 0.0
        %1219 = vmatpush1.msra.mxu0 %v1110
        %1220 = vmatprep.subr.mxu0 0.0
        %1221 = vmatpush1.msra.mxu0 %v1111
        %1222 = vmatprep.subr.mxu0 0.0
        %1223 = vmatpush1.msra.mxu0 %v1112
        %1224 = vmatprep.subr.mxu0 0.0
        %1225 = vmatpush1.msra.mxu0 %v1113
        %1226 = vmatprep.subr.mxu0 0.0
        %1227 = vmatpush1.msra.mxu0 %v1114
        %1228 = vmatprep.subr.mxu0 0.0
        %1229 = vmatpush1.msra.mxu0 0.0
        %1230 = vmatprep.subr.mxu0 0.0
        %1231 = vmatpush1.msra.mxu0 0.0
        %1232 = vmatprep.subr.mxu0 0.0
        %1233 = vmatpush1.msra.mxu0 0.0
        %1234 = vmatprep.subr.mxu0 0.0
        %1235 = vmatpush1.msra.mxu0 0.0
        %1236 = vmatprep.subr.mxu0 0.0
        %1237 = vmatpush1.msra.mxu0 0.0
        %1238 = vmatprep.subr.mxu0 0.0
        %1239 = vmatpush1.msra.mxu0 0.0
        %1240 = vmatprep.subr.mxu0 0.0
        %1241 = vmatpush1.msra.mxu0 0.0
        %1242 = vmatprep.subr.mxu0 0.0
        %1243 = vmatpush1.msra.mxu0 0.0
        %1244 = vmatprep.subr.mxu0 0.0
        %1245 = vmatpush1.msra.mxu0 0.0
        %1246 = vmatprep.subr.mxu0 0.0
        %1247 = vmatpush1.msra.mxu0 0.0
        %1248 = vmatprep.subr.mxu0 0.0
        %1249 = vmatpush1.msra.mxu0 0.0
        %1250 = vmatprep.subr.mxu0 0.0
        %1251 = vmatpush1.msra.mxu0 0.0
        %1252 = vmatprep.subr.mxu0 0.0
        %1253 = vmatpush1.msra.mxu0 0.0
        %1254 = vmatprep.subr.mxu0 0.0
        %1255 = vmatpush1.msra.mxu0 0.0
        %1256 = vmatprep.subr.mxu0 0.0
        %1257 = vmatpush1.msra.mxu0 0.0
        %1258 = vmatprep.subr.mxu0 0.0
        %1259 = vmatpush1.msra.mxu0 0.0
        %1260 = vmatprep.subr.mxu0 0.0
        %1261 = vmatpush1.msra.mxu0 0.0
        %1262 = vmatprep.subr.mxu0 0.0
        %1263 = vmatpush1.msra.mxu0 0.0
        %1264 = vmatprep.subr.mxu0 0.0
        %1265 = vmatpush1.msra.mxu0 0.0
        %1266 = vmatprep.subr.mxu0 0.0
        %1267 = vmatpush1.msra.mxu0 0.0
        %1268 = vmatprep.mubr.f32.mxu0 0.0
        %1269 = vmatmul.mubr.f32.gmra.mrb[0].mxu0 %v921
        %v1270 = vpop.f32.mrb[0].mxu0
        %v1271 = vadd.f32 0.0, %v1270
        %v1272 = vpop.f32.mrb[0].mxu0
        %1273 = vmatprep.mubr.f32.mxu0 0.0
        %1274 = vmatmul.mubr.f32.gmra.mrb[0].mxu0 %v924
        %v1275 = vpop.f32.mrb[0].mxu0
        %v1276 = vadd.f32 0.0, %v1275
        %v1277 = vpop.f32.mrb[0].mxu0
        %1278 = vmatprep.mubr.f32.mxu0 0.0
        %1279 = vmatmul.mubr.f32.gmra.mrb[0].mxu0 %v927
        %v1280 = vpop.f32.mrb[0].mxu0
        %v1281 = vadd.f32 0.0, %v1280
        %v1282 = vpop.f32.mrb[0].mxu0
        %1283 = vmatprep.mubr.f32.mxu0 0.0
        %1284 = vmatmul.mubr.f32.gmra.mrb[0].mxu0 %v930
        %v1285 = vpop.f32.mrb[0].mxu0
        %v1286 = vadd.f32 0.0, %v1285
        %v1287 = vpop.f32.mrb[0].mxu0
        %1288 = vdwg.mxu0
        %v1289 = vadd.f32 %v708, %v1271
        %v1290 = vadd.f32 %v713, %v1276
        %v1291 = vadd.f32 %v718, %v1281
        %v1292 = vadd.f32 %v723, %v1286
        %s1293 = sadd.s32 %s288, 3
        %s1294 = smul.u32 %s1293, 32
        %s1295 = scalar_lea.vmem %s257, %s1294
        %v1296 = vld [vmem:[%s1295] sm:$0xff]
        %v1297 = vld [vmem:[%s1295 + $0x8] sm:$0xff]
        %v1298 = vld [vmem:[%s1295 + $0x10] sm:$0xff]
        %v1299 = vld [vmem:[%s1295 + $0x18] sm:$0x3]
        %v1301 = vsel %vm337, %v1296, 0
        %v1304 = vsel %vm337, %v1297, 0
        %v1307 = vsel %vm337, %v1298, 0
        %v1310 = vsel %vm337, %v1299, 0
        %1312 = vmatprep.subr.mxu0 0.0
        %1313 = vmatpush1.msra.mxu0 %v1103
        %1314 = vmatprep.subr.mxu0 0.0
        %1315 = vmatpush1.msra.mxu0 %v1104
        %1316 = vmatprep.subr.mxu0 0.0
        %1317 = vmatpush1.msra.mxu0 %v1105
        %1318 = vmatprep.subr.mxu0 0.0
        %1319 = vmatpush1.msra.mxu0 %v1106
        %1320 = vmatprep.subr.mxu0 0.0
        %1321 = vmatpush1.msra.mxu0 %v1107
        %1322 = vmatprep.subr.mxu0 0.0
        %1323 = vmatpush1.msra.mxu0 %v1108
        %1324 = vmatprep.subr.mxu0 0.0
        %1325 = vmatpush1.msra.mxu0 %v1109
        %1326 = vmatprep.subr.mxu0 0.0
        %1327 = vmatpush1.msra.mxu0 %v1110
        %1328 = vmatprep.subr.mxu0 0.0
        %1329 = vmatpush1.msra.mxu0 %v1111
        %1330 = vmatprep.subr.mxu0 0.0
        %1331 = vmatpush1.msra.mxu0 %v1112
        %1332 = vmatprep.subr.mxu0 0.0
        %1333 = vmatpush1.msra.mxu0 %v1113
        %1334 = vmatprep.subr.mxu0 0.0
        %1335 = vmatpush1.msra.mxu0 %v1114
        %1336 = vmatprep.subr.mxu0 0.0
        %1337 = vmatpush1.msra.mxu0 0.0
        %1338 = vmatprep.subr.mxu0 0.0
        %1339 = vmatpush1.msra.mxu0 0.0
        %1340 = vmatprep.subr.mxu0 0.0
        %1341 = vmatpush1.msra.mxu0 0.0
        %1342 = vmatprep.subr.mxu0 0.0
        %1343 = vmatpush1.msra.mxu0 0.0
        %1344 = vmatprep.subr.mxu0 0.0
        %1345 = vmatpush1.msra.mxu0 0.0
        %1346 = vmatprep.subr.mxu0 0.0
        %1347 = vmatpush1.msra.mxu0 0.0
        %1348 = vmatprep.subr.mxu0 0.0
        %1349 = vmatpush1.msra.mxu0 0.0
        %1350 = vmatprep.subr.mxu0 0.0
        %1351 = vmatpush1.msra.mxu0 0.0
        %1352 = vmatprep.subr.mxu0 0.0
        %1353 = vmatpush1.msra.mxu0 0.0
        %1354 = vmatprep.subr.mxu0 0.0
        %1355 = vmatpush1.msra.mxu0 0.0
        %1356 = vmatprep.subr.mxu0 0.0
        %1357 = vmatpush1.msra.mxu0 0.0
        %1358 = vmatprep.subr.mxu0 0.0
        %1359 = vmatpush1.msra.mxu0 0.0
        %1360 = vmatprep.subr.mxu0 0.0
        %1361 = vmatpush1.msra.mxu0 0.0
        %1362 = vmatprep.subr.mxu0 0.0
        %1363 = vmatpush1.msra.mxu0 0.0
        %1364 = vmatprep.subr.mxu0 0.0
        %1365 = vmatpush1.msra.mxu0 0.0
        %1366 = vmatprep.subr.mxu0 0.0
        %1367 = vmatpush1.msra.mxu0 0.0
        %1368 = vmatprep.subr.mxu0 0.0
        %1369 = vmatpush1.msra.mxu0 0.0
        %1370 = vmatprep.subr.mxu0 0.0
        %1371 = vmatpush1.msra.mxu0 0.0
        %1372 = vmatprep.subr.mxu0 0.0
        %1373 = vmatpush1.msra.mxu0 0.0
        %1374 = vmatprep.subr.mxu0 0.0
        %1375 = vmatpush1.msra.mxu0 0.0
        %1376 = vmatprep.mubr.f32.mxu0 0.0
        %1377 = vmatmul.mubr.f32.gmra.mrb[0].mxu0 %v1301
        %v1378 = vpop.f32.mrb[0].mxu0
        %v1379 = vadd.f32 0.0, %v1378
        %v1380 = vpop.f32.mrb[0].mxu0
        %1381 = vmatprep.mubr.f32.mxu0 0.0
        %1382 = vmatmul.mubr.f32.gmra.mrb[0].mxu0 %v1304
        %v1383 = vpop.f32.mrb[0].mxu0
        %v1384 = vadd.f32 0.0, %v1383
        %v1385 = vpop.f32.mrb[0].mxu0
        %1386 = vmatprep.mubr.f32.mxu0 0.0
        %1387 = vmatmul.mubr.f32.gmra.mrb[0].mxu0 %v1307
        %v1388 = vpop.f32.mrb[0].mxu0
        %v1389 = vadd.f32 0.0, %v1388
        %v1390 = vpop.f32.mrb[0].mxu0
        %1391 = vmatprep.mubr.f32.mxu0 0.0
        %1392 = vmatmul.mubr.f32.gmra.mrb[0].mxu0 %v1310
        %v1393 = vpop.f32.mrb[0].mxu0
        %v1394 = vadd.f32 0.0, %v1393
        %v1395 = vpop.f32.mrb[0].mxu0
        %1396 = vdwg.mxu0
        %v1397 = vadd.f32 %v897, %v1379
        %v1398 = vadd.f32 %v902, %v1384
        %v1399 = vadd.f32 %v907, %v1389
        %v1400 = vadd.f32 %v912, %v1394
        %s1401 = scalar_lea.vmem %s268, %s1294
        %v1402 = vld [vmem:[%s1401] sm:$0xff]
        %v1403 = vld [vmem:[%s1401 + $0x8] sm:$0xff]
        %v1404 = vld [vmem:[%s1401 + $0x10] sm:$0xff]
        %v1405 = vld [vmem:[%s1401 + $0x18] sm:$0x3]
        %v1407 = vsel %vm337, %v1402, 0
        %v1410 = vsel %vm337, %v1403, 0
        %v1413 = vsel %vm337, %v1404, 0
        %v1416 = vsel %vm337, %v1405, 0
        %1418 = vmatprep.subr.mxu0 0.0
        %1419 = vmatpush1.msra.mxu0 %v1103
        %1420 = vmatprep.subr.mxu0 0.0
        %1421 = vmatpush1.msra.mxu0 %v1104
        %1422 = vmatprep.subr.mxu0 0.0
        %1423 = vmatpush1.msra.mxu0 %v1105
        %1424 = vmatprep.subr.mxu0 0.0
        %1425 = vmatpush1.msra.mxu0 %v1106
        %1426 = vmatprep.subr.mxu0 0.0
        %1427 = vmatpush1.msra.mxu0 %v1107
        %1428 = vmatprep.subr.mxu0 0.0
        %1429 = vmatpush1.msra.mxu0 %v1108
        %1430 = vmatprep.subr.mxu0 0.0
        %1431 = vmatpush1.msra.mxu0 %v1109
        %1432 = vmatprep.subr.mxu0 0.0
        %1433 = vmatpush1.msra.mxu0 %v1110
        %1434 = vmatprep.subr.mxu0 0.0
        %1435 = vmatpush1.msra.mxu0 %v1111
        %1436 = vmatprep.subr.mxu0 0.0
        %1437 = vmatpush1.msra.mxu0 %v1112
        %1438 = vmatprep.subr.mxu0 0.0
        %1439 = vmatpush1.msra.mxu0 %v1113
        %1440 = vmatprep.subr.mxu0 0.0
        %1441 = vmatpush1.msra.mxu0 %v1114
        %1442 = vmatprep.subr.mxu0 0.0
        %1443 = vmatpush1.msra.mxu0 0.0
        %1444 = vmatprep.subr.mxu0 0.0
        %1445 = vmatpush1.msra.mxu0 0.0
        %1446 = vmatprep.subr.mxu0 0.0
        %1447 = vmatpush1.msra.mxu0 0.0
        %1448 = vmatprep.subr.mxu0 0.0
        %1449 = vmatpush1.msra.mxu0 0.0
        %1450 = vmatprep.subr.mxu0 0.0
        %1451 = vmatpush1.msra.mxu0 0.0
        %1452 = vmatprep.subr.mxu0 0.0
        %1453 = vmatpush1.msra.mxu0 0.0
        %1454 = vmatprep.subr.mxu0 0.0
        %1455 = vmatpush1.msra.mxu0 0.0
        %1456 = vmatprep.subr.mxu0 0.0
        %1457 = vmatpush1.msra.mxu0 0.0
        %1458 = vmatprep.subr.mxu0 0.0
        %1459 = vmatpush1.msra.mxu0 0.0
        %1460 = vmatprep.subr.mxu0 0.0
        %1461 = vmatpush1.msra.mxu0 0.0
        %1462 = vmatprep.subr.mxu0 0.0
        %1463 = vmatpush1.msra.mxu0 0.0
        %1464 = vmatprep.subr.mxu0 0.0
        %1465 = vmatpush1.msra.mxu0 0.0
        %1466 = vmatprep.subr.mxu0 0.0
        %1467 = vmatpush1.msra.mxu0 0.0
        %1468 = vmatprep.subr.mxu0 0.0
        %1469 = vmatpush1.msra.mxu0 0.0
        %1470 = vmatprep.subr.mxu0 0.0
        %1471 = vmatpush1.msra.mxu0 0.0
        %1472 = vmatprep.subr.mxu0 0.0
        %1473 = vmatpush1.msra.mxu0 0.0
        %1474 = vmatprep.subr.mxu0 0.0
        %1475 = vmatpush1.msra.mxu0 0.0
        %1476 = vmatprep.subr.mxu0 0.0
        %1477 = vmatpush1.msra.mxu0 0.0
        %1478 = vmatprep.subr.mxu0 0.0
        %1479 = vmatpush1.msra.mxu0 0.0
        %1480 = vmatprep.subr.mxu0 0.0
        %1481 = vmatpush1.msra.mxu0 0.0
        %1482 = vmatprep.mubr.f32.mxu0 0.0
        %1483 = vmatmul.mubr.f32.gmra.mrb[0].mxu0 %v1407
        %v1484 = vpop.f32.mrb[0].mxu0
        %v1485 = vadd.f32 0.0, %v1484
        %v1486 = vpop.f32.mrb[0].mxu0
        %1487 = vmatprep.mubr.f32.mxu0 0.0
        %1488 = vmatmul.mubr.f32.gmra.mrb[0].mxu0 %v1410
        %v1489 = vpop.f32.mrb[0].mxu0
        %v1490 = vadd.f32 0.0, %v1489
        %v1491 = vpop.f32.mrb[0].mxu0
        %1492 = vmatprep.mubr.f32.mxu0 0.0
        %1493 = vmatmul.mubr.f32.gmra.mrb[0].mxu0 %v1413
        %v1494 = vpop.f32.mrb[0].mxu0
        %v1495 = vadd.f32 0.0, %v1494
        %v1496 = vpop.f32.mrb[0].mxu0
        %1497 = vmatprep.mubr.f32.mxu0 0.0
        %1498 = vmatmul.mubr.f32.gmra.mrb[0].mxu0 %v1416
        %v1499 = vpop.f32.mrb[0].mxu0
        %v1500 = vadd.f32 0.0, %v1499
        %v1501 = vpop.f32.mrb[0].mxu0
        %1502 = vdwg.mxu0
        %v1503 = vadd.f32 %v1084, %v1485
        %v1504 = vadd.f32 %v1089, %v1490
        %v1505 = vadd.f32 %v1094, %v1495
        %v1506 = vadd.f32 %v1099, %v1500
        %v1507 = vmax.f32 %v1200, %v1289
        %v1508 = vmax.f32 %v1201, %v1290
        %v1509 = vmax.f32 %v1202, %v1291
        %v1510 = vmax.f32 %v1203, %v1292
        %v1511 = vmax.f32 %v1397, %v1503
        %v1512 = vmax.f32 %v1398, %v1504
        %v1513 = vmax.f32 %v1399, %v1505
        %v1514 = vmax.f32 %v1400, %v1506
        %v1515 = vmax.f32 %v1507, %v1511
        %v1516 = vmax.f32 %v1508, %v1512
        %v1517 = vmax.f32 %v1509, %v1513
        %v1518 = vmax.f32 %v1510, %v1514
        %v1520 = vlaneseq
        %v1521 = vshrl.u32 %v1520, 7
        %v1522 = vsub.s32 0, %v1521
        %v1523 = vrot.slane %v281, %v1522
        %v1525 = vadd.f32 %v1515, %v1523
        %v1526 = vadd.f32 %v1516, %v1523
        %v1527 = vadd.f32 %v1517, %v1523
        %v1528 = vadd.f32 %v1518, %v1523
        %v1529 = vmax.f32 %v1525, 0.0
        %v1530 = vmax.f32 %v1526, 0.0
        %v1531 = vmax.f32 %v1527, 0.0
        %v1532 = vmax.f32 %v1528, 0.0
        %s1533 = smul.u32 %s283, 32
        %s1534 = scalar_lea.vmem %s279, %s1533
        %vm1535 = vcmask 130048
        %1536 = vst.msk [vmem:[%s1534] sm:$0xff] %vm1535, %v1529
        %1537 = vst.msk [vmem:[%s1534 + $0x8] sm:$0xff] %vm1535, %v1530
        %1538 = vst.msk [vmem:[%s1534 + $0x10] sm:$0xff] %vm1535, %v1531
        %vm1539 = vcmask 123904
        %1540 = vst.msk [vmem:[%s1534 + $0x18] sm:$0x3] %vm1539, %v1532
      $region41: #{simple_classifier_forward.6} parent=35 // loop_footer
        %s287 = sadd.s32 1, %s283
      $region42: #{simple_classifier_forward.6} parent=35 // loop_footer_branch
        %282 = sbr.rel target = $region38
      $region43: #{simple_classifier_forward.6} parent=35 // loop_exit
        _
      %s1541 = smul.u32 26, %s20
      %p1542 = scmp.lt.s32.totalorder %s19, 1
      %s1543 = scalar_select %p1542, %s19, 1
      %p1544 = scmp.lt.s32.totalorder %s1541, 25
      %s1545 = scalar_select %p1544, %s1541, 25
      %s1546 = smul.addr %s1545, 4
      %s1547 = smul.addr %s1543, 104
      %s1548 = sadd.s32 %s1546, %s1547
      %s1549 = smul.addr %s1548, 8
      %s1550 = scalar_lea.vmem %s4, %s1549
      // Predicated region
      $region44: #{simple_classifier_forward.6} parent=35 // pred_check
        %p1551 = pneg %p145
      $region45: #{simple_classifier_forward.6} parent=35 // pred_check_branch
        %1553 = sbr.rel (%p1551) target = $region47
      $region46: #{simple_classifier_forward.6} parent=35 // pred_region
        %s1554 = smul.u32 26, %s20
      $region47: #{simple_classifier_forward.6} parent=35 // pred_fallthru
        _
    $region36: #{simple_classifier_forward.6} parent=5 // pred_fallthru
      _
    %p1555 = scmp.le.s32.totalorder 2, %s10
    // Predicated region
    $region48: #{simple_classifier_forward.6} parent=5 // pred_check
      %p1556 = pneg %p1555
    $region49: #{simple_classifier_forward.6} parent=5 // pred_check_branch
      %1558 = sbr.rel (%p1556) target = $region51
    $region50: #{simple_classifier_forward.6} parent=5 // pred_region
      %s1559 = ssub.s32 %s10, 2
      // Predicated region
      $region52: #{simple_classifier_forward.6} parent=50 // pred_check
        %p1560 = pneg %p151
      $region53: #{simple_classifier_forward.6} parent=50 // pred_check_branch
        %1562 = sbr.rel (%p1560) target = $region55
      $region54: #{simple_classifier_forward.6} parent=50 // pred_region
        %s1563 = smul.u32 26, %s22
        %p1564 = scmp.lt.s32.totalorder %s21, 1
        %s1565 = scalar_select %p1564, %s21, 1
        %p1566 = scmp.lt.s32.totalorder %s1563, 25
        %s1567 = scalar_select %p1566, %s1563, 25
        %s1568 = smul.addr %s1567, 4
        %s1569 = smul.addr %s1565, 104
        %s1570 = sadd.s32 %s1568, %s1569
        %s1571 = smul.addr %s1570, 8
        %s1572 = scalar_lea.vmem %s4, %s1571
      $region55: #{simple_classifier_forward.6} parent=50 // pred_fallthru
        _
    $region51: #{simple_classifier_forward.6} parent=5 // pred_fallthru
      _
  $region6: #{simple_classifier_forward.6} parent=0 // loop_footer
    %s14 = sadd.s32 1, %s10
  $region7: #{simple_classifier_forward.6} parent=0 // loop_footer_branch
    %9 = sbr.rel target = $region3
  $region8: #{simple_classifier_forward.6} parent=0 // loop_exit
    _

// kernel: simple_classifier_forward.7
$region0: #{simple_classifier_forward.7}
  #allocation0 [shape = 'u32[]', space=smem, size = 0x4, offset = 0x4, fixed_abs, tag = 'smem constant byte address 0x4 - core index']
  #allocation1 [shape = 'u32[144,128]{1,0:T(1,128)}', space=vmem, size = 0x12000, scoped, tag = 'internal scratch']
  %s0 = inlined_call_operand.vmem [shape: f32[2,10816], index: 0, kind: input, shape index: {}]
  %s1 = inlined_call_operand.vmem [shape: f32[10816,120], index: 1, kind: input, shape index: {}]
  %s2 = inlined_call_operand.vmem [shape: f32[1,120], index: 2, kind: input, shape index: {}]
  %s3 = inlined_call_operand.vmem [shape: f32[120,84], index: 3, kind: input, shape index: {}]
  %s4 = inlined_call_operand.vmem [shape: f32[1,84], index: 4, kind: input, shape index: {}]
  %s5 = inlined_call_operand.vmem [shape: f32[84,21], index: 5, kind: input, shape index: {}]
  %s6 = inlined_call_operand.vmem [shape: f32[1,21], index: 6, kind: input, shape index: {}]
  %s7 = inlined_call_operand.hbm [shape: f32[2,21], index: 7, kind: output, shape index: {}]
  %s8 = sld [smem:[#allocation0]]
  $region38: #{simple_classifier_forward.7} parent=0
    _
  %s10 = ssub.s32 1, %s8
  %s11 = scalar_select 0, %s10, %s8
  $region1: #{simple_classifier_forward.7} parent=0
    #allocation2 [shape = 'u8[1024]{0}', space=vmem, size = 0x400, scoped, tag = 'output window, operand 0, single buffered']
    #allocation3 [shape = 's32[1]{0}', space=sflag, size = 0x4, scoped, tag = 'scoped memory for simple_classifier_forward.7']
    %12 = vsyncpa [#allocation3], 0
    // Predicated region
    $region2: #{simple_classifier_forward.7} parent=1 // pred_check
      _
    $region3: #{simple_classifier_forward.7} parent=1 // pred_check_branch
      %14 = sbr.rel (0) target = $region5
    $region4: #{simple_classifier_forward.7} parent=1 // pred_region
      _
    $region5: #{simple_classifier_forward.7} parent=1 // pred_fallthru
      _
    // Predicated region
    $region6: #{simple_classifier_forward.7} parent=1 // pred_check
      _
    $region7: #{simple_classifier_forward.7} parent=1 // pred_check_branch
      %16 = sbr.rel (0) target = $region9
    $region8: #{simple_classifier_forward.7} parent=1 // pred_region
      _
    $region9: #{simple_classifier_forward.7} parent=1 // pred_fallthru
      _
    // Predicated region
    $region10: #{simple_classifier_forward.7} parent=1 // pred_check
      _
    $region11: #{simple_classifier_forward.7} parent=1 // pred_check_branch
      %18 = sbr.rel (0) target = $region13
    $region12: #{simple_classifier_forward.7} parent=1 // pred_region
      _
    $region13: #{simple_classifier_forward.7} parent=1 // pred_fallthru
      _
    // Predicated region
    $region14: #{simple_classifier_forward.7} parent=1 // pred_check
      _
    $region15: #{simple_classifier_forward.7} parent=1 // pred_check_branch
      %20 = sbr.rel (0) target = $region17
    $region16: #{simple_classifier_forward.7} parent=1 // pred_region
      _
    $region17: #{simple_classifier_forward.7} parent=1 // pred_fallthru
      _
    // Predicated region
    $region18: #{simple_classifier_forward.7} parent=1 // pred_check
      _
    $region19: #{simple_classifier_forward.7} parent=1 // pred_check_branch
      %22 = sbr.rel (0) target = $region21
    $region20: #{simple_classifier_forward.7} parent=1 // pred_region
      _
    $region21: #{simple_classifier_forward.7} parent=1 // pred_fallthru
      _
    // Predicated region
    $region22: #{simple_classifier_forward.7} parent=1 // pred_check
      _
    $region23: #{simple_classifier_forward.7} parent=1 // pred_check_branch
      %24 = sbr.rel (0) target = $region25
    $region24: #{simple_classifier_forward.7} parent=1 // pred_region
      _
    $region25: #{simple_classifier_forward.7} parent=1 // pred_fallthru
      _
    // Predicated region
    $region26: #{simple_classifier_forward.7} parent=1 // pred_check
      _
    $region27: #{simple_classifier_forward.7} parent=1 // pred_check_branch
      %26 = sbr.rel (0) target = $region29
    $region28: #{simple_classifier_forward.7} parent=1 // pred_region
      _
    $region29: #{simple_classifier_forward.7} parent=1 // pred_fallthru
      _
    %v27 = vld [vmem:[%s0] sm:$0xff]
    %v28 = vld [vmem:[%s0 + $0x8] sm:$0xff]
    %v29 = vld [vmem:[%s0 + $0x10] sm:$0xff]
    %v30 = vld [vmem:[%s0 + $0x18] sm:$0xff]
    %v31 = vld [vmem:[%s0 + $0x20] sm:$0xff]
    %v32 = vld [vmem:[%s0 + $0x28] sm:$0xff]
    %v33 = vld [vmem:[%s0 + $0x30] sm:$0xff]
    %v34 = vld [vmem:[%s0 + $0x38] sm:$0xff]
    %v35 = vld [vmem:[%s0 + $0x40] sm:$0xff]
    %v36 = vld [vmem:[%s0 + $0x48] sm:$0xff]
    %v37 = vld [vmem:[%s0 + $0x50] sm:$0xff]
    %v38 = vld [vmem:[%s0 + $0x58] sm:$0xff]
    %v39 = vld [vmem:[%s0 + $0x60] sm:$0xff]
    %v40 = vld [vmem:[%s0 + $0x68] sm:$0xff]
    %v41 = vld [vmem:[%s0 + $0x70] sm:$0xff]
    %v42 = vld [vmem:[%s0 + $0x78] sm:$0xff]
    %v43 = vld [vmem:[%s0 + $0x80] sm:$0xff]
    %v44 = vld [vmem:[%s0 + $0x88] sm:$0xff]
    %v45 = vld [vmem:[%s0 + $0x90] sm:$0xff]
    %v46 = vld [vmem:[%s0 + $0x98] sm:$0xff]
    %v47 = vld [vmem:[%s0 + $0xa0] sm:$0xff]
    %v48 = vld [vmem:[%s0 + $0xa8] sm:$0x3]
    %v49 = vld [vmem:[%s1] sm:$0xff]
    %v50 = vld [vmem:[%s1 + $0x8] sm:$0xff]
    %v51 = vld [vmem:[%s1 + $0x10] sm:$0xff]
    %v52 = vld [vmem:[%s1 + $0x18] sm:$0xff]
    %v53 = vld [vmem:[%s1 + $0x20] sm:$0xff]
    %v54 = vld [vmem:[%s1 + $0x28] sm:$0xff]
    %v55 = vld [vmem:[%s1 + $0x30] sm:$0xff]
    %v56 = vld [vmem:[%s1 + $0x38] sm:$0xff]
    %v57 = vld [vmem:[%s1 + $0x40] sm:$0xff]
    %v58 = vld [vmem:[%s1 + $0x48] sm:$0xff]
    %v59 = vld [vmem:[%s1 + $0x50] sm:$0xff]
    %v60 = vld [vmem:[%s1 + $0x58] sm:$0xff]
    %v61 = vld [vmem:[%s1 + $0x60] sm:$0xff]
    %v62 = vld [vmem:[%s1 + $0x68] sm:$0xff]
    %v63 = vld [vmem:[%s1 + $0x70] sm:$0xff]
    %v64 = vld [vmem:[%s1 + $0x78] sm:$0xff]
    %v65 = vld [vmem:[%s1 + $0x80] sm:$0xff]
    %v66 = vld [vmem:[%s1 + $0x88] sm:$0xff]
    %v67 = vld [vmem:[%s1 + $0x90] sm:$0xff]
    %v68 = vld [vmem:[%s1 + $0x98] sm:$0xff]
    %v69 = vld [vmem:[%s1 + $0xa0] sm:$0xff]
    %v70 = vld [vmem:[%s1 + $0xa8] sm:$0xff]
    %v71 = vld [vmem:[%s1 + $0xb0] sm:$0xff]
    %v72 = vld [vmem:[%s1 + $0xb8] sm:$0xff]
    %v73 = vld [vmem:[%s1 + $0xc0] sm:$0xff]
    %v74 = vld [vmem:[%s1 + $0xc8] sm:$0xff]
    %v75 = vld [vmem:[%s1 + $0xd0] sm:$0xff]
    %v76 = vld [vmem:[%s1 + $0xd8] sm:$0xff]
    %v77 = vld [vmem:[%s1 + $0xe0] sm:$0xff]
    %v78 = vld [vmem:[%s1 + $0xe8] sm:$0xff]
    %v79 = vld [vmem:[%s1 + $0xf0] sm:$0xff]
    %v80 = vld [vmem:[%s1 + $0xf8] sm:$0xff]
    %v81 = vld [vmem:[%s1 + $0x100] sm:$0xff]
    %v82 = vld [vmem:[%s1 + $0x108] sm:$0xff]
    %v83 = vld [vmem:[%s1 + $0x110] sm:$0xff]
    %v84 = vld [vmem:[%s1 + $0x118] sm:$0xff]
    %v85 = vld [vmem:[%s1 + $0x120] sm:$0xff]
    %v86 = vld [vmem:[%s1 + $0x128] sm:$0xff]
    %v87 = vld [vmem:[%s1 + $0x130] sm:$0xff]
    %v88 = vld [vmem:[%s1 + $0x138] sm:$0xff]
    %v89 = vld [vmem:[%s1 + $0x140] sm:$0xff]
    %v90 = vld [vmem:[%s1 + $0x148] sm:$0xff]
    %v91 = vld [vmem:[%s1 + $0x150] sm:$0xff]
    %v92 = vld [vmem:[%s1 + $0x158] sm:$0xff]
    %v93 = vld [vmem:[%s1 + $0x160] sm:$0xff]
    %v94 = vld [vmem:[%s1 + $0x168] sm:$0xff]
    %v95 = vld [vmem:[%s1 + $0x170] sm:$0xff]
    %v96 = vld [vmem:[%s1 + $0x178] sm:$0xff]
    %v97 = vld [vmem:[%s1 + $0x180] sm:$0xff]
    %v98 = vld [vmem:[%s1 + $0x188] sm:$0xff]
    %v99 = vld [vmem:[%s1 + $0x190] sm:$0xff]
    %v100 = vld [vmem:[%s1 + $0x198] sm:$0xff]
    %v101 = vld [vmem:[%s1 + $0x1a0] sm:$0xff]
    %v102 = vld [vmem:[%s1 + $0x1a8] sm:$0xff]
    %v103 = vld [vmem:[%s1 + $0x1b0] sm:$0xff]
    %v104 = vld [vmem:[%s1 + $0x1b8] sm:$0xff]
    %v105 = vld [vmem:[%s1 + $0x1c0] sm:$0xff]
    %v106 = vld [vmem:[%s1 + $0x1c8] sm:$0xff]
    %v107 = vld [vmem:[%s1 + $0x1d0] sm:$0xff]
    %v108 = vld [vmem:[%s1 + $0x1d8] sm:$0xff]
    %v109 = vld [vmem:[%s1 + $0x1e0] sm:$0xff]
    %v110 = vld [vmem:[%s1 + $0x1e8] sm:$0xff]
    %v111 = vld [vmem:[%s1 + $0x1f0] sm:$0xff]
    %v112 = vld [vmem:[%s1 + $0x1f8] sm:$0xff]
    %v113 = vld [vmem:[%s1 + $0x200] sm:$0xff]
    %v114 = vld [vmem:[%s1 + $0x208] sm:$0xff]
    %v115 = vld [vmem:[%s1 + $0x210] sm:$0xff]
    %v116 = vld [vmem:[%s1 + $0x218] sm:$0xff]
    %v117 = vld [vmem:[%s1 + $0x220] sm:$0xff]
    %v118 = vld [vmem:[%s1 + $0x228] sm:$0xff]
    %v119 = vld [vmem:[%s1 + $0x230] sm:$0xff]
    %v120 = vld [vmem:[%s1 + $0x238] sm:$0xff]
    %v121 = vld [vmem:[%s1 + $0x240] sm:$0xff]
    %v122 = vld [vmem:[%s1 + $0x248] sm:$0xff]
    %v123 = vld [vmem:[%s1 + $0x250] sm:$0xff]
    %v124 = vld [vmem:[%s1 + $0x258] sm:$0xff]
    %v125 = vld [vmem:[%s1 + $0x260] sm:$0xff]
    %v126 = vld [vmem:[%s1 + $0x268] sm:$0xff]
    %v127 = vld [vmem:[%s1 + $0x270] sm:$0xff]
    %v128 = vld [vmem:[%s1 + $0x278] sm:$0xff]
    %v129 = vld [vmem:[%s1 + $0x280] sm:$0xff]
    %v130 = vld [vmem:[%s1 + $0x288] sm:$0xff]
    %v131 = vld [vmem:[%s1 + $0x290] sm:$0xff]
    %v132 = vld [vmem:[%s1 + $0x298] sm:$0xff]
    %v133 = vld [vmem:[%s1 + $0x2a0] sm:$0xff]
    %v134 = vld [vmem:[%s1 + $0x2a8] sm:$0xff]
    %v135 = vld [vmem:[%s1 + $0x2b0] sm:$0xff]
    %v136 = vld [vmem:[%s1 + $0x2b8] sm:$0xff]
    %v137 = vld [vmem:[%s1 + $0x2c0] sm:$0xff]
    %v138 = vld [vmem:[%s1 + $0x2c8] sm:$0xff]
    %v139 = vld [vmem:[%s1 + $0x2d0] sm:$0xff]
    %v140 = vld [vmem:[%s1 + $0x2d8] sm:$0xff]
    %v141 = vld [vmem:[%s1 + $0x2e0] sm:$0xff]
    %v142 = vld [vmem:[%s1 + $0x2e8] sm:$0xff]
    %v143 = vld [vmem:[%s1 + $0x2f0] sm:$0xff]
    %v144 = vld [vmem:[%s1 + $0x2f8] sm:$0xff]
    %v145 = vld [vmem:[%s1 + $0x300] sm:$0xff]
    %v146 = vld [vmem:[%s1 + $0x308] sm:$0xff]
    %v147 = vld [vmem:[%s1 + $0x310] sm:$0xff]
    %v148 = vld [vmem:[%s1 + $0x318] sm:$0xff]
    %v149 = vld [vmem:[%s1 + $0x320] sm:$0xff]
    %v150 = vld [vmem:[%s1 + $0x328] sm:$0xff]
    %v151 = vld [vmem:[%s1 + $0x330] sm:$0xff]
    %v152 = vld [vmem:[%s1 + $0x338] sm:$0xff]
    %v153 = vld [vmem:[%s1 + $0x340] sm:$0xff]
    %v154 = vld [vmem:[%s1 + $0x348] sm:$0xff]
    %v155 = vld [vmem:[%s1 + $0x350] sm:$0xff]
    %v156 = vld [vmem:[%s1 + $0x358] sm:$0xff]
    %v157 = vld [vmem:[%s1 + $0x360] sm:$0xff]
    %v158 = vld [vmem:[%s1 + $0x368] sm:$0xff]
    %v159 = vld [vmem:[%s1 + $0x370] sm:$0xff]
    %v160 = vld [vmem:[%s1 + $0x378] sm:$0xff]
    %v161 = vld [vmem:[%s1 + $0x380] sm:$0xff]
    %v162 = vld [vmem:[%s1 + $0x388] sm:$0xff]
    %v163 = vld [vmem:[%s1 + $0x390] sm:$0xff]
    %v164 = vld [vmem:[%s1 + $0x398] sm:$0xff]
    %v165 = vld [vmem:[%s1 + $0x3a0] sm:$0xff]
    %v166 = vld [vmem:[%s1 + $0x3a8] sm:$0xff]
    %v167 = vld [vmem:[%s1 + $0x3b0] sm:$0xff]
    %v168 = vld [vmem:[%s1 + $0x3b8] sm:$0xff]
    %v169 = vld [vmem:[%s1 + $0x3c0] sm:$0xff]
    %v170 = vld [vmem:[%s1 + $0x3c8] sm:$0xff]
    %v171 = vld [vmem:[%s1 + $0x3d0] sm:$0xff]
    %v172 = vld [vmem:[%s1 + $0x3d8] sm:$0xff]
    %v173 = vld [vmem:[%s1 + $0x3e0] sm:$0xff]
    %v174 = vld [vmem:[%s1 + $0x3e8] sm:$0xff]
    %v175 = vld [vmem:[%s1 + $0x3f0] sm:$0xff]
    %v176 = vld [vmem:[%s1 + $0x3f8] sm:$0xff]
    %v177 = vld [vmem:[%s1 + $0x400] sm:$0xff]
    %v178 = vld [vmem:[%s1 + $0x408] sm:$0xff]
    %v179 = vld [vmem:[%s1 + $0x410] sm:$0xff]
    %v180 = vld [vmem:[%s1 + $0x418] sm:$0xff]
    %v181 = vld [vmem:[%s1 + $0x420] sm:$0xff]
    %v182 = vld [vmem:[%s1 + $0x428] sm:$0xff]
    %v183 = vld [vmem:[%s1 + $0x430] sm:$0xff]
    %v184 = vld [vmem:[%s1 + $0x438] sm:$0xff]
    %v185 = vld [vmem:[%s1 + $0x440] sm:$0xff]
    %v186 = vld [vmem:[%s1 + $0x448] sm:$0xff]
    %v187 = vld [vmem:[%s1 + $0x450] sm:$0xff]
    %v188 = vld [vmem:[%s1 + $0x458] sm:$0xff]
    %v189 = vld [vmem:[%s1 + $0x460] sm:$0xff]
    %v190 = vld [vmem:[%s1 + $0x468] sm:$0xff]
    %v191 = vld [vmem:[%s1 + $0x470] sm:$0xff]
    %v192 = vld [vmem:[%s1 + $0x478] sm:$0xff]
    %v193 = vld [vmem:[%s1 + $0x480] sm:$0xff]
    %v194 = vld [vmem:[%s1 + $0x488] sm:$0xff]
    %v195 = vld [vmem:[%s1 + $0x490] sm:$0xff]
    %v196 = vld [vmem:[%s1 + $0x498] sm:$0xff]
    %v197 = vld [vmem:[%s1 + $0x4a0] sm:$0xff]
    %v198 = vld [vmem:[%s1 + $0x4a8] sm:$0xff]
    %v199 = vld [vmem:[%s1 + $0x4b0] sm:$0xff]
    %v200 = vld [vmem:[%s1 + $0x4b8] sm:$0xff]
    %v201 = vld [vmem:[%s1 + $0x4c0] sm:$0xff]
    %v202 = vld [vmem:[%s1 + $0x4c8] sm:$0xff]
    %v203 = vld [vmem:[%s1 + $0x4d0] sm:$0xff]
    %v204 = vld [vmem:[%s1 + $0x4d8] sm:$0xff]
    %v205 = vld [vmem:[%s1 + $0x4e0] sm:$0xff]
    %v206 = vld [vmem:[%s1 + $0x4e8] sm:$0xff]
    %v207 = vld [vmem:[%s1 + $0x4f0] sm:$0xff]
    %v208 = vld [vmem:[%s1 + $0x4f8] sm:$0xff]
    %v209 = vld [vmem:[%s1 + $0x500] sm:$0xff]
    %v210 = vld [vmem:[%s1 + $0x508] sm:$0xff]
    %v211 = vld [vmem:[%s1 + $0x510] sm:$0xff]
    %v212 = vld [vmem:[%s1 + $0x518] sm:$0xff]
    %v213 = vld [vmem:[%s1 + $0x520] sm:$0xff]
    %v214 = vld [vmem:[%s1 + $0x528] sm:$0xff]
    %v215 = vld [vmem:[%s1 + $0x530] sm:$0xff]
    %v216 = vld [vmem:[%s1 + $0x538] sm:$0xff]
    %v217 = vld [vmem:[%s1 + $0x540] sm:$0xff]
    %v218 = vld [vmem:[%s1 + $0x548] sm:$0xff]
    %v219 = vld [vmem:[%s1 + $0x550] sm:$0xff]
    %v220 = vld [vmem:[%s1 + $0x558] sm:$0xff]
    %v221 = vld [vmem:[%s1 + $0x560] sm:$0xff]
    %v222 = vld [vmem:[%s1 + $0x568] sm:$0xff]
    %v223 = vld [vmem:[%s1 + $0x570] sm:$0xff]
    %v224 = vld [vmem:[%s1 + $0x578] sm:$0xff]
    %v225 = vld [vmem:[%s1 + $0x580] sm:$0xff]
    %v226 = vld [vmem:[%s1 + $0x588] sm:$0xff]
    %v227 = vld [vmem:[%s1 + $0x590] sm:$0xff]
    %v228 = vld [vmem:[%s1 + $0x598] sm:$0xff]
    %v229 = vld [vmem:[%s1 + $0x5a0] sm:$0xff]
    %v230 = vld [vmem:[%s1 + $0x5a8] sm:$0xff]
    %v231 = vld [vmem:[%s1 + $0x5b0] sm:$0xff]
    %v232 = vld [vmem:[%s1 + $0x5b8] sm:$0xff]
    %v233 = vld [vmem:[%s1 + $0x5c0] sm:$0xff]
    %v234 = vld [vmem:[%s1 + $0x5c8] sm:$0xff]
    %v235 = vld [vmem:[%s1 + $0x5d0] sm:$0xff]
    %v236 = vld [vmem:[%s1 + $0x5d8] sm:$0xff]
    %v237 = vld [vmem:[%s1 + $0x5e0] sm:$0xff]
    %v238 = vld [vmem:[%s1 + $0x5e8] sm:$0xff]
    %v239 = vld [vmem:[%s1 + $0x5f0] sm:$0xff]
    %v240 = vld [vmem:[%s1 + $0x5f8] sm:$0xff]
    %v241 = vld [vmem:[%s1 + $0x600] sm:$0xff]
    %v242 = vld [vmem:[%s1 + $0x608] sm:$0xff]
    %v243 = vld [vmem:[%s1 + $0x610] sm:$0xff]
    %v244 = vld [vmem:[%s1 + $0x618] sm:$0xff]
    %v245 = vld [vmem:[%s1 + $0x620] sm:$0xff]
    %v246 = vld [vmem:[%s1 + $0x628] sm:$0xff]
    %v247 = vld [vmem:[%s1 + $0x630] sm:$0xff]
    %v248 = vld [vmem:[%s1 + $0x638] sm:$0xff]
    %v249 = vld [vmem:[%s1 + $0x640] sm:$0xff]
    %v250 = vld [vmem:[%s1 + $0x648] sm:$0xff]
    %v251 = vld [vmem:[%s1 + $0x650] sm:$0xff]
    %v252 = vld [vmem:[%s1 + $0x658] sm:$0xff]
    %v253 = vld [vmem:[%s1 + $0x660] sm:$0xff]
    %v254 = vld [vmem:[%s1 + $0x668] sm:$0xff]
    %v255 = vld [vmem:[%s1 + $0x670] sm:$0xff]
    %v256 = vld [vmem:[%s1 + $0x678] sm:$0xff]
    %v257 = vld [vmem:[%s1 + $0x680] sm:$0xff]
    %v258 = vld [vmem:[%s1 + $0x688] sm:$0xff]
    %v259 = vld [vmem:[%s1 + $0x690] sm:$0xff]
    %v260 = vld [vmem:[%s1 + $0x698] sm:$0xff]
    %v261 = vld [vmem:[%s1 + $0x6a0] sm:$0xff]
    %v262 = vld [vmem:[%s1 + $0x6a8] sm:$0xff]
    %v263 = vld [vmem:[%s1 + $0x6b0] sm:$0xff]
    %v264 = vld [vmem:[%s1 + $0x6b8] sm:$0xff]
    %v265 = vld [vmem:[%s1 + $0x6c0] sm:$0xff]
    %v266 = vld [vmem:[%s1 + $0x6c8] sm:$0xff]
    %v267 = vld [vmem:[%s1 + $0x6d0] sm:$0xff]
    %v268 = vld [vmem:[%s1 + $0x6d8] sm:$0xff]
    %v269 = vld [vmem:[%s1 + $0x6e0] sm:$0xff]
    %v270 = vld [vmem:[%s1 + $0x6e8] sm:$0xff]
    %v271 = vld [vmem:[%s1 + $0x6f0] sm:$0xff]
    %v272 = vld [vmem:[%s1 + $0x6f8] sm:$0xff]
    %v273 = vld [vmem:[%s1 + $0x700] sm:$0xff]
    %v274 = vld [vmem:[%s1 + $0x708] sm:$0xff]
    %v275 = vld [vmem:[%s1 + $0x710] sm:$0xff]
    %v276 = vld [vmem:[%s1 + $0x718] sm:$0xff]
    %v277 = vld [vmem:[%s1 + $0x720] sm:$0xff]
    %v278 = vld [vmem:[%s1 + $0x728] sm:$0xff]
    %v279 = vld [vmem:[%s1 + $0x730] sm:$0xff]
    %v280 = vld [vmem:[%s1 + $0x738] sm:$0xff]
    %v281 = vld [vmem:[%s1 + $0x740] sm:$0xff]
    %v282 = vld [vmem:[%s1 + $0x748] sm:$0xff]
    %v283 = vld [vmem:[%s1 + $0x750] sm:$0xff]
    %v284 = vld [vmem:[%s1 + $0x758] sm:$0xff]
    %v285 = vld [vmem:[%s1 + $0x760] sm:$0xff]
    %v286 = vld [vmem:[%s1 + $0x768] sm:$0xff]
    %v287 = vld [vmem:[%s1 + $0x770] sm:$0xff]
    %v288 = vld [vmem:[%s1 + $0x778] sm:$0xff]
    %v289 = vld [vmem:[%s1 + $0x780] sm:$0xff]
    %v290 = vld [vmem:[%s1 + $0x788] sm:$0xff]
    %v291 = vld [vmem:[%s1 + $0x790] sm:$0xff]
    %v292 = vld [vmem:[%s1 + $0x798] sm:$0xff]
    %v293 = vld [vmem:[%s1 + $0x7a0] sm:$0xff]
    %v294 = vld [vmem:[%s1 + $0x7a8] sm:$0xff]
    %v295 = vld [vmem:[%s1 + $0x7b0] sm:$0xff]
    %v296 = vld [vmem:[%s1 + $0x7b8] sm:$0xff]
    %v297 = vld [vmem:[%s1 + $0x7c0] sm:$0xff]
    %v298 = vld [vmem:[%s1 + $0x7c8] sm:$0xff]
    %v299 = vld [vmem:[%s1 + $0x7d0] sm:$0xff]
    %v300 = vld [vmem:[%s1 + $0x7d8] sm:$0xff]
    %v301 = vld [vmem:[%s1 + $0x7e0] sm:$0xff]
    %v302 = vld [vmem:[%s1 + $0x7e8] sm:$0xff]
    %v303 = vld [vmem:[%s1 + $0x7f0] sm:$0xff]
    %v304 = vld [vmem:[%s1 + $0x7f8] sm:$0xff]
    %v305 = vld [vmem:[%s1 + $0x800] sm:$0xff]
    %v306 = vld [vmem:[%s1 + $0x808] sm:$0xff]
    %v307 = vld [vmem:[%s1 + $0x810] sm:$0xff]
    %v308 = vld [vmem:[%s1 + $0x818] sm:$0xff]
    %v309 = vld [vmem:[%s1 + $0x820] sm:$0xff]
    %v310 = vld [vmem:[%s1 + $0x828] sm:$0xff]
    %v311 = vld [vmem:[%s1 + $0x830] sm:$0xff]
    %v312 = vld [vmem:[%s1 + $0x838] sm:$0xff]
    %v313 = vld [vmem:[%s1 + $0x840] sm:$0xff]
    %v314 = vld [vmem:[%s1 + $0x848] sm:$0xff]
    %v315 = vld [vmem:[%s1 + $0x850] sm:$0xff]
    %v316 = vld [vmem:[%s1 + $0x858] sm:$0xff]
    %v317 = vld [vmem:[%s1 + $0x860] sm:$0xff]
    %v318 = vld [vmem:[%s1 + $0x868] sm:$0xff]
    %v319 = vld [vmem:[%s1 + $0x870] sm:$0xff]
    %v320 = vld [vmem:[%s1 + $0x878] sm:$0xff]
    %v321 = vld [vmem:[%s1 + $0x880] sm:$0xff]
    %v322 = vld [vmem:[%s1 + $0x888] sm:$0xff]
    %v323 = vld [vmem:[%s1 + $0x890] sm:$0xff]
    %v324 = vld [vmem:[%s1 + $0x898] sm:$0xff]
    %v325 = vld [vmem:[%s1 + $0x8a0] sm:$0xff]
    %v326 = vld [vmem:[%s1 + $0x8a8] sm:$0xff]
    %v327 = vld [vmem:[%s1 + $0x8b0] sm:$0xff]
    %v328 = vld [vmem:[%s1 + $0x8b8] sm:$0xff]
    %v329 = vld [vmem:[%s1 + $0x8c0] sm:$0xff]
    %v330 = vld [vmem:[%s1 + $0x8c8] sm:$0xff]
    %v331 = vld [vmem:[%s1 + $0x8d0] sm:$0xff]
    %v332 = vld [vmem:[%s1 + $0x8d8] sm:$0xff]
    %v333 = vld [vmem:[%s1 + $0x8e0] sm:$0xff]
    %v334 = vld [vmem:[%s1 + $0x8e8] sm:$0xff]
    %v335 = vld [vmem:[%s1 + $0x8f0] sm:$0xff]
    %v336 = vld [vmem:[%s1 + $0x8f8] sm:$0xff]
    %v337 = vld [vmem:[%s1 + $0x900] sm:$0xff]
    %v338 = vld [vmem:[%s1 + $0x908] sm:$0xff]
    %v339 = vld [vmem:[%s1 + $0x910] sm:$0xff]
    %v340 = vld [vmem:[%s1 + $0x918] sm:$0xff]
    %v341 = vld [vmem:[%s1 + $0x920] sm:$0xff]
    %v342 = vld [vmem:[%s1 + $0x928] sm:$0xff]
    %v343 = vld [vmem:[%s1 + $0x930] sm:$0xff]
    %v344 = vld [vmem:[%s1 + $0x938] sm:$0xff]
    %v345 = vld [vmem:[%s1 + $0x940] sm:$0xff]
    %v346 = vld [vmem:[%s1 + $0x948] sm:$0xff]
    %v347 = vld [vmem:[%s1 + $0x950] sm:$0xff]
    %v348 = vld [vmem:[%s1 + $0x958] sm:$0xff]
    %v349 = vld [vmem:[%s1 + $0x960] sm:$0xff]
    %v350 = vld [vmem:[%s1 + $0x968] sm:$0xff]
    %v351 = vld [vmem:[%s1 + $0x970] sm:$0xff]
    %v352 = vld [vmem:[%s1 + $0x978] sm:$0xff]
    %v353 = vld [vmem:[%s1 + $0x980] sm:$0xff]
    %v354 = vld [vmem:[%s1 + $0x988] sm:$0xff]
    %v355 = vld [vmem:[%s1 + $0x990] sm:$0xff]
    %v356 = vld [vmem:[%s1 + $0x998] sm:$0xff]
    %v357 = vld [vmem:[%s1 + $0x9a0] sm:$0xff]
    %v358 = vld [vmem:[%s1 + $0x9a8] sm:$0xff]
    %v359 = vld [vmem:[%s1 + $0x9b0] sm:$0xff]
    %v360 = vld [vmem:[%s1 + $0x9b8] sm:$0xff]
    %v361 = vld [vmem:[%s1 + $0x9c0] sm:$0xff]
    %v362 = vld [vmem:[%s1 + $0x9c8] sm:$0xff]
    %v363 = vld [vmem:[%s1 + $0x9d0] sm:$0xff]
    %v364 = vld [vmem:[%s1 + $0x9d8] sm:$0xff]
    %v365 = vld [vmem:[%s1 + $0x9e0] sm:$0xff]
    %v366 = vld [vmem:[%s1 + $0x9e8] sm:$0xff]
    %v367 = vld [vmem:[%s1 + $0x9f0] sm:$0xff]
    %v368 = vld [vmem:[%s1 + $0x9f8] sm:$0xff]
    %v369 = vld [vmem:[%s1 + $0xa00] sm:$0xff]
    %v370 = vld [vmem:[%s1 + $0xa08] sm:$0xff]
    %v371 = vld [vmem:[%s1 + $0xa10] sm:$0xff]
    %v372 = vld [vmem:[%s1 + $0xa18] sm:$0xff]
    %v373 = vld [vmem:[%s1 + $0xa20] sm:$0xff]
    %v374 = vld [vmem:[%s1 + $0xa28] sm:$0xff]
    %v375 = vld [vmem:[%s1 + $0xa30] sm:$0xff]
    %v376 = vld [vmem:[%s1 + $0xa38] sm:$0xff]
    %v377 = vld [vmem:[%s1 + $0xa40] sm:$0xff]
    %v378 = vld [vmem:[%s1 + $0xa48] sm:$0xff]
    %v379 = vld [vmem:[%s1 + $0xa50] sm:$0xff]
    %v380 = vld [vmem:[%s1 + $0xa58] sm:$0xff]
    %v381 = vld [vmem:[%s1 + $0xa60] sm:$0xff]
    %v382 = vld [vmem:[%s1 + $0xa68] sm:$0xff]
    %v383 = vld [vmem:[%s1 + $0xa70] sm:$0xff]
    %v384 = vld [vmem:[%s1 + $0xa78] sm:$0xff]
    %v385 = vld [vmem:[%s1 + $0xa80] sm:$0xff]
    %v386 = vld [vmem:[%s1 + $0xa88] sm:$0xff]
    %v387 = vld [vmem:[%s1 + $0xa90] sm:$0xff]
    %v388 = vld [vmem:[%s1 + $0xa98] sm:$0xff]
    %v389 = vld [vmem:[%s1 + $0xaa0] sm:$0xff]
    %v390 = vld [vmem:[%s1 + $0xaa8] sm:$0xff]
    %v391 = vld [vmem:[%s1 + $0xab0] sm:$0xff]
    %v392 = vld [vmem:[%s1 + $0xab8] sm:$0xff]
    %v393 = vld [vmem:[%s1 + $0xac0] sm:$0xff]
    %v394 = vld [vmem:[%s1 + $0xac8] sm:$0xff]
    %v395 = vld [vmem:[%s1 + $0xad0] sm:$0xff]
    %v396 = vld [vmem:[%s1 + $0xad8] sm:$0xff]
    %v397 = vld [vmem:[%s1 + $0xae0] sm:$0xff]
    %v398 = vld [vmem:[%s1 + $0xae8] sm:$0xff]
    %v399 = vld [vmem:[%s1 + $0xaf0] sm:$0xff]
    %v400 = vld [vmem:[%s1 + $0xaf8] sm:$0xff]
    %v401 = vld [vmem:[%s1 + $0xb00] sm:$0xff]
    %v402 = vld [vmem:[%s1 + $0xb08] sm:$0xff]
    %v403 = vld [vmem:[%s1 + $0xb10] sm:$0xff]
    %v404 = vld [vmem:[%s1 + $0xb18] sm:$0xff]
    %v405 = vld [vmem:[%s1 + $0xb20] sm:$0xff]
    %v406 = vld [vmem:[%s1 + $0xb28] sm:$0xff]
    %v407 = vld [vmem:[%s1 + $0xb30] sm:$0xff]
    %v408 = vld [vmem:[%s1 + $0xb38] sm:$0xff]
    %v409 = vld [vmem:[%s1 + $0xb40] sm:$0xff]
    %v410 = vld [vmem:[%s1 + $0xb48] sm:$0xff]
    %v411 = vld [vmem:[%s1 + $0xb50] sm:$0xff]
    %v412 = vld [vmem:[%s1 + $0xb58] sm:$0xff]
    %v413 = vld [vmem:[%s1 + $0xb60] sm:$0xff]
    %v414 = vld [vmem:[%s1 + $0xb68] sm:$0xff]
    %v415 = vld [vmem:[%s1 + $0xb70] sm:$0xff]
    %v416 = vld [vmem:[%s1 + $0xb78] sm:$0xff]
    %v417 = vld [vmem:[%s1 + $0xb80] sm:$0xff]
    %v418 = vld [vmem:[%s1 + $0xb88] sm:$0xff]
    %v419 = vld [vmem:[%s1 + $0xb90] sm:$0xff]
    %v420 = vld [vmem:[%s1 + $0xb98] sm:$0xff]
    %v421 = vld [vmem:[%s1 + $0xba0] sm:$0xff]
    %v422 = vld [vmem:[%s1 + $0xba8] sm:$0xff]
    %v423 = vld [vmem:[%s1 + $0xbb0] sm:$0xff]
    %v424 = vld [vmem:[%s1 + $0xbb8] sm:$0xff]
    %v425 = vld [vmem:[%s1 + $0xbc0] sm:$0xff]
    %v426 = vld [vmem:[%s1 + $0xbc8] sm:$0xff]
    %v427 = vld [vmem:[%s1 + $0xbd0] sm:$0xff]
    %v428 = vld [vmem:[%s1 + $0xbd8] sm:$0xff]
    %v429 = vld [vmem:[%s1 + $0xbe0] sm:$0xff]
    %v430 = vld [vmem:[%s1 + $0xbe8] sm:$0xff]
    %v431 = vld [vmem:[%s1 + $0xbf0] sm:$0xff]
    %v432 = vld [vmem:[%s1 + $0xbf8] sm:$0xff]
    %v433 = vld [vmem:[%s1 + $0xc00] sm:$0xff]
    %v434 = vld [vmem:[%s1 + $0xc08] sm:$0xff]
    %v435 = vld [vmem:[%s1 + $0xc10] sm:$0xff]
    %v436 = vld [vmem:[%s1 + $0xc18] sm:$0xff]
    %v437 = vld [vmem:[%s1 + $0xc20] sm:$0xff]
    %v438 = vld [vmem:[%s1 + $0xc28] sm:$0xff]
    %v439 = vld [vmem:[%s1 + $0xc30] sm:$0xff]
    %v440 = vld [vmem:[%s1 + $0xc38] sm:$0xff]
    %v441 = vld [vmem:[%s1 + $0xc40] sm:$0xff]
    %v442 = vld [vmem:[%s1 + $0xc48] sm:$0xff]
    %v443 = vld [vmem:[%s1 + $0xc50] sm:$0xff]
    %v444 = vld [vmem:[%s1 + $0xc58] sm:$0xff]
    %v445 = vld [vmem:[%s1 + $0xc60] sm:$0xff]
    %v446 = vld [vmem:[%s1 + $0xc68] sm:$0xff]
    %v447 = vld [vmem:[%s1 + $0xc70] sm:$0xff]
    %v448 = vld [vmem:[%s1 + $0xc78] sm:$0xff]
    %v449 = vld [vmem:[%s1 + $0xc80] sm:$0xff]
    %v450 = vld [vmem:[%s1 + $0xc88] sm:$0xff]
    %v451 = vld [vmem:[%s1 + $0xc90] sm:$0xff]
    %v452 = vld [vmem:[%s1 + $0xc98] sm:$0xff]
    %v453 = vld [vmem:[%s1 + $0xca0] sm:$0xff]
    %v454 = vld [vmem:[%s1 + $0xca8] sm:$0xff]
    %v455 = vld [vmem:[%s1 + $0xcb0] sm:$0xff]
    %v456 = vld [vmem:[%s1 + $0xcb8] sm:$0xff]
    %v457 = vld [vmem:[%s1 + $0xcc0] sm:$0xff]
    %v458 = vld [vmem:[%s1 + $0xcc8] sm:$0xff]
    %v459 = vld [vmem:[%s1 + $0xcd0] sm:$0xff]
    %v460 = vld [vmem:[%s1 + $0xcd8] sm:$0xff]
    %v461 = vld [vmem:[%s1 + $0xce0] sm:$0xff]
    %v462 = vld [vmem:[%s1 + $0xce8] sm:$0xff]
    %v463 = vld [vmem:[%s1 + $0xcf0] sm:$0xff]
    %v464 = vld [vmem:[%s1 + $0xcf8] sm:$0xff]
    %v465 = vld [vmem:[%s1 + $0xd00] sm:$0xff]
    %v466 = vld [vmem:[%s1 + $0xd08] sm:$0xff]
    %v467 = vld [vmem:[%s1 + $0xd10] sm:$0xff]
    %v468 = vld [vmem:[%s1 + $0xd18] sm:$0xff]
    %v469 = vld [vmem:[%s1 + $0xd20] sm:$0xff]
    %v470 = vld [vmem:[%s1 + $0xd28] sm:$0xff]
    %v471 = vld [vmem:[%s1 + $0xd30] sm:$0xff]
    %v472 = vld [vmem:[%s1 + $0xd38] sm:$0xff]
    %v473 = vld [vmem:[%s1 + $0xd40] sm:$0xff]
    %v474 = vld [vmem:[%s1 + $0xd48] sm:$0xff]
    %v475 = vld [vmem:[%s1 + $0xd50] sm:$0xff]
    %v476 = vld [vmem:[%s1 + $0xd58] sm:$0xff]
    %v477 = vld [vmem:[%s1 + $0xd60] sm:$0xff]
    %v478 = vld [vmem:[%s1 + $0xd68] sm:$0xff]
    %v479 = vld [vmem:[%s1 + $0xd70] sm:$0xff]
    %v480 = vld [vmem:[%s1 + $0xd78] sm:$0xff]
    %v481 = vld [vmem:[%s1 + $0xd80] sm:$0xff]
    %v482 = vld [vmem:[%s1 + $0xd88] sm:$0xff]
    %v483 = vld [vmem:[%s1 + $0xd90] sm:$0xff]
    %v484 = vld [vmem:[%s1 + $0xd98] sm:$0xff]
    %v485 = vld [vmem:[%s1 + $0xda0] sm:$0xff]
    %v486 = vld [vmem:[%s1 + $0xda8] sm:$0xff]
    %v487 = vld [vmem:[%s1 + $0xdb0] sm:$0xff]
    %v488 = vld [vmem:[%s1 + $0xdb8] sm:$0xff]
    %v489 = vld [vmem:[%s1 + $0xdc0] sm:$0xff]
    %v490 = vld [vmem:[%s1 + $0xdc8] sm:$0xff]
    %v491 = vld [vmem:[%s1 + $0xdd0] sm:$0xff]
    %v492 = vld [vmem:[%s1 + $0xdd8] sm:$0xff]
    %v493 = vld [vmem:[%s1 + $0xde0] sm:$0xff]
    %v494 = vld [vmem:[%s1 + $0xde8] sm:$0xff]
    %v495 = vld [vmem:[%s1 + $0xdf0] sm:$0xff]
    %v496 = vld [vmem:[%s1 + $0xdf8] sm:$0xff]
    %v497 = vld [vmem:[%s1 + $0xe00] sm:$0xff]
    %v498 = vld [vmem:[%s1 + $0xe08] sm:$0xff]
    %v499 = vld [vmem:[%s1 + $0xe10] sm:$0xff]
    %v500 = vld [vmem:[%s1 + $0xe18] sm:$0xff]
    %v501 = vld [vmem:[%s1 + $0xe20] sm:$0xff]
    %v502 = vld [vmem:[%s1 + $0xe28] sm:$0xff]
    %v503 = vld [vmem:[%s1 + $0xe30] sm:$0xff]
    %v504 = vld [vmem:[%s1 + $0xe38] sm:$0xff]
    %v505 = vld [vmem:[%s1 + $0xe40] sm:$0xff]
    %v506 = vld [vmem:[%s1 + $0xe48] sm:$0xff]
    %v507 = vld [vmem:[%s1 + $0xe50] sm:$0xff]
    %v508 = vld [vmem:[%s1 + $0xe58] sm:$0xff]
    %v509 = vld [vmem:[%s1 + $0xe60] sm:$0xff]
    %v510 = vld [vmem:[%s1 + $0xe68] sm:$0xff]
    %v511 = vld [vmem:[%s1 + $0xe70] sm:$0xff]
    %v512 = vld [vmem:[%s1 + $0xe78] sm:$0xff]
    %v513 = vld [vmem:[%s1 + $0xe80] sm:$0xff]
    %v514 = vld [vmem:[%s1 + $0xe88] sm:$0xff]
    %v515 = vld [vmem:[%s1 + $0xe90] sm:$0xff]
    %v516 = vld [vmem:[%s1 + $0xe98] sm:$0xff]
    %v517 = vld [vmem:[%s1 + $0xea0] sm:$0xff]
    %v518 = vld [vmem:[%s1 + $0xea8] sm:$0xff]
    %v519 = vld [vmem:[%s1 + $0xeb0] sm:$0xff]
    %v520 = vld [vmem:[%s1 + $0xeb8] sm:$0xff]
    %v521 = vld [vmem:[%s1 + $0xec0] sm:$0xff]
    %v522 = vld [vmem:[%s1 + $0xec8] sm:$0xff]
    %v523 = vld [vmem:[%s1 + $0xed0] sm:$0xff]
    %v524 = vld [vmem:[%s1 + $0xed8] sm:$0xff]
    %v525 = vld [vmem:[%s1 + $0xee0] sm:$0xff]
    %v526 = vld [vmem:[%s1 + $0xee8] sm:$0xff]
    %v527 = vld [vmem:[%s1 + $0xef0] sm:$0xff]
    %v528 = vld [vmem:[%s1 + $0xef8] sm:$0xff]
    %v529 = vld [vmem:[%s1 + $0xf00] sm:$0xff]
    %v530 = vld [vmem:[%s1 + $0xf08] sm:$0xff]
    %v531 = vld [vmem:[%s1 + $0xf10] sm:$0xff]
    %v532 = vld [vmem:[%s1 + $0xf18] sm:$0xff]
    %v533 = vld [vmem:[%s1 + $0xf20] sm:$0xff]
    %v534 = vld [vmem:[%s1 + $0xf28] sm:$0xff]
    %v535 = vld [vmem:[%s1 + $0xf30] sm:$0xff]
    %v536 = vld [vmem:[%s1 + $0xf38] sm:$0xff]
    %v537 = vld [vmem:[%s1 + $0xf40] sm:$0xff]
    %v538 = vld [vmem:[%s1 + $0xf48] sm:$0xff]
    %v539 = vld [vmem:[%s1 + $0xf50] sm:$0xff]
    %v540 = vld [vmem:[%s1 + $0xf58] sm:$0xff]
    %v541 = vld [vmem:[%s1 + $0xf60] sm:$0xff]
    %v542 = vld [vmem:[%s1 + $0xf68] sm:$0xff]
    %v543 = vld [vmem:[%s1 + $0xf70] sm:$0xff]
    %v544 = vld [vmem:[%s1 + $0xf78] sm:$0xff]
    %v545 = vld [vmem:[%s1 + $0xf80] sm:$0xff]
    %v546 = vld [vmem:[%s1 + $0xf88] sm:$0xff]
    %v547 = vld [vmem:[%s1 + $0xf90] sm:$0xff]
    %v548 = vld [vmem:[%s1 + $0xf98] sm:$0xff]
    %v549 = vld [vmem:[%s1 + $0xfa0] sm:$0xff]
    %v550 = vld [vmem:[%s1 + $0xfa8] sm:$0xff]
    %v551 = vld [vmem:[%s1 + $0xfb0] sm:$0xff]
    %v552 = vld [vmem:[%s1 + $0xfb8] sm:$0xff]
    %v553 = vld [vmem:[%s1 + $0xfc0] sm:$0xff]
    %v554 = vld [vmem:[%s1 + $0xfc8] sm:$0xff]
    %v555 = vld [vmem:[%s1 + $0xfd0] sm:$0xff]
    %v556 = vld [vmem:[%s1 + $0xfd8] sm:$0xff]
    %v557 = vld [vmem:[%s1 + $0xfe0] sm:$0xff]
    %v558 = vld [vmem:[%s1 + $0xfe8] sm:$0xff]
    %v559 = vld [vmem:[%s1 + $0xff0] sm:$0xff]
    %v560 = vld [vmem:[%s1 + $0xff8] sm:$0xff]
    %v561 = vld [vmem:[%s1 + $0x1000] sm:$0xff]
    %v562 = vld [vmem:[%s1 + $0x1008] sm:$0xff]
    %v563 = vld [vmem:[%s1 + $0x1010] sm:$0xff]
    %v564 = vld [vmem:[%s1 + $0x1018] sm:$0xff]
    %v565 = vld [vmem:[%s1 + $0x1020] sm:$0xff]
    %v566 = vld [vmem:[%s1 + $0x1028] sm:$0xff]
    %v567 = vld [vmem:[%s1 + $0x1030] sm:$0xff]
    %v568 = vld [vmem:[%s1 + $0x1038] sm:$0xff]
    %v569 = vld [vmem:[%s1 + $0x1040] sm:$0xff]
    %v570 = vld [vmem:[%s1 + $0x1048] sm:$0xff]
    %v571 = vld [vmem:[%s1 + $0x1050] sm:$0xff]
    %v572 = vld [vmem:[%s1 + $0x1058] sm:$0xff]
    %v573 = vld [vmem:[%s1 + $0x1060] sm:$0xff]
    %v574 = vld [vmem:[%s1 + $0x1068] sm:$0xff]
    %v575 = vld [vmem:[%s1 + $0x1070] sm:$0xff]
    %v576 = vld [vmem:[%s1 + $0x1078] sm:$0xff]
    %v577 = vld [vmem:[%s1 + $0x1080] sm:$0xff]
    %v578 = vld [vmem:[%s1 + $0x1088] sm:$0xff]
    %v579 = vld [vmem:[%s1 + $0x1090] sm:$0xff]
    %v580 = vld [vmem:[%s1 + $0x1098] sm:$0xff]
    %v581 = vld [vmem:[%s1 + $0x10a0] sm:$0xff]
    %v582 = vld [vmem:[%s1 + $0x10a8] sm:$0xff]
    %v583 = vld [vmem:[%s1 + $0x10b0] sm:$0xff]
    %v584 = vld [vmem:[%s1 + $0x10b8] sm:$0xff]
    %v585 = vld [vmem:[%s1 + $0x10c0] sm:$0xff]
    %v586 = vld [vmem:[%s1 + $0x10c8] sm:$0xff]
    %v587 = vld [vmem:[%s1 + $0x10d0] sm:$0xff]
    %v588 = vld [vmem:[%s1 + $0x10d8] sm:$0xff]
    %v589 = vld [vmem:[%s1 + $0x10e0] sm:$0xff]
    %v590 = vld [vmem:[%s1 + $0x10e8] sm:$0xff]
    %v591 = vld [vmem:[%s1 + $0x10f0] sm:$0xff]
    %v592 = vld [vmem:[%s1 + $0x10f8] sm:$0xff]
    %v593 = vld [vmem:[%s1 + $0x1100] sm:$0xff]
    %v594 = vld [vmem:[%s1 + $0x1108] sm:$0xff]
    %v595 = vld [vmem:[%s1 + $0x1110] sm:$0xff]
    %v596 = vld [vmem:[%s1 + $0x1118] sm:$0xff]
    %v597 = vld [vmem:[%s1 + $0x1120] sm:$0xff]
    %v598 = vld [vmem:[%s1 + $0x1128] sm:$0xff]
    %v599 = vld [vmem:[%s1 + $0x1130] sm:$0xff]
    %v600 = vld [vmem:[%s1 + $0x1138] sm:$0xff]
    %v601 = vld [vmem:[%s1 + $0x1140] sm:$0xff]
    %v602 = vld [vmem:[%s1 + $0x1148] sm:$0xff]
    %v603 = vld [vmem:[%s1 + $0x1150] sm:$0xff]
    %v604 = vld [vmem:[%s1 + $0x1158] sm:$0xff]
    %v605 = vld [vmem:[%s1 + $0x1160] sm:$0xff]
    %v606 = vld [vmem:[%s1 + $0x1168] sm:$0xff]
    %v607 = vld [vmem:[%s1 + $0x1170] sm:$0xff]
    %v608 = vld [vmem:[%s1 + $0x1178] sm:$0xff]
    %v609 = vld [vmem:[%s1 + $0x1180] sm:$0xff]
    %v610 = vld [vmem:[%s1 + $0x1188] sm:$0xff]
    %v611 = vld [vmem:[%s1 + $0x1190] sm:$0xff]
    %v612 = vld [vmem:[%s1 + $0x1198] sm:$0xff]
    %v613 = vld [vmem:[%s1 + $0x11a0] sm:$0xff]
    %v614 = vld [vmem:[%s1 + $0x11a8] sm:$0xff]
    %v615 = vld [vmem:[%s1 + $0x11b0] sm:$0xff]
    %v616 = vld [vmem:[%s1 + $0x11b8] sm:$0xff]
    %v617 = vld [vmem:[%s1 + $0x11c0] sm:$0xff]
    %v618 = vld [vmem:[%s1 + $0x11c8] sm:$0xff]
    %v619 = vld [vmem:[%s1 + $0x11d0] sm:$0xff]
    %v620 = vld [vmem:[%s1 + $0x11d8] sm:$0xff]
    %v621 = vld [vmem:[%s1 + $0x11e0] sm:$0xff]
    %v622 = vld [vmem:[%s1 + $0x11e8] sm:$0xff]
    %v623 = vld [vmem:[%s1 + $0x11f0] sm:$0xff]
    %v624 = vld [vmem:[%s1 + $0x11f8] sm:$0xff]
    %v625 = vld [vmem:[%s1 + $0x1200] sm:$0xff]
    %v626 = vld [vmem:[%s1 + $0x1208] sm:$0xff]
    %v627 = vld [vmem:[%s1 + $0x1210] sm:$0xff]
    %v628 = vld [vmem:[%s1 + $0x1218] sm:$0xff]
    %v629 = vld [vmem:[%s1 + $0x1220] sm:$0xff]
    %v630 = vld [vmem:[%s1 + $0x1228] sm:$0xff]
    %v631 = vld [vmem:[%s1 + $0x1230] sm:$0xff]
    %v632 = vld [vmem:[%s1 + $0x1238] sm:$0xff]
    %v633 = vld [vmem:[%s1 + $0x1240] sm:$0xff]
    %v634 = vld [vmem:[%s1 + $0x1248] sm:$0xff]
    %v635 = vld [vmem:[%s1 + $0x1250] sm:$0xff]
    %v636 = vld [vmem:[%s1 + $0x1258] sm:$0xff]
    %v637 = vld [vmem:[%s1 + $0x1260] sm:$0xff]
    %v638 = vld [vmem:[%s1 + $0x1268] sm:$0xff]
    %v639 = vld [vmem:[%s1 + $0x1270] sm:$0xff]
    %v640 = vld [vmem:[%s1 + $0x1278] sm:$0xff]
    %v641 = vld [vmem:[%s1 + $0x1280] sm:$0xff]
    %v642 = vld [vmem:[%s1 + $0x1288] sm:$0xff]
    %v643 = vld [vmem:[%s1 + $0x1290] sm:$0xff]
    %v644 = vld [vmem:[%s1 + $0x1298] sm:$0xff]
    %v645 = vld [vmem:[%s1 + $0x12a0] sm:$0xff]
    %v646 = vld [vmem:[%s1 + $0x12a8] sm:$0xff]
    %v647 = vld [vmem:[%s1 + $0x12b0] sm:$0xff]
    %v648 = vld [vmem:[%s1 + $0x12b8] sm:$0xff]
    %v649 = vld [vmem:[%s1 + $0x12c0] sm:$0xff]
    %v650 = vld [vmem:[%s1 + $0x12c8] sm:$0xff]
    %v651 = vld [vmem:[%s1 + $0x12d0] sm:$0xff]
    %v652 = vld [vmem:[%s1 + $0x12d8] sm:$0xff]
    %v653 = vld [vmem:[%s1 + $0x12e0] sm:$0xff]
    %v654 = vld [vmem:[%s1 + $0x12e8] sm:$0xff]
    %v655 = vld [vmem:[%s1 + $0x12f0] sm:$0xff]
    %v656 = vld [vmem:[%s1 + $0x12f8] sm:$0xff]
    %v657 = vld [vmem:[%s1 + $0x1300] sm:$0xff]
    %v658 = vld [vmem:[%s1 + $0x1308] sm:$0xff]
    %v659 = vld [vmem:[%s1 + $0x1310] sm:$0xff]
    %v660 = vld [vmem:[%s1 + $0x1318] sm:$0xff]
    %v661 = vld [vmem:[%s1 + $0x1320] sm:$0xff]
    %v662 = vld [vmem:[%s1 + $0x1328] sm:$0xff]
    %v663 = vld [vmem:[%s1 + $0x1330] sm:$0xff]
    %v664 = vld [vmem:[%s1 + $0x1338] sm:$0xff]
    %v665 = vld [vmem:[%s1 + $0x1340] sm:$0xff]
    %v666 = vld [vmem:[%s1 + $0x1348] sm:$0xff]
    %v667 = vld [vmem:[%s1 + $0x1350] sm:$0xff]
    %v668 = vld [vmem:[%s1 + $0x1358] sm:$0xff]
    %v669 = vld [vmem:[%s1 + $0x1360] sm:$0xff]
    %v670 = vld [vmem:[%s1 + $0x1368] sm:$0xff]
    %v671 = vld [vmem:[%s1 + $0x1370] sm:$0xff]
    %v672 = vld [vmem:[%s1 + $0x1378] sm:$0xff]
    %v673 = vld [vmem:[%s1 + $0x1380] sm:$0xff]
    %v674 = vld [vmem:[%s1 + $0x1388] sm:$0xff]
    %v675 = vld [vmem:[%s1 + $0x1390] sm:$0xff]
    %v676 = vld [vmem:[%s1 + $0x1398] sm:$0xff]
    %v677 = vld [vmem:[%s1 + $0x13a0] sm:$0xff]
    %v678 = vld [vmem:[%s1 + $0x13a8] sm:$0xff]
    %v679 = vld [vmem:[%s1 + $0x13b0] sm:$0xff]
    %v680 = vld [vmem:[%s1 + $0x13b8] sm:$0xff]
    %v681 = vld [vmem:[%s1 + $0x13c0] sm:$0xff]
    %v682 = vld [vmem:[%s1 + $0x13c8] sm:$0xff]
    %v683 = vld [vmem:[%s1 + $0x13d0] sm:$0xff]
    %v684 = vld [vmem:[%s1 + $0x13d8] sm:$0xff]
    %v685 = vld [vmem:[%s1 + $0x13e0] sm:$0xff]
    %v686 = vld [vmem:[%s1 + $0x13e8] sm:$0xff]
    %v687 = vld [vmem:[%s1 + $0x13f0] sm:$0xff]
    %v688 = vld [vmem:[%s1 + $0x13f8] sm:$0xff]
    %v689 = vld [vmem:[%s1 + $0x1400] sm:$0xff]
    %v690 = vld [vmem:[%s1 + $0x1408] sm:$0xff]
    %v691 = vld [vmem:[%s1 + $0x1410] sm:$0xff]
    %v692 = vld [vmem:[%s1 + $0x1418] sm:$0xff]
    %v693 = vld [vmem:[%s1 + $0x1420] sm:$0xff]
    %v694 = vld [vmem:[%s1 + $0x1428] sm:$0xff]
    %v695 = vld [vmem:[%s1 + $0x1430] sm:$0xff]
    %v696 = vld [vmem:[%s1 + $0x1438] sm:$0xff]
    %v697 = vld [vmem:[%s1 + $0x1440] sm:$0xff]
    %v698 = vld [vmem:[%s1 + $0x1448] sm:$0xff]
    %v699 = vld [vmem:[%s1 + $0x1450] sm:$0xff]
    %v700 = vld [vmem:[%s1 + $0x1458] sm:$0xff]
    %v701 = vld [vmem:[%s1 + $0x1460] sm:$0xff]
    %v702 = vld [vmem:[%s1 + $0x1468] sm:$0xff]
    %v703 = vld [vmem:[%s1 + $0x1470] sm:$0xff]
    %v704 = vld [vmem:[%s1 + $0x1478] sm:$0xff]
    %v705 = vld [vmem:[%s1 + $0x1480] sm:$0xff]
    %v706 = vld [vmem:[%s1 + $0x1488] sm:$0xff]
    %v707 = vld [vmem:[%s1 + $0x1490] sm:$0xff]
    %v708 = vld [vmem:[%s1 + $0x1498] sm:$0xff]
    %v709 = vld [vmem:[%s1 + $0x14a0] sm:$0xff]
    %v710 = vld [vmem:[%s1 + $0x14a8] sm:$0xff]
    %v711 = vld [vmem:[%s1 + $0x14b0] sm:$0xff]
    %v712 = vld [vmem:[%s1 + $0x14b8] sm:$0xff]
    %v713 = vld [vmem:[%s1 + $0x14c0] sm:$0xff]
    %v714 = vld [vmem:[%s1 + $0x14c8] sm:$0xff]
    %v715 = vld [vmem:[%s1 + $0x14d0] sm:$0xff]
    %v716 = vld [vmem:[%s1 + $0x14d8] sm:$0xff]
    %v717 = vld [vmem:[%s1 + $0x14e0] sm:$0xff]
    %v718 = vld [vmem:[%s1 + $0x14e8] sm:$0xff]
    %v719 = vld [vmem:[%s1 + $0x14f0] sm:$0xff]
    %v720 = vld [vmem:[%s1 + $0x14f8] sm:$0xff]
    %v721 = vld [vmem:[%s1 + $0x1500] sm:$0xff]
    %v722 = vld [vmem:[%s1 + $0x1508] sm:$0xff]
    %v723 = vld [vmem:[%s1 + $0x1510] sm:$0xff]
    %v724 = vld [vmem:[%s1 + $0x1518] sm:$0xff]
    %v725 = vld [vmem:[%s1 + $0x1520] sm:$0xff]
    %v726 = vld [vmem:[%s1 + $0x1528] sm:$0xff]
    %v727 = vld [vmem:[%s1 + $0x1530] sm:$0xff]
    %v728 = vld [vmem:[%s1 + $0x1538] sm:$0xff]
    %v729 = vld [vmem:[%s1 + $0x1540] sm:$0xff]
    %v730 = vld [vmem:[%s1 + $0x1548] sm:$0xff]
    %v731 = vld [vmem:[%s1 + $0x1550] sm:$0xff]
    %v732 = vld [vmem:[%s1 + $0x1558] sm:$0xff]
    %v733 = vld [vmem:[%s1 + $0x1560] sm:$0xff]
    %v734 = vld [vmem:[%s1 + $0x1568] sm:$0xff]
    %v735 = vld [vmem:[%s1 + $0x1570] sm:$0xff]
    %v736 = vld [vmem:[%s1 + $0x1578] sm:$0xff]
    %v737 = vld [vmem:[%s1 + $0x1580] sm:$0xff]
    %v738 = vld [vmem:[%s1 + $0x1588] sm:$0xff]
    %v739 = vld [vmem:[%s1 + $0x1590] sm:$0xff]
    %v740 = vld [vmem:[%s1 + $0x1598] sm:$0xff]
    %v741 = vld [vmem:[%s1 + $0x15a0] sm:$0xff]
    %v742 = vld [vmem:[%s1 + $0x15a8] sm:$0xff]
    %v743 = vld [vmem:[%s1 + $0x15b0] sm:$0xff]
    %v744 = vld [vmem:[%s1 + $0x15b8] sm:$0xff]
    %v745 = vld [vmem:[%s1 + $0x15c0] sm:$0xff]
    %v746 = vld [vmem:[%s1 + $0x15c8] sm:$0xff]
    %v747 = vld [vmem:[%s1 + $0x15d0] sm:$0xff]
    %v748 = vld [vmem:[%s1 + $0x15d8] sm:$0xff]
    %v749 = vld [vmem:[%s1 + $0x15e0] sm:$0xff]
    %v750 = vld [vmem:[%s1 + $0x15e8] sm:$0xff]
    %v751 = vld [vmem:[%s1 + $0x15f0] sm:$0xff]
    %v752 = vld [vmem:[%s1 + $0x15f8] sm:$0xff]
    %v753 = vld [vmem:[%s1 + $0x1600] sm:$0xff]
    %v754 = vld [vmem:[%s1 + $0x1608] sm:$0xff]
    %v755 = vld [vmem:[%s1 + $0x1610] sm:$0xff]
    %v756 = vld [vmem:[%s1 + $0x1618] sm:$0xff]
    %v757 = vld [vmem:[%s1 + $0x1620] sm:$0xff]
    %v758 = vld [vmem:[%s1 + $0x1628] sm:$0xff]
    %v759 = vld [vmem:[%s1 + $0x1630] sm:$0xff]
    %v760 = vld [vmem:[%s1 + $0x1638] sm:$0xff]
    %v761 = vld [vmem:[%s1 + $0x1640] sm:$0xff]
    %v762 = vld [vmem:[%s1 + $0x1648] sm:$0xff]
    %v763 = vld [vmem:[%s1 + $0x1650] sm:$0xff]
    %v764 = vld [vmem:[%s1 + $0x1658] sm:$0xff]
    %v765 = vld [vmem:[%s1 + $0x1660] sm:$0xff]
    %v766 = vld [vmem:[%s1 + $0x1668] sm:$0xff]
    %v767 = vld [vmem:[%s1 + $0x1670] sm:$0xff]
    %v768 = vld [vmem:[%s1 + $0x1678] sm:$0xff]
    %v769 = vld [vmem:[%s1 + $0x1680] sm:$0xff]
    %v770 = vld [vmem:[%s1 + $0x1688] sm:$0xff]
    %v771 = vld [vmem:[%s1 + $0x1690] sm:$0xff]
    %v772 = vld [vmem:[%s1 + $0x1698] sm:$0xff]
    %v773 = vld [vmem:[%s1 + $0x16a0] sm:$0xff]
    %v774 = vld [vmem:[%s1 + $0x16a8] sm:$0xff]
    %v775 = vld [vmem:[%s1 + $0x16b0] sm:$0xff]
    %v776 = vld [vmem:[%s1 + $0x16b8] sm:$0xff]
    %v777 = vld [vmem:[%s1 + $0x16c0] sm:$0xff]
    %v778 = vld [vmem:[%s1 + $0x16c8] sm:$0xff]
    %v779 = vld [vmem:[%s1 + $0x16d0] sm:$0xff]
    %v780 = vld [vmem:[%s1 + $0x16d8] sm:$0xff]
    %v781 = vld [vmem:[%s1 + $0x16e0] sm:$0xff]
    %v782 = vld [vmem:[%s1 + $0x16e8] sm:$0xff]
    %v783 = vld [vmem:[%s1 + $0x16f0] sm:$0xff]
    %v784 = vld [vmem:[%s1 + $0x16f8] sm:$0xff]
    %v785 = vld [vmem:[%s1 + $0x1700] sm:$0xff]
    %v786 = vld [vmem:[%s1 + $0x1708] sm:$0xff]
    %v787 = vld [vmem:[%s1 + $0x1710] sm:$0xff]
    %v788 = vld [vmem:[%s1 + $0x1718] sm:$0xff]
    %v789 = vld [vmem:[%s1 + $0x1720] sm:$0xff]
    %v790 = vld [vmem:[%s1 + $0x1728] sm:$0xff]
    %v791 = vld [vmem:[%s1 + $0x1730] sm:$0xff]
    %v792 = vld [vmem:[%s1 + $0x1738] sm:$0xff]
    %v793 = vld [vmem:[%s1 + $0x1740] sm:$0xff]
    %v794 = vld [vmem:[%s1 + $0x1748] sm:$0xff]
    %v795 = vld [vmem:[%s1 + $0x1750] sm:$0xff]
    %v796 = vld [vmem:[%s1 + $0x1758] sm:$0xff]
    %v797 = vld [vmem:[%s1 + $0x1760] sm:$0xff]
    %v798 = vld [vmem:[%s1 + $0x1768] sm:$0xff]
    %v799 = vld [vmem:[%s1 + $0x1770] sm:$0xff]
    %v800 = vld [vmem:[%s1 + $0x1778] sm:$0xff]
    %v801 = vld [vmem:[%s1 + $0x1780] sm:$0xff]
    %v802 = vld [vmem:[%s1 + $0x1788] sm:$0xff]
    %v803 = vld [vmem:[%s1 + $0x1790] sm:$0xff]
    %v804 = vld [vmem:[%s1 + $0x1798] sm:$0xff]
    %v805 = vld [vmem:[%s1 + $0x17a0] sm:$0xff]
    %v806 = vld [vmem:[%s1 + $0x17a8] sm:$0xff]
    %v807 = vld [vmem:[%s1 + $0x17b0] sm:$0xff]
    %v808 = vld [vmem:[%s1 + $0x17b8] sm:$0xff]
    %v809 = vld [vmem:[%s1 + $0x17c0] sm:$0xff]
    %v810 = vld [vmem:[%s1 + $0x17c8] sm:$0xff]
    %v811 = vld [vmem:[%s1 + $0x17d0] sm:$0xff]
    %v812 = vld [vmem:[%s1 + $0x17d8] sm:$0xff]
    %v813 = vld [vmem:[%s1 + $0x17e0] sm:$0xff]
    %v814 = vld [vmem:[%s1 + $0x17e8] sm:$0xff]
    %v815 = vld [vmem:[%s1 + $0x17f0] sm:$0xff]
    %v816 = vld [vmem:[%s1 + $0x17f8] sm:$0xff]
    %v817 = vld [vmem:[%s1 + $0x1800] sm:$0xff]
    %v818 = vld [vmem:[%s1 + $0x1808] sm:$0xff]
    %v819 = vld [vmem:[%s1 + $0x1810] sm:$0xff]
    %v820 = vld [vmem:[%s1 + $0x1818] sm:$0xff]
    %v821 = vld [vmem:[%s1 + $0x1820] sm:$0xff]
    %v822 = vld [vmem:[%s1 + $0x1828] sm:$0xff]
    %v823 = vld [vmem:[%s1 + $0x1830] sm:$0xff]
    %v824 = vld [vmem:[%s1 + $0x1838] sm:$0xff]
    %v825 = vld [vmem:[%s1 + $0x1840] sm:$0xff]
    %v826 = vld [vmem:[%s1 + $0x1848] sm:$0xff]
    %v827 = vld [vmem:[%s1 + $0x1850] sm:$0xff]
    %v828 = vld [vmem:[%s1 + $0x1858] sm:$0xff]
    %v829 = vld [vmem:[%s1 + $0x1860] sm:$0xff]
    %v830 = vld [vmem:[%s1 + $0x1868] sm:$0xff]
    %v831 = vld [vmem:[%s1 + $0x1870] sm:$0xff]
    %v832 = vld [vmem:[%s1 + $0x1878] sm:$0xff]
    %v833 = vld [vmem:[%s1 + $0x1880] sm:$0xff]
    %v834 = vld [vmem:[%s1 + $0x1888] sm:$0xff]
    %v835 = vld [vmem:[%s1 + $0x1890] sm:$0xff]
    %v836 = vld [vmem:[%s1 + $0x1898] sm:$0xff]
    %v837 = vld [vmem:[%s1 + $0x18a0] sm:$0xff]
    %v838 = vld [vmem:[%s1 + $0x18a8] sm:$0xff]
    %v839 = vld [vmem:[%s1 + $0x18b0] sm:$0xff]
    %v840 = vld [vmem:[%s1 + $0x18b8] sm:$0xff]
    %v841 = vld [vmem:[%s1 + $0x18c0] sm:$0xff]
    %v842 = vld [vmem:[%s1 + $0x18c8] sm:$0xff]
    %v843 = vld [vmem:[%s1 + $0x18d0] sm:$0xff]
    %v844 = vld [vmem:[%s1 + $0x18d8] sm:$0xff]
    %v845 = vld [vmem:[%s1 + $0x18e0] sm:$0xff]
    %v846 = vld [vmem:[%s1 + $0x18e8] sm:$0xff]
    %v847 = vld [vmem:[%s1 + $0x18f0] sm:$0xff]
    %v848 = vld [vmem:[%s1 + $0x18f8] sm:$0xff]
    %v849 = vld [vmem:[%s1 + $0x1900] sm:$0xff]
    %v850 = vld [vmem:[%s1 + $0x1908] sm:$0xff]
    %v851 = vld [vmem:[%s1 + $0x1910] sm:$0xff]
    %v852 = vld [vmem:[%s1 + $0x1918] sm:$0xff]
    %v853 = vld [vmem:[%s1 + $0x1920] sm:$0xff]
    %v854 = vld [vmem:[%s1 + $0x1928] sm:$0xff]
    %v855 = vld [vmem:[%s1 + $0x1930] sm:$0xff]
    %v856 = vld [vmem:[%s1 + $0x1938] sm:$0xff]
    %v857 = vld [vmem:[%s1 + $0x1940] sm:$0xff]
    %v858 = vld [vmem:[%s1 + $0x1948] sm:$0xff]
    %v859 = vld [vmem:[%s1 + $0x1950] sm:$0xff]
    %v860 = vld [vmem:[%s1 + $0x1958] sm:$0xff]
    %v861 = vld [vmem:[%s1 + $0x1960] sm:$0xff]
    %v862 = vld [vmem:[%s1 + $0x1968] sm:$0xff]
    %v863 = vld [vmem:[%s1 + $0x1970] sm:$0xff]
    %v864 = vld [vmem:[%s1 + $0x1978] sm:$0xff]
    %v865 = vld [vmem:[%s1 + $0x1980] sm:$0xff]
    %v866 = vld [vmem:[%s1 + $0x1988] sm:$0xff]
    %v867 = vld [vmem:[%s1 + $0x1990] sm:$0xff]
    %v868 = vld [vmem:[%s1 + $0x1998] sm:$0xff]
    %v869 = vld [vmem:[%s1 + $0x19a0] sm:$0xff]
    %v870 = vld [vmem:[%s1 + $0x19a8] sm:$0xff]
    %v871 = vld [vmem:[%s1 + $0x19b0] sm:$0xff]
    %v872 = vld [vmem:[%s1 + $0x19b8] sm:$0xff]
    %v873 = vld [vmem:[%s1 + $0x19c0] sm:$0xff]
    %v874 = vld [vmem:[%s1 + $0x19c8] sm:$0xff]
    %v875 = vld [vmem:[%s1 + $0x19d0] sm:$0xff]
    %v876 = vld [vmem:[%s1 + $0x19d8] sm:$0xff]
    %v877 = vld [vmem:[%s1 + $0x19e0] sm:$0xff]
    %v878 = vld [vmem:[%s1 + $0x19e8] sm:$0xff]
    %v879 = vld [vmem:[%s1 + $0x19f0] sm:$0xff]
    %v880 = vld [vmem:[%s1 + $0x19f8] sm:$0xff]
    %v881 = vld [vmem:[%s1 + $0x1a00] sm:$0xff]
    %v882 = vld [vmem:[%s1 + $0x1a08] sm:$0xff]
    %v883 = vld [vmem:[%s1 + $0x1a10] sm:$0xff]
    %v884 = vld [vmem:[%s1 + $0x1a18] sm:$0xff]
    %v885 = vld [vmem:[%s1 + $0x1a20] sm:$0xff]
    %v886 = vld [vmem:[%s1 + $0x1a28] sm:$0xff]
    %v887 = vld [vmem:[%s1 + $0x1a30] sm:$0xff]
    %v888 = vld [vmem:[%s1 + $0x1a38] sm:$0xff]
    %v889 = vld [vmem:[%s1 + $0x1a40] sm:$0xff]
    %v890 = vld [vmem:[%s1 + $0x1a48] sm:$0xff]
    %v891 = vld [vmem:[%s1 + $0x1a50] sm:$0xff]
    %v892 = vld [vmem:[%s1 + $0x1a58] sm:$0xff]
    %v893 = vld [vmem:[%s1 + $0x1a60] sm:$0xff]
    %v894 = vld [vmem:[%s1 + $0x1a68] sm:$0xff]
    %v895 = vld [vmem:[%s1 + $0x1a70] sm:$0xff]
    %v896 = vld [vmem:[%s1 + $0x1a78] sm:$0xff]
    %v897 = vld [vmem:[%s1 + $0x1a80] sm:$0xff]
    %v898 = vld [vmem:[%s1 + $0x1a88] sm:$0xff]
    %v899 = vld [vmem:[%s1 + $0x1a90] sm:$0xff]
    %v900 = vld [vmem:[%s1 + $0x1a98] sm:$0xff]
    %v901 = vld [vmem:[%s1 + $0x1aa0] sm:$0xff]
    %v902 = vld [vmem:[%s1 + $0x1aa8] sm:$0xff]
    %v903 = vld [vmem:[%s1 + $0x1ab0] sm:$0xff]
    %v904 = vld [vmem:[%s1 + $0x1ab8] sm:$0xff]
    %v905 = vld [vmem:[%s1 + $0x1ac0] sm:$0xff]
    %v906 = vld [vmem:[%s1 + $0x1ac8] sm:$0xff]
    %v907 = vld [vmem:[%s1 + $0x1ad0] sm:$0xff]
    %v908 = vld [vmem:[%s1 + $0x1ad8] sm:$0xff]
    %v909 = vld [vmem:[%s1 + $0x1ae0] sm:$0xff]
    %v910 = vld [vmem:[%s1 + $0x1ae8] sm:$0xff]
    %v911 = vld [vmem:[%s1 + $0x1af0] sm:$0xff]
    %v912 = vld [vmem:[%s1 + $0x1af8] sm:$0xff]
    %v913 = vld [vmem:[%s1 + $0x1b00] sm:$0xff]
    %v914 = vld [vmem:[%s1 + $0x1b08] sm:$0xff]
    %v915 = vld [vmem:[%s1 + $0x1b10] sm:$0xff]
    %v916 = vld [vmem:[%s1 + $0x1b18] sm:$0xff]
    %v917 = vld [vmem:[%s1 + $0x1b20] sm:$0xff]
    %v918 = vld [vmem:[%s1 + $0x1b28] sm:$0xff]
    %v919 = vld [vmem:[%s1 + $0x1b30] sm:$0xff]
    %v920 = vld [vmem:[%s1 + $0x1b38] sm:$0xff]
    %v921 = vld [vmem:[%s1 + $0x1b40] sm:$0xff]
    %v922 = vld [vmem:[%s1 + $0x1b48] sm:$0xff]
    %v923 = vld [vmem:[%s1 + $0x1b50] sm:$0xff]
    %v924 = vld [vmem:[%s1 + $0x1b58] sm:$0xff]
    %v925 = vld [vmem:[%s1 + $0x1b60] sm:$0xff]
    %v926 = vld [vmem:[%s1 + $0x1b68] sm:$0xff]
    %v927 = vld [vmem:[%s1 + $0x1b70] sm:$0xff]
    %v928 = vld [vmem:[%s1 + $0x1b78] sm:$0xff]
    %v929 = vld [vmem:[%s1 + $0x1b80] sm:$0xff]
    %v930 = vld [vmem:[%s1 + $0x1b88] sm:$0xff]
    %v931 = vld [vmem:[%s1 + $0x1b90] sm:$0xff]
    %v932 = vld [vmem:[%s1 + $0x1b98] sm:$0xff]
    %v933 = vld [vmem:[%s1 + $0x1ba0] sm:$0xff]
    %v934 = vld [vmem:[%s1 + $0x1ba8] sm:$0xff]
    %v935 = vld [vmem:[%s1 + $0x1bb0] sm:$0xff]
    %v936 = vld [vmem:[%s1 + $0x1bb8] sm:$0xff]
    %v937 = vld [vmem:[%s1 + $0x1bc0] sm:$0xff]
    %v938 = vld [vmem:[%s1 + $0x1bc8] sm:$0xff]
    %v939 = vld [vmem:[%s1 + $0x1bd0] sm:$0xff]
    %v940 = vld [vmem:[%s1 + $0x1bd8] sm:$0xff]
    %v941 = vld [vmem:[%s1 + $0x1be0] sm:$0xff]
    %v942 = vld [vmem:[%s1 + $0x1be8] sm:$0xff]
    %v943 = vld [vmem:[%s1 + $0x1bf0] sm:$0xff]
    %v944 = vld [vmem:[%s1 + $0x1bf8] sm:$0xff]
    %v945 = vld [vmem:[%s1 + $0x1c00] sm:$0xff]
    %v946 = vld [vmem:[%s1 + $0x1c08] sm:$0xff]
    %v947 = vld [vmem:[%s1 + $0x1c10] sm:$0xff]
    %v948 = vld [vmem:[%s1 + $0x1c18] sm:$0xff]
    %v949 = vld [vmem:[%s1 + $0x1c20] sm:$0xff]
    %v950 = vld [vmem:[%s1 + $0x1c28] sm:$0xff]
    %v951 = vld [vmem:[%s1 + $0x1c30] sm:$0xff]
    %v952 = vld [vmem:[%s1 + $0x1c38] sm:$0xff]
    %v953 = vld [vmem:[%s1 + $0x1c40] sm:$0xff]
    %v954 = vld [vmem:[%s1 + $0x1c48] sm:$0xff]
    %v955 = vld [vmem:[%s1 + $0x1c50] sm:$0xff]
    %v956 = vld [vmem:[%s1 + $0x1c58] sm:$0xff]
    %v957 = vld [vmem:[%s1 + $0x1c60] sm:$0xff]
    %v958 = vld [vmem:[%s1 + $0x1c68] sm:$0xff]
    %v959 = vld [vmem:[%s1 + $0x1c70] sm:$0xff]
    %v960 = vld [vmem:[%s1 + $0x1c78] sm:$0xff]
    %v961 = vld [vmem:[%s1 + $0x1c80] sm:$0xff]
    %v962 = vld [vmem:[%s1 + $0x1c88] sm:$0xff]
    %v963 = vld [vmem:[%s1 + $0x1c90] sm:$0xff]
    %v964 = vld [vmem:[%s1 + $0x1c98] sm:$0xff]
    %v965 = vld [vmem:[%s1 + $0x1ca0] sm:$0xff]
    %v966 = vld [vmem:[%s1 + $0x1ca8] sm:$0xff]
    %v967 = vld [vmem:[%s1 + $0x1cb0] sm:$0xff]
    %v968 = vld [vmem:[%s1 + $0x1cb8] sm:$0xff]
    %v969 = vld [vmem:[%s1 + $0x1cc0] sm:$0xff]
    %v970 = vld [vmem:[%s1 + $0x1cc8] sm:$0xff]
    %v971 = vld [vmem:[%s1 + $0x1cd0] sm:$0xff]
    %v972 = vld [vmem:[%s1 + $0x1cd8] sm:$0xff]
    %v973 = vld [vmem:[%s1 + $0x1ce0] sm:$0xff]
    %v974 = vld [vmem:[%s1 + $0x1ce8] sm:$0xff]
    %v975 = vld [vmem:[%s1 + $0x1cf0] sm:$0xff]
    %v976 = vld [vmem:[%s1 + $0x1cf8] sm:$0xff]
    %v977 = vld [vmem:[%s1 + $0x1d00] sm:$0xff]
    %v978 = vld [vmem:[%s1 + $0x1d08] sm:$0xff]
    %v979 = vld [vmem:[%s1 + $0x1d10] sm:$0xff]
    %v980 = vld [vmem:[%s1 + $0x1d18] sm:$0xff]
    %v981 = vld [vmem:[%s1 + $0x1d20] sm:$0xff]
    %v982 = vld [vmem:[%s1 + $0x1d28] sm:$0xff]
    %v983 = vld [vmem:[%s1 + $0x1d30] sm:$0xff]
    %v984 = vld [vmem:[%s1 + $0x1d38] sm:$0xff]
    %v985 = vld [vmem:[%s1 + $0x1d40] sm:$0xff]
    %v986 = vld [vmem:[%s1 + $0x1d48] sm:$0xff]
    %v987 = vld [vmem:[%s1 + $0x1d50] sm:$0xff]
    %v988 = vld [vmem:[%s1 + $0x1d58] sm:$0xff]
    %v989 = vld [vmem:[%s1 + $0x1d60] sm:$0xff]
    %v990 = vld [vmem:[%s1 + $0x1d68] sm:$0xff]
    %v991 = vld [vmem:[%s1 + $0x1d70] sm:$0xff]
    %v992 = vld [vmem:[%s1 + $0x1d78] sm:$0xff]
    %v993 = vld [vmem:[%s1 + $0x1d80] sm:$0xff]
    %v994 = vld [vmem:[%s1 + $0x1d88] sm:$0xff]
    %v995 = vld [vmem:[%s1 + $0x1d90] sm:$0xff]
    %v996 = vld [vmem:[%s1 + $0x1d98] sm:$0xff]
    %v997 = vld [vmem:[%s1 + $0x1da0] sm:$0xff]
    %v998 = vld [vmem:[%s1 + $0x1da8] sm:$0xff]
    %v999 = vld [vmem:[%s1 + $0x1db0] sm:$0xff]
    %v1000 = vld [vmem:[%s1 + $0x1db8] sm:$0xff]
    %v1001 = vld [vmem:[%s1 + $0x1dc0] sm:$0xff]
    %v1002 = vld [vmem:[%s1 + $0x1dc8] sm:$0xff]
    %v1003 = vld [vmem:[%s1 + $0x1dd0] sm:$0xff]
    %v1004 = vld [vmem:[%s1 + $0x1dd8] sm:$0xff]
    %v1005 = vld [vmem:[%s1 + $0x1de0] sm:$0xff]
    %v1006 = vld [vmem:[%s1 + $0x1de8] sm:$0xff]
    %v1007 = vld [vmem:[%s1 + $0x1df0] sm:$0xff]
    %v1008 = vld [vmem:[%s1 + $0x1df8] sm:$0xff]
    %v1009 = vld [vmem:[%s1 + $0x1e00] sm:$0xff]
    %v1010 = vld [vmem:[%s1 + $0x1e08] sm:$0xff]
    %v1011 = vld [vmem:[%s1 + $0x1e10] sm:$0xff]
    %v1012 = vld [vmem:[%s1 + $0x1e18] sm:$0xff]
    %v1013 = vld [vmem:[%s1 + $0x1e20] sm:$0xff]
    %v1014 = vld [vmem:[%s1 + $0x1e28] sm:$0xff]
    %v1015 = vld [vmem:[%s1 + $0x1e30] sm:$0xff]
    %v1016 = vld [vmem:[%s1 + $0x1e38] sm:$0xff]
    %v1017 = vld [vmem:[%s1 + $0x1e40] sm:$0xff]
    %v1018 = vld [vmem:[%s1 + $0x1e48] sm:$0xff]
    %v1019 = vld [vmem:[%s1 + $0x1e50] sm:$0xff]
    %v1020 = vld [vmem:[%s1 + $0x1e58] sm:$0xff]
    %v1021 = vld [vmem:[%s1 + $0x1e60] sm:$0xff]
    %v1022 = vld [vmem:[%s1 + $0x1e68] sm:$0xff]
    %v1023 = vld [vmem:[%s1 + $0x1e70] sm:$0xff]
    %v1024 = vld [vmem:[%s1 + $0x1e78] sm:$0xff]
    %v1025 = vld [vmem:[%s1 + $0x1e80] sm:$0xff]
    %v1026 = vld [vmem:[%s1 + $0x1e88] sm:$0xff]
    %v1027 = vld [vmem:[%s1 + $0x1e90] sm:$0xff]
    %v1028 = vld [vmem:[%s1 + $0x1e98] sm:$0xff]
    %v1029 = vld [vmem:[%s1 + $0x1ea0] sm:$0xff]
    %v1030 = vld [vmem:[%s1 + $0x1ea8] sm:$0xff]
    %v1031 = vld [vmem:[%s1 + $0x1eb0] sm:$0xff]
    %v1032 = vld [vmem:[%s1 + $0x1eb8] sm:$0xff]
    %v1033 = vld [vmem:[%s1 + $0x1ec0] sm:$0xff]
    %v1034 = vld [vmem:[%s1 + $0x1ec8] sm:$0xff]
    %v1035 = vld [vmem:[%s1 + $0x1ed0] sm:$0xff]
    %v1036 = vld [vmem:[%s1 + $0x1ed8] sm:$0xff]
    %v1037 = vld [vmem:[%s1 + $0x1ee0] sm:$0xff]
    %v1038 = vld [vmem:[%s1 + $0x1ee8] sm:$0xff]
    %v1039 = vld [vmem:[%s1 + $0x1ef0] sm:$0xff]
    %v1040 = vld [vmem:[%s1 + $0x1ef8] sm:$0xff]
    %v1041 = vld [vmem:[%s1 + $0x1f00] sm:$0xff]
    %v1042 = vld [vmem:[%s1 + $0x1f08] sm:$0xff]
    %v1043 = vld [vmem:[%s1 + $0x1f10] sm:$0xff]
    %v1044 = vld [vmem:[%s1 + $0x1f18] sm:$0xff]
    %v1045 = vld [vmem:[%s1 + $0x1f20] sm:$0xff]
    %v1046 = vld [vmem:[%s1 + $0x1f28] sm:$0xff]
    %v1047 = vld [vmem:[%s1 + $0x1f30] sm:$0xff]
    %v1048 = vld [vmem:[%s1 + $0x1f38] sm:$0xff]
    %v1049 = vld [vmem:[%s1 + $0x1f40] sm:$0xff]
    %v1050 = vld [vmem:[%s1 + $0x1f48] sm:$0xff]
    %v1051 = vld [vmem:[%s1 + $0x1f50] sm:$0xff]
    %v1052 = vld [vmem:[%s1 + $0x1f58] sm:$0xff]
    %v1053 = vld [vmem:[%s1 + $0x1f60] sm:$0xff]
    %v1054 = vld [vmem:[%s1 + $0x1f68] sm:$0xff]
    %v1055 = vld [vmem:[%s1 + $0x1f70] sm:$0xff]
    %v1056 = vld [vmem:[%s1 + $0x1f78] sm:$0xff]
    %v1057 = vld [vmem:[%s1 + $0x1f80] sm:$0xff]
    %v1058 = vld [vmem:[%s1 + $0x1f88] sm:$0xff]
    %v1059 = vld [vmem:[%s1 + $0x1f90] sm:$0xff]
    %v1060 = vld [vmem:[%s1 + $0x1f98] sm:$0xff]
    %v1061 = vld [vmem:[%s1 + $0x1fa0] sm:$0xff]
    %v1062 = vld [vmem:[%s1 + $0x1fa8] sm:$0xff]
    %v1063 = vld [vmem:[%s1 + $0x1fb0] sm:$0xff]
    %v1064 = vld [vmem:[%s1 + $0x1fb8] sm:$0xff]
    %v1065 = vld [vmem:[%s1 + $0x1fc0] sm:$0xff]
    %v1066 = vld [vmem:[%s1 + $0x1fc8] sm:$0xff]
    %v1067 = vld [vmem:[%s1 + $0x1fd0] sm:$0xff]
    %v1068 = vld [vmem:[%s1 + $0x1fd8] sm:$0xff]
    %v1069 = vld [vmem:[%s1 + $0x1fe0] sm:$0xff]
    %v1070 = vld [vmem:[%s1 + $0x1fe8] sm:$0xff]
    %v1071 = vld [vmem:[%s1 + $0x1ff0] sm:$0xff]
    %v1072 = vld [vmem:[%s1 + $0x1ff8] sm:$0xff]
    %v1073 = vld [vmem:[%s1 + $0x2000] sm:$0xff]
    %v1074 = vld [vmem:[%s1 + $0x2008] sm:$0xff]
    %v1075 = vld [vmem:[%s1 + $0x2010] sm:$0xff]
    %v1076 = vld [vmem:[%s1 + $0x2018] sm:$0xff]
    %v1077 = vld [vmem:[%s1 + $0x2020] sm:$0xff]
    %v1078 = vld [vmem:[%s1 + $0x2028] sm:$0xff]
    %v1079 = vld [vmem:[%s1 + $0x2030] sm:$0xff]
    %v1080 = vld [vmem:[%s1 + $0x2038] sm:$0xff]
    %v1081 = vld [vmem:[%s1 + $0x2040] sm:$0xff]
    %v1082 = vld [vmem:[%s1 + $0x2048] sm:$0xff]
    %v1083 = vld [vmem:[%s1 + $0x2050] sm:$0xff]
    %v1084 = vld [vmem:[%s1 + $0x2058] sm:$0xff]
    %v1085 = vld [vmem:[%s1 + $0x2060] sm:$0xff]
    %v1086 = vld [vmem:[%s1 + $0x2068] sm:$0xff]
    %v1087 = vld [vmem:[%s1 + $0x2070] sm:$0xff]
    %v1088 = vld [vmem:[%s1 + $0x2078] sm:$0xff]
    %v1089 = vld [vmem:[%s1 + $0x2080] sm:$0xff]
    %v1090 = vld [vmem:[%s1 + $0x2088] sm:$0xff]
    %v1091 = vld [vmem:[%s1 + $0x2090] sm:$0xff]
    %v1092 = vld [vmem:[%s1 + $0x2098] sm:$0xff]
    %v1093 = vld [vmem:[%s1 + $0x20a0] sm:$0xff]
    %v1094 = vld [vmem:[%s1 + $0x20a8] sm:$0xff]
    %v1095 = vld [vmem:[%s1 + $0x20b0] sm:$0xff]
    %v1096 = vld [vmem:[%s1 + $0x20b8] sm:$0xff]
    %v1097 = vld [vmem:[%s1 + $0x20c0] sm:$0xff]
    %v1098 = vld [vmem:[%s1 + $0x20c8] sm:$0xff]
    %v1099 = vld [vmem:[%s1 + $0x20d0] sm:$0xff]
    %v1100 = vld [vmem:[%s1 + $0x20d8] sm:$0xff]
    %v1101 = vld [vmem:[%s1 + $0x20e0] sm:$0xff]
    %v1102 = vld [vmem:[%s1 + $0x20e8] sm:$0xff]
    %v1103 = vld [vmem:[%s1 + $0x20f0] sm:$0xff]
    %v1104 = vld [vmem:[%s1 + $0x20f8] sm:$0xff]
    %v1105 = vld [vmem:[%s1 + $0x2100] sm:$0xff]
    %v1106 = vld [vmem:[%s1 + $0x2108] sm:$0xff]
    %v1107 = vld [vmem:[%s1 + $0x2110] sm:$0xff]
    %v1108 = vld [vmem:[%s1 + $0x2118] sm:$0xff]
    %v1109 = vld [vmem:[%s1 + $0x2120] sm:$0xff]
    %v1110 = vld [vmem:[%s1 + $0x2128] sm:$0xff]
    %v1111 = vld [vmem:[%s1 + $0x2130] sm:$0xff]
    %v1112 = vld [vmem:[%s1 + $0x2138] sm:$0xff]
    %v1113 = vld [vmem:[%s1 + $0x2140] sm:$0xff]
    %v1114 = vld [vmem:[%s1 + $0x2148] sm:$0xff]
    %v1115 = vld [vmem:[%s1 + $0x2150] sm:$0xff]
    %v1116 = vld [vmem:[%s1 + $0x2158] sm:$0xff]
    %v1117 = vld [vmem:[%s1 + $0x2160] sm:$0xff]
    %v1118 = vld [vmem:[%s1 + $0x2168] sm:$0xff]
    %v1119 = vld [vmem:[%s1 + $0x2170] sm:$0xff]
    %v1120 = vld [vmem:[%s1 + $0x2178] sm:$0xff]
    %v1121 = vld [vmem:[%s1 + $0x2180] sm:$0xff]
    %v1122 = vld [vmem:[%s1 + $0x2188] sm:$0xff]
    %v1123 = vld [vmem:[%s1 + $0x2190] sm:$0xff]
    %v1124 = vld [vmem:[%s1 + $0x2198] sm:$0xff]
    %v1125 = vld [vmem:[%s1 + $0x21a0] sm:$0xff]
    %v1126 = vld [vmem:[%s1 + $0x21a8] sm:$0xff]
    %v1127 = vld [vmem:[%s1 + $0x21b0] sm:$0xff]
    %v1128 = vld [vmem:[%s1 + $0x21b8] sm:$0xff]
    %v1129 = vld [vmem:[%s1 + $0x21c0] sm:$0xff]
    %v1130 = vld [vmem:[%s1 + $0x21c8] sm:$0xff]
    %v1131 = vld [vmem:[%s1 + $0x21d0] sm:$0xff]
    %v1132 = vld [vmem:[%s1 + $0x21d8] sm:$0xff]
    %v1133 = vld [vmem:[%s1 + $0x21e0] sm:$0xff]
    %v1134 = vld [vmem:[%s1 + $0x21e8] sm:$0xff]
    %v1135 = vld [vmem:[%s1 + $0x21f0] sm:$0xff]
    %v1136 = vld [vmem:[%s1 + $0x21f8] sm:$0xff]
    %v1137 = vld [vmem:[%s1 + $0x2200] sm:$0xff]
    %v1138 = vld [vmem:[%s1 + $0x2208] sm:$0xff]
    %v1139 = vld [vmem:[%s1 + $0x2210] sm:$0xff]
    %v1140 = vld [vmem:[%s1 + $0x2218] sm:$0xff]
    %v1141 = vld [vmem:[%s1 + $0x2220] sm:$0xff]
    %v1142 = vld [vmem:[%s1 + $0x2228] sm:$0xff]
    %v1143 = vld [vmem:[%s1 + $0x2230] sm:$0xff]
    %v1144 = vld [vmem:[%s1 + $0x2238] sm:$0xff]
    %v1145 = vld [vmem:[%s1 + $0x2240] sm:$0xff]
    %v1146 = vld [vmem:[%s1 + $0x2248] sm:$0xff]
    %v1147 = vld [vmem:[%s1 + $0x2250] sm:$0xff]
    %v1148 = vld [vmem:[%s1 + $0x2258] sm:$0xff]
    %v1149 = vld [vmem:[%s1 + $0x2260] sm:$0xff]
    %v1150 = vld [vmem:[%s1 + $0x2268] sm:$0xff]
    %v1151 = vld [vmem:[%s1 + $0x2270] sm:$0xff]
    %v1152 = vld [vmem:[%s1 + $0x2278] sm:$0xff]
    %v1153 = vld [vmem:[%s1 + $0x2280] sm:$0xff]
    %v1154 = vld [vmem:[%s1 + $0x2288] sm:$0xff]
    %v1155 = vld [vmem:[%s1 + $0x2290] sm:$0xff]
    %v1156 = vld [vmem:[%s1 + $0x2298] sm:$0xff]
    %v1157 = vld [vmem:[%s1 + $0x22a0] sm:$0xff]
    %v1158 = vld [vmem:[%s1 + $0x22a8] sm:$0xff]
    %v1159 = vld [vmem:[%s1 + $0x22b0] sm:$0xff]
    %v1160 = vld [vmem:[%s1 + $0x22b8] sm:$0xff]
    %v1161 = vld [vmem:[%s1 + $0x22c0] sm:$0xff]
    %v1162 = vld [vmem:[%s1 + $0x22c8] sm:$0xff]
    %v1163 = vld [vmem:[%s1 + $0x22d0] sm:$0xff]
    %v1164 = vld [vmem:[%s1 + $0x22d8] sm:$0xff]
    %v1165 = vld [vmem:[%s1 + $0x22e0] sm:$0xff]
    %v1166 = vld [vmem:[%s1 + $0x22e8] sm:$0xff]
    %v1167 = vld [vmem:[%s1 + $0x22f0] sm:$0xff]
    %v1168 = vld [vmem:[%s1 + $0x22f8] sm:$0xff]
    %v1169 = vld [vmem:[%s1 + $0x2300] sm:$0xff]
    %v1170 = vld [vmem:[%s1 + $0x2308] sm:$0xff]
    %v1171 = vld [vmem:[%s1 + $0x2310] sm:$0xff]
    %v1172 = vld [vmem:[%s1 + $0x2318] sm:$0xff]
    %v1173 = vld [vmem:[%s1 + $0x2320] sm:$0xff]
    %v1174 = vld [vmem:[%s1 + $0x2328] sm:$0xff]
    %v1175 = vld [vmem:[%s1 + $0x2330] sm:$0xff]
    %v1176 = vld [vmem:[%s1 + $0x2338] sm:$0xff]
    %v1177 = vld [vmem:[%s1 + $0x2340] sm:$0xff]
    %v1178 = vld [vmem:[%s1 + $0x2348] sm:$0xff]
    %v1179 = vld [vmem:[%s1 + $0x2350] sm:$0xff]
    %v1180 = vld [vmem:[%s1 + $0x2358] sm:$0xff]
    %v1181 = vld [vmem:[%s1 + $0x2360] sm:$0xff]
    %v1182 = vld [vmem:[%s1 + $0x2368] sm:$0xff]
    %v1183 = vld [vmem:[%s1 + $0x2370] sm:$0xff]
    %v1184 = vld [vmem:[%s1 + $0x2378] sm:$0xff]
    %v1185 = vld [vmem:[%s1 + $0x2380] sm:$0xff]
    %v1186 = vld [vmem:[%s1 + $0x2388] sm:$0xff]
    %v1187 = vld [vmem:[%s1 + $0x2390] sm:$0xff]
    %v1188 = vld [vmem:[%s1 + $0x2398] sm:$0xff]
    %v1189 = vld [vmem:[%s1 + $0x23a0] sm:$0xff]
    %v1190 = vld [vmem:[%s1 + $0x23a8] sm:$0xff]
    %v1191 = vld [vmem:[%s1 + $0x23b0] sm:$0xff]
    %v1192 = vld [vmem:[%s1 + $0x23b8] sm:$0xff]
    %v1193 = vld [vmem:[%s1 + $0x23c0] sm:$0xff]
    %v1194 = vld [vmem:[%s1 + $0x23c8] sm:$0xff]
    %v1195 = vld [vmem:[%s1 + $0x23d0] sm:$0xff]
    %v1196 = vld [vmem:[%s1 + $0x23d8] sm:$0xff]
    %v1197 = vld [vmem:[%s1 + $0x23e0] sm:$0xff]
    %v1198 = vld [vmem:[%s1 + $0x23e8] sm:$0xff]
    %v1199 = vld [vmem:[%s1 + $0x23f0] sm:$0xff]
    %v1200 = vld [vmem:[%s1 + $0x23f8] sm:$0xff]
    %v1201 = vld [vmem:[%s1 + $0x2400] sm:$0xff]
    %v1202 = vld [vmem:[%s1 + $0x2408] sm:$0xff]
    %v1203 = vld [vmem:[%s1 + $0x2410] sm:$0xff]
    %v1204 = vld [vmem:[%s1 + $0x2418] sm:$0xff]
    %v1205 = vld [vmem:[%s1 + $0x2420] sm:$0xff]
    %v1206 = vld [vmem:[%s1 + $0x2428] sm:$0xff]
    %v1207 = vld [vmem:[%s1 + $0x2430] sm:$0xff]
    %v1208 = vld [vmem:[%s1 + $0x2438] sm:$0xff]
    %v1209 = vld [vmem:[%s1 + $0x2440] sm:$0xff]
    %v1210 = vld [vmem:[%s1 + $0x2448] sm:$0xff]
    %v1211 = vld [vmem:[%s1 + $0x2450] sm:$0xff]
    %v1212 = vld [vmem:[%s1 + $0x2458] sm:$0xff]
    %v1213 = vld [vmem:[%s1 + $0x2460] sm:$0xff]
    %v1214 = vld [vmem:[%s1 + $0x2468] sm:$0xff]
    %v1215 = vld [vmem:[%s1 + $0x2470] sm:$0xff]
    %v1216 = vld [vmem:[%s1 + $0x2478] sm:$0xff]
    %v1217 = vld [vmem:[%s1 + $0x2480] sm:$0xff]
    %v1218 = vld [vmem:[%s1 + $0x2488] sm:$0xff]
    %v1219 = vld [vmem:[%s1 + $0x2490] sm:$0xff]
    %v1220 = vld [vmem:[%s1 + $0x2498] sm:$0xff]
    %v1221 = vld [vmem:[%s1 + $0x24a0] sm:$0xff]
    %v1222 = vld [vmem:[%s1 + $0x24a8] sm:$0xff]
    %v1223 = vld [vmem:[%s1 + $0x24b0] sm:$0xff]
    %v1224 = vld [vmem:[%s1 + $0x24b8] sm:$0xff]
    %v1225 = vld [vmem:[%s1 + $0x24c0] sm:$0xff]
    %v1226 = vld [vmem:[%s1 + $0x24c8] sm:$0xff]
    %v1227 = vld [vmem:[%s1 + $0x24d0] sm:$0xff]
    %v1228 = vld [vmem:[%s1 + $0x24d8] sm:$0xff]
    %v1229 = vld [vmem:[%s1 + $0x24e0] sm:$0xff]
    %v1230 = vld [vmem:[%s1 + $0x24e8] sm:$0xff]
    %v1231 = vld [vmem:[%s1 + $0x24f0] sm:$0xff]
    %v1232 = vld [vmem:[%s1 + $0x24f8] sm:$0xff]
    %v1233 = vld [vmem:[%s1 + $0x2500] sm:$0xff]
    %v1234 = vld [vmem:[%s1 + $0x2508] sm:$0xff]
    %v1235 = vld [vmem:[%s1 + $0x2510] sm:$0xff]
    %v1236 = vld [vmem:[%s1 + $0x2518] sm:$0xff]
    %v1237 = vld [vmem:[%s1 + $0x2520] sm:$0xff]
    %v1238 = vld [vmem:[%s1 + $0x2528] sm:$0xff]
    %v1239 = vld [vmem:[%s1 + $0x2530] sm:$0xff]
    %v1240 = vld [vmem:[%s1 + $0x2538] sm:$0xff]
    %v1241 = vld [vmem:[%s1 + $0x2540] sm:$0xff]
    %v1242 = vld [vmem:[%s1 + $0x2548] sm:$0xff]
    %v1243 = vld [vmem:[%s1 + $0x2550] sm:$0xff]
    %v1244 = vld [vmem:[%s1 + $0x2558] sm:$0xff]
    %v1245 = vld [vmem:[%s1 + $0x2560] sm:$0xff]
    %v1246 = vld [vmem:[%s1 + $0x2568] sm:$0xff]
    %v1247 = vld [vmem:[%s1 + $0x2570] sm:$0xff]
    %v1248 = vld [vmem:[%s1 + $0x2578] sm:$0xff]
    %v1249 = vld [vmem:[%s1 + $0x2580] sm:$0xff]
    %v1250 = vld [vmem:[%s1 + $0x2588] sm:$0xff]
    %v1251 = vld [vmem:[%s1 + $0x2590] sm:$0xff]
    %v1252 = vld [vmem:[%s1 + $0x2598] sm:$0xff]
    %v1253 = vld [vmem:[%s1 + $0x25a0] sm:$0xff]
    %v1254 = vld [vmem:[%s1 + $0x25a8] sm:$0xff]
    %v1255 = vld [vmem:[%s1 + $0x25b0] sm:$0xff]
    %v1256 = vld [vmem:[%s1 + $0x25b8] sm:$0xff]
    %v1257 = vld [vmem:[%s1 + $0x25c0] sm:$0xff]
    %v1258 = vld [vmem:[%s1 + $0x25c8] sm:$0xff]
    %v1259 = vld [vmem:[%s1 + $0x25d0] sm:$0xff]
    %v1260 = vld [vmem:[%s1 + $0x25d8] sm:$0xff]
    %v1261 = vld [vmem:[%s1 + $0x25e0] sm:$0xff]
    %v1262 = vld [vmem:[%s1 + $0x25e8] sm:$0xff]
    %v1263 = vld [vmem:[%s1 + $0x25f0] sm:$0xff]
    %v1264 = vld [vmem:[%s1 + $0x25f8] sm:$0xff]
    %v1265 = vld [vmem:[%s1 + $0x2600] sm:$0xff]
    %v1266 = vld [vmem:[%s1 + $0x2608] sm:$0xff]
    %v1267 = vld [vmem:[%s1 + $0x2610] sm:$0xff]
    %v1268 = vld [vmem:[%s1 + $0x2618] sm:$0xff]
    %v1269 = vld [vmem:[%s1 + $0x2620] sm:$0xff]
    %v1270 = vld [vmem:[%s1 + $0x2628] sm:$0xff]
    %v1271 = vld [vmem:[%s1 + $0x2630] sm:$0xff]
    %v1272 = vld [vmem:[%s1 + $0x2638] sm:$0xff]
    %v1273 = vld [vmem:[%s1 + $0x2640] sm:$0xff]
    %v1274 = vld [vmem:[%s1 + $0x2648] sm:$0xff]
    %v1275 = vld [vmem:[%s1 + $0x2650] sm:$0xff]
    %v1276 = vld [vmem:[%s1 + $0x2658] sm:$0xff]
    %v1277 = vld [vmem:[%s1 + $0x2660] sm:$0xff]
    %v1278 = vld [vmem:[%s1 + $0x2668] sm:$0xff]
    %v1279 = vld [vmem:[%s1 + $0x2670] sm:$0xff]
    %v1280 = vld [vmem:[%s1 + $0x2678] sm:$0xff]
    %v1281 = vld [vmem:[%s1 + $0x2680] sm:$0xff]
    %v1282 = vld [vmem:[%s1 + $0x2688] sm:$0xff]
    %v1283 = vld [vmem:[%s1 + $0x2690] sm:$0xff]
    %v1284 = vld [vmem:[%s1 + $0x2698] sm:$0xff]
    %v1285 = vld [vmem:[%s1 + $0x26a0] sm:$0xff]
    %v1286 = vld [vmem:[%s1 + $0x26a8] sm:$0xff]
    %v1287 = vld [vmem:[%s1 + $0x26b0] sm:$0xff]
    %v1288 = vld [vmem:[%s1 + $0x26b8] sm:$0xff]
    %v1289 = vld [vmem:[%s1 + $0x26c0] sm:$0xff]
    %v1290 = vld [vmem:[%s1 + $0x26c8] sm:$0xff]
    %v1291 = vld [vmem:[%s1 + $0x26d0] sm:$0xff]
    %v1292 = vld [vmem:[%s1 + $0x26d8] sm:$0xff]
    %v1293 = vld [vmem:[%s1 + $0x26e0] sm:$0xff]
    %v1294 = vld [vmem:[%s1 + $0x26e8] sm:$0xff]
    %v1295 = vld [vmem:[%s1 + $0x26f0] sm:$0xff]
    %v1296 = vld [vmem:[%s1 + $0x26f8] sm:$0xff]
    %v1297 = vld [vmem:[%s1 + $0x2700] sm:$0xff]
    %v1298 = vld [vmem:[%s1 + $0x2708] sm:$0xff]
    %v1299 = vld [vmem:[%s1 + $0x2710] sm:$0xff]
    %v1300 = vld [vmem:[%s1 + $0x2718] sm:$0xff]
    %v1301 = vld [vmem:[%s1 + $0x2720] sm:$0xff]
    %v1302 = vld [vmem:[%s1 + $0x2728] sm:$0xff]
    %v1303 = vld [vmem:[%s1 + $0x2730] sm:$0xff]
    %v1304 = vld [vmem:[%s1 + $0x2738] sm:$0xff]
    %v1305 = vld [vmem:[%s1 + $0x2740] sm:$0xff]
    %v1306 = vld [vmem:[%s1 + $0x2748] sm:$0xff]
    %v1307 = vld [vmem:[%s1 + $0x2750] sm:$0xff]
    %v1308 = vld [vmem:[%s1 + $0x2758] sm:$0xff]
    %v1309 = vld [vmem:[%s1 + $0x2760] sm:$0xff]
    %v1310 = vld [vmem:[%s1 + $0x2768] sm:$0xff]
    %v1311 = vld [vmem:[%s1 + $0x2770] sm:$0xff]
    %v1312 = vld [vmem:[%s1 + $0x2778] sm:$0xff]
    %v1313 = vld [vmem:[%s1 + $0x2780] sm:$0xff]
    %v1314 = vld [vmem:[%s1 + $0x2788] sm:$0xff]
    %v1315 = vld [vmem:[%s1 + $0x2790] sm:$0xff]
    %v1316 = vld [vmem:[%s1 + $0x2798] sm:$0xff]
    %v1317 = vld [vmem:[%s1 + $0x27a0] sm:$0xff]
    %v1318 = vld [vmem:[%s1 + $0x27a8] sm:$0xff]
    %v1319 = vld [vmem:[%s1 + $0x27b0] sm:$0xff]
    %v1320 = vld [vmem:[%s1 + $0x27b8] sm:$0xff]
    %v1321 = vld [vmem:[%s1 + $0x27c0] sm:$0xff]
    %v1322 = vld [vmem:[%s1 + $0x27c8] sm:$0xff]
    %v1323 = vld [vmem:[%s1 + $0x27d0] sm:$0xff]
    %v1324 = vld [vmem:[%s1 + $0x27d8] sm:$0xff]
    %v1325 = vld [vmem:[%s1 + $0x27e0] sm:$0xff]
    %v1326 = vld [vmem:[%s1 + $0x27e8] sm:$0xff]
    %v1327 = vld [vmem:[%s1 + $0x27f0] sm:$0xff]
    %v1328 = vld [vmem:[%s1 + $0x27f8] sm:$0xff]
    %v1329 = vld [vmem:[%s1 + $0x2800] sm:$0xff]
    %v1330 = vld [vmem:[%s1 + $0x2808] sm:$0xff]
    %v1331 = vld [vmem:[%s1 + $0x2810] sm:$0xff]
    %v1332 = vld [vmem:[%s1 + $0x2818] sm:$0xff]
    %v1333 = vld [vmem:[%s1 + $0x2820] sm:$0xff]
    %v1334 = vld [vmem:[%s1 + $0x2828] sm:$0xff]
    %v1335 = vld [vmem:[%s1 + $0x2830] sm:$0xff]
    %v1336 = vld [vmem:[%s1 + $0x2838] sm:$0xff]
    %v1337 = vld [vmem:[%s1 + $0x2840] sm:$0xff]
    %v1338 = vld [vmem:[%s1 + $0x2848] sm:$0xff]
    %v1339 = vld [vmem:[%s1 + $0x2850] sm:$0xff]
    %v1340 = vld [vmem:[%s1 + $0x2858] sm:$0xff]
    %v1341 = vld [vmem:[%s1 + $0x2860] sm:$0xff]
    %v1342 = vld [vmem:[%s1 + $0x2868] sm:$0xff]
    %v1343 = vld [vmem:[%s1 + $0x2870] sm:$0xff]
    %v1344 = vld [vmem:[%s1 + $0x2878] sm:$0xff]
    %v1345 = vld [vmem:[%s1 + $0x2880] sm:$0xff]
    %v1346 = vld [vmem:[%s1 + $0x2888] sm:$0xff]
    %v1347 = vld [vmem:[%s1 + $0x2890] sm:$0xff]
    %v1348 = vld [vmem:[%s1 + $0x2898] sm:$0xff]
    %v1349 = vld [vmem:[%s1 + $0x28a0] sm:$0xff]
    %v1350 = vld [vmem:[%s1 + $0x28a8] sm:$0xff]
    %v1351 = vld [vmem:[%s1 + $0x28b0] sm:$0xff]
    %v1352 = vld [vmem:[%s1 + $0x28b8] sm:$0xff]
    %v1353 = vld [vmem:[%s1 + $0x28c0] sm:$0xff]
    %v1354 = vld [vmem:[%s1 + $0x28c8] sm:$0xff]
    %v1355 = vld [vmem:[%s1 + $0x28d0] sm:$0xff]
    %v1356 = vld [vmem:[%s1 + $0x28d8] sm:$0xff]
    %v1357 = vld [vmem:[%s1 + $0x28e0] sm:$0xff]
    %v1358 = vld [vmem:[%s1 + $0x28e8] sm:$0xff]
    %v1359 = vld [vmem:[%s1 + $0x28f0] sm:$0xff]
    %v1360 = vld [vmem:[%s1 + $0x28f8] sm:$0xff]
    %v1361 = vld [vmem:[%s1 + $0x2900] sm:$0xff]
    %v1362 = vld [vmem:[%s1 + $0x2908] sm:$0xff]
    %v1363 = vld [vmem:[%s1 + $0x2910] sm:$0xff]
    %v1364 = vld [vmem:[%s1 + $0x2918] sm:$0xff]
    %v1365 = vld [vmem:[%s1 + $0x2920] sm:$0xff]
    %v1366 = vld [vmem:[%s1 + $0x2928] sm:$0xff]
    %v1367 = vld [vmem:[%s1 + $0x2930] sm:$0xff]
    %v1368 = vld [vmem:[%s1 + $0x2938] sm:$0xff]
    %v1369 = vld [vmem:[%s1 + $0x2940] sm:$0xff]
    %v1370 = vld [vmem:[%s1 + $0x2948] sm:$0xff]
    %v1371 = vld [vmem:[%s1 + $0x2950] sm:$0xff]
    %v1372 = vld [vmem:[%s1 + $0x2958] sm:$0xff]
    %v1373 = vld [vmem:[%s1 + $0x2960] sm:$0xff]
    %v1374 = vld [vmem:[%s1 + $0x2968] sm:$0xff]
    %v1375 = vld [vmem:[%s1 + $0x2970] sm:$0xff]
    %v1376 = vld [vmem:[%s1 + $0x2978] sm:$0xff]
    %v1377 = vld [vmem:[%s1 + $0x2980] sm:$0xff]
    %v1378 = vld [vmem:[%s1 + $0x2988] sm:$0xff]
    %v1379 = vld [vmem:[%s1 + $0x2990] sm:$0xff]
    %v1380 = vld [vmem:[%s1 + $0x2998] sm:$0xff]
    %v1381 = vld [vmem:[%s1 + $0x29a0] sm:$0xff]
    %v1382 = vld [vmem:[%s1 + $0x29a8] sm:$0xff]
    %v1383 = vld [vmem:[%s1 + $0x29b0] sm:$0xff]
    %v1384 = vld [vmem:[%s1 + $0x29b8] sm:$0xff]
    %v1385 = vld [vmem:[%s1 + $0x29c0] sm:$0xff]
    %v1386 = vld [vmem:[%s1 + $0x29c8] sm:$0xff]
    %v1387 = vld [vmem:[%s1 + $0x29d0] sm:$0xff]
    %v1388 = vld [vmem:[%s1 + $0x29d8] sm:$0xff]
    %v1389 = vld [vmem:[%s1 + $0x29e0] sm:$0xff]
    %v1390 = vld [vmem:[%s1 + $0x29e8] sm:$0xff]
    %v1391 = vld [vmem:[%s1 + $0x29f0] sm:$0xff]
    %v1392 = vld [vmem:[%s1 + $0x29f8] sm:$0xff]
    %v1393 = vld [vmem:[%s1 + $0x2a00] sm:$0xff]
    %v1394 = vld [vmem:[%s1 + $0x2a08] sm:$0xff]
    %v1395 = vld [vmem:[%s1 + $0x2a10] sm:$0xff]
    %v1396 = vld [vmem:[%s1 + $0x2a18] sm:$0xff]
    %v1397 = vld [vmem:[%s1 + $0x2a20] sm:$0xff]
    %v1398 = vld [vmem:[%s1 + $0x2a28] sm:$0xff]
    %v1399 = vld [vmem:[%s1 + $0x2a30] sm:$0xff]
    %v1400 = vld [vmem:[%s1 + $0x2a38] sm:$0xff]
    %v1401 = vld [vmem:[%s2] sm:$0x1]
    %v1403 = vlaneseq
    %v1404 = vshrl.u32 %v1403, 7
    %v1405 = vsub.s32 0, %v1404
    %v1406 = vrot.slane %v1401, %v1405
    %v1430 = vcombine.high %v27, %v27
    %v1432 = vunpack.c.l.s4 1983009808
    %v1433 = vunpack.c.0.s8 %v1432
    %v1434 = vlaneseq
    %v1435 = vshrl.u32 %v1434, 7
    %v1436 = vsub.s32 %v1433, %v1435
    %v1437 = vrot.slane %v27, %v1436
    %v1439 = vunpack.c.l.s4 1983009808
    %v1440 = vunpack.c.0.s8 %v1439
    %v1441 = vlaneseq
    %v1442 = vshrl.u32 %v1441, 7
    %v1443 = vsub.s32 %v1440, %v1442
    %v1444 = vrot.slane %v1430, %v1443
    %v1445 = vcombine.high %v1437, %v1437
    %v1446 = vcombine.high %v1444, %v1444
    %v1447 = vcombine.high %v28, %v28
    %v1449 = vunpack.c.l.s4 1983009808
    %v1450 = vunpack.c.0.s8 %v1449
    %v1451 = vlaneseq
    %v1452 = vshrl.u32 %v1451, 7
    %v1453 = vsub.s32 %v1450, %v1452
    %v1454 = vrot.slane %v28, %v1453
    %v1456 = vunpack.c.l.s4 1983009808
    %v1457 = vunpack.c.0.s8 %v1456
    %v1458 = vlaneseq
    %v1459 = vshrl.u32 %v1458, 7
    %v1460 = vsub.s32 %v1457, %v1459
    %v1461 = vrot.slane %v1447, %v1460
    %v1462 = vcombine.high %v1454, %v1454
    %v1463 = vcombine.high %v1461, %v1461
    %v1464 = vcombine.high %v29, %v29
    %v1466 = vunpack.c.l.s4 1983009808
    %v1467 = vunpack.c.0.s8 %v1466
    %v1468 = vlaneseq
    %v1469 = vshrl.u32 %v1468, 7
    %v1470 = vsub.s32 %v1467, %v1469
    %v1471 = vrot.slane %v29, %v1470
    %v1473 = vunpack.c.l.s4 1983009808
    %v1474 = vunpack.c.0.s8 %v1473
    %v1475 = vlaneseq
    %v1476 = vshrl.u32 %v1475, 7
    %v1477 = vsub.s32 %v1474, %v1476
    %v1478 = vrot.slane %v1464, %v1477
    %v1479 = vcombine.high %v1471, %v1471
    %v1480 = vcombine.high %v1478, %v1478
    %v1481 = vcombine.high %v30, %v30
    %v1483 = vunpack.c.l.s4 1983009808
    %v1484 = vunpack.c.0.s8 %v1483
    %v1485 = vlaneseq
    %v1486 = vshrl.u32 %v1485, 7
    %v1487 = vsub.s32 %v1484, %v1486
    %v1488 = vrot.slane %v30, %v1487
    %v1490 = vunpack.c.l.s4 1983009808
    %v1491 = vunpack.c.0.s8 %v1490
    %v1492 = vlaneseq
    %v1493 = vshrl.u32 %v1492, 7
    %v1494 = vsub.s32 %v1491, %v1493
    %v1495 = vrot.slane %v1481, %v1494
    %v1496 = vcombine.high %v1488, %v1488
    %v1497 = vcombine.high %v1495, %v1495
    %v1498 = vcombine.high %v31, %v31
    %v1500 = vunpack.c.l.s4 1983009808
    %v1501 = vunpack.c.0.s8 %v1500
    %v1502 = vlaneseq
    %v1503 = vshrl.u32 %v1502, 7
    %v1504 = vsub.s32 %v1501, %v1503
    %v1505 = vrot.slane %v31, %v1504
    %v1507 = vunpack.c.l.s4 1983009808
    %v1508 = vunpack.c.0.s8 %v1507
    %v1509 = vlaneseq
    %v1510 = vshrl.u32 %v1509, 7
    %v1511 = vsub.s32 %v1508, %v1510
    %v1512 = vrot.slane %v1498, %v1511
    %v1513 = vcombine.high %v1505, %v1505
    %v1514 = vcombine.high %v1512, %v1512
    %v1515 = vcombine.high %v32, %v32
    %v1517 = vunpack.c.l.s4 1983009808
    %v1518 = vunpack.c.0.s8 %v1517
    %v1519 = vlaneseq
    %v1520 = vshrl.u32 %v1519, 7
    %v1521 = vsub.s32 %v1518, %v1520
    %v1522 = vrot.slane %v32, %v1521
    %v1524 = vunpack.c.l.s4 1983009808
    %v1525 = vunpack.c.0.s8 %v1524
    %v1526 = vlaneseq
    %v1527 = vshrl.u32 %v1526, 7
    %v1528 = vsub.s32 %v1525, %v1527
    %v1529 = vrot.slane %v1515, %v1528
    %v1530 = vcombine.high %v1522, %v1522
    %v1531 = vcombine.high %v1529, %v1529
    %v1532 = vcombine.high %v33, %v33
    %v1534 = vunpack.c.l.s4 1983009808
    %v1535 = vunpack.c.0.s8 %v1534
    %v1536 = vlaneseq
    %v1537 = vshrl.u32 %v1536, 7
    %v1538 = vsub.s32 %v1535, %v1537
    %v1539 = vrot.slane %v33, %v1538
    %v1541 = vunpack.c.l.s4 1983009808
    %v1542 = vunpack.c.0.s8 %v1541
    %v1543 = vlaneseq
    %v1544 = vshrl.u32 %v1543, 7
    %v1545 = vsub.s32 %v1542, %v1544
    %v1546 = vrot.slane %v1532, %v1545
    %v1547 = vcombine.high %v1539, %v1539
    %v1548 = vcombine.high %v1546, %v1546
    %v1549 = vcombine.high %v34, %v34
    %v1551 = vunpack.c.l.s4 1983009808
    %v1552 = vunpack.c.0.s8 %v1551
    %v1553 = vlaneseq
    %v1554 = vshrl.u32 %v1553, 7
    %v1555 = vsub.s32 %v1552, %v1554
    %v1556 = vrot.slane %v34, %v1555
    %v1558 = vunpack.c.l.s4 1983009808
    %v1559 = vunpack.c.0.s8 %v1558
    %v1560 = vlaneseq
    %v1561 = vshrl.u32 %v1560, 7
    %v1562 = vsub.s32 %v1559, %v1561
    %v1563 = vrot.slane %v1549, %v1562
    %v1564 = vcombine.high %v1556, %v1556
    %v1565 = vcombine.high %v1563, %v1563
    %v1566 = vcombine.high %v35, %v35
    %v1568 = vunpack.c.l.s4 1983009808
    %v1569 = vunpack.c.0.s8 %v1568
    %v1570 = vlaneseq
    %v1571 = vshrl.u32 %v1570, 7
    %v1572 = vsub.s32 %v1569, %v1571
    %v1573 = vrot.slane %v35, %v1572
    %v1575 = vunpack.c.l.s4 1983009808
    %v1576 = vunpack.c.0.s8 %v1575
    %v1577 = vlaneseq
    %v1578 = vshrl.u32 %v1577, 7
    %v1579 = vsub.s32 %v1576, %v1578
    %v1580 = vrot.slane %v1566, %v1579
    %v1581 = vcombine.high %v1573, %v1573
    %v1582 = vcombine.high %v1580, %v1580
    %v1583 = vcombine.high %v36, %v36
    %v1585 = vunpack.c.l.s4 1983009808
    %v1586 = vunpack.c.0.s8 %v1585
    %v1587 = vlaneseq
    %v1588 = vshrl.u32 %v1587, 7
    %v1589 = vsub.s32 %v1586, %v1588
    %v1590 = vrot.slane %v36, %v1589
    %v1592 = vunpack.c.l.s4 1983009808
    %v1593 = vunpack.c.0.s8 %v1592
    %v1594 = vlaneseq
    %v1595 = vshrl.u32 %v1594, 7
    %v1596 = vsub.s32 %v1593, %v1595
    %v1597 = vrot.slane %v1583, %v1596
    %v1598 = vcombine.high %v1590, %v1590
    %v1599 = vcombine.high %v1597, %v1597
    %v1600 = vcombine.high %v37, %v37
    %v1602 = vunpack.c.l.s4 1983009808
    %v1603 = vunpack.c.0.s8 %v1602
    %v1604 = vlaneseq
    %v1605 = vshrl.u32 %v1604, 7
    %v1606 = vsub.s32 %v1603, %v1605
    %v1607 = vrot.slane %v37, %v1606
    %v1609 = vunpack.c.l.s4 1983009808
    %v1610 = vunpack.c.0.s8 %v1609
    %v1611 = vlaneseq
    %v1612 = vshrl.u32 %v1611, 7
    %v1613 = vsub.s32 %v1610, %v1612
    %v1614 = vrot.slane %v1600, %v1613
    %v1615 = vcombine.high %v1607, %v1607
    %v1616 = vcombine.high %v1614, %v1614
    %v1617 = vcombine.high %v38, %v38
    %v1619 = vunpack.c.l.s4 1983009808
    %v1620 = vunpack.c.0.s8 %v1619
    %v1621 = vlaneseq
    %v1622 = vshrl.u32 %v1621, 7
    %v1623 = vsub.s32 %v1620, %v1622
    %v1624 = vrot.slane %v38, %v1623
    %v1626 = vunpack.c.l.s4 1983009808
    %v1627 = vunpack.c.0.s8 %v1626
    %v1628 = vlaneseq
    %v1629 = vshrl.u32 %v1628, 7
    %v1630 = vsub.s32 %v1627, %v1629
    %v1631 = vrot.slane %v1617, %v1630
    %v1632 = vcombine.high %v1624, %v1624
    %v1633 = vcombine.high %v1631, %v1631
    %v1634 = vcombine.high %v39, %v39
    %v1636 = vunpack.c.l.s4 1983009808
    %v1637 = vunpack.c.0.s8 %v1636
    %v1638 = vlaneseq
    %v1639 = vshrl.u32 %v1638, 7
    %v1640 = vsub.s32 %v1637, %v1639
    %v1641 = vrot.slane %v39, %v1640
    %v1643 = vunpack.c.l.s4 1983009808
    %v1644 = vunpack.c.0.s8 %v1643
    %v1645 = vlaneseq
    %v1646 = vshrl.u32 %v1645, 7
    %v1647 = vsub.s32 %v1644, %v1646
    %v1648 = vrot.slane %v1634, %v1647
    %v1649 = vcombine.high %v1641, %v1641
    %v1650 = vcombine.high %v1648, %v1648
    %v1651 = vcombine.high %v40, %v40
    %v1653 = vunpack.c.l.s4 1983009808
    %v1654 = vunpack.c.0.s8 %v1653
    %v1655 = vlaneseq
    %v1656 = vshrl.u32 %v1655, 7
    %v1657 = vsub.s32 %v1654, %v1656
    %v1658 = vrot.slane %v40, %v1657
    %v1660 = vunpack.c.l.s4 1983009808
    %v1661 = vunpack.c.0.s8 %v1660
    %v1662 = vlaneseq
    %v1663 = vshrl.u32 %v1662, 7
    %v1664 = vsub.s32 %v1661, %v1663
    %v1665 = vrot.slane %v1651, %v1664
    %v1666 = vcombine.high %v1658, %v1658
    %v1667 = vcombine.high %v1665, %v1665
    %v1668 = vcombine.high %v41, %v41
    %v1670 = vunpack.c.l.s4 1983009808
    %v1671 = vunpack.c.0.s8 %v1670
    %v1672 = vlaneseq
    %v1673 = vshrl.u32 %v1672, 7
    %v1674 = vsub.s32 %v1671, %v1673
    %v1675 = vrot.slane %v41, %v1674
    %v1677 = vunpack.c.l.s4 1983009808
    %v1678 = vunpack.c.0.s8 %v1677
    %v1679 = vlaneseq
    %v1680 = vshrl.u32 %v1679, 7
    %v1681 = vsub.s32 %v1678, %v1680
    %v1682 = vrot.slane %v1668, %v1681
    %v1683 = vcombine.high %v1675, %v1675
    %v1684 = vcombine.high %v1682, %v1682
    %v1685 = vcombine.high %v42, %v42
    %v1687 = vunpack.c.l.s4 1983009808
    %v1688 = vunpack.c.0.s8 %v1687
    %v1689 = vlaneseq
    %v1690 = vshrl.u32 %v1689, 7
    %v1691 = vsub.s32 %v1688, %v1690
    %v1692 = vrot.slane %v42, %v1691
    %v1694 = vunpack.c.l.s4 1983009808
    %v1695 = vunpack.c.0.s8 %v1694
    %v1696 = vlaneseq
    %v1697 = vshrl.u32 %v1696, 7
    %v1698 = vsub.s32 %v1695, %v1697
    %v1699 = vrot.slane %v1685, %v1698
    %v1700 = vcombine.high %v1692, %v1692
    %v1701 = vcombine.high %v1699, %v1699
    %v1702 = vcombine.high %v43, %v43
    %v1704 = vunpack.c.l.s4 1983009808
    %v1705 = vunpack.c.0.s8 %v1704
    %v1706 = vlaneseq
    %v1707 = vshrl.u32 %v1706, 7
    %v1708 = vsub.s32 %v1705, %v1707
    %v1709 = vrot.slane %v43, %v1708
    %v1711 = vunpack.c.l.s4 1983009808
    %v1712 = vunpack.c.0.s8 %v1711
    %v1713 = vlaneseq
    %v1714 = vshrl.u32 %v1713, 7
    %v1715 = vsub.s32 %v1712, %v1714
    %v1716 = vrot.slane %v1702, %v1715
    %v1717 = vcombine.high %v1709, %v1709
    %v1718 = vcombine.high %v1716, %v1716
    %v1719 = vcombine.high %v44, %v44
    %v1721 = vunpack.c.l.s4 1983009808
    %v1722 = vunpack.c.0.s8 %v1721
    %v1723 = vlaneseq
    %v1724 = vshrl.u32 %v1723, 7
    %v1725 = vsub.s32 %v1722, %v1724
    %v1726 = vrot.slane %v44, %v1725
    %v1728 = vunpack.c.l.s4 1983009808
    %v1729 = vunpack.c.0.s8 %v1728
    %v1730 = vlaneseq
    %v1731 = vshrl.u32 %v1730, 7
    %v1732 = vsub.s32 %v1729, %v1731
    %v1733 = vrot.slane %v1719, %v1732
    %v1734 = vcombine.high %v1726, %v1726
    %v1735 = vcombine.high %v1733, %v1733
    %v1736 = vcombine.high %v45, %v45
    %v1738 = vunpack.c.l.s4 1983009808
    %v1739 = vunpack.c.0.s8 %v1738
    %v1740 = vlaneseq
    %v1741 = vshrl.u32 %v1740, 7
    %v1742 = vsub.s32 %v1739, %v1741
    %v1743 = vrot.slane %v45, %v1742
    %v1745 = vunpack.c.l.s4 1983009808
    %v1746 = vunpack.c.0.s8 %v1745
    %v1747 = vlaneseq
    %v1748 = vshrl.u32 %v1747, 7
    %v1749 = vsub.s32 %v1746, %v1748
    %v1750 = vrot.slane %v1736, %v1749
    %v1751 = vcombine.high %v1743, %v1743
    %v1752 = vcombine.high %v1750, %v1750
    %v1753 = vcombine.high %v46, %v46
    %v1755 = vunpack.c.l.s4 1983009808
    %v1756 = vunpack.c.0.s8 %v1755
    %v1757 = vlaneseq
    %v1758 = vshrl.u32 %v1757, 7
    %v1759 = vsub.s32 %v1756, %v1758
    %v1760 = vrot.slane %v46, %v1759
    %v1762 = vunpack.c.l.s4 1983009808
    %v1763 = vunpack.c.0.s8 %v1762
    %v1764 = vlaneseq
    %v1765 = vshrl.u32 %v1764, 7
    %v1766 = vsub.s32 %v1763, %v1765
    %v1767 = vrot.slane %v1753, %v1766
    %v1768 = vcombine.high %v1760, %v1760
    %v1769 = vcombine.high %v1767, %v1767
    %v1770 = vcombine.high %v47, %v47
    %v1772 = vunpack.c.l.s4 1983009808
    %v1773 = vunpack.c.0.s8 %v1772
    %v1774 = vlaneseq
    %v1775 = vshrl.u32 %v1774, 7
    %v1776 = vsub.s32 %v1773, %v1775
    %v1777 = vrot.slane %v47, %v1776
    %v1779 = vunpack.c.l.s4 1983009808
    %v1780 = vunpack.c.0.s8 %v1779
    %v1781 = vlaneseq
    %v1782 = vshrl.u32 %v1781, 7
    %v1783 = vsub.s32 %v1780, %v1782
    %v1784 = vrot.slane %v1770, %v1783
    %v1785 = vcombine.high %v1777, %v1777
    %v1786 = vcombine.high %v1784, %v1784
    %v1788 = vunpack.c.l.s4 1983009808
    %v1789 = vunpack.c.0.s8 %v1788
    %v1790 = vlaneseq
    %v1791 = vshrl.u32 %v1790, 7
    %v1792 = vsub.s32 %v1789, %v1791
    %v1793 = vrot.slane %v48, %v1792
    %vm1878 = vcmask 523264
    %v1879 = vsel %vm1878, %v1793, 0
    %1881 = vmatprep.subr.mxu0 0.0
    %1882 = vmatpush1.msra.mxu0 %v49
    %1883 = vmatprep.subr.mxu0 0.0
    %1884 = vmatpush1.msra.mxu0 %v50
    %1885 = vmatprep.subr.mxu0 0.0
    %1886 = vmatpush1.msra.mxu0 %v51
    %1887 = vmatprep.subr.mxu0 0.0
    %1888 = vmatpush1.msra.mxu0 %v52
    %1889 = vmatprep.subr.mxu0 0.0
    %1890 = vmatpush1.msra.mxu0 %v53
    %1891 = vmatprep.subr.mxu0 0.0
    %1892 = vmatpush1.msra.mxu0 %v54
    %1893 = vmatprep.subr.mxu0 0.0
    %1894 = vmatpush1.msra.mxu0 %v55
    %1895 = vmatprep.subr.mxu0 0.0
    %1896 = vmatpush1.msra.mxu0 %v56
    %1897 = vmatprep.subr.mxu0 0.0
    %1898 = vmatpush1.msra.mxu0 %v57
    %1899 = vmatprep.subr.mxu0 0.0
    %1900 = vmatpush1.msra.mxu0 %v58
    %1901 = vmatprep.subr.mxu0 0.0
    %1902 = vmatpush1.msra.mxu0 %v59
    %1903 = vmatprep.subr.mxu0 0.0
    %1904 = vmatpush1.msra.mxu0 %v60
    %1905 = vmatprep.subr.mxu0 0.0
    %1906 = vmatpush1.msra.mxu0 %v61
    %1907 = vmatprep.subr.mxu0 0.0
    %1908 = vmatpush1.msra.mxu0 %v62
    %1909 = vmatprep.subr.mxu0 0.0
    %1910 = vmatpush1.msra.mxu0 %v63
    %1911 = vmatprep.subr.mxu0 0.0
    %1912 = vmatpush1.msra.mxu0 %v64
    %1913 = vmatprep.subr.mxu0 0.0
    %1914 = vmatpush1.msra.mxu0 %v65
    %1915 = vmatprep.subr.mxu0 0.0
    %1916 = vmatpush1.msra.mxu0 %v66
    %1917 = vmatprep.subr.mxu0 0.0
    %1918 = vmatpush1.msra.mxu0 %v67
    %1919 = vmatprep.subr.mxu0 0.0
    %1920 = vmatpush1.msra.mxu0 %v68
    %1921 = vmatprep.subr.mxu0 0.0
    %1922 = vmatpush1.msra.mxu0 %v69
    %1923 = vmatprep.subr.mxu0 0.0
    %1924 = vmatpush1.msra.mxu0 %v70
    %1925 = vmatprep.subr.mxu0 0.0
    %1926 = vmatpush1.msra.mxu0 %v71
    %1927 = vmatprep.subr.mxu0 0.0
    %1928 = vmatpush1.msra.mxu0 %v72
    %1929 = vmatprep.subr.mxu0 0.0
    %1930 = vmatpush1.msra.mxu0 %v73
    %1931 = vmatprep.subr.mxu0 0.0
    %1932 = vmatpush1.msra.mxu0 %v74
    %1933 = vmatprep.subr.mxu0 0.0
    %1934 = vmatpush1.msra.mxu0 %v75
    %1935 = vmatprep.subr.mxu0 0.0
    %1936 = vmatpush1.msra.mxu0 %v76
    %1937 = vmatprep.subr.mxu0 0.0
    %1938 = vmatpush1.msra.mxu0 %v77
    %1939 = vmatprep.subr.mxu0 0.0
    %1940 = vmatpush1.msra.mxu0 %v78
    %1941 = vmatprep.subr.mxu0 0.0
    %1942 = vmatpush1.msra.mxu0 %v79
    %1943 = vmatprep.subr.mxu0 0.0
    %1944 = vmatpush1.msra.mxu0 %v80
    %1945 = vmatprep.mubr.f32.mxu0 %v1445
    %1946 = vmatmul.mubr.f32.gmra.mrb[0].mxu0 %v1437
    %v1947 = vpop.f32.mrb[0].mxu0
    %v1948 = vadd.f32 %v1406, %v1947
    %v1949 = vpop.f32.mrb[0].mxu0
    %1950 = vdwg.mxu0
    %1951 = vmatprep.subr.mxu0 0.0
    %1952 = vmatpush1.msra.mxu0 %v81
    %1953 = vmatprep.subr.mxu0 0.0
    %1954 = vmatpush1.msra.mxu0 %v82
    %1955 = vmatprep.subr.mxu0 0.0
    %1956 = vmatpush1.msra.mxu0 %v83
    %1957 = vmatprep.subr.mxu0 0.0
    %1958 = vmatpush1.msra.mxu0 %v84
    %1959 = vmatprep.subr.mxu0 0.0
    %1960 = vmatpush1.msra.mxu0 %v85
    %1961 = vmatprep.subr.mxu0 0.0
    %1962 = vmatpush1.msra.mxu0 %v86
    %1963 = vmatprep.subr.mxu0 0.0
    %1964 = vmatpush1.msra.mxu0 %v87
    %1965 = vmatprep.subr.mxu0 0.0
    %1966 = vmatpush1.msra.mxu0 %v88
    %1967 = vmatprep.subr.mxu0 0.0
    %1968 = vmatpush1.msra.mxu0 %v89
    %1969 = vmatprep.subr.mxu0 0.0
    %1970 = vmatpush1.msra.mxu0 %v90
    %1971 = vmatprep.subr.mxu0 0.0
    %1972 = vmatpush1.msra.mxu0 %v91
    %1973 = vmatprep.subr.mxu0 0.0
    %1974 = vmatpush1.msra.mxu0 %v92
    %1975 = vmatprep.subr.mxu0 0.0
    %1976 = vmatpush1.msra.mxu0 %v93
    %1977 = vmatprep.subr.mxu0 0.0
    %1978 = vmatpush1.msra.mxu0 %v94
    %1979 = vmatprep.subr.mxu0 0.0
    %1980 = vmatpush1.msra.mxu0 %v95
    %1981 = vmatprep.subr.mxu0 0.0
    %1982 = vmatpush1.msra.mxu0 %v96
    %1983 = vmatprep.subr.mxu0 0.0
    %1984 = vmatpush1.msra.mxu0 %v97
    %1985 = vmatprep.subr.mxu0 0.0
    %1986 = vmatpush1.msra.mxu0 %v98
    %1987 = vmatprep.subr.mxu0 0.0
    %1988 = vmatpush1.msra.mxu0 %v99
    %1989 = vmatprep.subr.mxu0 0.0
    %1990 = vmatpush1.msra.mxu0 %v100
    %1991 = vmatprep.subr.mxu0 0.0
    %1992 = vmatpush1.msra.mxu0 %v101
    %1993 = vmatprep.subr.mxu0 0.0
    %1994 = vmatpush1.msra.mxu0 %v102
    %1995 = vmatprep.subr.mxu0 0.0
    %1996 = vmatpush1.msra.mxu0 %v103
    %1997 = vmatprep.subr.mxu0 0.0
    %1998 = vmatpush1.msra.mxu0 %v104
    %1999 = vmatprep.subr.mxu0 0.0
    %2000 = vmatpush1.msra.mxu0 %v105
    %2001 = vmatprep.subr.mxu0 0.0
    %2002 = vmatpush1.msra.mxu0 %v106
    %2003 = vmatprep.subr.mxu0 0.0
    %2004 = vmatpush1.msra.mxu0 %v107
    %2005 = vmatprep.subr.mxu0 0.0
    %2006 = vmatpush1.msra.mxu0 %v108
    %2007 = vmatprep.subr.mxu0 0.0
    %2008 = vmatpush1.msra.mxu0 %v109
    %2009 = vmatprep.subr.mxu0 0.0
    %2010 = vmatpush1.msra.mxu0 %v110
    %2011 = vmatprep.subr.mxu0 0.0
    %2012 = vmatpush1.msra.mxu0 %v111
    %2013 = vmatprep.subr.mxu0 0.0
    %2014 = vmatpush1.msra.mxu0 %v112
    %2015 = vmatprep.mubr.f32.mxu0 %v1446
    %2016 = vmatmul.mubr.f32.gmra.mrb[0].mxu0 %v1444
    %v2017 = vpop.f32.mrb[0].mxu0
    %v2018 = vadd.f32 %v1948, %v2017
    %v2019 = vpop.f32.mrb[0].mxu0
    %2020 = vdwg.mxu0
    %2021 = vmatprep.subr.mxu0 0.0
    %2022 = vmatpush1.msra.mxu0 %v113
    %2023 = vmatprep.subr.mxu0 0.0
    %2024 = vmatpush1.msra.mxu0 %v114
    %2025 = vmatprep.subr.mxu0 0.0
    %2026 = vmatpush1.msra.mxu0 %v115
    %2027 = vmatprep.subr.mxu0 0.0
    %2028 = vmatpush1.msra.mxu0 %v116
    %2029 = vmatprep.subr.mxu0 0.0
    %2030 = vmatpush1.msra.mxu0 %v117
    %2031 = vmatprep.subr.mxu0 0.0
    %2032 = vmatpush1.msra.mxu0 %v118
    %2033 = vmatprep.subr.mxu0 0.0
    %2034 = vmatpush1.msra.mxu0 %v119
    %2035 = vmatprep.subr.mxu0 0.0
    %2036 = vmatpush1.msra.mxu0 %v120
    %2037 = vmatprep.subr.mxu0 0.0
    %2038 = vmatpush1.msra.mxu0 %v121
    %2039 = vmatprep.subr.mxu0 0.0
    %2040 = vmatpush1.msra.mxu0 %v122
    %2041 = vmatprep.subr.mxu0 0.0
    %2042 = vmatpush1.msra.mxu0 %v123
    %2043 = vmatprep.subr.mxu0 0.0
    %2044 = vmatpush1.msra.mxu0 %v124
    %2045 = vmatprep.subr.mxu0 0.0
    %2046 = vmatpush1.msra.mxu0 %v125
    %2047 = vmatprep.subr.mxu0 0.0
    %2048 = vmatpush1.msra.mxu0 %v126
    %2049 = vmatprep.subr.mxu0 0.0
    %2050 = vmatpush1.msra.mxu0 %v127
    %2051 = vmatprep.subr.mxu0 0.0
    %2052 = vmatpush1.msra.mxu0 %v128
    %2053 = vmatprep.subr.mxu0 0.0
    %2054 = vmatpush1.msra.mxu0 %v129
    %2055 = vmatprep.subr.mxu0 0.0
    %2056 = vmatpush1.msra.mxu0 %v130
    %2057 = vmatprep.subr.mxu0 0.0
    %2058 = vmatpush1.msra.mxu0 %v131
    %2059 = vmatprep.subr.mxu0 0.0
    %2060 = vmatpush1.msra.mxu0 %v132
    %2061 = vmatprep.subr.mxu0 0.0
    %2062 = vmatpush1.msra.mxu0 %v133
    %2063 = vmatprep.subr.mxu0 0.0
    %2064 = vmatpush1.msra.mxu0 %v134
    %2065 = vmatprep.subr.mxu0 0.0
    %2066 = vmatpush1.msra.mxu0 %v135
    %2067 = vmatprep.subr.mxu0 0.0
    %2068 = vmatpush1.msra.mxu0 %v136
    %2069 = vmatprep.subr.mxu0 0.0
    %2070 = vmatpush1.msra.mxu0 %v137
    %2071 = vmatprep.subr.mxu0 0.0
    %2072 = vmatpush1.msra.mxu0 %v138
    %2073 = vmatprep.subr.mxu0 0.0
    %2074 = vmatpush1.msra.mxu0 %v139
    %2075 = vmatprep.subr.mxu0 0.0
    %2076 = vmatpush1.msra.mxu0 %v140
    %2077 = vmatprep.subr.mxu0 0.0
    %2078 = vmatpush1.msra.mxu0 %v141
    %2079 = vmatprep.subr.mxu0 0.0
    %2080 = vmatpush1.msra.mxu0 %v142
    %2081 = vmatprep.subr.mxu0 0.0
    %2082 = vmatpush1.msra.mxu0 %v143
    %2083 = vmatprep.subr.mxu0 0.0
    %2084 = vmatpush1.msra.mxu0 %v144
    %2085 = vmatprep.mubr.f32.mxu0 %v1462
    %2086 = vmatmul.mubr.f32.gmra.mrb[0].mxu0 %v1454
    %v2087 = vpop.f32.mrb[0].mxu0
    %v2088 = vadd.f32 %v2018, %v2087
    %v2089 = vpop.f32.mrb[0].mxu0
    %2090 = vdwg.mxu0
    %2091 = vmatprep.subr.mxu0 0.0
    %2092 = vmatpush1.msra.mxu0 %v145
    %2093 = vmatprep.subr.mxu0 0.0
    %2094 = vmatpush1.msra.mxu0 %v146
    %2095 = vmatprep.subr.mxu0 0.0
    %2096 = vmatpush1.msra.mxu0 %v147
    %2097 = vmatprep.subr.mxu0 0.0
    %2098 = vmatpush1.msra.mxu0 %v148
    %2099 = vmatprep.subr.mxu0 0.0
    %2100 = vmatpush1.msra.mxu0 %v149
    %2101 = vmatprep.subr.mxu0 0.0
    %2102 = vmatpush1.msra.mxu0 %v150
    %2103 = vmatprep.subr.mxu0 0.0
    %2104 = vmatpush1.msra.mxu0 %v151
    %2105 = vmatprep.subr.mxu0 0.0
    %2106 = vmatpush1.msra.mxu0 %v152
    %2107 = vmatprep.subr.mxu0 0.0
    %2108 = vmatpush1.msra.mxu0 %v153
    %2109 = vmatprep.subr.mxu0 0.0
    %2110 = vmatpush1.msra.mxu0 %v154
    %2111 = vmatprep.subr.mxu0 0.0
    %2112 = vmatpush1.msra.mxu0 %v155
    %2113 = vmatprep.subr.mxu0 0.0
    %2114 = vmatpush1.msra.mxu0 %v156
    %2115 = vmatprep.subr.mxu0 0.0
    %2116 = vmatpush1.msra.mxu0 %v157
    %2117 = vmatprep.subr.mxu0 0.0
    %2118 = vmatpush1.msra.mxu0 %v158
    %2119 = vmatprep.subr.mxu0 0.0
    %2120 = vmatpush1.msra.mxu0 %v159
    %2121 = vmatprep.subr.mxu0 0.0
    %2122 = vmatpush1.msra.mxu0 %v160
    %2123 = vmatprep.subr.mxu0 0.0
    %2124 = vmatpush1.msra.mxu0 %v161
    %2125 = vmatprep.subr.mxu0 0.0
    %2126 = vmatpush1.msra.mxu0 %v162
    %2127 = vmatprep.subr.mxu0 0.0
    %2128 = vmatpush1.msra.mxu0 %v163
    %2129 = vmatprep.subr.mxu0 0.0
    %2130 = vmatpush1.msra.mxu0 %v164
    %2131 = vmatprep.subr.mxu0 0.0
    %2132 = vmatpush1.msra.mxu0 %v165
    %2133 = vmatprep.subr.mxu0 0.0
    %2134 = vmatpush1.msra.mxu0 %v166
    %2135 = vmatprep.subr.mxu0 0.0
    %2136 = vmatpush1.msra.mxu0 %v167
    %2137 = vmatprep.subr.mxu0 0.0
    %2138 = vmatpush1.msra.mxu0 %v168
    %2139 = vmatprep.subr.mxu0 0.0
    %2140 = vmatpush1.msra.mxu0 %v169
    %2141 = vmatprep.subr.mxu0 0.0
    %2142 = vmatpush1.msra.mxu0 %v170
    %2143 = vmatprep.subr.mxu0 0.0
    %2144 = vmatpush1.msra.mxu0 %v171
    %2145 = vmatprep.subr.mxu0 0.0
    %2146 = vmatpush1.msra.mxu0 %v172
    %2147 = vmatprep.subr.mxu0 0.0
    %2148 = vmatpush1.msra.mxu0 %v173
    %2149 = vmatprep.subr.mxu0 0.0
    %2150 = vmatpush1.msra.mxu0 %v174
    %2151 = vmatprep.subr.mxu0 0.0
    %2152 = vmatpush1.msra.mxu0 %v175
    %2153 = vmatprep.subr.mxu0 0.0
    %2154 = vmatpush1.msra.mxu0 %v176
    %2155 = vmatprep.mubr.f32.mxu0 %v1463
    %2156 = vmatmul.mubr.f32.gmra.mrb[0].mxu0 %v1461
    %v2157 = vpop.f32.mrb[0].mxu0
    %v2158 = vadd.f32 %v2088, %v2157
    %v2159 = vpop.f32.mrb[0].mxu0
    %2160 = vdwg.mxu0
    %2161 = vmatprep.subr.mxu0 0.0
    %2162 = vmatpush1.msra.mxu0 %v177
    %2163 = vmatprep.subr.mxu0 0.0
    %2164 = vmatpush1.msra.mxu0 %v178
    %2165 = vmatprep.subr.mxu0 0.0
    %2166 = vmatpush1.msra.mxu0 %v179
    %2167 = vmatprep.subr.mxu0 0.0
    %2168 = vmatpush1.msra.mxu0 %v180
    %2169 = vmatprep.subr.mxu0 0.0
    %2170 = vmatpush1.msra.mxu0 %v181
    %2171 = vmatprep.subr.mxu0 0.0
    %2172 = vmatpush1.msra.mxu0 %v182
    %2173 = vmatprep.subr.mxu0 0.0
    %2174 = vmatpush1.msra.mxu0 %v183
    %2175 = vmatprep.subr.mxu0 0.0
    %2176 = vmatpush1.msra.mxu0 %v184
    %2177 = vmatprep.subr.mxu0 0.0
    %2178 = vmatpush1.msra.mxu0 %v185
    %2179 = vmatprep.subr.mxu0 0.0
    %2180 = vmatpush1.msra.mxu0 %v186
    %2181 = vmatprep.subr.mxu0 0.0
    %2182 = vmatpush1.msra.mxu0 %v187
    %2183 = vmatprep.subr.mxu0 0.0
    %2184 = vmatpush1.msra.mxu0 %v188
    %2185 = vmatprep.subr.mxu0 0.0
    %2186 = vmatpush1.msra.mxu0 %v189
    %2187 = vmatprep.subr.mxu0 0.0
    %2188 = vmatpush1.msra.mxu0 %v190
    %2189 = vmatprep.subr.mxu0 0.0
    %2190 = vmatpush1.msra.mxu0 %v191
    %2191 = vmatprep.subr.mxu0 0.0
    %2192 = vmatpush1.msra.mxu0 %v192
    %2193 = vmatprep.subr.mxu0 0.0
    %2194 = vmatpush1.msra.mxu0 %v193
    %2195 = vmatprep.subr.mxu0 0.0
    %2196 = vmatpush1.msra.mxu0 %v194
    %2197 = vmatprep.subr.mxu0 0.0
    %2198 = vmatpush1.msra.mxu0 %v195
    %2199 = vmatprep.subr.mxu0 0.0
    %2200 = vmatpush1.msra.mxu0 %v196
    %2201 = vmatprep.subr.mxu0 0.0
    %2202 = vmatpush1.msra.mxu0 %v197
    %2203 = vmatprep.subr.mxu0 0.0
    %2204 = vmatpush1.msra.mxu0 %v198
    %2205 = vmatprep.subr.mxu0 0.0
    %2206 = vmatpush1.msra.mxu0 %v199
    %2207 = vmatprep.subr.mxu0 0.0
    %2208 = vmatpush1.msra.mxu0 %v200
    %2209 = vmatprep.subr.mxu0 0.0
    %2210 = vmatpush1.msra.mxu0 %v201
    %2211 = vmatprep.subr.mxu0 0.0
    %2212 = vmatpush1.msra.mxu0 %v202
    %2213 = vmatprep.subr.mxu0 0.0
    %2214 = vmatpush1.msra.mxu0 %v203
    %2215 = vmatprep.subr.mxu0 0.0
    %2216 = vmatpush1.msra.mxu0 %v204
    %2217 = vmatprep.subr.mxu0 0.0
    %2218 = vmatpush1.msra.mxu0 %v205
    %2219 = vmatprep.subr.mxu0 0.0
    %2220 = vmatpush1.msra.mxu0 %v206
    %2221 = vmatprep.subr.mxu0 0.0
    %2222 = vmatpush1.msra.mxu0 %v207
    %2223 = vmatprep.subr.mxu0 0.0
    %2224 = vmatpush1.msra.mxu0 %v208
    %2225 = vmatprep.mubr.f32.mxu0 %v1479
    %2226 = vmatmul.mubr.f32.gmra.mrb[0].mxu0 %v1471
    %v2227 = vpop.f32.mrb[0].mxu0
    %v2228 = vadd.f32 %v2158, %v2227
    %v2229 = vpop.f32.mrb[0].mxu0
    %2230 = vdwg.mxu0
    %2231 = vmatprep.subr.mxu0 0.0
    %2232 = vmatpush1.msra.mxu0 %v209
    %2233 = vmatprep.subr.mxu0 0.0
    %2234 = vmatpush1.msra.mxu0 %v210
    %2235 = vmatprep.subr.mxu0 0.0
    %2236 = vmatpush1.msra.mxu0 %v211
    %2237 = vmatprep.subr.mxu0 0.0
    %2238 = vmatpush1.msra.mxu0 %v212
    %2239 = vmatprep.subr.mxu0 0.0
    %2240 = vmatpush1.msra.mxu0 %v213
    %2241 = vmatprep.subr.mxu0 0.0
    %2242 = vmatpush1.msra.mxu0 %v214
    %2243 = vmatprep.subr.mxu0 0.0
    %2244 = vmatpush1.msra.mxu0 %v215
    %2245 = vmatprep.subr.mxu0 0.0
    %2246 = vmatpush1.msra.mxu0 %v216
    %2247 = vmatprep.subr.mxu0 0.0
    %2248 = vmatpush1.msra.mxu0 %v217
    %2249 = vmatprep.subr.mxu0 0.0
    %2250 = vmatpush1.msra.mxu0 %v218
    %2251 = vmatprep.subr.mxu0 0.0
    %2252 = vmatpush1.msra.mxu0 %v219
    %2253 = vmatprep.subr.mxu0 0.0
    %2254 = vmatpush1.msra.mxu0 %v220
    %2255 = vmatprep.subr.mxu0 0.0
    %2256 = vmatpush1.msra.mxu0 %v221
    %2257 = vmatprep.subr.mxu0 0.0
    %2258 = vmatpush1.msra.mxu0 %v222
    %2259 = vmatprep.subr.mxu0 0.0
    %2260 = vmatpush1.msra.mxu0 %v223
    %2261 = vmatprep.subr.mxu0 0.0
    %2262 = vmatpush1.msra.mxu0 %v224
    %2263 = vmatprep.subr.mxu0 0.0
    %2264 = vmatpush1.msra.mxu0 %v225
    %2265 = vmatprep.subr.mxu0 0.0
    %2266 = vmatpush1.msra.mxu0 %v226
    %2267 = vmatprep.subr.mxu0 0.0
    %2268 = vmatpush1.msra.mxu0 %v227
    %2269 = vmatprep.subr.mxu0 0.0
    %2270 = vmatpush1.msra.mxu0 %v228
    %2271 = vmatprep.subr.mxu0 0.0
    %2272 = vmatpush1.msra.mxu0 %v229
    %2273 = vmatprep.subr.mxu0 0.0
    %2274 = vmatpush1.msra.mxu0 %v230
    %2275 = vmatprep.subr.mxu0 0.0
    %2276 = vmatpush1.msra.mxu0 %v231
    %2277 = vmatprep.subr.mxu0 0.0
    %2278 = vmatpush1.msra.mxu0 %v232
    %2279 = vmatprep.subr.mxu0 0.0
    %2280 = vmatpush1.msra.mxu0 %v233
    %2281 = vmatprep.subr.mxu0 0.0
    %2282 = vmatpush1.msra.mxu0 %v234
    %2283 = vmatprep.subr.mxu0 0.0
    %2284 = vmatpush1.msra.mxu0 %v235
    %2285 = vmatprep.subr.mxu0 0.0
    %2286 = vmatpush1.msra.mxu0 %v236
    %2287 = vmatprep.subr.mxu0 0.0
    %2288 = vmatpush1.msra.mxu0 %v237
    %2289 = vmatprep.subr.mxu0 0.0
    %2290 = vmatpush1.msra.mxu0 %v238
    %2291 = vmatprep.subr.mxu0 0.0
    %2292 = vmatpush1.msra.mxu0 %v239
    %2293 = vmatprep.subr.mxu0 0.0
    %2294 = vmatpush1.msra.mxu0 %v240
    %2295 = vmatprep.mubr.f32.mxu0 %v1480
    %2296 = vmatmul.mubr.f32.gmra.mrb[0].mxu0 %v1478
    %v2297 = vpop.f32.mrb[0].mxu0
    %v2298 = vadd.f32 %v2228, %v2297
    %v2299 = vpop.f32.mrb[0].mxu0
    %2300 = vdwg.mxu0
    %2301 = vmatprep.subr.mxu0 0.0
    %2302 = vmatpush1.msra.mxu0 %v241
    %2303 = vmatprep.subr.mxu0 0.0
    %2304 = vmatpush1.msra.mxu0 %v242
    %2305 = vmatprep.subr.mxu0 0.0
    %2306 = vmatpush1.msra.mxu0 %v243
    %2307 = vmatprep.subr.mxu0 0.0
    %2308 = vmatpush1.msra.mxu0 %v244
    %2309 = vmatprep.subr.mxu0 0.0
    %2310 = vmatpush1.msra.mxu0 %v245
    %2311 = vmatprep.subr.mxu0 0.0
    %2312 = vmatpush1.msra.mxu0 %v246
    %2313 = vmatprep.subr.mxu0 0.0
    %2314 = vmatpush1.msra.mxu0 %v247
    %2315 = vmatprep.subr.mxu0 0.0
    %2316 = vmatpush1.msra.mxu0 %v248
    %2317 = vmatprep.subr.mxu0 0.0
    %2318 = vmatpush1.msra.mxu0 %v249
    %2319 = vmatprep.subr.mxu0 0.0
    %2320 = vmatpush1.msra.mxu0 %v250
    %2321 = vmatprep.subr.mxu0 0.0
    %2322 = vmatpush1.msra.mxu0 %v251
    %2323 = vmatprep.subr.mxu0 0.0
    %2324 = vmatpush1.msra.mxu0 %v252
    %2325 = vmatprep.subr.mxu0 0.0
    %2326 = vmatpush1.msra.mxu0 %v253
    %2327 = vmatprep.subr.mxu0 0.0
    %2328 = vmatpush1.msra.mxu0 %v254
    %2329 = vmatprep.subr.mxu0 0.0
    %2330 = vmatpush1.msra.mxu0 %v255
    %2331 = vmatprep.subr.mxu0 0.0
    %2332 = vmatpush1.msra.mxu0 %v256
    %2333 = vmatprep.subr.mxu0 0.0
    %2334 = vmatpush1.msra.mxu0 %v257
    %2335 = vmatprep.subr.mxu0 0.0
    %2336 = vmatpush1.msra.mxu0 %v258
    %2337 = vmatprep.subr.mxu0 0.0
    %2338 = vmatpush1.msra.mxu0 %v259
    %2339 = vmatprep.subr.mxu0 0.0
    %2340 = vmatpush1.msra.mxu0 %v260
    %2341 = vmatprep.subr.mxu0 0.0
    %2342 = vmatpush1.msra.mxu0 %v261
    %2343 = vmatprep.subr.mxu0 0.0
    %2344 = vmatpush1.msra.mxu0 %v262
    %2345 = vmatprep.subr.mxu0 0.0
    %2346 = vmatpush1.msra.mxu0 %v263
    %2347 = vmatprep.subr.mxu0 0.0
    %2348 = vmatpush1.msra.mxu0 %v264
    %2349 = vmatprep.subr.mxu0 0.0
    %2350 = vmatpush1.msra.mxu0 %v265
    %2351 = vmatprep.subr.mxu0 0.0
    %2352 = vmatpush1.msra.mxu0 %v266
    %2353 = vmatprep.subr.mxu0 0.0
    %2354 = vmatpush1.msra.mxu0 %v267
    %2355 = vmatprep.subr.mxu0 0.0
    %2356 = vmatpush1.msra.mxu0 %v268
    %2357 = vmatprep.subr.mxu0 0.0
    %2358 = vmatpush1.msra.mxu0 %v269
    %2359 = vmatprep.subr.mxu0 0.0
    %2360 = vmatpush1.msra.mxu0 %v270
    %2361 = vmatprep.subr.mxu0 0.0
    %2362 = vmatpush1.msra.mxu0 %v271
    %2363 = vmatprep.subr.mxu0 0.0
    %2364 = vmatpush1.msra.mxu0 %v272
    %2365 = vmatprep.mubr.f32.mxu0 %v1496
    %2366 = vmatmul.mubr.f32.gmra.mrb[0].mxu0 %v1488
    %v2367 = vpop.f32.mrb[0].mxu0
    %v2368 = vadd.f32 %v2298, %v2367
    %v2369 = vpop.f32.mrb[0].mxu0
    %2370 = vdwg.mxu0
    %2371 = vmatprep.subr.mxu0 0.0
    %2372 = vmatpush1.msra.mxu0 %v273
    %2373 = vmatprep.subr.mxu0 0.0
    %2374 = vmatpush1.msra.mxu0 %v274
    %2375 = vmatprep.subr.mxu0 0.0
    %2376 = vmatpush1.msra.mxu0 %v275
    %2377 = vmatprep.subr.mxu0 0.0
    %2378 = vmatpush1.msra.mxu0 %v276
    %2379 = vmatprep.subr.mxu0 0.0
    %2380 = vmatpush1.msra.mxu0 %v277
    %2381 = vmatprep.subr.mxu0 0.0
    %2382 = vmatpush1.msra.mxu0 %v278
    %2383 = vmatprep.subr.mxu0 0.0
    %2384 = vmatpush1.msra.mxu0 %v279
    %2385 = vmatprep.subr.mxu0 0.0
    %2386 = vmatpush1.msra.mxu0 %v280
    %2387 = vmatprep.subr.mxu0 0.0
    %2388 = vmatpush1.msra.mxu0 %v281
    %2389 = vmatprep.subr.mxu0 0.0
    %2390 = vmatpush1.msra.mxu0 %v282
    %2391 = vmatprep.subr.mxu0 0.0
    %2392 = vmatpush1.msra.mxu0 %v283
    %2393 = vmatprep.subr.mxu0 0.0
    %2394 = vmatpush1.msra.mxu0 %v284
    %2395 = vmatprep.subr.mxu0 0.0
    %2396 = vmatpush1.msra.mxu0 %v285
    %2397 = vmatprep.subr.mxu0 0.0
    %2398 = vmatpush1.msra.mxu0 %v286
    %2399 = vmatprep.subr.mxu0 0.0
    %2400 = vmatpush1.msra.mxu0 %v287
    %2401 = vmatprep.subr.mxu0 0.0
    %2402 = vmatpush1.msra.mxu0 %v288
    %2403 = vmatprep.subr.mxu0 0.0
    %2404 = vmatpush1.msra.mxu0 %v289
    %2405 = vmatprep.subr.mxu0 0.0
    %2406 = vmatpush1.msra.mxu0 %v290
    %2407 = vmatprep.subr.mxu0 0.0
    %2408 = vmatpush1.msra.mxu0 %v291
    %2409 = vmatprep.subr.mxu0 0.0
    %2410 = vmatpush1.msra.mxu0 %v292
    %2411 = vmatprep.subr.mxu0 0.0
    %2412 = vmatpush1.msra.mxu0 %v293
    %2413 = vmatprep.subr.mxu0 0.0
    %2414 = vmatpush1.msra.mxu0 %v294
    %2415 = vmatprep.subr.mxu0 0.0
    %2416 = vmatpush1.msra.mxu0 %v295
    %2417 = vmatprep.subr.mxu0 0.0
    %2418 = vmatpush1.msra.mxu0 %v296
    %2419 = vmatprep.subr.mxu0 0.0
    %2420 = vmatpush1.msra.mxu0 %v297
    %2421 = vmatprep.subr.mxu0 0.0
    %2422 = vmatpush1.msra.mxu0 %v298
    %2423 = vmatprep.subr.mxu0 0.0
    %2424 = vmatpush1.msra.mxu0 %v299
    %2425 = vmatprep.subr.mxu0 0.0
    %2426 = vmatpush1.msra.mxu0 %v300
    %2427 = vmatprep.subr.mxu0 0.0
    %2428 = vmatpush1.msra.mxu0 %v301
    %2429 = vmatprep.subr.mxu0 0.0
    %2430 = vmatpush1.msra.mxu0 %v302
    %2431 = vmatprep.subr.mxu0 0.0
    %2432 = vmatpush1.msra.mxu0 %v303
    %2433 = vmatprep.subr.mxu0 0.0
    %2434 = vmatpush1.msra.mxu0 %v304
    %2435 = vmatprep.mubr.f32.mxu0 %v1497
    %2436 = vmatmul.mubr.f32.gmra.mrb[0].mxu0 %v1495
    %v2437 = vpop.f32.mrb[0].mxu0
    %v2438 = vadd.f32 %v2368, %v2437
    %v2439 = vpop.f32.mrb[0].mxu0
    %2440 = vdwg.mxu0
    %2441 = vmatprep.subr.mxu0 0.0
    %2442 = vmatpush1.msra.mxu0 %v305
    %2443 = vmatprep.subr.mxu0 0.0
    %2444 = vmatpush1.msra.mxu0 %v306
    %2445 = vmatprep.subr.mxu0 0.0
    %2446 = vmatpush1.msra.mxu0 %v307
    %2447 = vmatprep.subr.mxu0 0.0
    %2448 = vmatpush1.msra.mxu0 %v308
    %2449 = vmatprep.subr.mxu0 0.0
    %2450 = vmatpush1.msra.mxu0 %v309
    %2451 = vmatprep.subr.mxu0 0.0
    %2452 = vmatpush1.msra.mxu0 %v310
    %2453 = vmatprep.subr.mxu0 0.0
    %2454 = vmatpush1.msra.mxu0 %v311
    %2455 = vmatprep.subr.mxu0 0.0
    %2456 = vmatpush1.msra.mxu0 %v312
    %2457 = vmatprep.subr.mxu0 0.0
    %2458 = vmatpush1.msra.mxu0 %v313
    %2459 = vmatprep.subr.mxu0 0.0
    %2460 = vmatpush1.msra.mxu0 %v314
    %2461 = vmatprep.subr.mxu0 0.0
    %2462 = vmatpush1.msra.mxu0 %v315
    %2463 = vmatprep.subr.mxu0 0.0
    %2464 = vmatpush1.msra.mxu0 %v316
    %2465 = vmatprep.subr.mxu0 0.0
    %2466 = vmatpush1.msra.mxu0 %v317
    %2467 = vmatprep.subr.mxu0 0.0
    %2468 = vmatpush1.msra.mxu0 %v318
    %2469 = vmatprep.subr.mxu0 0.0
    %2470 = vmatpush1.msra.mxu0 %v319
    %2471 = vmatprep.subr.mxu0 0.0
    %2472 = vmatpush1.msra.mxu0 %v320
    %2473 = vmatprep.subr.mxu0 0.0
    %2474 = vmatpush1.msra.mxu0 %v321
    %2475 = vmatprep.subr.mxu0 0.0
    %2476 = vmatpush1.msra.mxu0 %v322
    %2477 = vmatprep.subr.mxu0 0.0
    %2478 = vmatpush1.msra.mxu0 %v323
    %2479 = vmatprep.subr.mxu0 0.0
    %2480 = vmatpush1.msra.mxu0 %v324
    %2481 = vmatprep.subr.mxu0 0.0
    %2482 = vmatpush1.msra.mxu0 %v325
    %2483 = vmatprep.subr.mxu0 0.0
    %2484 = vmatpush1.msra.mxu0 %v326
    %2485 = vmatprep.subr.mxu0 0.0
    %2486 = vmatpush1.msra.mxu0 %v327
    %2487 = vmatprep.subr.mxu0 0.0
    %2488 = vmatpush1.msra.mxu0 %v328
    %2489 = vmatprep.subr.mxu0 0.0
    %2490 = vmatpush1.msra.mxu0 %v329
    %2491 = vmatprep.subr.mxu0 0.0
    %2492 = vmatpush1.msra.mxu0 %v330
    %2493 = vmatprep.subr.mxu0 0.0
    %2494 = vmatpush1.msra.mxu0 %v331
    %2495 = vmatprep.subr.mxu0 0.0
    %2496 = vmatpush1.msra.mxu0 %v332
    %2497 = vmatprep.subr.mxu0 0.0
    %2498 = vmatpush1.msra.mxu0 %v333
    %2499 = vmatprep.subr.mxu0 0.0
    %2500 = vmatpush1.msra.mxu0 %v334
    %2501 = vmatprep.subr.mxu0 0.0
    %2502 = vmatpush1.msra.mxu0 %v335
    %2503 = vmatprep.subr.mxu0 0.0
    %2504 = vmatpush1.msra.mxu0 %v336
    %2505 = vmatprep.mubr.f32.mxu0 %v1513
    %2506 = vmatmul.mubr.f32.gmra.mrb[0].mxu0 %v1505
    %v2507 = vpop.f32.mrb[0].mxu0
    %v2508 = vadd.f32 %v2438, %v2507
    %v2509 = vpop.f32.mrb[0].mxu0
    %2510 = vdwg.mxu0
    %2511 = vmatprep.subr.mxu0 0.0
    %2512 = vmatpush1.msra.mxu0 %v337
    %2513 = vmatprep.subr.mxu0 0.0
    %2514 = vmatpush1.msra.mxu0 %v338
    %2515 = vmatprep.subr.mxu0 0.0
    %2516 = vmatpush1.msra.mxu0 %v339
    %2517 = vmatprep.subr.mxu0 0.0
    %2518 = vmatpush1.msra.mxu0 %v340
    %2519 = vmatprep.subr.mxu0 0.0
    %2520 = vmatpush1.msra.mxu0 %v341
    %2521 = vmatprep.subr.mxu0 0.0
    %2522 = vmatpush1.msra.mxu0 %v342
    %2523 = vmatprep.subr.mxu0 0.0
    %2524 = vmatpush1.msra.mxu0 %v343
    %2525 = vmatprep.subr.mxu0 0.0
    %2526 = vmatpush1.msra.mxu0 %v344
    %2527 = vmatprep.subr.mxu0 0.0
    %2528 = vmatpush1.msra.mxu0 %v345
    %2529 = vmatprep.subr.mxu0 0.0
    %2530 = vmatpush1.msra.mxu0 %v346
    %2531 = vmatprep.subr.mxu0 0.0
    %2532 = vmatpush1.msra.mxu0 %v347
    %2533 = vmatprep.subr.mxu0 0.0
    %2534 = vmatpush1.msra.mxu0 %v348
    %2535 = vmatprep.subr.mxu0 0.0
    %2536 = vmatpush1.msra.mxu0 %v349
    %2537 = vmatprep.subr.mxu0 0.0
    %2538 = vmatpush1.msra.mxu0 %v350
    %2539 = vmatprep.subr.mxu0 0.0
    %2540 = vmatpush1.msra.mxu0 %v351
    %2541 = vmatprep.subr.mxu0 0.0
    %2542 = vmatpush1.msra.mxu0 %v352
    %2543 = vmatprep.subr.mxu0 0.0
    %2544 = vmatpush1.msra.mxu0 %v353
    %2545 = vmatprep.subr.mxu0 0.0
    %2546 = vmatpush1.msra.mxu0 %v354
    %2547 = vmatprep.subr.mxu0 0.0
    %2548 = vmatpush1.msra.mxu0 %v355
    %2549 = vmatprep.subr.mxu0 0.0
    %2550 = vmatpush1.msra.mxu0 %v356
    %2551 = vmatprep.subr.mxu0 0.0
    %2552 = vmatpush1.msra.mxu0 %v357
    %2553 = vmatprep.subr.mxu0 0.0
    %2554 = vmatpush1.msra.mxu0 %v358
    %2555 = vmatprep.subr.mxu0 0.0
    %2556 = vmatpush1.msra.mxu0 %v359
    %2557 = vmatprep.subr.mxu0 0.0
    %2558 = vmatpush1.msra.mxu0 %v360
    %2559 = vmatprep.subr.mxu0 0.0
    %2560 = vmatpush1.msra.mxu0 %v361
    %2561 = vmatprep.subr.mxu0 0.0
    %2562 = vmatpush1.msra.mxu0 %v362
    %2563 = vmatprep.subr.mxu0 0.0
    %2564 = vmatpush1.msra.mxu0 %v363
    %2565 = vmatprep.subr.mxu0 0.0
    %2566 = vmatpush1.msra.mxu0 %v364
    %2567 = vmatprep.subr.mxu0 0.0
    %2568 = vmatpush1.msra.mxu0 %v365
    %2569 = vmatprep.subr.mxu0 0.0
    %2570 = vmatpush1.msra.mxu0 %v366
    %2571 = vmatprep.subr.mxu0 0.0
    %2572 = vmatpush1.msra.mxu0 %v367
    %2573 = vmatprep.subr.mxu0 0.0
    %2574 = vmatpush1.msra.mxu0 %v368
    %2575 = vmatprep.mubr.f32.mxu0 %v1514
    %2576 = vmatmul.mubr.f32.gmra.mrb[0].mxu0 %v1512
    %v2577 = vpop.f32.mrb[0].mxu0
    %v2578 = vadd.f32 %v2508, %v2577
    %v2579 = vpop.f32.mrb[0].mxu0
    %2580 = vdwg.mxu0
    %2581 = vmatprep.subr.mxu0 0.0
    %2582 = vmatpush1.msra.mxu0 %v369
    %2583 = vmatprep.subr.mxu0 0.0
    %2584 = vmatpush1.msra.mxu0 %v370
    %2585 = vmatprep.subr.mxu0 0.0
    %2586 = vmatpush1.msra.mxu0 %v371
    %2587 = vmatprep.subr.mxu0 0.0
    %2588 = vmatpush1.msra.mxu0 %v372
    %2589 = vmatprep.subr.mxu0 0.0
    %2590 = vmatpush1.msra.mxu0 %v373
    %2591 = vmatprep.subr.mxu0 0.0
    %2592 = vmatpush1.msra.mxu0 %v374
    %2593 = vmatprep.subr.mxu0 0.0
    %2594 = vmatpush1.msra.mxu0 %v375
    %2595 = vmatprep.subr.mxu0 0.0
    %2596 = vmatpush1.msra.mxu0 %v376
    %2597 = vmatprep.subr.mxu0 0.0
    %2598 = vmatpush1.msra.mxu0 %v377
    %2599 = vmatprep.subr.mxu0 0.0
    %2600 = vmatpush1.msra.mxu0 %v378
    %2601 = vmatprep.subr.mxu0 0.0
    %2602 = vmatpush1.msra.mxu0 %v379
    %2603 = vmatprep.subr.mxu0 0.0
    %2604 = vmatpush1.msra.mxu0 %v380
    %2605 = vmatprep.subr.mxu0 0.0
    %2606 = vmatpush1.msra.mxu0 %v381
    %2607 = vmatprep.subr.mxu0 0.0
    %2608 = vmatpush1.msra.mxu0 %v382
    %2609 = vmatprep.subr.mxu0 0.0
    %2610 = vmatpush1.msra.mxu0 %v383
    %2611 = vmatprep.subr.mxu0 0.0
    %2612 = vmatpush1.msra.mxu0 %v384
    %2613 = vmatprep.subr.mxu0 0.0
    %2614 = vmatpush1.msra.mxu0 %v385
    %2615 = vmatprep.subr.mxu0 0.0
    %2616 = vmatpush1.msra.mxu0 %v386
    %2617 = vmatprep.subr.mxu0 0.0
    %2618 = vmatpush1.msra.mxu0 %v387
    %2619 = vmatprep.subr.mxu0 0.0
    %2620 = vmatpush1.msra.mxu0 %v388
    %2621 = vmatprep.subr.mxu0 0.0
    %2622 = vmatpush1.msra.mxu0 %v389
    %2623 = vmatprep.subr.mxu0 0.0
    %2624 = vmatpush1.msra.mxu0 %v390
    %2625 = vmatprep.subr.mxu0 0.0
    %2626 = vmatpush1.msra.mxu0 %v391
    %2627 = vmatprep.subr.mxu0 0.0
    %2628 = vmatpush1.msra.mxu0 %v392
    %2629 = vmatprep.subr.mxu0 0.0
    %2630 = vmatpush1.msra.mxu0 %v393
    %2631 = vmatprep.subr.mxu0 0.0
    %2632 = vmatpush1.msra.mxu0 %v394
    %2633 = vmatprep.subr.mxu0 0.0
    %2634 = vmatpush1.msra.mxu0 %v395
    %2635 = vmatprep.subr.mxu0 0.0
    %2636 = vmatpush1.msra.mxu0 %v396
    %2637 = vmatprep.subr.mxu0 0.0
    %2638 = vmatpush1.msra.mxu0 %v397
    %2639 = vmatprep.subr.mxu0 0.0
    %2640 = vmatpush1.msra.mxu0 %v398
    %2641 = vmatprep.subr.mxu0 0.0
    %2642 = vmatpush1.msra.mxu0 %v399
    %2643 = vmatprep.subr.mxu0 0.0
    %2644 = vmatpush1.msra.mxu0 %v400
    %2645 = vmatprep.mubr.f32.mxu0 %v1530
    %2646 = vmatmul.mubr.f32.gmra.mrb[0].mxu0 %v1522
    %v2647 = vpop.f32.mrb[0].mxu0
    %v2648 = vadd.f32 %v2578, %v2647
    %v2649 = vpop.f32.mrb[0].mxu0
    %2650 = vdwg.mxu0
    %2651 = vmatprep.subr.mxu0 0.0
    %2652 = vmatpush1.msra.mxu0 %v401
    %2653 = vmatprep.subr.mxu0 0.0
    %2654 = vmatpush1.msra.mxu0 %v402
    %2655 = vmatprep.subr.mxu0 0.0
    %2656 = vmatpush1.msra.mxu0 %v403
    %2657 = vmatprep.subr.mxu0 0.0
    %2658 = vmatpush1.msra.mxu0 %v404
    %2659 = vmatprep.subr.mxu0 0.0
    %2660 = vmatpush1.msra.mxu0 %v405
    %2661 = vmatprep.subr.mxu0 0.0
    %2662 = vmatpush1.msra.mxu0 %v406
    %2663 = vmatprep.subr.mxu0 0.0
    %2664 = vmatpush1.msra.mxu0 %v407
    %2665 = vmatprep.subr.mxu0 0.0
    %2666 = vmatpush1.msra.mxu0 %v408
    %2667 = vmatprep.subr.mxu0 0.0
    %2668 = vmatpush1.msra.mxu0 %v409
    %2669 = vmatprep.subr.mxu0 0.0
    %2670 = vmatpush1.msra.mxu0 %v410
    %2671 = vmatprep.subr.mxu0 0.0
    %2672 = vmatpush1.msra.mxu0 %v411
    %2673 = vmatprep.subr.mxu0 0.0
    %2674 = vmatpush1.msra.mxu0 %v412
    %2675 = vmatprep.subr.mxu0 0.0
    %2676 = vmatpush1.msra.mxu0 %v413
    %2677 = vmatprep.subr.mxu0 0.0
    %2678 = vmatpush1.msra.mxu0 %v414
    %2679 = vmatprep.subr.mxu0 0.0
    %2680 = vmatpush1.msra.mxu0 %v415
    %2681 = vmatprep.subr.mxu0 0.0
    %2682 = vmatpush1.msra.mxu0 %v416
    %2683 = vmatprep.subr.mxu0 0.0
    %2684 = vmatpush1.msra.mxu0 %v417
    %2685 = vmatprep.subr.mxu0 0.0
    %2686 = vmatpush1.msra.mxu0 %v418
    %2687 = vmatprep.subr.mxu0 0.0
    %2688 = vmatpush1.msra.mxu0 %v419
    %2689 = vmatprep.subr.mxu0 0.0
    %2690 = vmatpush1.msra.mxu0 %v420
    %2691 = vmatprep.subr.mxu0 0.0
    %2692 = vmatpush1.msra.mxu0 %v421
    %2693 = vmatprep.subr.mxu0 0.0
    %2694 = vmatpush1.msra.mxu0 %v422
    %2695 = vmatprep.subr.mxu0 0.0
    %2696 = vmatpush1.msra.mxu0 %v423
    %2697 = vmatprep.subr.mxu0 0.0
    %2698 = vmatpush1.msra.mxu0 %v424
    %2699 = vmatprep.subr.mxu0 0.0
    %2700 = vmatpush1.msra.mxu0 %v425
    %2701 = vmatprep.subr.mxu0 0.0
    %2702 = vmatpush1.msra.mxu0 %v426
    %2703 = vmatprep.subr.mxu0 0.0
    %2704 = vmatpush1.msra.mxu0 %v427
    %2705 = vmatprep.subr.mxu0 0.0
    %2706 = vmatpush1.msra.mxu0 %v428
    %2707 = vmatprep.subr.mxu0 0.0
    %2708 = vmatpush1.msra.mxu0 %v429
    %2709 = vmatprep.subr.mxu0 0.0
    %2710 = vmatpush1.msra.mxu0 %v430
    %2711 = vmatprep.subr.mxu0 0.0
    %2712 = vmatpush1.msra.mxu0 %v431
    %2713 = vmatprep.subr.mxu0 0.0
    %2714 = vmatpush1.msra.mxu0 %v432
    %2715 = vmatprep.mubr.f32.mxu0 %v1531
    %2716 = vmatmul.mubr.f32.gmra.mrb[0].mxu0 %v1529
    %v2717 = vpop.f32.mrb[0].mxu0
    %v2718 = vadd.f32 %v2648, %v2717
    %v2719 = vpop.f32.mrb[0].mxu0
    %2720 = vdwg.mxu0
    %2721 = vmatprep.subr.mxu0 0.0
    %2722 = vmatpush1.msra.mxu0 %v433
    %2723 = vmatprep.subr.mxu0 0.0
    %2724 = vmatpush1.msra.mxu0 %v434
    %2725 = vmatprep.subr.mxu0 0.0
    %2726 = vmatpush1.msra.mxu0 %v435
    %2727 = vmatprep.subr.mxu0 0.0
    %2728 = vmatpush1.msra.mxu0 %v436
    %2729 = vmatprep.subr.mxu0 0.0
    %2730 = vmatpush1.msra.mxu0 %v437
    %2731 = vmatprep.subr.mxu0 0.0
    %2732 = vmatpush1.msra.mxu0 %v438
    %2733 = vmatprep.subr.mxu0 0.0
    %2734 = vmatpush1.msra.mxu0 %v439
    %2735 = vmatprep.subr.mxu0 0.0
    %2736 = vmatpush1.msra.mxu0 %v440
    %2737 = vmatprep.subr.mxu0 0.0
    %2738 = vmatpush1.msra.mxu0 %v441
    %2739 = vmatprep.subr.mxu0 0.0
    %2740 = vmatpush1.msra.mxu0 %v442
    %2741 = vmatprep.subr.mxu0 0.0
    %2742 = vmatpush1.msra.mxu0 %v443
    %2743 = vmatprep.subr.mxu0 0.0
    %2744 = vmatpush1.msra.mxu0 %v444
    %2745 = vmatprep.subr.mxu0 0.0
    %2746 = vmatpush1.msra.mxu0 %v445
    %2747 = vmatprep.subr.mxu0 0.0
    %2748 = vmatpush1.msra.mxu0 %v446
    %2749 = vmatprep.subr.mxu0 0.0
    %2750 = vmatpush1.msra.mxu0 %v447
    %2751 = vmatprep.subr.mxu0 0.0
    %2752 = vmatpush1.msra.mxu0 %v448
    %2753 = vmatprep.subr.mxu0 0.0
    %2754 = vmatpush1.msra.mxu0 %v449
    %2755 = vmatprep.subr.mxu0 0.0
    %2756 = vmatpush1.msra.mxu0 %v450
    %2757 = vmatprep.subr.mxu0 0.0
    %2758 = vmatpush1.msra.mxu0 %v451
    %2759 = vmatprep.subr.mxu0 0.0
    %2760 = vmatpush1.msra.mxu0 %v452
    %2761 = vmatprep.subr.mxu0 0.0
    %2762 = vmatpush1.msra.mxu0 %v453
    %2763 = vmatprep.subr.mxu0 0.0
    %2764 = vmatpush1.msra.mxu0 %v454
    %2765 = vmatprep.subr.mxu0 0.0
    %2766 = vmatpush1.msra.mxu0 %v455
    %2767 = vmatprep.subr.mxu0 0.0
    %2768 = vmatpush1.msra.mxu0 %v456
    %2769 = vmatprep.subr.mxu0 0.0
    %2770 = vmatpush1.msra.mxu0 %v457
    %2771 = vmatprep.subr.mxu0 0.0
    %2772 = vmatpush1.msra.mxu0 %v458
    %2773 = vmatprep.subr.mxu0 0.0
    %2774 = vmatpush1.msra.mxu0 %v459
    %2775 = vmatprep.subr.mxu0 0.0
    %2776 = vmatpush1.msra.mxu0 %v460
    %2777 = vmatprep.subr.mxu0 0.0
    %2778 = vmatpush1.msra.mxu0 %v461
    %2779 = vmatprep.subr.mxu0 0.0
    %2780 = vmatpush1.msra.mxu0 %v462
    %2781 = vmatprep.subr.mxu0 0.0
    %2782 = vmatpush1.msra.mxu0 %v463
    %2783 = vmatprep.subr.mxu0 0.0
    %2784 = vmatpush1.msra.mxu0 %v464
    %2785 = vmatprep.mubr.f32.mxu0 %v1547
    %2786 = vmatmul.mubr.f32.gmra.mrb[0].mxu0 %v1539
    %v2787 = vpop.f32.mrb[0].mxu0
    %v2788 = vadd.f32 %v2718, %v2787
    %v2789 = vpop.f32.mrb[0].mxu0
    %2790 = vdwg.mxu0
    %2791 = vmatprep.subr.mxu0 0.0
    %2792 = vmatpush1.msra.mxu0 %v465
    %2793 = vmatprep.subr.mxu0 0.0
    %2794 = vmatpush1.msra.mxu0 %v466
    %2795 = vmatprep.subr.mxu0 0.0
    %2796 = vmatpush1.msra.mxu0 %v467
    %2797 = vmatprep.subr.mxu0 0.0
    %2798 = vmatpush1.msra.mxu0 %v468
    %2799 = vmatprep.subr.mxu0 0.0
    %2800 = vmatpush1.msra.mxu0 %v469
    %2801 = vmatprep.subr.mxu0 0.0
    %2802 = vmatpush1.msra.mxu0 %v470
    %2803 = vmatprep.subr.mxu0 0.0
    %2804 = vmatpush1.msra.mxu0 %v471
    %2805 = vmatprep.subr.mxu0 0.0
    %2806 = vmatpush1.msra.mxu0 %v472
    %2807 = vmatprep.subr.mxu0 0.0
    %2808 = vmatpush1.msra.mxu0 %v473
    %2809 = vmatprep.subr.mxu0 0.0
    %2810 = vmatpush1.msra.mxu0 %v474
    %2811 = vmatprep.subr.mxu0 0.0
    %2812 = vmatpush1.msra.mxu0 %v475
    %2813 = vmatprep.subr.mxu0 0.0
    %2814 = vmatpush1.msra.mxu0 %v476
    %2815 = vmatprep.subr.mxu0 0.0
    %2816 = vmatpush1.msra.mxu0 %v477
    %2817 = vmatprep.subr.mxu0 0.0
    %2818 = vmatpush1.msra.mxu0 %v478
    %2819 = vmatprep.subr.mxu0 0.0
    %2820 = vmatpush1.msra.mxu0 %v479
    %2821 = vmatprep.subr.mxu0 0.0
    %2822 = vmatpush1.msra.mxu0 %v480
    %2823 = vmatprep.subr.mxu0 0.0
    %2824 = vmatpush1.msra.mxu0 %v481
    %2825 = vmatprep.subr.mxu0 0.0
    %2826 = vmatpush1.msra.mxu0 %v482
    %2827 = vmatprep.subr.mxu0 0.0
    %2828 = vmatpush1.msra.mxu0 %v483
    %2829 = vmatprep.subr.mxu0 0.0
    %2830 = vmatpush1.msra.mxu0 %v484
    %2831 = vmatprep.subr.mxu0 0.0
    %2832 = vmatpush1.msra.mxu0 %v485
    %2833 = vmatprep.subr.mxu0 0.0
    %2834 = vmatpush1.msra.mxu0 %v486
    %2835 = vmatprep.subr.mxu0 0.0
    %2836 = vmatpush1.msra.mxu0 %v487
    %2837 = vmatprep.subr.mxu0 0.0
    %2838 = vmatpush1.msra.mxu0 %v488
    %2839 = vmatprep.subr.mxu0 0.0
    %2840 = vmatpush1.msra.mxu0 %v489
    %2841 = vmatprep.subr.mxu0 0.0
    %2842 = vmatpush1.msra.mxu0 %v490
    %2843 = vmatprep.subr.mxu0 0.0
    %2844 = vmatpush1.msra.mxu0 %v491
    %2845 = vmatprep.subr.mxu0 0.0
    %2846 = vmatpush1.msra.mxu0 %v492
    %2847 = vmatprep.subr.mxu0 0.0
    %2848 = vmatpush1.msra.mxu0 %v493
    %2849 = vmatprep.subr.mxu0 0.0
    %2850 = vmatpush1.msra.mxu0 %v494
    %2851 = vmatprep.subr.mxu0 0.0
    %2852 = vmatpush1.msra.mxu0 %v495
    %2853 = vmatprep.subr.mxu0 0.0
    %2854 = vmatpush1.msra.mxu0 %v496
    %2855 = vmatprep.mubr.f32.mxu0 %v1548
    %2856 = vmatmul.mubr.f32.gmra.mrb[0].mxu0 %v1546
    %v2857 = vpop.f32.mrb[0].mxu0
    %v2858 = vadd.f32 %v2788, %v2857
    %v2859 = vpop.f32.mrb[0].mxu0
    %2860 = vdwg.mxu0
    %2861 = vmatprep.subr.mxu0 0.0
    %2862 = vmatpush1.msra.mxu0 %v497
    %2863 = vmatprep.subr.mxu0 0.0
    %2864 = vmatpush1.msra.mxu0 %v498
    %2865 = vmatprep.subr.mxu0 0.0
    %2866 = vmatpush1.msra.mxu0 %v499
    %2867 = vmatprep.subr.mxu0 0.0
    %2868 = vmatpush1.msra.mxu0 %v500
    %2869 = vmatprep.subr.mxu0 0.0
    %2870 = vmatpush1.msra.mxu0 %v501
    %2871 = vmatprep.subr.mxu0 0.0
    %2872 = vmatpush1.msra.mxu0 %v502
    %2873 = vmatprep.subr.mxu0 0.0
    %2874 = vmatpush1.msra.mxu0 %v503
    %2875 = vmatprep.subr.mxu0 0.0
    %2876 = vmatpush1.msra.mxu0 %v504
    %2877 = vmatprep.subr.mxu0 0.0
    %2878 = vmatpush1.msra.mxu0 %v505
    %2879 = vmatprep.subr.mxu0 0.0
    %2880 = vmatpush1.msra.mxu0 %v506
    %2881 = vmatprep.subr.mxu0 0.0
    %2882 = vmatpush1.msra.mxu0 %v507
    %2883 = vmatprep.subr.mxu0 0.0
    %2884 = vmatpush1.msra.mxu0 %v508
    %2885 = vmatprep.subr.mxu0 0.0
    %2886 = vmatpush1.msra.mxu0 %v509
    %2887 = vmatprep.subr.mxu0 0.0
    %2888 = vmatpush1.msra.mxu0 %v510
    %2889 = vmatprep.subr.mxu0 0.0
    %2890 = vmatpush1.msra.mxu0 %v511
    %2891 = vmatprep.subr.mxu0 0.0
    %2892 = vmatpush1.msra.mxu0 %v512
    %2893 = vmatprep.subr.mxu0 0.0
    %2894 = vmatpush1.msra.mxu0 %v513
    %2895 = vmatprep.subr.mxu0 0.0
    %2896 = vmatpush1.msra.mxu0 %v514
    %2897 = vmatprep.subr.mxu0 0.0
    %2898 = vmatpush1.msra.mxu0 %v515
    %2899 = vmatprep.subr.mxu0 0.0
    %2900 = vmatpush1.msra.mxu0 %v516
    %2901 = vmatprep.subr.mxu0 0.0
    %2902 = vmatpush1.msra.mxu0 %v517
    %2903 = vmatprep.subr.mxu0 0.0
    %2904 = vmatpush1.msra.mxu0 %v518
    %2905 = vmatprep.subr.mxu0 0.0
    %2906 = vmatpush1.msra.mxu0 %v519
    %2907 = vmatprep.subr.mxu0 0.0
    %2908 = vmatpush1.msra.mxu0 %v520
    %2909 = vmatprep.subr.mxu0 0.0
    %2910 = vmatpush1.msra.mxu0 %v521
    %2911 = vmatprep.subr.mxu0 0.0
    %2912 = vmatpush1.msra.mxu0 %v522
    %2913 = vmatprep.subr.mxu0 0.0
    %2914 = vmatpush1.msra.mxu0 %v523
    %2915 = vmatprep.subr.mxu0 0.0
    %2916 = vmatpush1.msra.mxu0 %v524
    %2917 = vmatprep.subr.mxu0 0.0
    %2918 = vmatpush1.msra.mxu0 %v525
    %2919 = vmatprep.subr.mxu0 0.0
    %2920 = vmatpush1.msra.mxu0 %v526
    %2921 = vmatprep.subr.mxu0 0.0
    %2922 = vmatpush1.msra.mxu0 %v527
    %2923 = vmatprep.subr.mxu0 0.0
    %2924 = vmatpush1.msra.mxu0 %v528
    %2925 = vmatprep.mubr.f32.mxu0 %v1564
    %2926 = vmatmul.mubr.f32.gmra.mrb[0].mxu0 %v1556
    %v2927 = vpop.f32.mrb[0].mxu0
    %v2928 = vadd.f32 %v2858, %v2927
    %v2929 = vpop.f32.mrb[0].mxu0
    %2930 = vdwg.mxu0
    %2931 = vmatprep.subr.mxu0 0.0
    %2932 = vmatpush1.msra.mxu0 %v529
    %2933 = vmatprep.subr.mxu0 0.0
    %2934 = vmatpush1.msra.mxu0 %v530
    %2935 = vmatprep.subr.mxu0 0.0
    %2936 = vmatpush1.msra.mxu0 %v531
    %2937 = vmatprep.subr.mxu0 0.0
    %2938 = vmatpush1.msra.mxu0 %v532
    %2939 = vmatprep.subr.mxu0 0.0
    %2940 = vmatpush1.msra.mxu0 %v533
    %2941 = vmatprep.subr.mxu0 0.0
    %2942 = vmatpush1.msra.mxu0 %v534
    %2943 = vmatprep.subr.mxu0 0.0
    %2944 = vmatpush1.msra.mxu0 %v535
    %2945 = vmatprep.subr.mxu0 0.0
    %2946 = vmatpush1.msra.mxu0 %v536
    %2947 = vmatprep.subr.mxu0 0.0
    %2948 = vmatpush1.msra.mxu0 %v537
    %2949 = vmatprep.subr.mxu0 0.0
    %2950 = vmatpush1.msra.mxu0 %v538
    %2951 = vmatprep.subr.mxu0 0.0
    %2952 = vmatpush1.msra.mxu0 %v539
    %2953 = vmatprep.subr.mxu0 0.0
    %2954 = vmatpush1.msra.mxu0 %v540
    %2955 = vmatprep.subr.mxu0 0.0
    %2956 = vmatpush1.msra.mxu0 %v541
    %2957 = vmatprep.subr.mxu0 0.0
    %2958 = vmatpush1.msra.mxu0 %v542
    %2959 = vmatprep.subr.mxu0 0.0
    %2960 = vmatpush1.msra.mxu0 %v543
    %2961 = vmatprep.subr.mxu0 0.0
    %2962 = vmatpush1.msra.mxu0 %v544
    %2963 = vmatprep.subr.mxu0 0.0
    %2964 = vmatpush1.msra.mxu0 %v545
    %2965 = vmatprep.subr.mxu0 0.0
    %2966 = vmatpush1.msra.mxu0 %v546
    %2967 = vmatprep.subr.mxu0 0.0
    %2968 = vmatpush1.msra.mxu0 %v547
    %2969 = vmatprep.subr.mxu0 0.0
    %2970 = vmatpush1.msra.mxu0 %v548
    %2971 = vmatprep.subr.mxu0 0.0
    %2972 = vmatpush1.msra.mxu0 %v549
    %2973 = vmatprep.subr.mxu0 0.0
    %2974 = vmatpush1.msra.mxu0 %v550
    %2975 = vmatprep.subr.mxu0 0.0
    %2976 = vmatpush1.msra.mxu0 %v551
    %2977 = vmatprep.subr.mxu0 0.0
    %2978 = vmatpush1.msra.mxu0 %v552
    %2979 = vmatprep.subr.mxu0 0.0
    %2980 = vmatpush1.msra.mxu0 %v553
    %2981 = vmatprep.subr.mxu0 0.0
    %2982 = vmatpush1.msra.mxu0 %v554
    %2983 = vmatprep.subr.mxu0 0.0
    %2984 = vmatpush1.msra.mxu0 %v555
    %2985 = vmatprep.subr.mxu0 0.0
    %2986 = vmatpush1.msra.mxu0 %v556
    %2987 = vmatprep.subr.mxu0 0.0
    %2988 = vmatpush1.msra.mxu0 %v557
    %2989 = vmatprep.subr.mxu0 0.0
    %2990 = vmatpush1.msra.mxu0 %v558
    %2991 = vmatprep.subr.mxu0 0.0
    %2992 = vmatpush1.msra.mxu0 %v559
    %2993 = vmatprep.subr.mxu0 0.0
    %2994 = vmatpush1.msra.mxu0 %v560
    %2995 = vmatprep.mubr.f32.mxu0 %v1565
    %2996 = vmatmul.mubr.f32.gmra.mrb[0].mxu0 %v1563
    %v2997 = vpop.f32.mrb[0].mxu0
    %v2998 = vadd.f32 %v2928, %v2997
    %v2999 = vpop.f32.mrb[0].mxu0
    %3000 = vdwg.mxu0
    %3001 = vmatprep.subr.mxu0 0.0
    %3002 = vmatpush1.msra.mxu0 %v561
    %3003 = vmatprep.subr.mxu0 0.0
    %3004 = vmatpush1.msra.mxu0 %v562
    %3005 = vmatprep.subr.mxu0 0.0
    %3006 = vmatpush1.msra.mxu0 %v563
    %3007 = vmatprep.subr.mxu0 0.0
    %3008 = vmatpush1.msra.mxu0 %v564
    %3009 = vmatprep.subr.mxu0 0.0
    %3010 = vmatpush1.msra.mxu0 %v565
    %3011 = vmatprep.subr.mxu0 0.0
    %3012 = vmatpush1.msra.mxu0 %v566
    %3013 = vmatprep.subr.mxu0 0.0
    %3014 = vmatpush1.msra.mxu0 %v567
    %3015 = vmatprep.subr.mxu0 0.0
    %3016 = vmatpush1.msra.mxu0 %v568
    %3017 = vmatprep.subr.mxu0 0.0
    %3018 = vmatpush1.msra.mxu0 %v569
    %3019 = vmatprep.subr.mxu0 0.0
    %3020 = vmatpush1.msra.mxu0 %v570
    %3021 = vmatprep.subr.mxu0 0.0
    %3022 = vmatpush1.msra.mxu0 %v571
    %3023 = vmatprep.subr.mxu0 0.0
    %3024 = vmatpush1.msra.mxu0 %v572
    %3025 = vmatprep.subr.mxu0 0.0
    %3026 = vmatpush1.msra.mxu0 %v573
    %3027 = vmatprep.subr.mxu0 0.0
    %3028 = vmatpush1.msra.mxu0 %v574
    %3029 = vmatprep.subr.mxu0 0.0
    %3030 = vmatpush1.msra.mxu0 %v575
    %3031 = vmatprep.subr.mxu0 0.0
    %3032 = vmatpush1.msra.mxu0 %v576
    %3033 = vmatprep.subr.mxu0 0.0
    %3034 = vmatpush1.msra.mxu0 %v577
    %3035 = vmatprep.subr.mxu0 0.0
    %3036 = vmatpush1.msra.mxu0 %v578
    %3037 = vmatprep.subr.mxu0 0.0
    %3038 = vmatpush1.msra.mxu0 %v579
    %3039 = vmatprep.subr.mxu0 0.0
    %3040 = vmatpush1.msra.mxu0 %v580
    %3041 = vmatprep.subr.mxu0 0.0
    %3042 = vmatpush1.msra.mxu0 %v581
    %3043 = vmatprep.subr.mxu0 0.0
    %3044 = vmatpush1.msra.mxu0 %v582
    %3045 = vmatprep.subr.mxu0 0.0
    %3046 = vmatpush1.msra.mxu0 %v583
    %3047 = vmatprep.subr.mxu0 0.0
    %3048 = vmatpush1.msra.mxu0 %v584
    %3049 = vmatprep.subr.mxu0 0.0
    %3050 = vmatpush1.msra.mxu0 %v585
    %3051 = vmatprep.subr.mxu0 0.0
    %3052 = vmatpush1.msra.mxu0 %v586
    %3053 = vmatprep.subr.mxu0 0.0
    %3054 = vmatpush1.msra.mxu0 %v587
    %3055 = vmatprep.subr.mxu0 0.0
    %3056 = vmatpush1.msra.mxu0 %v588
    %3057 = vmatprep.subr.mxu0 0.0
    %3058 = vmatpush1.msra.mxu0 %v589
    %3059 = vmatprep.subr.mxu0 0.0
    %3060 = vmatpush1.msra.mxu0 %v590
    %3061 = vmatprep.subr.mxu0 0.0
    %3062 = vmatpush1.msra.mxu0 %v591
    %3063 = vmatprep.subr.mxu0 0.0
    %3064 = vmatpush1.msra.mxu0 %v592
    %3065 = vmatprep.mubr.f32.mxu0 %v1581
    %3066 = vmatmul.mubr.f32.gmra.mrb[0].mxu0 %v1573
    %v3067 = vpop.f32.mrb[0].mxu0
    %v3068 = vadd.f32 %v2998, %v3067
    %v3069 = vpop.f32.mrb[0].mxu0
    %3070 = vdwg.mxu0
    %3071 = vmatprep.subr.mxu0 0.0
    %3072 = vmatpush1.msra.mxu0 %v593
    %3073 = vmatprep.subr.mxu0 0.0
    %3074 = vmatpush1.msra.mxu0 %v594
    %3075 = vmatprep.subr.mxu0 0.0
    %3076 = vmatpush1.msra.mxu0 %v595
    %3077 = vmatprep.subr.mxu0 0.0
    %3078 = vmatpush1.msra.mxu0 %v596
    %3079 = vmatprep.subr.mxu0 0.0
    %3080 = vmatpush1.msra.mxu0 %v597
    %3081 = vmatprep.subr.mxu0 0.0
    %3082 = vmatpush1.msra.mxu0 %v598
    %3083 = vmatprep.subr.mxu0 0.0
    %3084 = vmatpush1.msra.mxu0 %v599
    %3085 = vmatprep.subr.mxu0 0.0
    %3086 = vmatpush1.msra.mxu0 %v600
    %3087 = vmatprep.subr.mxu0 0.0
    %3088 = vmatpush1.msra.mxu0 %v601
    %3089 = vmatprep.subr.mxu0 0.0
    %3090 = vmatpush1.msra.mxu0 %v602
    %3091 = vmatprep.subr.mxu0 0.0
    %3092 = vmatpush1.msra.mxu0 %v603
    %3093 = vmatprep.subr.mxu0 0.0
    %3094 = vmatpush1.msra.mxu0 %v604
    %3095 = vmatprep.subr.mxu0 0.0
    %3096 = vmatpush1.msra.mxu0 %v605
    %3097 = vmatprep.subr.mxu0 0.0
    %3098 = vmatpush1.msra.mxu0 %v606
    %3099 = vmatprep.subr.mxu0 0.0
    %3100 = vmatpush1.msra.mxu0 %v607
    %3101 = vmatprep.subr.mxu0 0.0
    %3102 = vmatpush1.msra.mxu0 %v608
    %3103 = vmatprep.subr.mxu0 0.0
    %3104 = vmatpush1.msra.mxu0 %v609
    %3105 = vmatprep.subr.mxu0 0.0
    %3106 = vmatpush1.msra.mxu0 %v610
    %3107 = vmatprep.subr.mxu0 0.0
    %3108 = vmatpush1.msra.mxu0 %v611
    %3109 = vmatprep.subr.mxu0 0.0
    %3110 = vmatpush1.msra.mxu0 %v612
    %3111 = vmatprep.subr.mxu0 0.0
    %3112 = vmatpush1.msra.mxu0 %v613
    %3113 = vmatprep.subr.mxu0 0.0
    %3114 = vmatpush1.msra.mxu0 %v614
    %3115 = vmatprep.subr.mxu0 0.0
    %3116 = vmatpush1.msra.mxu0 %v615
    %3117 = vmatprep.subr.mxu0 0.0
    %3118 = vmatpush1.msra.mxu0 %v616
    %3119 = vmatprep.subr.mxu0 0.0
    %3120 = vmatpush1.msra.mxu0 %v617
    %3121 = vmatprep.subr.mxu0 0.0
    %3122 = vmatpush1.msra.mxu0 %v618
    %3123 = vmatprep.subr.mxu0 0.0
    %3124 = vmatpush1.msra.mxu0 %v619
    %3125 = vmatprep.subr.mxu0 0.0
    %3126 = vmatpush1.msra.mxu0 %v620
    %3127 = vmatprep.subr.mxu0 0.0
    %3128 = vmatpush1.msra.mxu0 %v621
    %3129 = vmatprep.subr.mxu0 0.0
    %3130 = vmatpush1.msra.mxu0 %v622
    %3131 = vmatprep.subr.mxu0 0.0
    %3132 = vmatpush1.msra.mxu0 %v623
    %3133 = vmatprep.subr.mxu0 0.0
    %3134 = vmatpush1.msra.mxu0 %v624
    %3135 = vmatprep.mubr.f32.mxu0 %v1582
    %3136 = vmatmul.mubr.f32.gmra.mrb[0].mxu0 %v1580
    %v3137 = vpop.f32.mrb[0].mxu0
    %v3138 = vadd.f32 %v3068, %v3137
    %v3139 = vpop.f32.mrb[0].mxu0
    %3140 = vdwg.mxu0
    %3141 = vmatprep.subr.mxu0 0.0
    %3142 = vmatpush1.msra.mxu0 %v625
    %3143 = vmatprep.subr.mxu0 0.0
    %3144 = vmatpush1.msra.mxu0 %v626
    %3145 = vmatprep.subr.mxu0 0.0
    %3146 = vmatpush1.msra.mxu0 %v627
    %3147 = vmatprep.subr.mxu0 0.0
    %3148 = vmatpush1.msra.mxu0 %v628
    %3149 = vmatprep.subr.mxu0 0.0
    %3150 = vmatpush1.msra.mxu0 %v629
    %3151 = vmatprep.subr.mxu0 0.0
    %3152 = vmatpush1.msra.mxu0 %v630
    %3153 = vmatprep.subr.mxu0 0.0
    %3154 = vmatpush1.msra.mxu0 %v631
    %3155 = vmatprep.subr.mxu0 0.0
    %3156 = vmatpush1.msra.mxu0 %v632
    %3157 = vmatprep.subr.mxu0 0.0
    %3158 = vmatpush1.msra.mxu0 %v633
    %3159 = vmatprep.subr.mxu0 0.0
    %3160 = vmatpush1.msra.mxu0 %v634
    %3161 = vmatprep.subr.mxu0 0.0
    %3162 = vmatpush1.msra.mxu0 %v635
    %3163 = vmatprep.subr.mxu0 0.0
    %3164 = vmatpush1.msra.mxu0 %v636
    %3165 = vmatprep.subr.mxu0 0.0
    %3166 = vmatpush1.msra.mxu0 %v637
    %3167 = vmatprep.subr.mxu0 0.0
    %3168 = vmatpush1.msra.mxu0 %v638
    %3169 = vmatprep.subr.mxu0 0.0
    %3170 = vmatpush1.msra.mxu0 %v639
    %3171 = vmatprep.subr.mxu0 0.0
    %3172 = vmatpush1.msra.mxu0 %v640
    %3173 = vmatprep.subr.mxu0 0.0
    %3174 = vmatpush1.msra.mxu0 %v641
    %3175 = vmatprep.subr.mxu0 0.0
    %3176 = vmatpush1.msra.mxu0 %v642
    %3177 = vmatprep.subr.mxu0 0.0
    %3178 = vmatpush1.msra.mxu0 %v643
    %3179 = vmatprep.subr.mxu0 0.0
    %3180 = vmatpush1.msra.mxu0 %v644
    %3181 = vmatprep.subr.mxu0 0.0
    %3182 = vmatpush1.msra.mxu0 %v645
    %3183 = vmatprep.subr.mxu0 0.0
    %3184 = vmatpush1.msra.mxu0 %v646
    %3185 = vmatprep.subr.mxu0 0.0
    %3186 = vmatpush1.msra.mxu0 %v647
    %3187 = vmatprep.subr.mxu0 0.0
    %3188 = vmatpush1.msra.mxu0 %v648
    %3189 = vmatprep.subr.mxu0 0.0
    %3190 = vmatpush1.msra.mxu0 %v649
    %3191 = vmatprep.subr.mxu0 0.0
    %3192 = vmatpush1.msra.mxu0 %v650
    %3193 = vmatprep.subr.mxu0 0.0
    %3194 = vmatpush1.msra.mxu0 %v651
    %3195 = vmatprep.subr.mxu0 0.0
    %3196 = vmatpush1.msra.mxu0 %v652
    %3197 = vmatprep.subr.mxu0 0.0
    %3198 = vmatpush1.msra.mxu0 %v653
    %3199 = vmatprep.subr.mxu0 0.0
    %3200 = vmatpush1.msra.mxu0 %v654
    %3201 = vmatprep.subr.mxu0 0.0
    %3202 = vmatpush1.msra.mxu0 %v655
    %3203 = vmatprep.subr.mxu0 0.0
    %3204 = vmatpush1.msra.mxu0 %v656
    %3205 = vmatprep.mubr.f32.mxu0 %v1598
    %3206 = vmatmul.mubr.f32.gmra.mrb[0].mxu0 %v1590
    %v3207 = vpop.f32.mrb[0].mxu0
    %v3208 = vadd.f32 %v3138, %v3207
    %v3209 = vpop.f32.mrb[0].mxu0
    %3210 = vdwg.mxu0
    %3211 = vmatprep.subr.mxu0 0.0
    %3212 = vmatpush1.msra.mxu0 %v657
    %3213 = vmatprep.subr.mxu0 0.0
    %3214 = vmatpush1.msra.mxu0 %v658
    %3215 = vmatprep.subr.mxu0 0.0
    %3216 = vmatpush1.msra.mxu0 %v659
    %3217 = vmatprep.subr.mxu0 0.0
    %3218 = vmatpush1.msra.mxu0 %v660
    %3219 = vmatprep.subr.mxu0 0.0
    %3220 = vmatpush1.msra.mxu0 %v661
    %3221 = vmatprep.subr.mxu0 0.0
    %3222 = vmatpush1.msra.mxu0 %v662
    %3223 = vmatprep.subr.mxu0 0.0
    %3224 = vmatpush1.msra.mxu0 %v663
    %3225 = vmatprep.subr.mxu0 0.0
    %3226 = vmatpush1.msra.mxu0 %v664
    %3227 = vmatprep.subr.mxu0 0.0
    %3228 = vmatpush1.msra.mxu0 %v665
    %3229 = vmatprep.subr.mxu0 0.0
    %3230 = vmatpush1.msra.mxu0 %v666
    %3231 = vmatprep.subr.mxu0 0.0
    %3232 = vmatpush1.msra.mxu0 %v667
    %3233 = vmatprep.subr.mxu0 0.0
    %3234 = vmatpush1.msra.mxu0 %v668
    %3235 = vmatprep.subr.mxu0 0.0
    %3236 = vmatpush1.msra.mxu0 %v669
    %3237 = vmatprep.subr.mxu0 0.0
    %3238 = vmatpush1.msra.mxu0 %v670
    %3239 = vmatprep.subr.mxu0 0.0
    %3240 = vmatpush1.msra.mxu0 %v671
    %3241 = vmatprep.subr.mxu0 0.0
    %3242 = vmatpush1.msra.mxu0 %v672
    %3243 = vmatprep.subr.mxu0 0.0
    %3244 = vmatpush1.msra.mxu0 %v673
    %3245 = vmatprep.subr.mxu0 0.0
    %3246 = vmatpush1.msra.mxu0 %v674
    %3247 = vmatprep.subr.mxu0 0.0
    %3248 = vmatpush1.msra.mxu0 %v675
    %3249 = vmatprep.subr.mxu0 0.0
    %3250 = vmatpush1.msra.mxu0 %v676
    %3251 = vmatprep.subr.mxu0 0.0
    %3252 = vmatpush1.msra.mxu0 %v677
    %3253 = vmatprep.subr.mxu0 0.0
    %3254 = vmatpush1.msra.mxu0 %v678
    %3255 = vmatprep.subr.mxu0 0.0
    %3256 = vmatpush1.msra.mxu0 %v679
    %3257 = vmatprep.subr.mxu0 0.0
    %3258 = vmatpush1.msra.mxu0 %v680
    %3259 = vmatprep.subr.mxu0 0.0
    %3260 = vmatpush1.msra.mxu0 %v681
    %3261 = vmatprep.subr.mxu0 0.0
    %3262 = vmatpush1.msra.mxu0 %v682
    %3263 = vmatprep.subr.mxu0 0.0
    %3264 = vmatpush1.msra.mxu0 %v683
    %3265 = vmatprep.subr.mxu0 0.0
    %3266 = vmatpush1.msra.mxu0 %v684
    %3267 = vmatprep.subr.mxu0 0.0
    %3268 = vmatpush1.msra.mxu0 %v685
    %3269 = vmatprep.subr.mxu0 0.0
    %3270 = vmatpush1.msra.mxu0 %v686
    %3271 = vmatprep.subr.mxu0 0.0
    %3272 = vmatpush1.msra.mxu0 %v687
    %3273 = vmatprep.subr.mxu0 0.0
    %3274 = vmatpush1.msra.mxu0 %v688
    %3275 = vmatprep.mubr.f32.mxu0 %v1599
    %3276 = vmatmul.mubr.f32.gmra.mrb[0].mxu0 %v1597
    %v3277 = vpop.f32.mrb[0].mxu0
    %v3278 = vadd.f32 %v3208, %v3277
    %v3279 = vpop.f32.mrb[0].mxu0
    %3280 = vdwg.mxu0
    %3281 = vmatprep.subr.mxu0 0.0
    %3282 = vmatpush1.msra.mxu0 %v689
    %3283 = vmatprep.subr.mxu0 0.0
    %3284 = vmatpush1.msra.mxu0 %v690
    %3285 = vmatprep.subr.mxu0 0.0
    %3286 = vmatpush1.msra.mxu0 %v691
    %3287 = vmatprep.subr.mxu0 0.0
    %3288 = vmatpush1.msra.mxu0 %v692
    %3289 = vmatprep.subr.mxu0 0.0
    %3290 = vmatpush1.msra.mxu0 %v693
    %3291 = vmatprep.subr.mxu0 0.0
    %3292 = vmatpush1.msra.mxu0 %v694
    %3293 = vmatprep.subr.mxu0 0.0
    %3294 = vmatpush1.msra.mxu0 %v695
    %3295 = vmatprep.subr.mxu0 0.0
    %3296 = vmatpush1.msra.mxu0 %v696
    %3297 = vmatprep.subr.mxu0 0.0
    %3298 = vmatpush1.msra.mxu0 %v697
    %3299 = vmatprep.subr.mxu0 0.0
    %3300 = vmatpush1.msra.mxu0 %v698
    %3301 = vmatprep.subr.mxu0 0.0
    %3302 = vmatpush1.msra.mxu0 %v699
    %3303 = vmatprep.subr.mxu0 0.0
    %3304 = vmatpush1.msra.mxu0 %v700
    %3305 = vmatprep.subr.mxu0 0.0
    %3306 = vmatpush1.msra.mxu0 %v701
    %3307 = vmatprep.subr.mxu0 0.0
    %3308 = vmatpush1.msra.mxu0 %v702
    %3309 = vmatprep.subr.mxu0 0.0
    %3310 = vmatpush1.msra.mxu0 %v703
    %3311 = vmatprep.subr.mxu0 0.0
    %3312 = vmatpush1.msra.mxu0 %v704
    %3313 = vmatprep.subr.mxu0 0.0
    %3314 = vmatpush1.msra.mxu0 %v705
    %3315 = vmatprep.subr.mxu0 0.0
    %3316 = vmatpush1.msra.mxu0 %v706
    %3317 = vmatprep.subr.mxu0 0.0
    %3318 = vmatpush1.msra.mxu0 %v707
    %3319 = vmatprep.subr.mxu0 0.0
    %3320 = vmatpush1.msra.mxu0 %v708
    %3321 = vmatprep.subr.mxu0 0.0
    %3322 = vmatpush1.msra.mxu0 %v709
    %3323 = vmatprep.subr.mxu0 0.0
    %3324 = vmatpush1.msra.mxu0 %v710
    %3325 = vmatprep.subr.mxu0 0.0
    %3326 = vmatpush1.msra.mxu0 %v711
    %3327 = vmatprep.subr.mxu0 0.0
    %3328 = vmatpush1.msra.mxu0 %v712
    %3329 = vmatprep.subr.mxu0 0.0
    %3330 = vmatpush1.msra.mxu0 %v713
    %3331 = vmatprep.subr.mxu0 0.0
    %3332 = vmatpush1.msra.mxu0 %v714
    %3333 = vmatprep.subr.mxu0 0.0
    %3334 = vmatpush1.msra.mxu0 %v715
    %3335 = vmatprep.subr.mxu0 0.0
    %3336 = vmatpush1.msra.mxu0 %v716
    %3337 = vmatprep.subr.mxu0 0.0
    %3338 = vmatpush1.msra.mxu0 %v717
    %3339 = vmatprep.subr.mxu0 0.0
    %3340 = vmatpush1.msra.mxu0 %v718
    %3341 = vmatprep.subr.mxu0 0.0
    %3342 = vmatpush1.msra.mxu0 %v719
    %3343 = vmatprep.subr.mxu0 0.0
    %3344 = vmatpush1.msra.mxu0 %v720
    %3345 = vmatprep.mubr.f32.mxu0 %v1615
    %3346 = vmatmul.mubr.f32.gmra.mrb[0].mxu0 %v1607
    %v3347 = vpop.f32.mrb[0].mxu0
    %v3348 = vadd.f32 %v3278, %v3347
    %v3349 = vpop.f32.mrb[0].mxu0
    %3350 = vdwg.mxu0
    %3351 = vmatprep.subr.mxu0 0.0
    %3352 = vmatpush1.msra.mxu0 %v721
    %3353 = vmatprep.subr.mxu0 0.0
    %3354 = vmatpush1.msra.mxu0 %v722
    %3355 = vmatprep.subr.mxu0 0.0
    %3356 = vmatpush1.msra.mxu0 %v723
    %3357 = vmatprep.subr.mxu0 0.0
    %3358 = vmatpush1.msra.mxu0 %v724
    %3359 = vmatprep.subr.mxu0 0.0
    %3360 = vmatpush1.msra.mxu0 %v725
    %3361 = vmatprep.subr.mxu0 0.0
    %3362 = vmatpush1.msra.mxu0 %v726
    %3363 = vmatprep.subr.mxu0 0.0
    %3364 = vmatpush1.msra.mxu0 %v727
    %3365 = vmatprep.subr.mxu0 0.0
    %3366 = vmatpush1.msra.mxu0 %v728
    %3367 = vmatprep.subr.mxu0 0.0
    %3368 = vmatpush1.msra.mxu0 %v729
    %3369 = vmatprep.subr.mxu0 0.0
    %3370 = vmatpush1.msra.mxu0 %v730
    %3371 = vmatprep.subr.mxu0 0.0
    %3372 = vmatpush1.msra.mxu0 %v731
    %3373 = vmatprep.subr.mxu0 0.0
    %3374 = vmatpush1.msra.mxu0 %v732
    %3375 = vmatprep.subr.mxu0 0.0
    %3376 = vmatpush1.msra.mxu0 %v733
    %3377 = vmatprep.subr.mxu0 0.0
    %3378 = vmatpush1.msra.mxu0 %v734
    %3379 = vmatprep.subr.mxu0 0.0
    %3380 = vmatpush1.msra.mxu0 %v735
    %3381 = vmatprep.subr.mxu0 0.0
    %3382 = vmatpush1.msra.mxu0 %v736
    %3383 = vmatprep.subr.mxu0 0.0
    %3384 = vmatpush1.msra.mxu0 %v737
    %3385 = vmatprep.subr.mxu0 0.0
    %3386 = vmatpush1.msra.mxu0 %v738
    %3387 = vmatprep.subr.mxu0 0.0
    %3388 = vmatpush1.msra.mxu0 %v739
    %3389 = vmatprep.subr.mxu0 0.0
    %3390 = vmatpush1.msra.mxu0 %v740
    %3391 = vmatprep.subr.mxu0 0.0
    %3392 = vmatpush1.msra.mxu0 %v741
    %3393 = vmatprep.subr.mxu0 0.0
    %3394 = vmatpush1.msra.mxu0 %v742
    %3395 = vmatprep.subr.mxu0 0.0
    %3396 = vmatpush1.msra.mxu0 %v743
    %3397 = vmatprep.subr.mxu0 0.0
    %3398 = vmatpush1.msra.mxu0 %v744
    %3399 = vmatprep.subr.mxu0 0.0
    %3400 = vmatpush1.msra.mxu0 %v745
    %3401 = vmatprep.subr.mxu0 0.0
    %3402 = vmatpush1.msra.mxu0 %v746
    %3403 = vmatprep.subr.mxu0 0.0
    %3404 = vmatpush1.msra.mxu0 %v747
    %3405 = vmatprep.subr.mxu0 0.0
    %3406 = vmatpush1.msra.mxu0 %v748
    %3407 = vmatprep.subr.mxu0 0.0
    %3408 = vmatpush1.msra.mxu0 %v749
    %3409 = vmatprep.subr.mxu0 0.0
    %3410 = vmatpush1.msra.mxu0 %v750
    %3411 = vmatprep.subr.mxu0 0.0
    %3412 = vmatpush1.msra.mxu0 %v751
    %3413 = vmatprep.subr.mxu0 0.0
    %3414 = vmatpush1.msra.mxu0 %v752
    %3415 = vmatprep.mubr.f32.mxu0 %v1616
    %3416 = vmatmul.mubr.f32.gmra.mrb[0].mxu0 %v1614
    %v3417 = vpop.f32.mrb[0].mxu0
    %v3418 = vadd.f32 %v3348, %v3417
    %v3419 = vpop.f32.mrb[0].mxu0
    %3420 = vdwg.mxu0
    %3421 = vmatprep.subr.mxu0 0.0
    %3422 = vmatpush1.msra.mxu0 %v753
    %3423 = vmatprep.subr.mxu0 0.0
    %3424 = vmatpush1.msra.mxu0 %v754
    %3425 = vmatprep.subr.mxu0 0.0
    %3426 = vmatpush1.msra.mxu0 %v755
    %3427 = vmatprep.subr.mxu0 0.0
    %3428 = vmatpush1.msra.mxu0 %v756
    %3429 = vmatprep.subr.mxu0 0.0
    %3430 = vmatpush1.msra.mxu0 %v757
    %3431 = vmatprep.subr.mxu0 0.0
    %3432 = vmatpush1.msra.mxu0 %v758
    %3433 = vmatprep.subr.mxu0 0.0
    %3434 = vmatpush1.msra.mxu0 %v759
    %3435 = vmatprep.subr.mxu0 0.0
    %3436 = vmatpush1.msra.mxu0 %v760
    %3437 = vmatprep.subr.mxu0 0.0
    %3438 = vmatpush1.msra.mxu0 %v761
    %3439 = vmatprep.subr.mxu0 0.0
    %3440 = vmatpush1.msra.mxu0 %v762
    %3441 = vmatprep.subr.mxu0 0.0
    %3442 = vmatpush1.msra.mxu0 %v763
    %3443 = vmatprep.subr.mxu0 0.0
    %3444 = vmatpush1.msra.mxu0 %v764
    %3445 = vmatprep.subr.mxu0 0.0
    %3446 = vmatpush1.msra.mxu0 %v765
    %3447 = vmatprep.subr.mxu0 0.0
    %3448 = vmatpush1.msra.mxu0 %v766
    %3449 = vmatprep.subr.mxu0 0.0
    %3450 = vmatpush1.msra.mxu0 %v767
    %3451 = vmatprep.subr.mxu0 0.0
    %3452 = vmatpush1.msra.mxu0 %v768
    %3453 = vmatprep.subr.mxu0 0.0
    %3454 = vmatpush1.msra.mxu0 %v769
    %3455 = vmatprep.subr.mxu0 0.0
    %3456 = vmatpush1.msra.mxu0 %v770
    %3457 = vmatprep.subr.mxu0 0.0
    %3458 = vmatpush1.msra.mxu0 %v771
    %3459 = vmatprep.subr.mxu0 0.0
    %3460 = vmatpush1.msra.mxu0 %v772
    %3461 = vmatprep.subr.mxu0 0.0
    %3462 = vmatpush1.msra.mxu0 %v773
    %3463 = vmatprep.subr.mxu0 0.0
    %3464 = vmatpush1.msra.mxu0 %v774
    %3465 = vmatprep.subr.mxu0 0.0
    %3466 = vmatpush1.msra.mxu0 %v775
    %3467 = vmatprep.subr.mxu0 0.0
    %3468 = vmatpush1.msra.mxu0 %v776
    %3469 = vmatprep.subr.mxu0 0.0
    %3470 = vmatpush1.msra.mxu0 %v777
    %3471 = vmatprep.subr.mxu0 0.0
    %3472 = vmatpush1.msra.mxu0 %v778
    %3473 = vmatprep.subr.mxu0 0.0
    %3474 = vmatpush1.msra.mxu0 %v779
    %3475 = vmatprep.subr.mxu0 0.0
    %3476 = vmatpush1.msra.mxu0 %v780
    %3477 = vmatprep.subr.mxu0 0.0
    %3478 = vmatpush1.msra.mxu0 %v781
    %3479 = vmatprep.subr.mxu0 0.0
    %3480 = vmatpush1.msra.mxu0 %v782
    %3481 = vmatprep.subr.mxu0 0.0
    %3482 = vmatpush1.msra.mxu0 %v783
    %3483 = vmatprep.subr.mxu0 0.0
    %3484 = vmatpush1.msra.mxu0 %v784
    %3485 = vmatprep.mubr.f32.mxu0 %v1632
    %3486 = vmatmul.mubr.f32.gmra.mrb[0].mxu0 %v1624
    %v3487 = vpop.f32.mrb[0].mxu0
    %v3488 = vadd.f32 %v3418, %v3487
    %v3489 = vpop.f32.mrb[0].mxu0
    %3490 = vdwg.mxu0
    %3491 = vmatprep.subr.mxu0 0.0
    %3492 = vmatpush1.msra.mxu0 %v785
    %3493 = vmatprep.subr.mxu0 0.0
    %3494 = vmatpush1.msra.mxu0 %v786
    %3495 = vmatprep.subr.mxu0 0.0
    %3496 = vmatpush1.msra.mxu0 %v787
    %3497 = vmatprep.subr.mxu0 0.0
    %3498 = vmatpush1.msra.mxu0 %v788
    %3499 = vmatprep.subr.mxu0 0.0
    %3500 = vmatpush1.msra.mxu0 %v789
    %3501 = vmatprep.subr.mxu0 0.0
    %3502 = vmatpush1.msra.mxu0 %v790
    %3503 = vmatprep.subr.mxu0 0.0
    %3504 = vmatpush1.msra.mxu0 %v791
    %3505 = vmatprep.subr.mxu0 0.0
    %3506 = vmatpush1.msra.mxu0 %v792
    %3507 = vmatprep.subr.mxu0 0.0
    %3508 = vmatpush1.msra.mxu0 %v793
    %3509 = vmatprep.subr.mxu0 0.0
    %3510 = vmatpush1.msra.mxu0 %v794
    %3511 = vmatprep.subr.mxu0 0.0
    %3512 = vmatpush1.msra.mxu0 %v795
    %3513 = vmatprep.subr.mxu0 0.0
    %3514 = vmatpush1.msra.mxu0 %v796
    %3515 = vmatprep.subr.mxu0 0.0
    %3516 = vmatpush1.msra.mxu0 %v797
    %3517 = vmatprep.subr.mxu0 0.0
    %3518 = vmatpush1.msra.mxu0 %v798
    %3519 = vmatprep.subr.mxu0 0.0
    %3520 = vmatpush1.msra.mxu0 %v799
    %3521 = vmatprep.subr.mxu0 0.0
    %3522 = vmatpush1.msra.mxu0 %v800
    %3523 = vmatprep.subr.mxu0 0.0
    %3524 = vmatpush1.msra.mxu0 %v801
    %3525 = vmatprep.subr.mxu0 0.0
    %3526 = vmatpush1.msra.mxu0 %v802
    %3527 = vmatprep.subr.mxu0 0.0
    %3528 = vmatpush1.msra.mxu0 %v803
    %3529 = vmatprep.subr.mxu0 0.0
    %3530 = vmatpush1.msra.mxu0 %v804
    %3531 = vmatprep.subr.mxu0 0.0
    %3532 = vmatpush1.msra.mxu0 %v805
    %3533 = vmatprep.subr.mxu0 0.0
    %3534 = vmatpush1.msra.mxu0 %v806
    %3535 = vmatprep.subr.mxu0 0.0
    %3536 = vmatpush1.msra.mxu0 %v807
    %3537 = vmatprep.subr.mxu0 0.0
    %3538 = vmatpush1.msra.mxu0 %v808
    %3539 = vmatprep.subr.mxu0 0.0
    %3540 = vmatpush1.msra.mxu0 %v809
    %3541 = vmatprep.subr.mxu0 0.0
    %3542 = vmatpush1.msra.mxu0 %v810
    %3543 = vmatprep.subr.mxu0 0.0
    %3544 = vmatpush1.msra.mxu0 %v811
    %3545 = vmatprep.subr.mxu0 0.0
    %3546 = vmatpush1.msra.mxu0 %v812
    %3547 = vmatprep.subr.mxu0 0.0
    %3548 = vmatpush1.msra.mxu0 %v813
    %3549 = vmatprep.subr.mxu0 0.0
    %3550 = vmatpush1.msra.mxu0 %v814
    %3551 = vmatprep.subr.mxu0 0.0
    %3552 = vmatpush1.msra.mxu0 %v815
    %3553 = vmatprep.subr.mxu0 0.0
    %3554 = vmatpush1.msra.mxu0 %v816
    %3555 = vmatprep.mubr.f32.mxu0 %v1633
    %3556 = vmatmul.mubr.f32.gmra.mrb[0].mxu0 %v1631
    %v3557 = vpop.f32.mrb[0].mxu0
    %v3558 = vadd.f32 %v3488, %v3557
    %v3559 = vpop.f32.mrb[0].mxu0
    %3560 = vdwg.mxu0
    %3561 = vmatprep.subr.mxu0 0.0
    %3562 = vmatpush1.msra.mxu0 %v817
    %3563 = vmatprep.subr.mxu0 0.0
    %3564 = vmatpush1.msra.mxu0 %v818
    %3565 = vmatprep.subr.mxu0 0.0
    %3566 = vmatpush1.msra.mxu0 %v819
    %3567 = vmatprep.subr.mxu0 0.0
    %3568 = vmatpush1.msra.mxu0 %v820
    %3569 = vmatprep.subr.mxu0 0.0
    %3570 = vmatpush1.msra.mxu0 %v821
    %3571 = vmatprep.subr.mxu0 0.0
    %3572 = vmatpush1.msra.mxu0 %v822
    %3573 = vmatprep.subr.mxu0 0.0
    %3574 = vmatpush1.msra.mxu0 %v823
    %3575 = vmatprep.subr.mxu0 0.0
    %3576 = vmatpush1.msra.mxu0 %v824
    %3577 = vmatprep.subr.mxu0 0.0
    %3578 = vmatpush1.msra.mxu0 %v825
    %3579 = vmatprep.subr.mxu0 0.0
    %3580 = vmatpush1.msra.mxu0 %v826
    %3581 = vmatprep.subr.mxu0 0.0
    %3582 = vmatpush1.msra.mxu0 %v827
    %3583 = vmatprep.subr.mxu0 0.0
    %3584 = vmatpush1.msra.mxu0 %v828
    %3585 = vmatprep.subr.mxu0 0.0
    %3586 = vmatpush1.msra.mxu0 %v829
    %3587 = vmatprep.subr.mxu0 0.0
    %3588 = vmatpush1.msra.mxu0 %v830
    %3589 = vmatprep.subr.mxu0 0.0
    %3590 = vmatpush1.msra.mxu0 %v831
    %3591 = vmatprep.subr.mxu0 0.0
    %3592 = vmatpush1.msra.mxu0 %v832
    %3593 = vmatprep.subr.mxu0 0.0
    %3594 = vmatpush1.msra.mxu0 %v833
    %3595 = vmatprep.subr.mxu0 0.0
    %3596 = vmatpush1.msra.mxu0 %v834
    %3597 = vmatprep.subr.mxu0 0.0
    %3598 = vmatpush1.msra.mxu0 %v835
    %3599 = vmatprep.subr.mxu0 0.0
    %3600 = vmatpush1.msra.mxu0 %v836
    %3601 = vmatprep.subr.mxu0 0.0
    %3602 = vmatpush1.msra.mxu0 %v837
    %3603 = vmatprep.subr.mxu0 0.0
    %3604 = vmatpush1.msra.mxu0 %v838
    %3605 = vmatprep.subr.mxu0 0.0
    %3606 = vmatpush1.msra.mxu0 %v839
    %3607 = vmatprep.subr.mxu0 0.0
    %3608 = vmatpush1.msra.mxu0 %v840
    %3609 = vmatprep.subr.mxu0 0.0
    %3610 = vmatpush1.msra.mxu0 %v841
    %3611 = vmatprep.subr.mxu0 0.0
    %3612 = vmatpush1.msra.mxu0 %v842
    %3613 = vmatprep.subr.mxu0 0.0
    %3614 = vmatpush1.msra.mxu0 %v843
    %3615 = vmatprep.subr.mxu0 0.0
    %3616 = vmatpush1.msra.mxu0 %v844
    %3617 = vmatprep.subr.mxu0 0.0
    %3618 = vmatpush1.msra.mxu0 %v845
    %3619 = vmatprep.subr.mxu0 0.0
    %3620 = vmatpush1.msra.mxu0 %v846
    %3621 = vmatprep.subr.mxu0 0.0
    %3622 = vmatpush1.msra.mxu0 %v847
    %3623 = vmatprep.subr.mxu0 0.0
    %3624 = vmatpush1.msra.mxu0 %v848
    %3625 = vmatprep.mubr.f32.mxu0 %v1649
    %3626 = vmatmul.mubr.f32.gmra.mrb[0].mxu0 %v1641
    %v3627 = vpop.f32.mrb[0].mxu0
    %v3628 = vadd.f32 %v3558, %v3627
    %v3629 = vpop.f32.mrb[0].mxu0
    %3630 = vdwg.mxu0
    %3631 = vmatprep.subr.mxu0 0.0
    %3632 = vmatpush1.msra.mxu0 %v849
    %3633 = vmatprep.subr.mxu0 0.0
    %3634 = vmatpush1.msra.mxu0 %v850
    %3635 = vmatprep.subr.mxu0 0.0
    %3636 = vmatpush1.msra.mxu0 %v851
    %3637 = vmatprep.subr.mxu0 0.0
    %3638 = vmatpush1.msra.mxu0 %v852
    %3639 = vmatprep.subr.mxu0 0.0
    %3640 = vmatpush1.msra.mxu0 %v853
    %3641 = vmatprep.subr.mxu0 0.0
    %3642 = vmatpush1.msra.mxu0 %v854
    %3643 = vmatprep.subr.mxu0 0.0
    %3644 = vmatpush1.msra.mxu0 %v855
    %3645 = vmatprep.subr.mxu0 0.0
    %3646 = vmatpush1.msra.mxu0 %v856
    %3647 = vmatprep.subr.mxu0 0.0
    %3648 = vmatpush1.msra.mxu0 %v857
    %3649 = vmatprep.subr.mxu0 0.0
    %3650 = vmatpush1.msra.mxu0 %v858
    %3651 = vmatprep.subr.mxu0 0.0
    %3652 = vmatpush1.msra.mxu0 %v859
    %3653 = vmatprep.subr.mxu0 0.0
    %3654 = vmatpush1.msra.mxu0 %v860
    %3655 = vmatprep.subr.mxu0 0.0
    %3656 = vmatpush1.msra.mxu0 %v861
    %3657 = vmatprep.subr.mxu0 0.0
    %3658 = vmatpush1.msra.mxu0 %v862
    %3659 = vmatprep.subr.mxu0 0.0
    %3660 = vmatpush1.msra.mxu0 %v863
    %3661 = vmatprep.subr.mxu0 0.0
    %3662 = vmatpush1.msra.mxu0 %v864
    %3663 = vmatprep.subr.mxu0 0.0
    %3664 = vmatpush1.msra.mxu0 %v865
    %3665 = vmatprep.subr.mxu0 0.0
    %3666 = vmatpush1.msra.mxu0 %v866
    %3667 = vmatprep.subr.mxu0 0.0
    %3668 = vmatpush1.msra.mxu0 %v867
    %3669 = vmatprep.subr.mxu0 0.0
    %3670 = vmatpush1.msra.mxu0 %v868
    %3671 = vmatprep.subr.mxu0 0.0
    %3672 = vmatpush1.msra.mxu0 %v869
    %3673 = vmatprep.subr.mxu0 0.0
    %3674 = vmatpush1.msra.mxu0 %v870
    %3675 = vmatprep.subr.mxu0 0.0
    %3676 = vmatpush1.msra.mxu0 %v871
    %3677 = vmatprep.subr.mxu0 0.0
    %3678 = vmatpush1.msra.mxu0 %v872
    %3679 = vmatprep.subr.mxu0 0.0
    %3680 = vmatpush1.msra.mxu0 %v873
    %3681 = vmatprep.subr.mxu0 0.0
    %3682 = vmatpush1.msra.mxu0 %v874
    %3683 = vmatprep.subr.mxu0 0.0
    %3684 = vmatpush1.msra.mxu0 %v875
    %3685 = vmatprep.subr.mxu0 0.0
    %3686 = vmatpush1.msra.mxu0 %v876
    %3687 = vmatprep.subr.mxu0 0.0
    %3688 = vmatpush1.msra.mxu0 %v877
    %3689 = vmatprep.subr.mxu0 0.0
    %3690 = vmatpush1.msra.mxu0 %v878
    %3691 = vmatprep.subr.mxu0 0.0
    %3692 = vmatpush1.msra.mxu0 %v879
    %3693 = vmatprep.subr.mxu0 0.0
    %3694 = vmatpush1.msra.mxu0 %v880
    %3695 = vmatprep.mubr.f32.mxu0 %v1650
    %3696 = vmatmul.mubr.f32.gmra.mrb[0].mxu0 %v1648
    %v3697 = vpop.f32.mrb[0].mxu0
    %v3698 = vadd.f32 %v3628, %v3697
    %v3699 = vpop.f32.mrb[0].mxu0
    %3700 = vdwg.mxu0
    %3701 = vmatprep.subr.mxu0 0.0
    %3702 = vmatpush1.msra.mxu0 %v881
    %3703 = vmatprep.subr.mxu0 0.0
    %3704 = vmatpush1.msra.mxu0 %v882
    %3705 = vmatprep.subr.mxu0 0.0
    %3706 = vmatpush1.msra.mxu0 %v883
    %3707 = vmatprep.subr.mxu0 0.0
    %3708 = vmatpush1.msra.mxu0 %v884
    %3709 = vmatprep.subr.mxu0 0.0
    %3710 = vmatpush1.msra.mxu0 %v885
    %3711 = vmatprep.subr.mxu0 0.0
    %3712 = vmatpush1.msra.mxu0 %v886
    %3713 = vmatprep.subr.mxu0 0.0
    %3714 = vmatpush1.msra.mxu0 %v887
    %3715 = vmatprep.subr.mxu0 0.0
    %3716 = vmatpush1.msra.mxu0 %v888
    %3717 = vmatprep.subr.mxu0 0.0
    %3718 = vmatpush1.msra.mxu0 %v889
    %3719 = vmatprep.subr.mxu0 0.0
    %3720 = vmatpush1.msra.mxu0 %v890
    %3721 = vmatprep.subr.mxu0 0.0
    %3722 = vmatpush1.msra.mxu0 %v891
    %3723 = vmatprep.subr.mxu0 0.0
    %3724 = vmatpush1.msra.mxu0 %v892
    %3725 = vmatprep.subr.mxu0 0.0
    %3726 = vmatpush1.msra.mxu0 %v893
    %3727 = vmatprep.subr.mxu0 0.0
    %3728 = vmatpush1.msra.mxu0 %v894
    %3729 = vmatprep.subr.mxu0 0.0
    %3730 = vmatpush1.msra.mxu0 %v895
    %3731 = vmatprep.subr.mxu0 0.0
    %3732 = vmatpush1.msra.mxu0 %v896
    %3733 = vmatprep.subr.mxu0 0.0
    %3734 = vmatpush1.msra.mxu0 %v897
    %3735 = vmatprep.subr.mxu0 0.0
    %3736 = vmatpush1.msra.mxu0 %v898
    %3737 = vmatprep.subr.mxu0 0.0
    %3738 = vmatpush1.msra.mxu0 %v899
    %3739 = vmatprep.subr.mxu0 0.0
    %3740 = vmatpush1.msra.mxu0 %v900
    %3741 = vmatprep.subr.mxu0 0.0
    %3742 = vmatpush1.msra.mxu0 %v901
    %3743 = vmatprep.subr.mxu0 0.0
    %3744 = vmatpush1.msra.mxu0 %v902
    %3745 = vmatprep.subr.mxu0 0.0
    %3746 = vmatpush1.msra.mxu0 %v903
    %3747 = vmatprep.subr.mxu0 0.0
    %3748 = vmatpush1.msra.mxu0 %v904
    %3749 = vmatprep.subr.mxu0 0.0
    %3750 = vmatpush1.msra.mxu0 %v905
    %3751 = vmatprep.subr.mxu0 0.0
    %3752 = vmatpush1.msra.mxu0 %v906
    %3753 = vmatprep.subr.mxu0 0.0
    %3754 = vmatpush1.msra.mxu0 %v907
    %3755 = vmatprep.subr.mxu0 0.0
    %3756 = vmatpush1.msra.mxu0 %v908
    %3757 = vmatprep.subr.mxu0 0.0
    %3758 = vmatpush1.msra.mxu0 %v909
    %3759 = vmatprep.subr.mxu0 0.0
    %3760 = vmatpush1.msra.mxu0 %v910
    %3761 = vmatprep.subr.mxu0 0.0
    %3762 = vmatpush1.msra.mxu0 %v911
    %3763 = vmatprep.subr.mxu0 0.0
    %3764 = vmatpush1.msra.mxu0 %v912
    %3765 = vmatprep.mubr.f32.mxu0 %v1666
    %3766 = vmatmul.mubr.f32.gmra.mrb[0].mxu0 %v1658
    %v3767 = vpop.f32.mrb[0].mxu0
    %v3768 = vadd.f32 %v3698, %v3767
    %v3769 = vpop.f32.mrb[0].mxu0
    %3770 = vdwg.mxu0
    %3771 = vmatprep.subr.mxu0 0.0
    %3772 = vmatpush1.msra.mxu0 %v913
    %3773 = vmatprep.subr.mxu0 0.0
    %3774 = vmatpush1.msra.mxu0 %v914
    %3775 = vmatprep.subr.mxu0 0.0
    %3776 = vmatpush1.msra.mxu0 %v915
    %3777 = vmatprep.subr.mxu0 0.0
    %3778 = vmatpush1.msra.mxu0 %v916
    %3779 = vmatprep.subr.mxu0 0.0
    %3780 = vmatpush1.msra.mxu0 %v917
    %3781 = vmatprep.subr.mxu0 0.0
    %3782 = vmatpush1.msra.mxu0 %v918
    %3783 = vmatprep.subr.mxu0 0.0
    %3784 = vmatpush1.msra.mxu0 %v919
    %3785 = vmatprep.subr.mxu0 0.0
    %3786 = vmatpush1.msra.mxu0 %v920
    %3787 = vmatprep.subr.mxu0 0.0
    %3788 = vmatpush1.msra.mxu0 %v921
    %3789 = vmatprep.subr.mxu0 0.0
    %3790 = vmatpush1.msra.mxu0 %v922
    %3791 = vmatprep.subr.mxu0 0.0
    %3792 = vmatpush1.msra.mxu0 %v923
    %3793 = vmatprep.subr.mxu0 0.0
    %3794 = vmatpush1.msra.mxu0 %v924
    %3795 = vmatprep.subr.mxu0 0.0
    %3796 = vmatpush1.msra.mxu0 %v925
    %3797 = vmatprep.subr.mxu0 0.0
    %3798 = vmatpush1.msra.mxu0 %v926
    %3799 = vmatprep.subr.mxu0 0.0
    %3800 = vmatpush1.msra.mxu0 %v927
    %3801 = vmatprep.subr.mxu0 0.0
    %3802 = vmatpush1.msra.mxu0 %v928
    %3803 = vmatprep.subr.mxu0 0.0
    %3804 = vmatpush1.msra.mxu0 %v929
    %3805 = vmatprep.subr.mxu0 0.0
    %3806 = vmatpush1.msra.mxu0 %v930
    %3807 = vmatprep.subr.mxu0 0.0
    %3808 = vmatpush1.msra.mxu0 %v931
    %3809 = vmatprep.subr.mxu0 0.0
    %3810 = vmatpush1.msra.mxu0 %v932
    %3811 = vmatprep.subr.mxu0 0.0
    %3812 = vmatpush1.msra.mxu0 %v933
    %3813 = vmatprep.subr.mxu0 0.0
    %3814 = vmatpush1.msra.mxu0 %v934
    %3815 = vmatprep.subr.mxu0 0.0
    %3816 = vmatpush1.msra.mxu0 %v935
    %3817 = vmatprep.subr.mxu0 0.0
    %3818 = vmatpush1.msra.mxu0 %v936
    %3819 = vmatprep.subr.mxu0 0.0
    %3820 = vmatpush1.msra.mxu0 %v937
    %3821 = vmatprep.subr.mxu0 0.0
    %3822 = vmatpush1.msra.mxu0 %v938
    %3823 = vmatprep.subr.mxu0 0.0
    %3824 = vmatpush1.msra.mxu0 %v939
    %3825 = vmatprep.subr.mxu0 0.0
    %3826 = vmatpush1.msra.mxu0 %v940
    %3827 = vmatprep.subr.mxu0 0.0
    %3828 = vmatpush1.msra.mxu0 %v941
    %3829 = vmatprep.subr.mxu0 0.0
    %3830 = vmatpush1.msra.mxu0 %v942
    %3831 = vmatprep.subr.mxu0 0.0
    %3832 = vmatpush1.msra.mxu0 %v943
    %3833 = vmatprep.subr.mxu0 0.0
    %3834 = vmatpush1.msra.mxu0 %v944
    %3835 = vmatprep.mubr.f32.mxu0 %v1667
    %3836 = vmatmul.mubr.f32.gmra.mrb[0].mxu0 %v1665
    %v3837 = vpop.f32.mrb[0].mxu0
    %v3838 = vadd.f32 %v3768, %v3837
    %v3839 = vpop.f32.mrb[0].mxu0
    %3840 = vdwg.mxu0
    %3841 = vmatprep.subr.mxu0 0.0
    %3842 = vmatpush1.msra.mxu0 %v945
    %3843 = vmatprep.subr.mxu0 0.0
    %3844 = vmatpush1.msra.mxu0 %v946
    %3845 = vmatprep.subr.mxu0 0.0
    %3846 = vmatpush1.msra.mxu0 %v947
    %3847 = vmatprep.subr.mxu0 0.0
    %3848 = vmatpush1.msra.mxu0 %v948
    %3849 = vmatprep.subr.mxu0 0.0
    %3850 = vmatpush1.msra.mxu0 %v949
    %3851 = vmatprep.subr.mxu0 0.0
    %3852 = vmatpush1.msra.mxu0 %v950
    %3853 = vmatprep.subr.mxu0 0.0
    %3854 = vmatpush1.msra.mxu0 %v951
    %3855 = vmatprep.subr.mxu0 0.0
    %3856 = vmatpush1.msra.mxu0 %v952
    %3857 = vmatprep.subr.mxu0 0.0
    %3858 = vmatpush1.msra.mxu0 %v953
    %3859 = vmatprep.subr.mxu0 0.0
    %3860 = vmatpush1.msra.mxu0 %v954
    %3861 = vmatprep.subr.mxu0 0.0
    %3862 = vmatpush1.msra.mxu0 %v955
    %3863 = vmatprep.subr.mxu0 0.0
    %3864 = vmatpush1.msra.mxu0 %v956
    %3865 = vmatprep.subr.mxu0 0.0
    %3866 = vmatpush1.msra.mxu0 %v957
    %3867 = vmatprep.subr.mxu0 0.0
    %3868 = vmatpush1.msra.mxu0 %v958
    %3869 = vmatprep.subr.mxu0 0.0
    %3870 = vmatpush1.msra.mxu0 %v959
    %3871 = vmatprep.subr.mxu0 0.0
    %3872 = vmatpush1.msra.mxu0 %v960
    %3873 = vmatprep.subr.mxu0 0.0
    %3874 = vmatpush1.msra.mxu0 %v961
    %3875 = vmatprep.subr.mxu0 0.0
    %3876 = vmatpush1.msra.mxu0 %v962
    %3877 = vmatprep.subr.mxu0 0.0
    %3878 = vmatpush1.msra.mxu0 %v963
    %3879 = vmatprep.subr.mxu0 0.0
    %3880 = vmatpush1.msra.mxu0 %v964
    %3881 = vmatprep.subr.mxu0 0.0
    %3882 = vmatpush1.msra.mxu0 %v965
    %3883 = vmatprep.subr.mxu0 0.0
    %3884 = vmatpush1.msra.mxu0 %v966
    %3885 = vmatprep.subr.mxu0 0.0
    %3886 = vmatpush1.msra.mxu0 %v967
    %3887 = vmatprep.subr.mxu0 0.0
    %3888 = vmatpush1.msra.mxu0 %v968
    %3889 = vmatprep.subr.mxu0 0.0
    %3890 = vmatpush1.msra.mxu0 %v969
    %3891 = vmatprep.subr.mxu0 0.0
    %3892 = vmatpush1.msra.mxu0 %v970
    %3893 = vmatprep.subr.mxu0 0.0
    %3894 = vmatpush1.msra.mxu0 %v971
    %3895 = vmatprep.subr.mxu0 0.0
    %3896 = vmatpush1.msra.mxu0 %v972
    %3897 = vmatprep.subr.mxu0 0.0
    %3898 = vmatpush1.msra.mxu0 %v973
    %3899 = vmatprep.subr.mxu0 0.0
    %3900 = vmatpush1.msra.mxu0 %v974
    %3901 = vmatprep.subr.mxu0 0.0
    %3902 = vmatpush1.msra.mxu0 %v975
    %3903 = vmatprep.subr.mxu0 0.0
    %3904 = vmatpush1.msra.mxu0 %v976
    %3905 = vmatprep.mubr.f32.mxu0 %v1683
    %3906 = vmatmul.mubr.f32.gmra.mrb[0].mxu0 %v1675
    %v3907 = vpop.f32.mrb[0].mxu0
    %v3908 = vadd.f32 %v3838, %v3907
    %v3909 = vpop.f32.mrb[0].mxu0
    %3910 = vdwg.mxu0
    %3911 = vmatprep.subr.mxu0 0.0
    %3912 = vmatpush1.msra.mxu0 %v977
    %3913 = vmatprep.subr.mxu0 0.0
    %3914 = vmatpush1.msra.mxu0 %v978
    %3915 = vmatprep.subr.mxu0 0.0
    %3916 = vmatpush1.msra.mxu0 %v979
    %3917 = vmatprep.subr.mxu0 0.0
    %3918 = vmatpush1.msra.mxu0 %v980
    %3919 = vmatprep.subr.mxu0 0.0
    %3920 = vmatpush1.msra.mxu0 %v981
    %3921 = vmatprep.subr.mxu0 0.0
    %3922 = vmatpush1.msra.mxu0 %v982
    %3923 = vmatprep.subr.mxu0 0.0
    %3924 = vmatpush1.msra.mxu0 %v983
    %3925 = vmatprep.subr.mxu0 0.0
    %3926 = vmatpush1.msra.mxu0 %v984
    %3927 = vmatprep.subr.mxu0 0.0
    %3928 = vmatpush1.msra.mxu0 %v985
    %3929 = vmatprep.subr.mxu0 0.0
    %3930 = vmatpush1.msra.mxu0 %v986
    %3931 = vmatprep.subr.mxu0 0.0
    %3932 = vmatpush1.msra.mxu0 %v987
    %3933 = vmatprep.subr.mxu0 0.0
    %3934 = vmatpush1.msra.mxu0 %v988
    %3935 = vmatprep.subr.mxu0 0.0
    %3936 = vmatpush1.msra.mxu0 %v989
    %3937 = vmatprep.subr.mxu0 0.0
    %3938 = vmatpush1.msra.mxu0 %v990
    %3939 = vmatprep.subr.mxu0 0.0
    %3940 = vmatpush1.msra.mxu0 %v991
    %3941 = vmatprep.subr.mxu0 0.0
    %3942 = vmatpush1.msra.mxu0 %v992
    %3943 = vmatprep.subr.mxu0 0.0
    %3944 = vmatpush1.msra.mxu0 %v993
    %3945 = vmatprep.subr.mxu0 0.0
    %3946 = vmatpush1.msra.mxu0 %v994
    %3947 = vmatprep.subr.mxu0 0.0
    %3948 = vmatpush1.msra.mxu0 %v995
    %3949 = vmatprep.subr.mxu0 0.0
    %3950 = vmatpush1.msra.mxu0 %v996
    %3951 = vmatprep.subr.mxu0 0.0
    %3952 = vmatpush1.msra.mxu0 %v997
    %3953 = vmatprep.subr.mxu0 0.0
    %3954 = vmatpush1.msra.mxu0 %v998
    %3955 = vmatprep.subr.mxu0 0.0
    %3956 = vmatpush1.msra.mxu0 %v999
    %3957 = vmatprep.subr.mxu0 0.0
    %3958 = vmatpush1.msra.mxu0 %v1000
    %3959 = vmatprep.subr.mxu0 0.0
    %3960 = vmatpush1.msra.mxu0 %v1001
    %3961 = vmatprep.subr.mxu0 0.0
    %3962 = vmatpush1.msra.mxu0 %v1002
    %3963 = vmatprep.subr.mxu0 0.0
    %3964 = vmatpush1.msra.mxu0 %v1003
    %3965 = vmatprep.subr.mxu0 0.0
    %3966 = vmatpush1.msra.mxu0 %v1004
    %3967 = vmatprep.subr.mxu0 0.0
    %3968 = vmatpush1.msra.mxu0 %v1005
    %3969 = vmatprep.subr.mxu0 0.0
    %3970 = vmatpush1.msra.mxu0 %v1006
    %3971 = vmatprep.subr.mxu0 0.0
    %3972 = vmatpush1.msra.mxu0 %v1007
    %3973 = vmatprep.subr.mxu0 0.0
    %3974 = vmatpush1.msra.mxu0 %v1008
    %3975 = vmatprep.mubr.f32.mxu0 %v1684
    %3976 = vmatmul.mubr.f32.gmra.mrb[0].mxu0 %v1682
    %v3977 = vpop.f32.mrb[0].mxu0
    %v3978 = vadd.f32 %v3908, %v3977
    %v3979 = vpop.f32.mrb[0].mxu0
    %3980 = vdwg.mxu0
    %3981 = vmatprep.subr.mxu0 0.0
    %3982 = vmatpush1.msra.mxu0 %v1009
    %3983 = vmatprep.subr.mxu0 0.0
    %3984 = vmatpush1.msra.mxu0 %v1010
    %3985 = vmatprep.subr.mxu0 0.0
    %3986 = vmatpush1.msra.mxu0 %v1011
    %3987 = vmatprep.subr.mxu0 0.0
    %3988 = vmatpush1.msra.mxu0 %v1012
    %3989 = vmatprep.subr.mxu0 0.0
    %3990 = vmatpush1.msra.mxu0 %v1013
    %3991 = vmatprep.subr.mxu0 0.0
    %3992 = vmatpush1.msra.mxu0 %v1014
    %3993 = vmatprep.subr.mxu0 0.0
    %3994 = vmatpush1.msra.mxu0 %v1015
    %3995 = vmatprep.subr.mxu0 0.0
    %3996 = vmatpush1.msra.mxu0 %v1016
    %3997 = vmatprep.subr.mxu0 0.0
    %3998 = vmatpush1.msra.mxu0 %v1017
    %3999 = vmatprep.subr.mxu0 0.0
    %4000 = vmatpush1.msra.mxu0 %v1018
    %4001 = vmatprep.subr.mxu0 0.0
    %4002 = vmatpush1.msra.mxu0 %v1019
    %4003 = vmatprep.subr.mxu0 0.0
    %4004 = vmatpush1.msra.mxu0 %v1020
    %4005 = vmatprep.subr.mxu0 0.0
    %4006 = vmatpush1.msra.mxu0 %v1021
    %4007 = vmatprep.subr.mxu0 0.0
    %4008 = vmatpush1.msra.mxu0 %v1022
    %4009 = vmatprep.subr.mxu0 0.0
    %4010 = vmatpush1.msra.mxu0 %v1023
    %4011 = vmatprep.subr.mxu0 0.0
    %4012 = vmatpush1.msra.mxu0 %v1024
    %4013 = vmatprep.subr.mxu0 0.0
    %4014 = vmatpush1.msra.mxu0 %v1025
    %4015 = vmatprep.subr.mxu0 0.0
    %4016 = vmatpush1.msra.mxu0 %v1026
    %4017 = vmatprep.subr.mxu0 0.0
    %4018 = vmatpush1.msra.mxu0 %v1027
    %4019 = vmatprep.subr.mxu0 0.0
    %4020 = vmatpush1.msra.mxu0 %v1028
    %4021 = vmatprep.subr.mxu0 0.0
    %4022 = vmatpush1.msra.mxu0 %v1029
    %4023 = vmatprep.subr.mxu0 0.0
    %4024 = vmatpush1.msra.mxu0 %v1030
    %4025 = vmatprep.subr.mxu0 0.0
    %4026 = vmatpush1.msra.mxu0 %v1031
    %4027 = vmatprep.subr.mxu0 0.0
    %4028 = vmatpush1.msra.mxu0 %v1032
    %4029 = vmatprep.subr.mxu0 0.0
    %4030 = vmatpush1.msra.mxu0 %v1033
    %4031 = vmatprep.subr.mxu0 0.0
    %4032 = vmatpush1.msra.mxu0 %v1034
    %4033 = vmatprep.subr.mxu0 0.0
    %4034 = vmatpush1.msra.mxu0 %v1035
    %4035 = vmatprep.subr.mxu0 0.0
    %4036 = vmatpush1.msra.mxu0 %v1036
    %4037 = vmatprep.subr.mxu0 0.0
    %4038 = vmatpush1.msra.mxu0 %v1037
    %4039 = vmatprep.subr.mxu0 0.0
    %4040 = vmatpush1.msra.mxu0 %v1038
    %4041 = vmatprep.subr.mxu0 0.0
    %4042 = vmatpush1.msra.mxu0 %v1039
    %4043 = vmatprep.subr.mxu0 0.0
    %4044 = vmatpush1.msra.mxu0 %v1040
    %4045 = vmatprep.mubr.f32.mxu0 %v1700
    %4046 = vmatmul.mubr.f32.gmra.mrb[0].mxu0 %v1692
    %v4047 = vpop.f32.mrb[0].mxu0
    %v4048 = vadd.f32 %v3978, %v4047
    %v4049 = vpop.f32.mrb[0].mxu0
    %4050 = vdwg.mxu0
    %4051 = vmatprep.subr.mxu0 0.0
    %4052 = vmatpush1.msra.mxu0 %v1041
    %4053 = vmatprep.subr.mxu0 0.0
    %4054 = vmatpush1.msra.mxu0 %v1042
    %4055 = vmatprep.subr.mxu0 0.0
    %4056 = vmatpush1.msra.mxu0 %v1043
    %4057 = vmatprep.subr.mxu0 0.0
    %4058 = vmatpush1.msra.mxu0 %v1044
    %4059 = vmatprep.subr.mxu0 0.0
    %4060 = vmatpush1.msra.mxu0 %v1045
    %4061 = vmatprep.subr.mxu0 0.0
    %4062 = vmatpush1.msra.mxu0 %v1046
    %4063 = vmatprep.subr.mxu0 0.0
    %4064 = vmatpush1.msra.mxu0 %v1047
    %4065 = vmatprep.subr.mxu0 0.0
    %4066 = vmatpush1.msra.mxu0 %v1048
    %4067 = vmatprep.subr.mxu0 0.0
    %4068 = vmatpush1.msra.mxu0 %v1049
    %4069 = vmatprep.subr.mxu0 0.0
    %4070 = vmatpush1.msra.mxu0 %v1050
    %4071 = vmatprep.subr.mxu0 0.0
    %4072 = vmatpush1.msra.mxu0 %v1051
    %4073 = vmatprep.subr.mxu0 0.0
    %4074 = vmatpush1.msra.mxu0 %v1052
    %4075 = vmatprep.subr.mxu0 0.0
    %4076 = vmatpush1.msra.mxu0 %v1053
    %4077 = vmatprep.subr.mxu0 0.0
    %4078 = vmatpush1.msra.mxu0 %v1054
    %4079 = vmatprep.subr.mxu0 0.0
    %4080 = vmatpush1.msra.mxu0 %v1055
    %4081 = vmatprep.subr.mxu0 0.0
    %4082 = vmatpush1.msra.mxu0 %v1056
    %4083 = vmatprep.subr.mxu0 0.0
    %4084 = vmatpush1.msra.mxu0 %v1057
    %4085 = vmatprep.subr.mxu0 0.0
    %4086 = vmatpush1.msra.mxu0 %v1058
    %4087 = vmatprep.subr.mxu0 0.0
    %4088 = vmatpush1.msra.mxu0 %v1059
    %4089 = vmatprep.subr.mxu0 0.0
    %4090 = vmatpush1.msra.mxu0 %v1060
    %4091 = vmatprep.subr.mxu0 0.0
    %4092 = vmatpush1.msra.mxu0 %v1061
    %4093 = vmatprep.subr.mxu0 0.0
    %4094 = vmatpush1.msra.mxu0 %v1062
    %4095 = vmatprep.subr.mxu0 0.0
    %4096 = vmatpush1.msra.mxu0 %v1063
    %4097 = vmatprep.subr.mxu0 0.0
    %4098 = vmatpush1.msra.mxu0 %v1064
    %4099 = vmatprep.subr.mxu0 0.0
    %4100 = vmatpush1.msra.mxu0 %v1065
    %4101 = vmatprep.subr.mxu0 0.0
    %4102 = vmatpush1.msra.mxu0 %v1066
    %4103 = vmatprep.subr.mxu0 0.0
    %4104 = vmatpush1.msra.mxu0 %v1067
    %4105 = vmatprep.subr.mxu0 0.0
    %4106 = vmatpush1.msra.mxu0 %v1068
    %4107 = vmatprep.subr.mxu0 0.0
    %4108 = vmatpush1.msra.mxu0 %v1069
    %4109 = vmatprep.subr.mxu0 0.0
    %4110 = vmatpush1.msra.mxu0 %v1070
    %4111 = vmatprep.subr.mxu0 0.0
    %4112 = vmatpush1.msra.mxu0 %v1071
    %4113 = vmatprep.subr.mxu0 0.0
    %4114 = vmatpush1.msra.mxu0 %v1072
    %4115 = vmatprep.mubr.f32.mxu0 %v1701
    %4116 = vmatmul.mubr.f32.gmra.mrb[0].mxu0 %v1699
    %v4117 = vpop.f32.mrb[0].mxu0
    %v4118 = vadd.f32 %v4048, %v4117
    %v4119 = vpop.f32.mrb[0].mxu0
    %4120 = vdwg.mxu0
    %4121 = vmatprep.subr.mxu0 0.0
    %4122 = vmatpush1.msra.mxu0 %v1073
    %4123 = vmatprep.subr.mxu0 0.0
    %4124 = vmatpush1.msra.mxu0 %v1074
    %4125 = vmatprep.subr.mxu0 0.0
    %4126 = vmatpush1.msra.mxu0 %v1075
    %4127 = vmatprep.subr.mxu0 0.0
    %4128 = vmatpush1.msra.mxu0 %v1076
    %4129 = vmatprep.subr.mxu0 0.0
    %4130 = vmatpush1.msra.mxu0 %v1077
    %4131 = vmatprep.subr.mxu0 0.0
    %4132 = vmatpush1.msra.mxu0 %v1078
    %4133 = vmatprep.subr.mxu0 0.0
    %4134 = vmatpush1.msra.mxu0 %v1079
    %4135 = vmatprep.subr.mxu0 0.0
    %4136 = vmatpush1.msra.mxu0 %v1080
    %4137 = vmatprep.subr.mxu0 0.0
    %4138 = vmatpush1.msra.mxu0 %v1081
    %4139 = vmatprep.subr.mxu0 0.0
    %4140 = vmatpush1.msra.mxu0 %v1082
    %4141 = vmatprep.subr.mxu0 0.0
    %4142 = vmatpush1.msra.mxu0 %v1083
    %4143 = vmatprep.subr.mxu0 0.0
    %4144 = vmatpush1.msra.mxu0 %v1084
    %4145 = vmatprep.subr.mxu0 0.0
    %4146 = vmatpush1.msra.mxu0 %v1085
    %4147 = vmatprep.subr.mxu0 0.0
    %4148 = vmatpush1.msra.mxu0 %v1086
    %4149 = vmatprep.subr.mxu0 0.0
    %4150 = vmatpush1.msra.mxu0 %v1087
    %4151 = vmatprep.subr.mxu0 0.0
    %4152 = vmatpush1.msra.mxu0 %v1088
    %4153 = vmatprep.subr.mxu0 0.0
    %4154 = vmatpush1.msra.mxu0 %v1089
    %4155 = vmatprep.subr.mxu0 0.0
    %4156 = vmatpush1.msra.mxu0 %v1090
    %4157 = vmatprep.subr.mxu0 0.0
    %4158 = vmatpush1.msra.mxu0 %v1091
    %4159 = vmatprep.subr.mxu0 0.0
    %4160 = vmatpush1.msra.mxu0 %v1092
    %4161 = vmatprep.subr.mxu0 0.0
    %4162 = vmatpush1.msra.mxu0 %v1093
    %4163 = vmatprep.subr.mxu0 0.0
    %4164 = vmatpush1.msra.mxu0 %v1094
    %4165 = vmatprep.subr.mxu0 0.0
    %4166 = vmatpush1.msra.mxu0 %v1095
    %4167 = vmatprep.subr.mxu0 0.0
    %4168 = vmatpush1.msra.mxu0 %v1096
    %4169 = vmatprep.subr.mxu0 0.0
    %4170 = vmatpush1.msra.mxu0 %v1097
    %4171 = vmatprep.subr.mxu0 0.0
    %4172 = vmatpush1.msra.mxu0 %v1098
    %4173 = vmatprep.subr.mxu0 0.0
    %4174 = vmatpush1.msra.mxu0 %v1099
    %4175 = vmatprep.subr.mxu0 0.0
    %4176 = vmatpush1.msra.mxu0 %v1100
    %4177 = vmatprep.subr.mxu0 0.0
    %4178 = vmatpush1.msra.mxu0 %v1101
    %4179 = vmatprep.subr.mxu0 0.0
    %4180 = vmatpush1.msra.mxu0 %v1102
    %4181 = vmatprep.subr.mxu0 0.0
    %4182 = vmatpush1.msra.mxu0 %v1103
    %4183 = vmatprep.subr.mxu0 0.0
    %4184 = vmatpush1.msra.mxu0 %v1104
    %4185 = vmatprep.mubr.f32.mxu0 %v1717
    %4186 = vmatmul.mubr.f32.gmra.mrb[0].mxu0 %v1709
    %v4187 = vpop.f32.mrb[0].mxu0
    %v4188 = vadd.f32 %v4118, %v4187
    %v4189 = vpop.f32.mrb[0].mxu0
    %4190 = vdwg.mxu0
    %4191 = vmatprep.subr.mxu0 0.0
    %4192 = vmatpush1.msra.mxu0 %v1105
    %4193 = vmatprep.subr.mxu0 0.0
    %4194 = vmatpush1.msra.mxu0 %v1106
    %4195 = vmatprep.subr.mxu0 0.0
    %4196 = vmatpush1.msra.mxu0 %v1107
    %4197 = vmatprep.subr.mxu0 0.0
    %4198 = vmatpush1.msra.mxu0 %v1108
    %4199 = vmatprep.subr.mxu0 0.0
    %4200 = vmatpush1.msra.mxu0 %v1109
    %4201 = vmatprep.subr.mxu0 0.0
    %4202 = vmatpush1.msra.mxu0 %v1110
    %4203 = vmatprep.subr.mxu0 0.0
    %4204 = vmatpush1.msra.mxu0 %v1111
    %4205 = vmatprep.subr.mxu0 0.0
    %4206 = vmatpush1.msra.mxu0 %v1112
    %4207 = vmatprep.subr.mxu0 0.0
    %4208 = vmatpush1.msra.mxu0 %v1113
    %4209 = vmatprep.subr.mxu0 0.0
    %4210 = vmatpush1.msra.mxu0 %v1114
    %4211 = vmatprep.subr.mxu0 0.0
    %4212 = vmatpush1.msra.mxu0 %v1115
    %4213 = vmatprep.subr.mxu0 0.0
    %4214 = vmatpush1.msra.mxu0 %v1116
    %4215 = vmatprep.subr.mxu0 0.0
    %4216 = vmatpush1.msra.mxu0 %v1117
    %4217 = vmatprep.subr.mxu0 0.0
    %4218 = vmatpush1.msra.mxu0 %v1118
    %4219 = vmatprep.subr.mxu0 0.0
    %4220 = vmatpush1.msra.mxu0 %v1119
    %4221 = vmatprep.subr.mxu0 0.0
    %4222 = vmatpush1.msra.mxu0 %v1120
    %4223 = vmatprep.subr.mxu0 0.0
    %4224 = vmatpush1.msra.mxu0 %v1121
    %4225 = vmatprep.subr.mxu0 0.0
    %4226 = vmatpush1.msra.mxu0 %v1122
    %4227 = vmatprep.subr.mxu0 0.0
    %4228 = vmatpush1.msra.mxu0 %v1123
    %4229 = vmatprep.subr.mxu0 0.0
    %4230 = vmatpush1.msra.mxu0 %v1124
    %4231 = vmatprep.subr.mxu0 0.0
    %4232 = vmatpush1.msra.mxu0 %v1125
    %4233 = vmatprep.subr.mxu0 0.0
    %4234 = vmatpush1.msra.mxu0 %v1126
    %4235 = vmatprep.subr.mxu0 0.0
    %4236 = vmatpush1.msra.mxu0 %v1127
    %4237 = vmatprep.subr.mxu0 0.0
    %4238 = vmatpush1.msra.mxu0 %v1128
    %4239 = vmatprep.subr.mxu0 0.0
    %4240 = vmatpush1.msra.mxu0 %v1129
    %4241 = vmatprep.subr.mxu0 0.0
    %4242 = vmatpush1.msra.mxu0 %v1130
    %4243 = vmatprep.subr.mxu0 0.0
    %4244 = vmatpush1.msra.mxu0 %v1131
    %4245 = vmatprep.subr.mxu0 0.0
    %4246 = vmatpush1.msra.mxu0 %v1132
    %4247 = vmatprep.subr.mxu0 0.0
    %4248 = vmatpush1.msra.mxu0 %v1133
    %4249 = vmatprep.subr.mxu0 0.0
    %4250 = vmatpush1.msra.mxu0 %v1134
    %4251 = vmatprep.subr.mxu0 0.0
    %4252 = vmatpush1.msra.mxu0 %v1135
    %4253 = vmatprep.subr.mxu0 0.0
    %4254 = vmatpush1.msra.mxu0 %v1136
    %4255 = vmatprep.mubr.f32.mxu0 %v1718
    %4256 = vmatmul.mubr.f32.gmra.mrb[0].mxu0 %v1716
    %v4257 = vpop.f32.mrb[0].mxu0
    %v4258 = vadd.f32 %v4188, %v4257
    %v4259 = vpop.f32.mrb[0].mxu0
    %4260 = vdwg.mxu0
    %4261 = vmatprep.subr.mxu0 0.0
    %4262 = vmatpush1.msra.mxu0 %v1137
    %4263 = vmatprep.subr.mxu0 0.0
    %4264 = vmatpush1.msra.mxu0 %v1138
    %4265 = vmatprep.subr.mxu0 0.0
    %4266 = vmatpush1.msra.mxu0 %v1139
    %4267 = vmatprep.subr.mxu0 0.0
    %4268 = vmatpush1.msra.mxu0 %v1140
    %4269 = vmatprep.subr.mxu0 0.0
    %4270 = vmatpush1.msra.mxu0 %v1141
    %4271 = vmatprep.subr.mxu0 0.0
    %4272 = vmatpush1.msra.mxu0 %v1142
    %4273 = vmatprep.subr.mxu0 0.0
    %4274 = vmatpush1.msra.mxu0 %v1143
    %4275 = vmatprep.subr.mxu0 0.0
    %4276 = vmatpush1.msra.mxu0 %v1144
    %4277 = vmatprep.subr.mxu0 0.0
    %4278 = vmatpush1.msra.mxu0 %v1145
    %4279 = vmatprep.subr.mxu0 0.0
    %4280 = vmatpush1.msra.mxu0 %v1146
    %4281 = vmatprep.subr.mxu0 0.0
    %4282 = vmatpush1.msra.mxu0 %v1147
    %4283 = vmatprep.subr.mxu0 0.0
    %4284 = vmatpush1.msra.mxu0 %v1148
    %4285 = vmatprep.subr.mxu0 0.0
    %4286 = vmatpush1.msra.mxu0 %v1149
    %4287 = vmatprep.subr.mxu0 0.0
    %4288 = vmatpush1.msra.mxu0 %v1150
    %4289 = vmatprep.subr.mxu0 0.0
    %4290 = vmatpush1.msra.mxu0 %v1151
    %4291 = vmatprep.subr.mxu0 0.0
    %4292 = vmatpush1.msra.mxu0 %v1152
    %4293 = vmatprep.subr.mxu0 0.0
    %4294 = vmatpush1.msra.mxu0 %v1153
    %4295 = vmatprep.subr.mxu0 0.0
    %4296 = vmatpush1.msra.mxu0 %v1154
    %4297 = vmatprep.subr.mxu0 0.0
    %4298 = vmatpush1.msra.mxu0 %v1155
    %4299 = vmatprep.subr.mxu0 0.0
    %4300 = vmatpush1.msra.mxu0 %v1156
    %4301 = vmatprep.subr.mxu0 0.0
    %4302 = vmatpush1.msra.mxu0 %v1157
    %4303 = vmatprep.subr.mxu0 0.0
    %4304 = vmatpush1.msra.mxu0 %v1158
    %4305 = vmatprep.subr.mxu0 0.0
    %4306 = vmatpush1.msra.mxu0 %v1159
    %4307 = vmatprep.subr.mxu0 0.0
    %4308 = vmatpush1.msra.mxu0 %v1160
    %4309 = vmatprep.subr.mxu0 0.0
    %4310 = vmatpush1.msra.mxu0 %v1161
    %4311 = vmatprep.subr.mxu0 0.0
    %4312 = vmatpush1.msra.mxu0 %v1162
    %4313 = vmatprep.subr.mxu0 0.0
    %4314 = vmatpush1.msra.mxu0 %v1163
    %4315 = vmatprep.subr.mxu0 0.0
    %4316 = vmatpush1.msra.mxu0 %v1164
    %4317 = vmatprep.subr.mxu0 0.0
    %4318 = vmatpush1.msra.mxu0 %v1165
    %4319 = vmatprep.subr.mxu0 0.0
    %4320 = vmatpush1.msra.mxu0 %v1166
    %4321 = vmatprep.subr.mxu0 0.0
    %4322 = vmatpush1.msra.mxu0 %v1167
    %4323 = vmatprep.subr.mxu0 0.0
    %4324 = vmatpush1.msra.mxu0 %v1168
    %4325 = vmatprep.mubr.f32.mxu0 %v1734
    %4326 = vmatmul.mubr.f32.gmra.mrb[0].mxu0 %v1726
    %v4327 = vpop.f32.mrb[0].mxu0
    %v4328 = vadd.f32 %v4258, %v4327
    %v4329 = vpop.f32.mrb[0].mxu0
    %4330 = vdwg.mxu0
    %4331 = vmatprep.subr.mxu0 0.0
    %4332 = vmatpush1.msra.mxu0 %v1169
    %4333 = vmatprep.subr.mxu0 0.0
    %4334 = vmatpush1.msra.mxu0 %v1170
    %4335 = vmatprep.subr.mxu0 0.0
    %4336 = vmatpush1.msra.mxu0 %v1171
    %4337 = vmatprep.subr.mxu0 0.0
    %4338 = vmatpush1.msra.mxu0 %v1172
    %4339 = vmatprep.subr.mxu0 0.0
    %4340 = vmatpush1.msra.mxu0 %v1173
    %4341 = vmatprep.subr.mxu0 0.0
    %4342 = vmatpush1.msra.mxu0 %v1174
    %4343 = vmatprep.subr.mxu0 0.0
    %4344 = vmatpush1.msra.mxu0 %v1175
    %4345 = vmatprep.subr.mxu0 0.0
    %4346 = vmatpush1.msra.mxu0 %v1176
    %4347 = vmatprep.subr.mxu0 0.0
    %4348 = vmatpush1.msra.mxu0 %v1177
    %4349 = vmatprep.subr.mxu0 0.0
    %4350 = vmatpush1.msra.mxu0 %v1178
    %4351 = vmatprep.subr.mxu0 0.0
    %4352 = vmatpush1.msra.mxu0 %v1179
    %4353 = vmatprep.subr.mxu0 0.0
    %4354 = vmatpush1.msra.mxu0 %v1180
    %4355 = vmatprep.subr.mxu0 0.0
    %4356 = vmatpush1.msra.mxu0 %v1181
    %4357 = vmatprep.subr.mxu0 0.0
    %4358 = vmatpush1.msra.mxu0 %v1182
    %4359 = vmatprep.subr.mxu0 0.0
    %4360 = vmatpush1.msra.mxu0 %v1183
    %4361 = vmatprep.subr.mxu0 0.0
    %4362 = vmatpush1.msra.mxu0 %v1184
    %4363 = vmatprep.subr.mxu0 0.0
    %4364 = vmatpush1.msra.mxu0 %v1185
    %4365 = vmatprep.subr.mxu0 0.0
    %4366 = vmatpush1.msra.mxu0 %v1186
    %4367 = vmatprep.subr.mxu0 0.0
    %4368 = vmatpush1.msra.mxu0 %v1187
    %4369 = vmatprep.subr.mxu0 0.0
    %4370 = vmatpush1.msra.mxu0 %v1188
    %4371 = vmatprep.subr.mxu0 0.0
    %4372 = vmatpush1.msra.mxu0 %v1189
    %4373 = vmatprep.subr.mxu0 0.0
    %4374 = vmatpush1.msra.mxu0 %v1190
    %4375 = vmatprep.subr.mxu0 0.0
    %4376 = vmatpush1.msra.mxu0 %v1191
    %4377 = vmatprep.subr.mxu0 0.0
    %4378 = vmatpush1.msra.mxu0 %v1192
    %4379 = vmatprep.subr.mxu0 0.0
    %4380 = vmatpush1.msra.mxu0 %v1193
    %4381 = vmatprep.subr.mxu0 0.0
    %4382 = vmatpush1.msra.mxu0 %v1194
    %4383 = vmatprep.subr.mxu0 0.0
    %4384 = vmatpush1.msra.mxu0 %v1195
    %4385 = vmatprep.subr.mxu0 0.0
    %4386 = vmatpush1.msra.mxu0 %v1196
    %4387 = vmatprep.subr.mxu0 0.0
    %4388 = vmatpush1.msra.mxu0 %v1197
    %4389 = vmatprep.subr.mxu0 0.0
    %4390 = vmatpush1.msra.mxu0 %v1198
    %4391 = vmatprep.subr.mxu0 0.0
    %4392 = vmatpush1.msra.mxu0 %v1199
    %4393 = vmatprep.subr.mxu0 0.0
    %4394 = vmatpush1.msra.mxu0 %v1200
    %4395 = vmatprep.mubr.f32.mxu0 %v1735
    %4396 = vmatmul.mubr.f32.gmra.mrb[0].mxu0 %v1733
    %v4397 = vpop.f32.mrb[0].mxu0
    %v4398 = vadd.f32 %v4328, %v4397
    %v4399 = vpop.f32.mrb[0].mxu0
    %4400 = vdwg.mxu0
    %4401 = vmatprep.subr.mxu0 0.0
    %4402 = vmatpush1.msra.mxu0 %v1201
    %4403 = vmatprep.subr.mxu0 0.0
    %4404 = vmatpush1.msra.mxu0 %v1202
    %4405 = vmatprep.subr.mxu0 0.0
    %4406 = vmatpush1.msra.mxu0 %v1203
    %4407 = vmatprep.subr.mxu0 0.0
    %4408 = vmatpush1.msra.mxu0 %v1204
    %4409 = vmatprep.subr.mxu0 0.0
    %4410 = vmatpush1.msra.mxu0 %v1205
    %4411 = vmatprep.subr.mxu0 0.0
    %4412 = vmatpush1.msra.mxu0 %v1206
    %4413 = vmatprep.subr.mxu0 0.0
    %4414 = vmatpush1.msra.mxu0 %v1207
    %4415 = vmatprep.subr.mxu0 0.0
    %4416 = vmatpush1.msra.mxu0 %v1208
    %4417 = vmatprep.subr.mxu0 0.0
    %4418 = vmatpush1.msra.mxu0 %v1209
    %4419 = vmatprep.subr.mxu0 0.0
    %4420 = vmatpush1.msra.mxu0 %v1210
    %4421 = vmatprep.subr.mxu0 0.0
    %4422 = vmatpush1.msra.mxu0 %v1211
    %4423 = vmatprep.subr.mxu0 0.0
    %4424 = vmatpush1.msra.mxu0 %v1212
    %4425 = vmatprep.subr.mxu0 0.0
    %4426 = vmatpush1.msra.mxu0 %v1213
    %4427 = vmatprep.subr.mxu0 0.0
    %4428 = vmatpush1.msra.mxu0 %v1214
    %4429 = vmatprep.subr.mxu0 0.0
    %4430 = vmatpush1.msra.mxu0 %v1215
    %4431 = vmatprep.subr.mxu0 0.0
    %4432 = vmatpush1.msra.mxu0 %v1216
    %4433 = vmatprep.subr.mxu0 0.0
    %4434 = vmatpush1.msra.mxu0 %v1217
    %4435 = vmatprep.subr.mxu0 0.0
    %4436 = vmatpush1.msra.mxu0 %v1218
    %4437 = vmatprep.subr.mxu0 0.0
    %4438 = vmatpush1.msra.mxu0 %v1219
    %4439 = vmatprep.subr.mxu0 0.0
    %4440 = vmatpush1.msra.mxu0 %v1220
    %4441 = vmatprep.subr.mxu0 0.0
    %4442 = vmatpush1.msra.mxu0 %v1221
    %4443 = vmatprep.subr.mxu0 0.0
    %4444 = vmatpush1.msra.mxu0 %v1222
    %4445 = vmatprep.subr.mxu0 0.0
    %4446 = vmatpush1.msra.mxu0 %v1223
    %4447 = vmatprep.subr.mxu0 0.0
    %4448 = vmatpush1.msra.mxu0 %v1224
    %4449 = vmatprep.subr.mxu0 0.0
    %4450 = vmatpush1.msra.mxu0 %v1225
    %4451 = vmatprep.subr.mxu0 0.0
    %4452 = vmatpush1.msra.mxu0 %v1226
    %4453 = vmatprep.subr.mxu0 0.0
    %4454 = vmatpush1.msra.mxu0 %v1227
    %4455 = vmatprep.subr.mxu0 0.0
    %4456 = vmatpush1.msra.mxu0 %v1228
    %4457 = vmatprep.subr.mxu0 0.0
    %4458 = vmatpush1.msra.mxu0 %v1229
    %4459 = vmatprep.subr.mxu0 0.0
    %4460 = vmatpush1.msra.mxu0 %v1230
    %4461 = vmatprep.subr.mxu0 0.0
    %4462 = vmatpush1.msra.mxu0 %v1231
    %4463 = vmatprep.subr.mxu0 0.0
    %4464 = vmatpush1.msra.mxu0 %v1232
    %4465 = vmatprep.mubr.f32.mxu0 %v1751
    %4466 = vmatmul.mubr.f32.gmra.mrb[0].mxu0 %v1743
    %v4467 = vpop.f32.mrb[0].mxu0
    %v4468 = vadd.f32 %v4398, %v4467
    %v4469 = vpop.f32.mrb[0].mxu0
    %4470 = vdwg.mxu0
    %4471 = vmatprep.subr.mxu0 0.0
    %4472 = vmatpush1.msra.mxu0 %v1233
    %4473 = vmatprep.subr.mxu0 0.0
    %4474 = vmatpush1.msra.mxu0 %v1234
    %4475 = vmatprep.subr.mxu0 0.0
    %4476 = vmatpush1.msra.mxu0 %v1235
    %4477 = vmatprep.subr.mxu0 0.0
    %4478 = vmatpush1.msra.mxu0 %v1236
    %4479 = vmatprep.subr.mxu0 0.0
    %4480 = vmatpush1.msra.mxu0 %v1237
    %4481 = vmatprep.subr.mxu0 0.0
    %4482 = vmatpush1.msra.mxu0 %v1238
    %4483 = vmatprep.subr.mxu0 0.0
    %4484 = vmatpush1.msra.mxu0 %v1239
    %4485 = vmatprep.subr.mxu0 0.0
    %4486 = vmatpush1.msra.mxu0 %v1240
    %4487 = vmatprep.subr.mxu0 0.0
    %4488 = vmatpush1.msra.mxu0 %v1241
    %4489 = vmatprep.subr.mxu0 0.0
    %4490 = vmatpush1.msra.mxu0 %v1242
    %4491 = vmatprep.subr.mxu0 0.0
    %4492 = vmatpush1.msra.mxu0 %v1243
    %4493 = vmatprep.subr.mxu0 0.0
    %4494 = vmatpush1.msra.mxu0 %v1244
    %4495 = vmatprep.subr.mxu0 0.0
    %4496 = vmatpush1.msra.mxu0 %v1245
    %4497 = vmatprep.subr.mxu0 0.0
    %4498 = vmatpush1.msra.mxu0 %v1246
    %4499 = vmatprep.subr.mxu0 0.0
    %4500 = vmatpush1.msra.mxu0 %v1247
    %4501 = vmatprep.subr.mxu0 0.0
    %4502 = vmatpush1.msra.mxu0 %v1248
    %4503 = vmatprep.subr.mxu0 0.0
    %4504 = vmatpush1.msra.mxu0 %v1249
    %4505 = vmatprep.subr.mxu0 0.0
    %4506 = vmatpush1.msra.mxu0 %v1250
    %4507 = vmatprep.subr.mxu0 0.0
    %4508 = vmatpush1.msra.mxu0 %v1251
    %4509 = vmatprep.subr.mxu0 0.0
    %4510 = vmatpush1.msra.mxu0 %v1252
    %4511 = vmatprep.subr.mxu0 0.0
    %4512 = vmatpush1.msra.mxu0 %v1253
    %4513 = vmatprep.subr.mxu0 0.0
    %4514 = vmatpush1.msra.mxu0 %v1254
    %4515 = vmatprep.subr.mxu0 0.0
    %4516 = vmatpush1.msra.mxu0 %v1255
    %4517 = vmatprep.subr.mxu0 0.0
    %4518 = vmatpush1.msra.mxu0 %v1256
    %4519 = vmatprep.subr.mxu0 0.0
    %4520 = vmatpush1.msra.mxu0 %v1257
    %4521 = vmatprep.subr.mxu0 0.0
    %4522 = vmatpush1.msra.mxu0 %v1258
    %4523 = vmatprep.subr.mxu0 0.0
    %4524 = vmatpush1.msra.mxu0 %v1259
    %4525 = vmatprep.subr.mxu0 0.0
    %4526 = vmatpush1.msra.mxu0 %v1260
    %4527 = vmatprep.subr.mxu0 0.0
    %4528 = vmatpush1.msra.mxu0 %v1261
    %4529 = vmatprep.subr.mxu0 0.0
    %4530 = vmatpush1.msra.mxu0 %v1262
    %4531 = vmatprep.subr.mxu0 0.0
    %4532 = vmatpush1.msra.mxu0 %v1263
    %4533 = vmatprep.subr.mxu0 0.0
    %4534 = vmatpush1.msra.mxu0 %v1264
    %4535 = vmatprep.mubr.f32.mxu0 %v1752
    %4536 = vmatmul.mubr.f32.gmra.mrb[0].mxu0 %v1750
    %v4537 = vpop.f32.mrb[0].mxu0
    %v4538 = vadd.f32 %v4468, %v4537
    %v4539 = vpop.f32.mrb[0].mxu0
    %4540 = vdwg.mxu0
    %4541 = vmatprep.subr.mxu0 0.0
    %4542 = vmatpush1.msra.mxu0 %v1265
    %4543 = vmatprep.subr.mxu0 0.0
    %4544 = vmatpush1.msra.mxu0 %v1266
    %4545 = vmatprep.subr.mxu0 0.0
    %4546 = vmatpush1.msra.mxu0 %v1267
    %4547 = vmatprep.subr.mxu0 0.0
    %4548 = vmatpush1.msra.mxu0 %v1268
    %4549 = vmatprep.subr.mxu0 0.0
    %4550 = vmatpush1.msra.mxu0 %v1269
    %4551 = vmatprep.subr.mxu0 0.0
    %4552 = vmatpush1.msra.mxu0 %v1270
    %4553 = vmatprep.subr.mxu0 0.0
    %4554 = vmatpush1.msra.mxu0 %v1271
    %4555 = vmatprep.subr.mxu0 0.0
    %4556 = vmatpush1.msra.mxu0 %v1272
    %4557 = vmatprep.subr.mxu0 0.0
    %4558 = vmatpush1.msra.mxu0 %v1273
    %4559 = vmatprep.subr.mxu0 0.0
    %4560 = vmatpush1.msra.mxu0 %v1274
    %4561 = vmatprep.subr.mxu0 0.0
    %4562 = vmatpush1.msra.mxu0 %v1275
    %4563 = vmatprep.subr.mxu0 0.0
    %4564 = vmatpush1.msra.mxu0 %v1276
    %4565 = vmatprep.subr.mxu0 0.0
    %4566 = vmatpush1.msra.mxu0 %v1277
    %4567 = vmatprep.subr.mxu0 0.0
    %4568 = vmatpush1.msra.mxu0 %v1278
    %4569 = vmatprep.subr.mxu0 0.0
    %4570 = vmatpush1.msra.mxu0 %v1279
    %4571 = vmatprep.subr.mxu0 0.0
    %4572 = vmatpush1.msra.mxu0 %v1280
    %4573 = vmatprep.subr.mxu0 0.0
    %4574 = vmatpush1.msra.mxu0 %v1281
    %4575 = vmatprep.subr.mxu0 0.0
    %4576 = vmatpush1.msra.mxu0 %v1282
    %4577 = vmatprep.subr.mxu0 0.0
    %4578 = vmatpush1.msra.mxu0 %v1283
    %4579 = vmatprep.subr.mxu0 0.0
    %4580 = vmatpush1.msra.mxu0 %v1284
    %4581 = vmatprep.subr.mxu0 0.0
    %4582 = vmatpush1.msra.mxu0 %v1285
    %4583 = vmatprep.subr.mxu0 0.0
    %4584 = vmatpush1.msra.mxu0 %v1286
    %4585 = vmatprep.subr.mxu0 0.0
    %4586 = vmatpush1.msra.mxu0 %v1287
    %4587 = vmatprep.subr.mxu0 0.0
    %4588 = vmatpush1.msra.mxu0 %v1288
    %4589 = vmatprep.subr.mxu0 0.0
    %4590 = vmatpush1.msra.mxu0 %v1289
    %4591 = vmatprep.subr.mxu0 0.0
    %4592 = vmatpush1.msra.mxu0 %v1290
    %4593 = vmatprep.subr.mxu0 0.0
    %4594 = vmatpush1.msra.mxu0 %v1291
    %4595 = vmatprep.subr.mxu0 0.0
    %4596 = vmatpush1.msra.mxu0 %v1292
    %4597 = vmatprep.subr.mxu0 0.0
    %4598 = vmatpush1.msra.mxu0 %v1293
    %4599 = vmatprep.subr.mxu0 0.0
    %4600 = vmatpush1.msra.mxu0 %v1294
    %4601 = vmatprep.subr.mxu0 0.0
    %4602 = vmatpush1.msra.mxu0 %v1295
    %4603 = vmatprep.subr.mxu0 0.0
    %4604 = vmatpush1.msra.mxu0 %v1296
    %4605 = vmatprep.mubr.f32.mxu0 %v1768
    %4606 = vmatmul.mubr.f32.gmra.mrb[0].mxu0 %v1760
    %v4607 = vpop.f32.mrb[0].mxu0
    %v4608 = vadd.f32 %v4538, %v4607
    %v4609 = vpop.f32.mrb[0].mxu0
    %4610 = vdwg.mxu0
    %4611 = vmatprep.subr.mxu0 0.0
    %4612 = vmatpush1.msra.mxu0 %v1297
    %4613 = vmatprep.subr.mxu0 0.0
    %4614 = vmatpush1.msra.mxu0 %v1298
    %4615 = vmatprep.subr.mxu0 0.0
    %4616 = vmatpush1.msra.mxu0 %v1299
    %4617 = vmatprep.subr.mxu0 0.0
    %4618 = vmatpush1.msra.mxu0 %v1300
    %4619 = vmatprep.subr.mxu0 0.0
    %4620 = vmatpush1.msra.mxu0 %v1301
    %4621 = vmatprep.subr.mxu0 0.0
    %4622 = vmatpush1.msra.mxu0 %v1302
    %4623 = vmatprep.subr.mxu0 0.0
    %4624 = vmatpush1.msra.mxu0 %v1303
    %4625 = vmatprep.subr.mxu0 0.0
    %4626 = vmatpush1.msra.mxu0 %v1304
    %4627 = vmatprep.subr.mxu0 0.0
    %4628 = vmatpush1.msra.mxu0 %v1305
    %4629 = vmatprep.subr.mxu0 0.0
    %4630 = vmatpush1.msra.mxu0 %v1306
    %4631 = vmatprep.subr.mxu0 0.0
    %4632 = vmatpush1.msra.mxu0 %v1307
    %4633 = vmatprep.subr.mxu0 0.0
    %4634 = vmatpush1.msra.mxu0 %v1308
    %4635 = vmatprep.subr.mxu0 0.0
    %4636 = vmatpush1.msra.mxu0 %v1309
    %4637 = vmatprep.subr.mxu0 0.0
    %4638 = vmatpush1.msra.mxu0 %v1310
    %4639 = vmatprep.subr.mxu0 0.0
    %4640 = vmatpush1.msra.mxu0 %v1311
    %4641 = vmatprep.subr.mxu0 0.0
    %4642 = vmatpush1.msra.mxu0 %v1312
    %4643 = vmatprep.subr.mxu0 0.0
    %4644 = vmatpush1.msra.mxu0 %v1313
    %4645 = vmatprep.subr.mxu0 0.0
    %4646 = vmatpush1.msra.mxu0 %v1314
    %4647 = vmatprep.subr.mxu0 0.0
    %4648 = vmatpush1.msra.mxu0 %v1315
    %4649 = vmatprep.subr.mxu0 0.0
    %4650 = vmatpush1.msra.mxu0 %v1316
    %4651 = vmatprep.subr.mxu0 0.0
    %4652 = vmatpush1.msra.mxu0 %v1317
    %4653 = vmatprep.subr.mxu0 0.0
    %4654 = vmatpush1.msra.mxu0 %v1318
    %4655 = vmatprep.subr.mxu0 0.0
    %4656 = vmatpush1.msra.mxu0 %v1319
    %4657 = vmatprep.subr.mxu0 0.0
    %4658 = vmatpush1.msra.mxu0 %v1320
    %4659 = vmatprep.subr.mxu0 0.0
    %4660 = vmatpush1.msra.mxu0 %v1321
    %4661 = vmatprep.subr.mxu0 0.0
    %4662 = vmatpush1.msra.mxu0 %v1322
    %4663 = vmatprep.subr.mxu0 0.0
    %4664 = vmatpush1.msra.mxu0 %v1323
    %4665 = vmatprep.subr.mxu0 0.0
    %4666 = vmatpush1.msra.mxu0 %v1324
    %4667 = vmatprep.subr.mxu0 0.0
    %4668 = vmatpush1.msra.mxu0 %v1325
    %4669 = vmatprep.subr.mxu0 0.0
    %4670 = vmatpush1.msra.mxu0 %v1326
    %4671 = vmatprep.subr.mxu0 0.0
    %4672 = vmatpush1.msra.mxu0 %v1327
    %4673 = vmatprep.subr.mxu0 0.0
    %4674 = vmatpush1.msra.mxu0 %v1328
    %4675 = vmatprep.mubr.f32.mxu0 %v1769
    %4676 = vmatmul.mubr.f32.gmra.mrb[0].mxu0 %v1767
    %v4677 = vpop.f32.mrb[0].mxu0
    %v4678 = vadd.f32 %v4608, %v4677
    %v4679 = vpop.f32.mrb[0].mxu0
    %4680 = vdwg.mxu0
    %4681 = vmatprep.subr.mxu0 0.0
    %4682 = vmatpush1.msra.mxu0 %v1329
    %4683 = vmatprep.subr.mxu0 0.0
    %4684 = vmatpush1.msra.mxu0 %v1330
    %4685 = vmatprep.subr.mxu0 0.0
    %4686 = vmatpush1.msra.mxu0 %v1331
    %4687 = vmatprep.subr.mxu0 0.0
    %4688 = vmatpush1.msra.mxu0 %v1332
    %4689 = vmatprep.subr.mxu0 0.0
    %4690 = vmatpush1.msra.mxu0 %v1333
    %4691 = vmatprep.subr.mxu0 0.0
    %4692 = vmatpush1.msra.mxu0 %v1334
    %4693 = vmatprep.subr.mxu0 0.0
    %4694 = vmatpush1.msra.mxu0 %v1335
    %4695 = vmatprep.subr.mxu0 0.0
    %4696 = vmatpush1.msra.mxu0 %v1336
    %4697 = vmatprep.subr.mxu0 0.0
    %4698 = vmatpush1.msra.mxu0 %v1337
    %4699 = vmatprep.subr.mxu0 0.0
    %4700 = vmatpush1.msra.mxu0 %v1338
    %4701 = vmatprep.subr.mxu0 0.0
    %4702 = vmatpush1.msra.mxu0 %v1339
    %4703 = vmatprep.subr.mxu0 0.0
    %4704 = vmatpush1.msra.mxu0 %v1340
    %4705 = vmatprep.subr.mxu0 0.0
    %4706 = vmatpush1.msra.mxu0 %v1341
    %4707 = vmatprep.subr.mxu0 0.0
    %4708 = vmatpush1.msra.mxu0 %v1342
    %4709 = vmatprep.subr.mxu0 0.0
    %4710 = vmatpush1.msra.mxu0 %v1343
    %4711 = vmatprep.subr.mxu0 0.0
    %4712 = vmatpush1.msra.mxu0 %v1344
    %4713 = vmatprep.subr.mxu0 0.0
    %4714 = vmatpush1.msra.mxu0 %v1345
    %4715 = vmatprep.subr.mxu0 0.0
    %4716 = vmatpush1.msra.mxu0 %v1346
    %4717 = vmatprep.subr.mxu0 0.0
    %4718 = vmatpush1.msra.mxu0 %v1347
    %4719 = vmatprep.subr.mxu0 0.0
    %4720 = vmatpush1.msra.mxu0 %v1348
    %4721 = vmatprep.subr.mxu0 0.0
    %4722 = vmatpush1.msra.mxu0 %v1349
    %4723 = vmatprep.subr.mxu0 0.0
    %4724 = vmatpush1.msra.mxu0 %v1350
    %4725 = vmatprep.subr.mxu0 0.0
    %4726 = vmatpush1.msra.mxu0 %v1351
    %4727 = vmatprep.subr.mxu0 0.0
    %4728 = vmatpush1.msra.mxu0 %v1352
    %4729 = vmatprep.subr.mxu0 0.0
    %4730 = vmatpush1.msra.mxu0 %v1353
    %4731 = vmatprep.subr.mxu0 0.0
    %4732 = vmatpush1.msra.mxu0 %v1354
    %4733 = vmatprep.subr.mxu0 0.0
    %4734 = vmatpush1.msra.mxu0 %v1355
    %4735 = vmatprep.subr.mxu0 0.0
    %4736 = vmatpush1.msra.mxu0 %v1356
    %4737 = vmatprep.subr.mxu0 0.0
    %4738 = vmatpush1.msra.mxu0 %v1357
    %4739 = vmatprep.subr.mxu0 0.0
    %4740 = vmatpush1.msra.mxu0 %v1358
    %4741 = vmatprep.subr.mxu0 0.0
    %4742 = vmatpush1.msra.mxu0 %v1359
    %4743 = vmatprep.subr.mxu0 0.0
    %4744 = vmatpush1.msra.mxu0 %v1360
    %4745 = vmatprep.mubr.f32.mxu0 %v1785
    %4746 = vmatmul.mubr.f32.gmra.mrb[0].mxu0 %v1777
    %v4747 = vpop.f32.mrb[0].mxu0
    %v4748 = vadd.f32 %v4678, %v4747
    %v4749 = vpop.f32.mrb[0].mxu0
    %4750 = vdwg.mxu0
    %4751 = vmatprep.subr.mxu0 0.0
    %4752 = vmatpush1.msra.mxu0 %v1361
    %4753 = vmatprep.subr.mxu0 0.0
    %4754 = vmatpush1.msra.mxu0 %v1362
    %4755 = vmatprep.subr.mxu0 0.0
    %4756 = vmatpush1.msra.mxu0 %v1363
    %4757 = vmatprep.subr.mxu0 0.0
    %4758 = vmatpush1.msra.mxu0 %v1364
    %4759 = vmatprep.subr.mxu0 0.0
    %4760 = vmatpush1.msra.mxu0 %v1365
    %4761 = vmatprep.subr.mxu0 0.0
    %4762 = vmatpush1.msra.mxu0 %v1366
    %4763 = vmatprep.subr.mxu0 0.0
    %4764 = vmatpush1.msra.mxu0 %v1367
    %4765 = vmatprep.subr.mxu0 0.0
    %4766 = vmatpush1.msra.mxu0 %v1368
    %4767 = vmatprep.subr.mxu0 0.0
    %4768 = vmatpush1.msra.mxu0 %v1369
    %4769 = vmatprep.subr.mxu0 0.0
    %4770 = vmatpush1.msra.mxu0 %v1370
    %4771 = vmatprep.subr.mxu0 0.0
    %4772 = vmatpush1.msra.mxu0 %v1371
    %4773 = vmatprep.subr.mxu0 0.0
    %4774 = vmatpush1.msra.mxu0 %v1372
    %4775 = vmatprep.subr.mxu0 0.0
    %4776 = vmatpush1.msra.mxu0 %v1373
    %4777 = vmatprep.subr.mxu0 0.0
    %4778 = vmatpush1.msra.mxu0 %v1374
    %4779 = vmatprep.subr.mxu0 0.0
    %4780 = vmatpush1.msra.mxu0 %v1375
    %4781 = vmatprep.subr.mxu0 0.0
    %4782 = vmatpush1.msra.mxu0 %v1376
    %4783 = vmatprep.subr.mxu0 0.0
    %4784 = vmatpush1.msra.mxu0 %v1377
    %4785 = vmatprep.subr.mxu0 0.0
    %4786 = vmatpush1.msra.mxu0 %v1378
    %4787 = vmatprep.subr.mxu0 0.0
    %4788 = vmatpush1.msra.mxu0 %v1379
    %4789 = vmatprep.subr.mxu0 0.0
    %4790 = vmatpush1.msra.mxu0 %v1380
    %4791 = vmatprep.subr.mxu0 0.0
    %4792 = vmatpush1.msra.mxu0 %v1381
    %4793 = vmatprep.subr.mxu0 0.0
    %4794 = vmatpush1.msra.mxu0 %v1382
    %4795 = vmatprep.subr.mxu0 0.0
    %4796 = vmatpush1.msra.mxu0 %v1383
    %4797 = vmatprep.subr.mxu0 0.0
    %4798 = vmatpush1.msra.mxu0 %v1384
    %4799 = vmatprep.subr.mxu0 0.0
    %4800 = vmatpush1.msra.mxu0 %v1385
    %4801 = vmatprep.subr.mxu0 0.0
    %4802 = vmatpush1.msra.mxu0 %v1386
    %4803 = vmatprep.subr.mxu0 0.0
    %4804 = vmatpush1.msra.mxu0 %v1387
    %4805 = vmatprep.subr.mxu0 0.0
    %4806 = vmatpush1.msra.mxu0 %v1388
    %4807 = vmatprep.subr.mxu0 0.0
    %4808 = vmatpush1.msra.mxu0 %v1389
    %4809 = vmatprep.subr.mxu0 0.0
    %4810 = vmatpush1.msra.mxu0 %v1390
    %4811 = vmatprep.subr.mxu0 0.0
    %4812 = vmatpush1.msra.mxu0 %v1391
    %4813 = vmatprep.subr.mxu0 0.0
    %4814 = vmatpush1.msra.mxu0 %v1392
    %4815 = vmatprep.mubr.f32.mxu0 %v1786
    %4816 = vmatmul.mubr.f32.gmra.mrb[0].mxu0 %v1784
    %v4817 = vpop.f32.mrb[0].mxu0
    %v4818 = vadd.f32 %v4748, %v4817
    %v4819 = vpop.f32.mrb[0].mxu0
    %4820 = vdwg.mxu0
    %4821 = vmatprep.subr.mxu0 0.0
    %4822 = vmatpush1.msra.mxu0 %v1393
    %4823 = vmatprep.subr.mxu0 0.0
    %4824 = vmatpush1.msra.mxu0 %v1394
    %4825 = vmatprep.subr.mxu0 0.0
    %4826 = vmatpush1.msra.mxu0 %v1395
    %4827 = vmatprep.subr.mxu0 0.0
    %4828 = vmatpush1.msra.mxu0 %v1396
    %4829 = vmatprep.subr.mxu0 0.0
    %4830 = vmatpush1.msra.mxu0 %v1397
    %4831 = vmatprep.subr.mxu0 0.0
    %4832 = vmatpush1.msra.mxu0 %v1398
    %4833 = vmatprep.subr.mxu0 0.0
    %4834 = vmatpush1.msra.mxu0 %v1399
    %4835 = vmatprep.subr.mxu0 0.0
    %4836 = vmatpush1.msra.mxu0 %v1400
    %4837 = vmatprep.subr.mxu0 0.0
    %4838 = vmatpush1.msra.mxu0 0.0
    %4839 = vmatprep.subr.mxu0 0.0
    %4840 = vmatpush1.msra.mxu0 0.0
    %4841 = vmatprep.subr.mxu0 0.0
    %4842 = vmatpush1.msra.mxu0 0.0
    %4843 = vmatprep.subr.mxu0 0.0
    %4844 = vmatpush1.msra.mxu0 0.0
    %4845 = vmatprep.subr.mxu0 0.0
    %4846 = vmatpush1.msra.mxu0 0.0
    %4847 = vmatprep.subr.mxu0 0.0
    %4848 = vmatpush1.msra.mxu0 0.0
    %4849 = vmatprep.subr.mxu0 0.0
    %4850 = vmatpush1.msra.mxu0 0.0
    %4851 = vmatprep.subr.mxu0 0.0
    %4852 = vmatpush1.msra.mxu0 0.0
    %4853 = vmatprep.subr.mxu0 0.0
    %4854 = vmatpush1.msra.mxu0 0.0
    %4855 = vmatprep.subr.mxu0 0.0
    %4856 = vmatpush1.msra.mxu0 0.0
    %4857 = vmatprep.subr.mxu0 0.0
    %4858 = vmatpush1.msra.mxu0 0.0
    %4859 = vmatprep.subr.mxu0 0.0
    %4860 = vmatpush1.msra.mxu0 0.0
    %4861 = vmatprep.subr.mxu0 0.0
    %4862 = vmatpush1.msra.mxu0 0.0
    %4863 = vmatprep.subr.mxu0 0.0
    %4864 = vmatpush1.msra.mxu0 0.0
    %4865 = vmatprep.subr.mxu0 0.0
    %4866 = vmatpush1.msra.mxu0 0.0
    %4867 = vmatprep.subr.mxu0 0.0
    %4868 = vmatpush1.msra.mxu0 0.0
    %4869 = vmatprep.subr.mxu0 0.0
    %4870 = vmatpush1.msra.mxu0 0.0
    %4871 = vmatprep.subr.mxu0 0.0
    %4872 = vmatpush1.msra.mxu0 0.0
    %4873 = vmatprep.subr.mxu0 0.0
    %4874 = vmatpush1.msra.mxu0 0.0
    %4875 = vmatprep.subr.mxu0 0.0
    %4876 = vmatpush1.msra.mxu0 0.0
    %4877 = vmatprep.subr.mxu0 0.0
    %4878 = vmatpush1.msra.mxu0 0.0
    %4879 = vmatprep.subr.mxu0 0.0
    %4880 = vmatpush1.msra.mxu0 0.0
    %4881 = vmatprep.subr.mxu0 0.0
    %4882 = vmatpush1.msra.mxu0 0.0
    %4883 = vmatprep.subr.mxu0 0.0
    %4884 = vmatpush1.msra.mxu0 0.0
    %4885 = vmatprep.mubr.f32.mxu0 0.0
    %4886 = vmatmul.mubr.f32.gmra.mrb[0].mxu0 %v1879
    %v4887 = vpop.f32.mrb[0].mxu0
    %v4888 = vadd.f32 %v4818, %v4887
    %v4889 = vpop.f32.mrb[0].mxu0
    %4890 = vdwg.mxu0
    %v4891 = vmax.f32 %v4888, 0.0
    %v4892 = vld [vmem:[%s3] sm:$0xff]
    %v4893 = vld [vmem:[%s3 + $0x8] sm:$0xff]
    %v4894 = vld [vmem:[%s3 + $0x10] sm:$0xff]
    %v4895 = vld [vmem:[%s3 + $0x18] sm:$0xff]
    %v4896 = vld [vmem:[%s3 + $0x20] sm:$0xff]
    %v4897 = vld [vmem:[%s3 + $0x28] sm:$0xff]
    %v4898 = vld [vmem:[%s3 + $0x30] sm:$0xff]
    %v4899 = vld [vmem:[%s3 + $0x38] sm:$0xff]
    %v4900 = vld [vmem:[%s3 + $0x40] sm:$0xff]
    %v4901 = vld [vmem:[%s3 + $0x48] sm:$0xff]
    %v4902 = vld [vmem:[%s3 + $0x50] sm:$0xff]
    %v4903 = vld [vmem:[%s3 + $0x58] sm:$0xff]
    %v4904 = vld [vmem:[%s3 + $0x60] sm:$0xff]
    %v4905 = vld [vmem:[%s3 + $0x68] sm:$0xff]
    %v4906 = vld [vmem:[%s3 + $0x70] sm:$0xff]
    %v4907 = vld [vmem:[%s4] sm:$0x1]
    %v4909 = vlaneseq
    %v4910 = vshrl.u32 %v4909, 7
    %v4911 = vsub.s32 0, %v4910
    %v4912 = vrot.slane %v4907, %v4911
    %vm4914 = vcmask 982016
    %v4916 = vsel %vm4914, %v4891, 0
    %4918 = vmatprep.subr.mxu0 0.0
    %4919 = vmatpush1.msra.mxu0 %v4892
    %4920 = vmatprep.subr.mxu0 0.0
    %4921 = vmatpush1.msra.mxu0 %v4893
    %4922 = vmatprep.subr.mxu0 0.0
    %4923 = vmatpush1.msra.mxu0 %v4894
    %4924 = vmatprep.subr.mxu0 0.0
    %4925 = vmatpush1.msra.mxu0 %v4895
    %4926 = vmatprep.subr.mxu0 0.0
    %4927 = vmatpush1.msra.mxu0 %v4896
    %4928 = vmatprep.subr.mxu0 0.0
    %4929 = vmatpush1.msra.mxu0 %v4897
    %4930 = vmatprep.subr.mxu0 0.0
    %4931 = vmatpush1.msra.mxu0 %v4898
    %4932 = vmatprep.subr.mxu0 0.0
    %4933 = vmatpush1.msra.mxu0 %v4899
    %4934 = vmatprep.subr.mxu0 0.0
    %4935 = vmatpush1.msra.mxu0 %v4900
    %4936 = vmatprep.subr.mxu0 0.0
    %4937 = vmatpush1.msra.mxu0 %v4901
    %4938 = vmatprep.subr.mxu0 0.0
    %4939 = vmatpush1.msra.mxu0 %v4902
    %4940 = vmatprep.subr.mxu0 0.0
    %4941 = vmatpush1.msra.mxu0 %v4903
    %4942 = vmatprep.subr.mxu0 0.0
    %4943 = vmatpush1.msra.mxu0 %v4904
    %4944 = vmatprep.subr.mxu0 0.0
    %4945 = vmatpush1.msra.mxu0 %v4905
    %4946 = vmatprep.subr.mxu0 0.0
    %4947 = vmatpush1.msra.mxu0 %v4906
    %4948 = vmatprep.subr.mxu0 0.0
    %4949 = vmatpush1.msra.mxu0 0.0
    %4950 = vmatprep.subr.mxu0 0.0
    %4951 = vmatpush1.msra.mxu0 0.0
    %4952 = vmatprep.subr.mxu0 0.0
    %4953 = vmatpush1.msra.mxu0 0.0
    %4954 = vmatprep.subr.mxu0 0.0
    %4955 = vmatpush1.msra.mxu0 0.0
    %4956 = vmatprep.subr.mxu0 0.0
    %4957 = vmatpush1.msra.mxu0 0.0
    %4958 = vmatprep.subr.mxu0 0.0
    %4959 = vmatpush1.msra.mxu0 0.0
    %4960 = vmatprep.subr.mxu0 0.0
    %4961 = vmatpush1.msra.mxu0 0.0
    %4962 = vmatprep.subr.mxu0 0.0
    %4963 = vmatpush1.msra.mxu0 0.0
    %4964 = vmatprep.subr.mxu0 0.0
    %4965 = vmatpush1.msra.mxu0 0.0
    %4966 = vmatprep.subr.mxu0 0.0
    %4967 = vmatpush1.msra.mxu0 0.0
    %4968 = vmatprep.subr.mxu0 0.0
    %4969 = vmatpush1.msra.mxu0 0.0
    %4970 = vmatprep.subr.mxu0 0.0
    %4971 = vmatpush1.msra.mxu0 0.0
    %4972 = vmatprep.subr.mxu0 0.0
    %4973 = vmatpush1.msra.mxu0 0.0
    %4974 = vmatprep.subr.mxu0 0.0
    %4975 = vmatpush1.msra.mxu0 0.0
    %4976 = vmatprep.subr.mxu0 0.0
    %4977 = vmatpush1.msra.mxu0 0.0
    %4978 = vmatprep.subr.mxu0 0.0
    %4979 = vmatpush1.msra.mxu0 0.0
    %4980 = vmatprep.subr.mxu0 0.0
    %4981 = vmatpush1.msra.mxu0 0.0
    %4982 = vmatprep.mubr.f32.mxu0 0.0
    %4983 = vmatmul.mubr.f32.gmra.mrb[0].mxu0 %v4916
    %v4984 = vpop.f32.mrb[0].mxu0
    %v4985 = vadd.f32 %v4912, %v4984
    %v4986 = vpop.f32.mrb[0].mxu0
    %4987 = vdwg.mxu0
    %v4988 = vmax.f32 %v4985, 0.0
    %v4989 = vld [vmem:[%s5] sm:$0xff]
    %v4990 = vld [vmem:[%s5 + $0x8] sm:$0xff]
    %v4991 = vld [vmem:[%s5 + $0x10] sm:$0xff]
    %v4992 = vld [vmem:[%s5 + $0x18] sm:$0xff]
    %v4993 = vld [vmem:[%s5 + $0x20] sm:$0xff]
    %v4994 = vld [vmem:[%s5 + $0x28] sm:$0xff]
    %v4995 = vld [vmem:[%s5 + $0x30] sm:$0xff]
    %v4996 = vld [vmem:[%s5 + $0x38] sm:$0xff]
    %v4997 = vld [vmem:[%s5 + $0x40] sm:$0xff]
    %v4998 = vld [vmem:[%s5 + $0x48] sm:$0xff]
    %v4999 = vld [vmem:[%s5 + $0x50] sm:$0xf]
    %v5000 = vld [vmem:[%s6] sm:$0x1]
    %v5002 = vlaneseq
    %v5003 = vshrl.u32 %v5002, 7
    %v5004 = vsub.s32 0, %v5003
    %v5005 = vrot.slane %v5000, %v5004
    %vm5007 = vcmask 687104
    %v5009 = vsel %vm5007, %v4988, 0
    %vm5011 = vcmask 1043456
    %v5013 = vsel %vm5011, %v4999, 0
    %5015 = vmatprep.subr.mxu0 0.0
    %5016 = vmatpush1.msra.mxu0 %v4989
    %5017 = vmatprep.subr.mxu0 0.0
    %5018 = vmatpush1.msra.mxu0 %v4990
    %5019 = vmatprep.subr.mxu0 0.0
    %5020 = vmatpush1.msra.mxu0 %v4991
    %5021 = vmatprep.subr.mxu0 0.0
    %5022 = vmatpush1.msra.mxu0 %v4992
    %5023 = vmatprep.subr.mxu0 0.0
    %5024 = vmatpush1.msra.mxu0 %v4993
    %5025 = vmatprep.subr.mxu0 0.0
    %5026 = vmatpush1.msra.mxu0 %v4994
    %5027 = vmatprep.subr.mxu0 0.0
    %5028 = vmatpush1.msra.mxu0 %v4995
    %5029 = vmatprep.subr.mxu0 0.0
    %5030 = vmatpush1.msra.mxu0 %v4996
    %5031 = vmatprep.subr.mxu0 0.0
    %5032 = vmatpush1.msra.mxu0 %v4997
    %5033 = vmatprep.subr.mxu0 0.0
    %5034 = vmatpush1.msra.mxu0 %v4998
    %5035 = vmatprep.subr.mxu0 0.0
    %5036 = vmatpush1.msra.mxu0 %v5013
    %5037 = vmatprep.subr.mxu0 0.0
    %5038 = vmatpush1.msra.mxu0 0.0
    %5039 = vmatprep.subr.mxu0 0.0
    %5040 = vmatpush1.msra.mxu0 0.0
    %5041 = vmatprep.subr.mxu0 0.0
    %5042 = vmatpush1.msra.mxu0 0.0
    %5043 = vmatprep.subr.mxu0 0.0
    %5044 = vmatpush1.msra.mxu0 0.0
    %5045 = vmatprep.subr.mxu0 0.0
    %5046 = vmatpush1.msra.mxu0 0.0
    %5047 = vmatprep.subr.mxu0 0.0
    %5048 = vmatpush1.msra.mxu0 0.0
    %5049 = vmatprep.subr.mxu0 0.0
    %5050 = vmatpush1.msra.mxu0 0.0
    %5051 = vmatprep.subr.mxu0 0.0
    %5052 = vmatpush1.msra.mxu0 0.0
    %5053 = vmatprep.subr.mxu0 0.0
    %5054 = vmatpush1.msra.mxu0 0.0
    %5055 = vmatprep.subr.mxu0 0.0
    %5056 = vmatpush1.msra.mxu0 0.0
    %5057 = vmatprep.subr.mxu0 0.0
    %5058 = vmatpush1.msra.mxu0 0.0
    %5059 = vmatprep.subr.mxu0 0.0
    %5060 = vmatpush1.msra.mxu0 0.0
    %5061 = vmatprep.subr.mxu0 0.0
    %5062 = vmatpush1.msra.mxu0 0.0
    %5063 = vmatprep.subr.mxu0 0.0
    %5064 = vmatpush1.msra.mxu0 0.0
    %5065 = vmatprep.subr.mxu0 0.0
    %5066 = vmatpush1.msra.mxu0 0.0
    %5067 = vmatprep.subr.mxu0 0.0
    %5068 = vmatpush1.msra.mxu0 0.0
    %5069 = vmatprep.subr.mxu0 0.0
    %5070 = vmatpush1.msra.mxu0 0.0
    %5071 = vmatprep.subr.mxu0 0.0
    %5072 = vmatpush1.msra.mxu0 0.0
    %5073 = vmatprep.subr.mxu0 0.0
    %5074 = vmatpush1.msra.mxu0 0.0
    %5075 = vmatprep.subr.mxu0 0.0
    %5076 = vmatpush1.msra.mxu0 0.0
    %5077 = vmatprep.subr.mxu0 0.0
    %5078 = vmatpush1.msra.mxu0 0.0
    %5079 = vmatprep.mubr.f32.mxu0 0.0
    %5080 = vmatmul.mubr.f32.gmra.mrb[0].mxu0 %v5009
    %v5081 = vpop.f32.mrb[0].mxu0
    %v5082 = vadd.f32 %v5005, %v5081
    %v5083 = vpop.f32.mrb[0].mxu0
    %5084 = vdwg.mxu0
    %vm5085 = vcmask 164864
    %5086 = vst.msk [vmem:[#allocation2] sm:$0x3] %vm5085, %v5082
    // Predicated region
    $region30: #{simple_classifier_forward.7} parent=1 // pred_check
      _
    $region31: #{simple_classifier_forward.7} parent=1 // pred_check_branch
      %5088 = sbr.rel (0) target = $region33
    $region32: #{simple_classifier_forward.7} parent=1 // pred_region
      %s5090 = ssub.s32 32, 32
      %5091 = vsyncadd [#allocation3], %s5090
      %s5093 = sshll.u32 [#allocation2], 4
      %s5094 = int_to_ptr.vmem [resolvable:$true] %s5093
      %5096 = dma.vmem_to_hbm [thread:$0]  %s5094, 32, %s7, [#allocation3]
    $region33: #{simple_classifier_forward.7} parent=1 // pred_fallthru
      _
    // Predicated region
    $region34: #{simple_classifier_forward.7} parent=1 // pred_check
      _
    $region35: #{simple_classifier_forward.7} parent=1 // pred_check_branch
      %5098 = sbr.rel (0) target = $region37
    $region36: #{simple_classifier_forward.7} parent=1 // pred_region
      %5099 = dma.done [#allocation3], 32
    $region37: #{simple_classifier_forward.7} parent=1 // pred_fallthru
      _
    %5100 = vsyncpa [#allocation3], 1

</llo_original>
